<compile_context>
chip_gen: v7x
topology: tpu7x:2x2x1
jax: 0.10.0
libtpu: 0.0.40
codegen_flags: <defaults>
</compile_context>

<pallas_src>
import functools

import jax
import jax.numpy as jnp
from jax.experimental import pallas as pl
from jax.experimental.pallas import tpu as pltpu

INPUT_N = 3
H_N = 20
N_LAYERS = 10      # 10 linears total: 3->20, 8 x (20->20), 20->1
N_HIDDEN = 8       # the eight (20,20) hidden linears (each followed by swish)


def _swish(x):
    # x * sigmoid(x) == t*tanh(t) + t with t = 0.5*x  (exact identity; one EUP
    # tanh per element and minimal VALU work, no divide, no +1 constant splat).
    t = 0.5 * x
    return t * jnp.tanh(t) + t


def pinn_w_kernel(x_ref, w0_ref, b0_ref, w_ref, b_ref, wl_ref, bl_ref, out_ref,
                  *, act_dtype):
    # x_ref : (3, TM)       input rows, feature-major, f32
    # w0_ref: (20, 3)       first-layer weight (torch layout: out x in), f32
    # b0_ref: (20, 1)       f32
    # w_ref : (8, 20, 20)   hidden weights, bf16 (MXU operands)
    # b_ref : (8, 20, 1)    f32
    # wl_ref: (20, 1)       last-layer weight (transposed), f32
    # bl_ref: (1, 1)        f32
    # out_ref: (1, TM)      lane-dense output tile, f32
    x = x_ref[...]
    w0 = w0_ref[...]

    # Layer 0: K = 3 matmul replaced by broadcast FMAs on the VPU (f32).
    z = (w0[:, 0:1] * x[0:1, :]
         + w0[:, 1:2] * x[1:2, :]
         + w0[:, 2:3] * x[2:3, :]
         + b0_ref[...])
    h = _swish(z).astype(act_dtype)

    # Hidden layers: (20,20) bf16 @ (20,TM) bf16 on the MXU, f32 accumulation.
    for l in range(N_HIDDEN):
        z = jnp.dot(w_ref[l], h.astype(jnp.bfloat16),
                    preferred_element_type=jnp.float32)
        z = (z + b_ref[l]).astype(act_dtype)
        h = _swish(z)

    # Output layer (20 -> 1, no swish): masked sublane reduce in f32.
    hf = h.astype(jnp.float32)
    out = jnp.sum(wl_ref[...] * hf, axis=0, keepdims=True) + bl_ref[...]
    out_ref[...] = out


def init_params(key):
    """Synthetic nn.Linear-style parameters in torch layout: W (out,in), b (out,)."""
    dims = [INPUT_N] + [H_N] * (N_LAYERS - 1) + [1]
    params = []
    for i in range(N_LAYERS):
        fan_in, fan_out = dims[i], dims[i + 1]
        key, kw, kb = jax.random.split(key, 3)
        bound = fan_in ** -0.5
        w = jax.random.uniform(kw, (fan_out, fan_in), jnp.float32, -bound, bound)
        b = jax.random.uniform(kb, (fan_out,), jnp.float32, -bound, bound)
        params.append((w, b))
    return params


def pack_params(params):
    """Pack torch-layout params into the kernel's resident arrays."""
    w0, b0 = params[0]                                         # (20,3), (20,)
    hidden = params[1:-1]                                      # 8 x ((20,20), (20,))
    wstack = jnp.stack([w for w, _ in hidden]).astype(jnp.bfloat16)        # (8,20,20)
    bstack = jnp.stack([b for _, b in hidden])[..., None].astype(jnp.float32)  # (8,20,1)
    wl, bl = params[-1]                                        # (1,20), (1,)
    return (w0.astype(jnp.float32),
            b0[:, None].astype(jnp.float32),
            wstack,
            bstack,
            wl.T.astype(jnp.float32),                          # (20,1)
            bl.reshape(1, 1).astype(jnp.float32))


def _bf16_activations_ok():
    """bf16 VPU/EUP exists on v6e/v7x; keep activations f32 elsewhere (v5e...)."""
    try:
        kind = jax.devices()[0].device_kind.lower()
    except Exception:
        return False
    return any(tag in kind for tag in ("v6", "v7", "7x", "trillium"))


def _choose_tm(n):
    """Row-tile size: as large as useful (<=8192) but keep >= 2 grid steps."""
    tm = -(-n // 2)                  # ceil(n/2) -> grid >= 2 whenever n > 128
    tm = -(-tm // 128) * 128         # lane-multiple
    return int(max(128, min(8192, tm)))


@functools.partial(jax.jit, static_argnames=("tm", "bf16_act"))
def _pinn_w_forward(x, w0, b0, wstack, bstack, wlast, blast, *, tm, bf16_act):
    """x: (N, 3) float32 -> (N, 1) float32."""
    n = x.shape[0]
    n_pad = pl.cdiv(n, tm) * tm
    # Feature-major layout; zero-pad the batch so the grid divides evenly.
    # TODO(synk): for very large collocation sets, feed x feature-major upstream
    # to avoid this extra HBM pass.
    xt = jnp.pad(x.astype(jnp.float32), ((0, n_pad - n), (0, 0))).T   # (3, n_pad)

    act_dtype = jnp.bfloat16 if bf16_act else jnp.float32
    kernel = functools.partial(pinn_w_kernel, act_dtype=act_dtype)

    out = pl.pallas_call(
        kernel,
        out_shape=jax.ShapeDtypeStruct((1, n_pad), jnp.float32),
        grid_spec=pltpu.PrefetchScalarGridSpec(
            num_scalar_prefetch=0,
            grid=(n_pad // tm,),
            in_specs=[
                pl.BlockSpec((INPUT_N, tm), lambda i: (0, i)),
                pl.BlockSpec((H_N, INPUT_N), lambda i: (0, 0)),
                pl.BlockSpec((H_N, 1), lambda i: (0, 0)),
                pl.BlockSpec((N_HIDDEN, H_N, H_N), lambda i: (0, 0, 0)),
                pl.BlockSpec((N_HIDDEN, H_N, 1), lambda i: (0, 0, 0)),
                pl.BlockSpec((H_N, 1), lambda i: (0, 0)),
                pl.BlockSpec((1, 1), lambda i: (0, 0)),
            ],
            out_specs=pl.BlockSpec((1, tm), lambda i: (0, i)),
        ),
        compiler_params=pltpu.CompilerParams(
            dimension_semantics=("parallel",),  # v7x shards grid steps over 2 TCs
        ),
    )(xt, w0, b0, wstack, bstack, wlast, blast)
    return out[0, :n, None]


def pinn_w_forward(x, packed, tm=None, bf16_act=None):
    if tm is None:
        tm = _choose_tm(x.shape[0])
    if bf16_act is None:
        bf16_act = _bf16_activations_ok()
    return _pinn_w_forward(x, *packed, tm=tm, bf16_act=bool(bf16_act))


def reference_forward_f32(x, params):
    """Pure-f32 reference identical to the torch module."""
    h = x
    for i, (w, b) in enumerate(params):
        h = h @ w.T + b
        if i < len(params) - 1:
            h = h * jax.nn.sigmoid(h)
    return h


def reference_forward_matched(x, params, bf16_act):
    """Reference that mirrors the kernel's precision policy (bf16 operands, f32 acc)."""
    act = jnp.bfloat16 if bf16_act else jnp.float32
    w0, b0 = params[0]
    h = _swish(x @ w0.T + b0).astype(act)
    for w, b in params[1:-1]:
        z = jnp.dot(h.astype(jnp.bfloat16), w.T.astype(jnp.bfloat16),
                    preferred_element_type=jnp.float32) + b
        h = _swish(z.astype(act))
    wl, bl = params[-1]
    return h.astype(jnp.float32) @ wl.T + bl


if __name__ == "__main__":
    key = jax.random.PRNGKey(0)
    key, kx = jax.random.split(key)

    # Point cloud consistent with the module's (n_points, 3) input.
    n_points = 4000  # deliberately not a multiple of the tile (exercises padding)
    lb = jnp.array([-7.5, 0.0, -7.5], jnp.float32)
    ub = jnp.array([15.0, 7.7, 7.5], jnp.float32)
    x = jax.random.uniform(kx, (n_points, INPUT_N), jnp.float32) * (ub - lb) + lb

    params = init_params(key)
    packed = pack_params(params)
    bf16_act = _bf16_activations_ok()

    out = pinn_w_forward(x, packed, bf16_act=bf16_act)
    out = jax.block_until_ready(out)
    assert out.shape == (n_points, 1)

    # Tight check vs a precision-matched reference (same bf16/f32 policy).
    ref_m = reference_forward_matched(x, params, bf16_act)
    err_m = float(jnp.max(jnp.abs(out - ref_m)))
    assert jnp.allclose(out, ref_m, atol=3e-2, rtol=3e-2), (
        f"mismatch vs precision-matched reference: max abs err {err_m}")

    # Loose sanity check vs the pure-f32 torch-equivalent reference.
    ref_f = reference_forward_f32(x, params)
    err_f = float(jnp.max(jnp.abs(out - ref_f)))
    assert jnp.allclose(out, ref_f, atol=0.15, rtol=0.15), (
        f"mismatch vs f32 reference: max abs err {err_f}")

    print("KERNEL_OK")
</pallas_src>

<mosaic_0001>
module attributes {stable_mosaic.version = 11 : i64} {
  func.func @pinn_w_kernel(%arg0: i32, %arg1: memref<3x2048xf32, #tpu.memory_space<vmem>>, %arg2: memref<20x3xf32, #tpu.memory_space<vmem>>, %arg3: memref<20x1xf32, #tpu.memory_space<vmem>>, %arg4: memref<8x20x20xbf16, #tpu.memory_space<vmem>>, %arg5: memref<8x20x1xf32, #tpu.memory_space<vmem>>, %arg6: memref<20x1xf32, #tpu.memory_space<vmem>>, %arg7: memref<1x1xf32, #tpu.memory_space<vmem>>, %arg8: memref<1x2048xf32, #tpu.memory_space<vmem>>) attributes {dimension_semantics = [#tpu.dimension_semantics<parallel>], iteration_bounds = array<i64: 2>, scalar_prefetch = 0 : i64, scratch_operands = 0 : i64, tpu.core_type = #tpu.core_type<tc>, window_params = [{transform_indices = @transform_0, window_bounds = array<i64: 3, 2048>}, {pipeline_mode = #tpu.pipeline_mode<synchronous>, transform_indices = @transform_1, window_bounds = array<i64: 20, 3>}, {pipeline_mode = #tpu.pipeline_mode<synchronous>, transform_indices = @transform_2, window_bounds = array<i64: 20, 1>}, {pipeline_mode = #tpu.pipeline_mode<synchronous>, transform_indices = @transform_3, window_bounds = array<i64: 8, 20, 20>}, {pipeline_mode = #tpu.pipeline_mode<synchronous>, transform_indices = @transform_4, window_bounds = array<i64: 8, 20, 1>}, {pipeline_mode = #tpu.pipeline_mode<synchronous>, transform_indices = @transform_5, window_bounds = array<i64: 20, 1>}, {pipeline_mode = #tpu.pipeline_mode<synchronous>, transform_indices = @transform_6, window_bounds = array<i64: 1, 1>}, {transform_indices = @transform_7, window_bounds = array<i64: 1, 2048>}]} {
    %c0 = arith.constant 0 : index
    %c0_0 = arith.constant 0 : index
    %0 = vector.load %arg1[%c0, %c0_0] : memref<3x2048xf32, #tpu.memory_space<vmem>>, vector<3x2048xf32>
    %c0_1 = arith.constant 0 : index
    %c0_2 = arith.constant 0 : index
    %1 = vector.load %arg2[%c0_1, %c0_2] : memref<20x3xf32, #tpu.memory_space<vmem>>, vector<20x3xf32>
    %2 = vector.extract_strided_slice %1 {offsets = [0, 0], sizes = [20, 1], strides = [1, 1]} : vector<20x3xf32> to vector<20x1xf32>
    %3 = vector.extract_strided_slice %0 {offsets = [0, 0], sizes = [1, 2048], strides = [1, 1]} : vector<3x2048xf32> to vector<1x2048xf32>
    %4 = vector.broadcast %2 : vector<20x1xf32> to vector<20x2048xf32>
    %5 = vector.broadcast %3 : vector<1x2048xf32> to vector<20x2048xf32>
    %6 = arith.mulf %4, %5 : vector<20x2048xf32>
    %7 = vector.extract_strided_slice %1 {offsets = [0, 1], sizes = [20, 1], strides = [1, 1]} : vector<20x3xf32> to vector<20x1xf32>
    %8 = vector.extract_strided_slice %0 {offsets = [1, 0], sizes = [1, 2048], strides = [1, 1]} : vector<3x2048xf32> to vector<1x2048xf32>
    %9 = vector.broadcast %7 : vector<20x1xf32> to vector<20x2048xf32>
    %10 = vector.broadcast %8 : vector<1x2048xf32> to vector<20x2048xf32>
    %11 = arith.mulf %9, %10 : vector<20x2048xf32>
    %12 = arith.addf %6, %11 : vector<20x2048xf32>
    %13 = vector.extract_strided_slice %1 {offsets = [0, 2], sizes = [20, 1], strides = [1, 1]} : vector<20x3xf32> to vector<20x1xf32>
    %14 = vector.extract_strided_slice %0 {offsets = [2, 0], sizes = [1, 2048], strides = [1, 1]} : vector<3x2048xf32> to vector<1x2048xf32>
    %15 = vector.broadcast %13 : vector<20x1xf32> to vector<20x2048xf32>
    %16 = vector.broadcast %14 : vector<1x2048xf32> to vector<20x2048xf32>
    %17 = arith.mulf %15, %16 : vector<20x2048xf32>
    %18 = arith.addf %12, %17 : vector<20x2048xf32>
    %c0_3 = arith.constant 0 : index
    %c0_4 = arith.constant 0 : index
    %19 = vector.load %arg3[%c0_3, %c0_4] : memref<20x1xf32, #tpu.memory_space<vmem>>, vector<20x1xf32>
    %20 = vector.broadcast %19 : vector<20x1xf32> to vector<20x2048xf32>
    %21 = arith.addf %18, %20 : vector<20x2048xf32>
    %cst = arith.constant 5.000000e-01 : f32
    %22 = vector.broadcast %cst : f32 to vector<20x2048xf32>
    %23 = arith.mulf %22, %21 : vector<20x2048xf32>
    %24 = math.tanh %23 : vector<20x2048xf32>
    %25 = arith.mulf %23, %24 : vector<20x2048xf32>
    %26 = arith.addf %25, %23 : vector<20x2048xf32>
    %c0_5 = arith.constant 0 : index
    %c0_6 = arith.constant 0 : index
    %c0_7 = arith.constant 0 : index
    %27 = vector.load %arg4[%c0_5, %c0_6, %c0_7] : memref<8x20x20xbf16, #tpu.memory_space<vmem>>, vector<1x20x20xbf16>
    %28 = vector.shape_cast %27 : vector<1x20x20xbf16> to vector<20x20xbf16>
    %29 = arith.truncf %26 : vector<20x2048xf32> to vector<20x2048xbf16>
    %cst_8 = arith.constant dense<0.000000e+00> : vector<20x2048xf32>
    %30 = tpu.matmul %28, %29, %cst_8 {dimension_numbers = #tpu.dot_dimension_numbers<[1], [0], [0], [1], [0, 0, 1, 1], [], []>} : vector<20x20xbf16>, vector<20x2048xbf16>, vector<20x2048xf32> -> vector<20x2048xf32>
    %c0_9 = arith.constant 0 : index
    %c0_10 = arith.constant 0 : index
    %c0_11 = arith.constant 0 : index
    %31 = vector.load %arg5[%c0_9, %c0_10, %c0_11] : memref<8x20x1xf32, #tpu.memory_space<vmem>>, vector<1x20x1xf32>
    %32 = vector.shape_cast %31 : vector<1x20x1xf32> to vector<20x1xf32>
    %33 = vector.broadcast %32 : vector<20x1xf32> to vector<20x2048xf32>
    %34 = arith.addf %30, %33 : vector<20x2048xf32>
    %cst_12 = arith.constant 5.000000e-01 : f32
    %35 = vector.broadcast %cst_12 : f32 to vector<20x2048xf32>
    %36 = arith.mulf %35, %34 : vector<20x2048xf32>
    %37 = math.tanh %36 : vector<20x2048xf32>
    %38 = arith.mulf %36, %37 : vector<20x2048xf32>
    %39 = arith.addf %38, %36 : vector<20x2048xf32>
    %c1 = arith.constant 1 : index
    %c0_13 = arith.constant 0 : index
    %c0_14 = arith.constant 0 : index
    %40 = vector.load %arg4[%c1, %c0_13, %c0_14] : memref<8x20x20xbf16, #tpu.memory_space<vmem>>, vector<1x20x20xbf16>
    %41 = vector.shape_cast %40 : vector<1x20x20xbf16> to vector<20x20xbf16>
    %42 = arith.truncf %39 : vector<20x2048xf32> to vector<20x2048xbf16>
    %cst_15 = arith.constant dense<0.000000e+00> : vector<20x2048xf32>
    %43 = tpu.matmul %41, %42, %cst_15 {dimension_numbers = #tpu.dot_dimension_numbers<[1], [0], [0], [1], [0, 0, 1, 1], [], []>} : vector<20x20xbf16>, vector<20x2048xbf16>, vector<20x2048xf32> -> vector<20x2048xf32>
    %c1_16 = arith.constant 1 : index
    %c0_17 = arith.constant 0 : index
    %c0_18 = arith.constant 0 : index
    %44 = vector.load %arg5[%c1_16, %c0_17, %c0_18] : memref<8x20x1xf32, #tpu.memory_space<vmem>>, vector<1x20x1xf32>
    %45 = vector.shape_cast %44 : vector<1x20x1xf32> to vector<20x1xf32>
    %46 = vector.broadcast %45 : vector<20x1xf32> to vector<20x2048xf32>
    %47 = arith.addf %43, %46 : vector<20x2048xf32>
    %cst_19 = arith.constant 5.000000e-01 : f32
    %48 = vector.broadcast %cst_19 : f32 to vector<20x2048xf32>
    %49 = arith.mulf %48, %47 : vector<20x2048xf32>
    %50 = math.tanh %49 : vector<20x2048xf32>
    %51 = arith.mulf %49, %50 : vector<20x2048xf32>
    %52 = arith.addf %51, %49 : vector<20x2048xf32>
    %c2 = arith.constant 2 : index
    %c0_20 = arith.constant 0 : index
    %c0_21 = arith.constant 0 : index
    %53 = vector.load %arg4[%c2, %c0_20, %c0_21] : memref<8x20x20xbf16, #tpu.memory_space<vmem>>, vector<1x20x20xbf16>
    %54 = vector.shape_cast %53 : vector<1x20x20xbf16> to vector<20x20xbf16>
    %55 = arith.truncf %52 : vector<20x2048xf32> to vector<20x2048xbf16>
    %cst_22 = arith.constant dense<0.000000e+00> : vector<20x2048xf32>
    %56 = tpu.matmul %54, %55, %cst_22 {dimension_numbers = #tpu.dot_dimension_numbers<[1], [0], [0], [1], [0, 0, 1, 1], [], []>} : vector<20x20xbf16>, vector<20x2048xbf16>, vector<20x2048xf32> -> vector<20x2048xf32>
    %c2_23 = arith.constant 2 : index
    %c0_24 = arith.constant 0 : index
    %c0_25 = arith.constant 0 : index
    %57 = vector.load %arg5[%c2_23, %c0_24, %c0_25] : memref<8x20x1xf32, #tpu.memory_space<vmem>>, vector<1x20x1xf32>
    %58 = vector.shape_cast %57 : vector<1x20x1xf32> to vector<20x1xf32>
    %59 = vector.broadcast %58 : vector<20x1xf32> to vector<20x2048xf32>
    %60 = arith.addf %56, %59 : vector<20x2048xf32>
    %cst_26 = arith.constant 5.000000e-01 : f32
    %61 = vector.broadcast %cst_26 : f32 to vector<20x2048xf32>
    %62 = arith.mulf %61, %60 : vector<20x2048xf32>
    %63 = math.tanh %62 : vector<20x2048xf32>
    %64 = arith.mulf %62, %63 : vector<20x2048xf32>
    %65 = arith.addf %64, %62 : vector<20x2048xf32>
    %c3 = arith.constant 3 : index
    %c0_27 = arith.constant 0 : index
    %c0_28 = arith.constant 0 : index
    %66 = vector.load %arg4[%c3, %c0_27, %c0_28] : memref<8x20x20xbf16, #tpu.memory_space<vmem>>, vector<1x20x20xbf16>
    %67 = vector.shape_cast %66 : vector<1x20x20xbf16> to vector<20x20xbf16>
    %68 = arith.truncf %65 : vector<20x2048xf32> to vector<20x2048xbf16>
    %cst_29 = arith.constant dense<0.000000e+00> : vector<20x2048xf32>
    %69 = tpu.matmul %67, %68, %cst_29 {dimension_numbers = #tpu.dot_dimension_numbers<[1], [0], [0], [1], [0, 0, 1, 1], [], []>} : vector<20x20xbf16>, vector<20x2048xbf16>, vector<20x2048xf32> -> vector<20x2048xf32>
    %c3_30 = arith.constant 3 : index
    %c0_31 = arith.constant 0 : index
    %c0_32 = arith.constant 0 : index
    %70 = vector.load %arg5[%c3_30, %c0_31, %c0_32] : memref<8x20x1xf32, #tpu.memory_space<vmem>>, vector<1x20x1xf32>
    %71 = vector.shape_cast %70 : vector<1x20x1xf32> to vector<20x1xf32>
    %72 = vector.broadcast %71 : vector<20x1xf32> to vector<20x2048xf32>
    %73 = arith.addf %69, %72 : vector<20x2048xf32>
    %cst_33 = arith.constant 5.000000e-01 : f32
    %74 = vector.broadcast %cst_33 : f32 to vector<20x2048xf32>
    %75 = arith.mulf %74, %73 : vector<20x2048xf32>
    %76 = math.tanh %75 : vector<20x2048xf32>
    %77 = arith.mulf %75, %76 : vector<20x2048xf32>
    %78 = arith.addf %77, %75 : vector<20x2048xf32>
    %c4 = arith.constant 4 : index
    %c0_34 = arith.constant 0 : index
    %c0_35 = arith.constant 0 : index
    %79 = vector.load %arg4[%c4, %c0_34, %c0_35] : memref<8x20x20xbf16, #tpu.memory_space<vmem>>, vector<1x20x20xbf16>
    %80 = vector.shape_cast %79 : vector<1x20x20xbf16> to vector<20x20xbf16>
    %81 = arith.truncf %78 : vector<20x2048xf32> to vector<20x2048xbf16>
    %cst_36 = arith.constant dense<0.000000e+00> : vector<20x2048xf32>
    %82 = tpu.matmul %80, %81, %cst_36 {dimension_numbers = #tpu.dot_dimension_numbers<[1], [0], [0], [1], [0, 0, 1, 1], [], []>} : vector<20x20xbf16>, vector<20x2048xbf16>, vector<20x2048xf32> -> vector<20x2048xf32>
    %c4_37 = arith.constant 4 : index
    %c0_38 = arith.constant 0 : index
    %c0_39 = arith.constant 0 : index
    %83 = vector.load %arg5[%c4_37, %c0_38, %c0_39] : memref<8x20x1xf32, #tpu.memory_space<vmem>>, vector<1x20x1xf32>
    %84 = vector.shape_cast %83 : vector<1x20x1xf32> to vector<20x1xf32>
    %85 = vector.broadcast %84 : vector<20x1xf32> to vector<20x2048xf32>
    %86 = arith.addf %82, %85 : vector<20x2048xf32>
    %cst_40 = arith.constant 5.000000e-01 : f32
    %87 = vector.broadcast %cst_40 : f32 to vector<20x2048xf32>
    %88 = arith.mulf %87, %86 : vector<20x2048xf32>
    %89 = math.tanh %88 : vector<20x2048xf32>
    %90 = arith.mulf %88, %89 : vector<20x2048xf32>
    %91 = arith.addf %90, %88 : vector<20x2048xf32>
    %c5 = arith.constant 5 : index
    %c0_41 = arith.constant 0 : index
    %c0_42 = arith.constant 0 : index
    %92 = vector.load %arg4[%c5, %c0_41, %c0_42] : memref<8x20x20xbf16, #tpu.memory_space<vmem>>, vector<1x20x20xbf16>
    %93 = vector.shape_cast %92 : vector<1x20x20xbf16> to vector<20x20xbf16>
    %94 = arith.truncf %91 : vector<20x2048xf32> to vector<20x2048xbf16>
    %cst_43 = arith.constant dense<0.000000e+00> : vector<20x2048xf32>
    %95 = tpu.matmul %93, %94, %cst_43 {dimension_numbers = #tpu.dot_dimension_numbers<[1], [0], [0], [1], [0, 0, 1, 1], [], []>} : vector<20x20xbf16>, vector<20x2048xbf16>, vector<20x2048xf32> -> vector<20x2048xf32>
    %c5_44 = arith.constant 5 : index
    %c0_45 = arith.constant 0 : index
    %c0_46 = arith.constant 0 : index
    %96 = vector.load %arg5[%c5_44, %c0_45, %c0_46] : memref<8x20x1xf32, #tpu.memory_space<vmem>>, vector<1x20x1xf32>
    %97 = vector.shape_cast %96 : vector<1x20x1xf32> to vector<20x1xf32>
    %98 = vector.broadcast %97 : vector<20x1xf32> to vector<20x2048xf32>
    %99 = arith.addf %95, %98 : vector<20x2048xf32>
    %cst_47 = arith.constant 5.000000e-01 : f32
    %100 = vector.broadcast %cst_47 : f32 to vector<20x2048xf32>
    %101 = arith.mulf %100, %99 : vector<20x2048xf32>
    %102 = math.tanh %101 : vector<20x2048xf32>
    %103 = arith.mulf %101, %102 : vector<20x2048xf32>
    %104 = arith.addf %103, %101 : vector<20x2048xf32>
    %c6 = arith.constant 6 : index
    %c0_48 = arith.constant 0 : index
    %c0_49 = arith.constant 0 : index
    %105 = vector.load %arg4[%c6, %c0_48, %c0_49] : memref<8x20x20xbf16, #tpu.memory_space<vmem>>, vector<1x20x20xbf16>
    %106 = vector.shape_cast %105 : vector<1x20x20xbf16> to vector<20x20xbf16>
    %107 = arith.truncf %104 : vector<20x2048xf32> to vector<20x2048xbf16>
    %cst_50 = arith.constant dense<0.000000e+00> : vector<20x2048xf32>
    %108 = tpu.matmul %106, %107, %cst_50 {dimension_numbers = #tpu.dot_dimension_numbers<[1], [0], [0], [1], [0, 0, 1, 1], [], []>} : vector<20x20xbf16>, vector<20x2048xbf16>, vector<20x2048xf32> -> vector<20x2048xf32>
    %c6_51 = arith.constant 6 : index
    %c0_52 = arith.constant 0 : index
    %c0_53 = arith.constant 0 : index
    %109 = vector.load %arg5[%c6_51, %c0_52, %c0_53] : memref<8x20x1xf32, #tpu.memory_space<vmem>>, vector<1x20x1xf32>
    %110 = vector.shape_cast %109 : vector<1x20x1xf32> to vector<20x1xf32>
    %111 = vector.broadcast %110 : vector<20x1xf32> to vector<20x2048xf32>
    %112 = arith.addf %108, %111 : vector<20x2048xf32>
    %cst_54 = arith.constant 5.000000e-01 : f32
    %113 = vector.broadcast %cst_54 : f32 to vector<20x2048xf32>
    %114 = arith.mulf %113, %112 : vector<20x2048xf32>
    %115 = math.tanh %114 : vector<20x2048xf32>
    %116 = arith.mulf %114, %115 : vector<20x2048xf32>
    %117 = arith.addf %116, %114 : vector<20x2048xf32>
    %c7 = arith.constant 7 : index
    %c0_55 = arith.constant 0 : index
    %c0_56 = arith.constant 0 : index
    %118 = vector.load %arg4[%c7, %c0_55, %c0_56] : memref<8x20x20xbf16, #tpu.memory_space<vmem>>, vector<1x20x20xbf16>
    %119 = vector.shape_cast %118 : vector<1x20x20xbf16> to vector<20x20xbf16>
    %120 = arith.truncf %117 : vector<20x2048xf32> to vector<20x2048xbf16>
    %cst_57 = arith.constant dense<0.000000e+00> : vector<20x2048xf32>
    %121 = tpu.matmul %119, %120, %cst_57 {dimension_numbers = #tpu.dot_dimension_numbers<[1], [0], [0], [1], [0, 0, 1, 1], [], []>} : vector<20x20xbf16>, vector<20x2048xbf16>, vector<20x2048xf32> -> vector<20x2048xf32>
    %c7_58 = arith.constant 7 : index
    %c0_59 = arith.constant 0 : index
    %c0_60 = arith.constant 0 : index
    %122 = vector.load %arg5[%c7_58, %c0_59, %c0_60] : memref<8x20x1xf32, #tpu.memory_space<vmem>>, vector<1x20x1xf32>
    %123 = vector.shape_cast %122 : vector<1x20x1xf32> to vector<20x1xf32>
    %124 = vector.broadcast %123 : vector<20x1xf32> to vector<20x2048xf32>
    %125 = arith.addf %121, %124 : vector<20x2048xf32>
    %cst_61 = arith.constant 5.000000e-01 : f32
    %126 = vector.broadcast %cst_61 : f32 to vector<20x2048xf32>
    %127 = arith.mulf %126, %125 : vector<20x2048xf32>
    %128 = math.tanh %127 : vector<20x2048xf32>
    %129 = arith.mulf %127, %128 : vector<20x2048xf32>
    %130 = arith.addf %129, %127 : vector<20x2048xf32>
    %c0_62 = arith.constant 0 : index
    %c0_63 = arith.constant 0 : index
    %131 = vector.load %arg6[%c0_62, %c0_63] : memref<20x1xf32, #tpu.memory_space<vmem>>, vector<20x1xf32>
    %132 = vector.broadcast %131 : vector<20x1xf32> to vector<20x2048xf32>
    %133 = arith.mulf %132, %130 : vector<20x2048xf32>
    %cst_64 = arith.constant dense<0.000000e+00> : vector<2048xf32>
    %134 = vector.multi_reduction <add>, %133, %cst_64 [0] : vector<20x2048xf32> to vector<2048xf32>
    %135 = vector.shape_cast %134 : vector<2048xf32> to vector<1x2048xf32>
    %c0_65 = arith.constant 0 : index
    %c0_66 = arith.constant 0 : index
    %136 = vector.load %arg7[%c0_65, %c0_66] : memref<1x1xf32, #tpu.memory_space<vmem>>, vector<1x1xf32>
    %137 = vector.broadcast %136 : vector<1x1xf32> to vector<1x2048xf32>
    %138 = arith.addf %135, %137 : vector<1x2048xf32>
    %c0_67 = arith.constant 0 : index
    %c0_68 = arith.constant 0 : index
    %139 = vector.load %arg8[%c0_67, %c0_68] : memref<1x2048xf32, #tpu.memory_space<vmem>>, vector<1x2048xf32>
    tpu.vector_store %arg8[%c0_67, %c0_68], %138 {strides = array<i32>} : memref<1x2048xf32, #tpu.memory_space<vmem>>, vector<1x2048xf32>,
    return
  }
  func.func @transform_0(%arg0: i32) -> (i32, i32) {
    %c0_i32 = arith.constant 0 : i32
    %c0_i32_0 = arith.constant 0 : i32
    return %c0_i32, %arg0 : i32, i32
  }
  func.func @transform_1(%arg0: i32) -> (i32, i32) {
    %c0_i32 = arith.constant 0 : i32
    %c0_i32_0 = arith.constant 0 : i32
    %c0_i32_1 = arith.constant 0 : i32
    return %c0_i32, %c0_i32_0 : i32, i32
  }
  func.func @transform_2(%arg0: i32) -> (i32, i32) {
    %c0_i32 = arith.constant 0 : i32
    %c0_i32_0 = arith.constant 0 : i32
    %c0_i32_1 = arith.constant 0 : i32
    return %c0_i32, %c0_i32_0 : i32, i32
  }
  func.func @transform_3(%arg0: i32) -> (i32, i32, i32) {
    %c0_i32 = arith.constant 0 : i32
    %c0_i32_0 = arith.constant 0 : i32
    %c0_i32_1 = arith.constant 0 : i32
    %c0_i32_2 = arith.constant 0 : i32
    return %c0_i32, %c0_i32_0, %c0_i32_1 : i32, i32, i32
  }
  func.func @transform_4(%arg0: i32) -> (i32, i32, i32) {
    %c0_i32 = arith.constant 0 : i32
    %c0_i32_0 = arith.constant 0 : i32
    %c0_i32_1 = arith.constant 0 : i32
    %c0_i32_2 = arith.constant 0 : i32
    return %c0_i32, %c0_i32_0, %c0_i32_1 : i32, i32, i32
  }
  func.func @transform_5(%arg0: i32) -> (i32, i32) {
    %c0_i32 = arith.constant 0 : i32
    %c0_i32_0 = arith.constant 0 : i32
    %c0_i32_1 = arith.constant 0 : i32
    return %c0_i32, %c0_i32_0 : i32, i32
  }
  func.func @transform_6(%arg0: i32) -> (i32, i32) {
    %c0_i32 = arith.constant 0 : i32
    %c0_i32_0 = arith.constant 0 : i32
    %c0_i32_1 = arith.constant 0 : i32
    return %c0_i32, %c0_i32_0 : i32, i32
  }
  func.func @transform_7(%arg0: i32) -> (i32, i32) {
    %c0_i32 = arith.constant 0 : i32
    %c0_i32_0 = arith.constant 0 : i32
    return %c0_i32, %arg0 : i32, i32
  }
}

</mosaic_0001>

<llo_original>
// kernel: _pinn_w_forward.1
$region0: #{_pinn_w_forward.1}
  #allocation0 [shape = 'u32[]', space=smem, size = 0x4, offset = 0x4, fixed_abs, tag = 'smem constant byte address 0x4 - core index']
  #allocation1 [shape = 'u32[144,128]{1,0:T(1,128)}', space=vmem, size = 0x12000, scoped, tag = 'internal scratch']
  #allocation2 [shape = 'f32[1,1]{1,0:T(1,128)S(1)}', space=vmem, size = 0x200, scoped, tag = 'scoped memory for _pinn_w_forward.1']
  %s0 = inlined_call_operand.vmem [shape: f32[3,4096], index: 0, kind: input, shape index: {}]
  %s1 = inlined_call_operand.vmem [shape: f32[20,3], index: 1, kind: input, shape index: {}]
  %s2 = inlined_call_operand.vmem [shape: f32[20,1], index: 2, kind: input, shape index: {}]
  %s3 = inlined_call_operand.vmem [shape: bf16[8,20,20], index: 3, kind: input, shape index: {}]
  %s4 = inlined_call_operand.vmem [shape: f32[8,20,1], index: 4, kind: input, shape index: {}]
  %s5 = inlined_call_operand.vmem [shape: f32[20,1], index: 5, kind: input, shape index: {}]
  %s6 = inlined_call_operand.<no memory space> [shape: f32[1,1], index: 6, kind: input, shape index: {}]
  %s7 = inlined_call_operand.vmem [shape: f32[1,4096], index: 7, kind: output, shape index: {}]
  %s8 = sld [smem:[#allocation0]]
  $region61: #{_pinn_w_forward.1} parent=0
    _
  %s10 = ssub.s32 1, %s8
  %s11 = scalar_select 0, %s10, %s8
  %v12 = vstv %s6
  %13 = vst [vmem:[#allocation2] sm:$0x1] %v12
  loop: start=0, step=1, limit=4
  $region2: #{_pinn_w_forward.1} parent=0 // loop_pre_header
    _
  $region3: #{_pinn_w_forward.1} parent=0 // loop_header
    %s15 = sphi 0, %s19
    %p16 = scmp.ge.s32.totalorder %s15, 4
    %s25 = sphi 0, %s27
    %s28 = sphi 0, %s25
    %s29 = sphi 0, %s28
    %s45 = sphi 0, %s29
    %s49 = sphi 0, %s49
    %s51 = sphi 0, %s49
    %s52 = sphi 0, %s51
    %s66 = sphi 0, %s52
    %s70 = sphi 0, %s70
    %s72 = sphi 0, %s70
    %s73 = sphi 0, %s72
    %s87 = sphi 0, %s73
    %s91 = sphi 0, %s91
    %s93 = sphi 0, %s91
    %s94 = sphi 0, %s93
    %s108 = sphi 0, %s94
    %s112 = sphi 0, %s112
    %s114 = sphi 0, %s112
    %s115 = sphi 0, %s114
    %s129 = sphi 0, %s115
    %s133 = sphi 0, %s133
    %s135 = sphi 0, %s133
    %s136 = sphi 0, %s135
    %s150 = sphi 0, %s136
    %s154 = sphi 0, %s154
    %s156 = sphi 0, %s154
    %s157 = sphi 0, %s156
    %s171 = sphi 0, %s157
    %s177 = sphi 0, %s179
    %s180 = sphi 0, %s177
    %s181 = sphi 0, %s180
    %s197 = sphi 0, %s181
  $region4: #{_pinn_w_forward.1} parent=0 // loop_header_branch
    %18 = sbr.rel (%p16) target = $region8
  $region5: #{_pinn_w_forward.1} parent=0 // loop_body
    %s20 = ssub.s32 %s15, 1
    %s21 = ssub.s32 %s15, 2
    %s22 = sadd.s32 %s15, 1
    %s23 = ssub.s32 %s15, %s22
    %p24 = scmp.eq.s32.totalorder %s23, 0
    %s26 = sadd.s32 %s25, 1
    %s27 = scalar_select %p24, %s25, %s26
    %p30 = pneg %p24
    %p31 = scmp.eq.s32.totalorder %s15, 1
    %p32 = por %p30, %p31
    %p33 = scmp.ne.s32.totalorder %s25, %s28
    %p34 = scmp.eq.s32.totalorder %s15, 0
    %p35 = por %p33, %p34
    %p36 = scmp.ne.s32.totalorder %s25, %s28
    %p37 = scmp.eq.s32.totalorder %s20, 1
    %p38 = por %p36, %p37
    %p39 = scmp.ne.s32.totalorder %s28, %s29
    %p40 = scmp.eq.s32.totalorder %s20, 0
    %p41 = por %p39, %p40
    %p42 = scmp.ne.s32.totalorder %s28, %s29
    %p43 = scmp.eq.s32.totalorder %s21, 1
    %p44 = por %p42, %p43
    %p46 = scmp.ne.s32.totalorder %s29, %s45
    %p47 = scmp.eq.s32.totalorder %s21, 0
    %p48 = por %p46, %p47
    %s50 = sadd.s32 %s49, 1
    %p53 = scmp.eq.s32.totalorder %s15, 1
    %p54 = scmp.ne.s32.totalorder %s49, %s51
    %p55 = scmp.eq.s32.totalorder %s15, 0
    %p56 = por %p54, %p55
    %p57 = scmp.ne.s32.totalorder %s49, %s51
    %p58 = scmp.eq.s32.totalorder %s20, 1
    %p59 = por %p57, %p58
    %p60 = scmp.ne.s32.totalorder %s51, %s52
    %p61 = scmp.eq.s32.totalorder %s20, 0
    %p62 = por %p60, %p61
    %p63 = scmp.ne.s32.totalorder %s51, %s52
    %p64 = scmp.eq.s32.totalorder %s21, 1
    %p65 = por %p63, %p64
    %p67 = scmp.ne.s32.totalorder %s52, %s66
    %p68 = scmp.eq.s32.totalorder %s21, 0
    %p69 = por %p67, %p68
    %s71 = sadd.s32 %s70, 1
    %p74 = scmp.eq.s32.totalorder %s15, 1
    %p75 = scmp.ne.s32.totalorder %s70, %s72
    %p76 = scmp.eq.s32.totalorder %s15, 0
    %p77 = por %p75, %p76
    %p78 = scmp.ne.s32.totalorder %s70, %s72
    %p79 = scmp.eq.s32.totalorder %s20, 1
    %p80 = por %p78, %p79
    %p81 = scmp.ne.s32.totalorder %s72, %s73
    %p82 = scmp.eq.s32.totalorder %s20, 0
    %p83 = por %p81, %p82
    %p84 = scmp.ne.s32.totalorder %s72, %s73
    %p85 = scmp.eq.s32.totalorder %s21, 1
    %p86 = por %p84, %p85
    %p88 = scmp.ne.s32.totalorder %s73, %s87
    %p89 = scmp.eq.s32.totalorder %s21, 0
    %p90 = por %p88, %p89
    %s92 = sadd.s32 %s91, 1
    %p95 = scmp.eq.s32.totalorder %s15, 1
    %p96 = scmp.ne.s32.totalorder %s91, %s93
    %p97 = scmp.eq.s32.totalorder %s15, 0
    %p98 = por %p96, %p97
    %p99 = scmp.ne.s32.totalorder %s91, %s93
    %p100 = scmp.eq.s32.totalorder %s20, 1
    %p101 = por %p99, %p100
    %p102 = scmp.ne.s32.totalorder %s93, %s94
    %p103 = scmp.eq.s32.totalorder %s20, 0
    %p104 = por %p102, %p103
    %p105 = scmp.ne.s32.totalorder %s93, %s94
    %p106 = scmp.eq.s32.totalorder %s21, 1
    %p107 = por %p105, %p106
    %p109 = scmp.ne.s32.totalorder %s94, %s108
    %p110 = scmp.eq.s32.totalorder %s21, 0
    %p111 = por %p109, %p110
    %s113 = sadd.s32 %s112, 1
    %p116 = scmp.eq.s32.totalorder %s15, 1
    %p117 = scmp.ne.s32.totalorder %s112, %s114
    %p118 = scmp.eq.s32.totalorder %s15, 0
    %p119 = por %p117, %p118
    %p120 = scmp.ne.s32.totalorder %s112, %s114
    %p121 = scmp.eq.s32.totalorder %s20, 1
    %p122 = por %p120, %p121
    %p123 = scmp.ne.s32.totalorder %s114, %s115
    %p124 = scmp.eq.s32.totalorder %s20, 0
    %p125 = por %p123, %p124
    %p126 = scmp.ne.s32.totalorder %s114, %s115
    %p127 = scmp.eq.s32.totalorder %s21, 1
    %p128 = por %p126, %p127
    %p130 = scmp.ne.s32.totalorder %s115, %s129
    %p131 = scmp.eq.s32.totalorder %s21, 0
    %p132 = por %p130, %p131
    %s134 = sadd.s32 %s133, 1
    %p137 = scmp.eq.s32.totalorder %s15, 1
    %p138 = scmp.ne.s32.totalorder %s133, %s135
    %p139 = scmp.eq.s32.totalorder %s15, 0
    %p140 = por %p138, %p139
    %p141 = scmp.ne.s32.totalorder %s133, %s135
    %p142 = scmp.eq.s32.totalorder %s20, 1
    %p143 = por %p141, %p142
    %p144 = scmp.ne.s32.totalorder %s135, %s136
    %p145 = scmp.eq.s32.totalorder %s20, 0
    %p146 = por %p144, %p145
    %p147 = scmp.ne.s32.totalorder %s135, %s136
    %p148 = scmp.eq.s32.totalorder %s21, 1
    %p149 = por %p147, %p148
    %p151 = scmp.ne.s32.totalorder %s136, %s150
    %p152 = scmp.eq.s32.totalorder %s21, 0
    %p153 = por %p151, %p152
    %s155 = sadd.s32 %s154, 1
    %p158 = scmp.eq.s32.totalorder %s15, 1
    %p159 = scmp.ne.s32.totalorder %s154, %s156
    %p160 = scmp.eq.s32.totalorder %s15, 0
    %p161 = por %p159, %p160
    %p162 = scmp.ne.s32.totalorder %s154, %s156
    %p163 = scmp.eq.s32.totalorder %s20, 1
    %p164 = por %p162, %p163
    %p165 = scmp.ne.s32.totalorder %s156, %s157
    %p166 = scmp.eq.s32.totalorder %s20, 0
    %p167 = por %p165, %p166
    %p168 = scmp.ne.s32.totalorder %s156, %s157
    %p169 = scmp.eq.s32.totalorder %s21, 1
    %p170 = por %p168, %p169
    %p172 = scmp.ne.s32.totalorder %s157, %s171
    %p173 = scmp.eq.s32.totalorder %s21, 0
    %p174 = por %p172, %p173
    %s175 = ssub.s32 %s15, %s22
    %p176 = scmp.eq.s32.totalorder %s175, 0
    %s178 = sadd.s32 %s177, 1
    %s179 = scalar_select %p176, %s177, %s178
    %p182 = pneg %p176
    %p183 = scmp.eq.s32.totalorder %s15, 1
    %p184 = por %p182, %p183
    %p185 = scmp.ne.s32.totalorder %s177, %s180
    %p186 = scmp.eq.s32.totalorder %s15, 0
    %p187 = por %p185, %p186
    %p188 = scmp.ne.s32.totalorder %s177, %s180
    %p189 = scmp.eq.s32.totalorder %s20, 1
    %p190 = por %p188, %p189
    %p191 = scmp.ne.s32.totalorder %s180, %s181
    %p192 = scmp.eq.s32.totalorder %s20, 0
    %p193 = por %p191, %p192
    %p194 = scmp.ne.s32.totalorder %s180, %s181
    %p195 = scmp.eq.s32.totalorder %s21, 1
    %p196 = por %p194, %p195
    %p198 = scmp.ne.s32.totalorder %s181, %s197
    %p199 = scmp.eq.s32.totalorder %s21, 0
    %p200 = por %p198, %p199
    %p201 = scmp.le.s32.totalorder 1, %s15
    %p202 = scmp.lt.s32.totalorder %s15, 3
    %p203 = pnand %p201, %p202
    %p204 = pneg %p203
    // Predicated region
    $region9: #{_pinn_w_forward.1} parent=5 // pred_check
      _
    $region10: #{_pinn_w_forward.1} parent=5 // pred_check_branch
      %206 = sbr.rel (%p203) target = $region12
    $region11: #{_pinn_w_forward.1} parent=5 // pred_region
      %s207 = ssub.s32 %s15, 1
      // Predicated region
      $region13: #{_pinn_w_forward.1} parent=11 // pred_check
        %p208 = pneg %p62
      $region14: #{_pinn_w_forward.1} parent=11 // pred_check_branch
        %210 = sbr.rel (%p208) target = $region16
      $region15: #{_pinn_w_forward.1} parent=11 // pred_region
        _
      $region16: #{_pinn_w_forward.1} parent=11 // pred_fallthru
        _
      // Predicated region
      $region17: #{_pinn_w_forward.1} parent=11 // pred_check
        %p211 = pneg %p83
      $region18: #{_pinn_w_forward.1} parent=11 // pred_check_branch
        %213 = sbr.rel (%p211) target = $region20
      $region19: #{_pinn_w_forward.1} parent=11 // pred_region
        _
      $region20: #{_pinn_w_forward.1} parent=11 // pred_fallthru
        _
      // Predicated region
      $region21: #{_pinn_w_forward.1} parent=11 // pred_check
        %p214 = pneg %p104
      $region22: #{_pinn_w_forward.1} parent=11 // pred_check_branch
        %216 = sbr.rel (%p214) target = $region24
      $region23: #{_pinn_w_forward.1} parent=11 // pred_region
        _
      $region24: #{_pinn_w_forward.1} parent=11 // pred_fallthru
        _
      // Predicated region
      $region25: #{_pinn_w_forward.1} parent=11 // pred_check
        %p217 = pneg %p125
      $region26: #{_pinn_w_forward.1} parent=11 // pred_check_branch
        %219 = sbr.rel (%p217) target = $region28
      $region27: #{_pinn_w_forward.1} parent=11 // pred_region
        _
      $region28: #{_pinn_w_forward.1} parent=11 // pred_fallthru
        _
      // Predicated region
      $region29: #{_pinn_w_forward.1} parent=11 // pred_check
        %p220 = pneg %p146
      $region30: #{_pinn_w_forward.1} parent=11 // pred_check_branch
        %222 = sbr.rel (%p220) target = $region32
      $region31: #{_pinn_w_forward.1} parent=11 // pred_region
        _
      $region32: #{_pinn_w_forward.1} parent=11 // pred_fallthru
        _
      // Predicated region
      $region33: #{_pinn_w_forward.1} parent=11 // pred_check
        %p223 = pneg %p167
      $region34: #{_pinn_w_forward.1} parent=11 // pred_check_branch
        %225 = sbr.rel (%p223) target = $region36
      $region35: #{_pinn_w_forward.1} parent=11 // pred_region
        _
      $region36: #{_pinn_w_forward.1} parent=11 // pred_fallthru
        _
    $region12: #{_pinn_w_forward.1} parent=5 // pred_fallthru
      _
    %p226 = scmp.lt.s32.totalorder %s15, 2
    // Predicated region
    $region37: #{_pinn_w_forward.1} parent=5 // pred_check
      %p227 = pneg %p226
    $region38: #{_pinn_w_forward.1} parent=5 // pred_check_branch
      %229 = sbr.rel (%p227) target = $region40
    $region39: #{_pinn_w_forward.1} parent=5 // pred_region
      // Predicated region
      $region41: #{_pinn_w_forward.1} parent=39 // pred_check
        %p230 = pneg %p35
      $region42: #{_pinn_w_forward.1} parent=39 // pred_check_branch
        %232 = sbr.rel (%p230) target = $region44
      $region43: #{_pinn_w_forward.1} parent=39 // pred_region
        %s233 = smul.u32 16, %s15
        %p234 = scmp.lt.s32.totalorder %s233, 31
        %s235 = scalar_select %p234, %s233, 31
        %s236 = smul.addr %s235, 4
        %s237 = scalar_lea.vmem %s0, %s236
        %s238 = smul.u32 16, %s15
      $region44: #{_pinn_w_forward.1} parent=39 // pred_fallthru
        _
    $region40: #{_pinn_w_forward.1} parent=5 // pred_fallthru
      _
    %p239 = scmp.le.s32.totalorder 1, %s15
    %p240 = scmp.lt.s32.totalorder %s15, 3
    %p241 = pnand %p239, %p240
    %p242 = pneg %p241
    // Predicated region
    $region45: #{_pinn_w_forward.1} parent=5 // pred_check
      _
    $region46: #{_pinn_w_forward.1} parent=5 // pred_check_branch
      %244 = sbr.rel (%p241) target = $region48
    $region47: #{_pinn_w_forward.1} parent=5 // pred_region
      %s245 = ssub.s32 %s15, 1
      %s246 = smul.u32 16, %s20
      %p247 = scmp.lt.s32.totalorder %s246, 31
      %s248 = scalar_select %p247, %s246, 31
      %s249 = smul.addr %s248, 4
      %s250 = scalar_lea.vmem %s0, %s249
      %p251 = pneg %p41
      %p252 = pneg %p38
      %p253 = pneg %p62
      %p254 = pneg %p59
      %p255 = pneg %p83
      %p256 = pneg %p80
      %p257 = pneg %p104
      %p258 = pneg %p101
      %p259 = pneg %p125
      %p260 = pneg %p122
      %p261 = pneg %p146
      %p262 = pneg %p143
      %p263 = pneg %p167
      %p264 = pneg %p164
      %p265 = pneg %p193
      %p266 = pneg %p190
      %s267 = smul.u32 16, %s20
      %p268 = scmp.lt.s32.totalorder %s267, 31
      %s269 = scalar_select %p268, %s267, 31
      %s270 = scalar_lea.vmem %s7, %s269
      %s271 = smul.u32 16, %s20
      %p272 = scmp.lt.s32.totalorder %s271, 31
      %s273 = scalar_select %p272, %s271, 31
      %s274 = smul.addr %s273, 4
      %s275 = scalar_lea.vmem %s0, %s274
      %s276 = smul.u32 16, %s20
      %s277 = smul.u32 16, %s20
      %p278 = scmp.lt.s32.totalorder %s277, 31
      %s279 = scalar_select %p278, %s277, 31
      %s280 = scalar_lea.vmem %s7, %s279
      %s281 = smul.u32 16, %s20
      %v283 = vld [vmem:[%s275] sm:$0x77]
      %v284 = vld [vmem:[%s275 + $0x8] sm:$0x77]
      %v285 = vld [vmem:[%s275 + $0x10] sm:$0x77]
      %v286 = vld [vmem:[%s275 + $0x18] sm:$0x77]
      %v287 = vld [vmem:[%s275 + $0x20] sm:$0x77]
      %v288 = vld [vmem:[%s275 + $0x28] sm:$0x77]
      %v289 = vld [vmem:[%s275 + $0x30] sm:$0x77]
      %v290 = vld [vmem:[%s275 + $0x38] sm:$0x77]
      %v291 = vld [vmem:[%s1] sm:$0xff]
      %v292 = vld [vmem:[%s1 + $0x8] sm:$0xff]
      %v293 = vld [vmem:[%s1 + $0x10] sm:$0xf]
      %295 = vset.pattern.permute.xlu0 0
      %296 = vperm.xlu0 %295, %v291
      %v297 = vpop.permute.xlu0 %296
      %300 = vset.pattern.permute.xlu0 0
      %301 = vperm.xlu0 %300, %v292
      %v302 = vpop.permute.xlu0 %301
      %305 = vset.pattern.permute.xlu0 0
      %306 = vperm.xlu0 %305, %v293
      %v307 = vpop.permute.xlu0 %306
      %v317 = vlaneseq
      %v318 = vshrl.u32 %v317, 7
      %v319 = vsub.s32 0, %v318
      %v320 = vrot.slane %v283, %v319
      %v321 = vlaneseq
      %v322 = vshrl.u32 %v321, 7
      %v323 = vsub.s32 4, %v322
      %v324 = vrot.slane %v283, %v323
      %v325 = vlaneseq
      %v326 = vshrl.u32 %v325, 7
      %v327 = vsub.s32 0, %v326
      %v328 = vrot.slane %v284, %v327
      %v329 = vlaneseq
      %v330 = vshrl.u32 %v329, 7
      %v331 = vsub.s32 4, %v330
      %v332 = vrot.slane %v284, %v331
      %v333 = vlaneseq
      %v334 = vshrl.u32 %v333, 7
      %v335 = vsub.s32 0, %v334
      %v336 = vrot.slane %v285, %v335
      %v337 = vlaneseq
      %v338 = vshrl.u32 %v337, 7
      %v339 = vsub.s32 4, %v338
      %v340 = vrot.slane %v285, %v339
      %v341 = vlaneseq
      %v342 = vshrl.u32 %v341, 7
      %v343 = vsub.s32 0, %v342
      %v344 = vrot.slane %v286, %v343
      %v345 = vlaneseq
      %v346 = vshrl.u32 %v345, 7
      %v347 = vsub.s32 4, %v346
      %v348 = vrot.slane %v286, %v347
      %v349 = vlaneseq
      %v350 = vshrl.u32 %v349, 7
      %v351 = vsub.s32 0, %v350
      %v352 = vrot.slane %v287, %v351
      %v353 = vlaneseq
      %v354 = vshrl.u32 %v353, 7
      %v355 = vsub.s32 4, %v354
      %v356 = vrot.slane %v287, %v355
      %v357 = vlaneseq
      %v358 = vshrl.u32 %v357, 7
      %v359 = vsub.s32 0, %v358
      %v360 = vrot.slane %v288, %v359
      %v361 = vlaneseq
      %v362 = vshrl.u32 %v361, 7
      %v363 = vsub.s32 4, %v362
      %v364 = vrot.slane %v288, %v363
      %v365 = vlaneseq
      %v366 = vshrl.u32 %v365, 7
      %v367 = vsub.s32 0, %v366
      %v368 = vrot.slane %v289, %v367
      %v369 = vlaneseq
      %v370 = vshrl.u32 %v369, 7
      %v371 = vsub.s32 4, %v370
      %v372 = vrot.slane %v289, %v371
      %v373 = vlaneseq
      %v374 = vshrl.u32 %v373, 7
      %v375 = vsub.s32 0, %v374
      %v376 = vrot.slane %v290, %v375
      %v377 = vlaneseq
      %v378 = vshrl.u32 %v377, 7
      %v379 = vsub.s32 4, %v378
      %v380 = vrot.slane %v290, %v379
      %v397 = vlaneseq
      %v398 = vshrl.u32 %v397, 7
      %v399 = vsub.s32 0, %v398
      %v400 = vrot.slane %v320, %v399
      %v401 = vlaneseq
      %v402 = vshrl.u32 %v401, 7
      %v403 = vsub.s32 0, %v402
      %v404 = vrot.slane %v324, %v403
      %v405 = vlaneseq
      %v406 = vshrl.u32 %v405, 7
      %v407 = vsub.s32 0, %v406
      %v408 = vrot.slane %v328, %v407
      %v409 = vlaneseq
      %v410 = vshrl.u32 %v409, 7
      %v411 = vsub.s32 0, %v410
      %v412 = vrot.slane %v332, %v411
      %v413 = vlaneseq
      %v414 = vshrl.u32 %v413, 7
      %v415 = vsub.s32 0, %v414
      %v416 = vrot.slane %v336, %v415
      %v417 = vlaneseq
      %v418 = vshrl.u32 %v417, 7
      %v419 = vsub.s32 0, %v418
      %v420 = vrot.slane %v340, %v419
      %v421 = vlaneseq
      %v422 = vshrl.u32 %v421, 7
      %v423 = vsub.s32 0, %v422
      %v424 = vrot.slane %v344, %v423
      %v425 = vlaneseq
      %v426 = vshrl.u32 %v425, 7
      %v427 = vsub.s32 0, %v426
      %v428 = vrot.slane %v348, %v427
      %v429 = vlaneseq
      %v430 = vshrl.u32 %v429, 7
      %v431 = vsub.s32 0, %v430
      %v432 = vrot.slane %v352, %v431
      %v433 = vlaneseq
      %v434 = vshrl.u32 %v433, 7
      %v435 = vsub.s32 0, %v434
      %v436 = vrot.slane %v356, %v435
      %v437 = vlaneseq
      %v438 = vshrl.u32 %v437, 7
      %v439 = vsub.s32 0, %v438
      %v440 = vrot.slane %v360, %v439
      %v441 = vlaneseq
      %v442 = vshrl.u32 %v441, 7
      %v443 = vsub.s32 0, %v442
      %v444 = vrot.slane %v364, %v443
      %v445 = vlaneseq
      %v446 = vshrl.u32 %v445, 7
      %v447 = vsub.s32 0, %v446
      %v448 = vrot.slane %v368, %v447
      %v449 = vlaneseq
      %v450 = vshrl.u32 %v449, 7
      %v451 = vsub.s32 0, %v450
      %v452 = vrot.slane %v372, %v451
      %v453 = vlaneseq
      %v454 = vshrl.u32 %v453, 7
      %v455 = vsub.s32 0, %v454
      %v456 = vrot.slane %v376, %v455
      %v457 = vlaneseq
      %v458 = vshrl.u32 %v457, 7
      %v459 = vsub.s32 0, %v458
      %v460 = vrot.slane %v380, %v459
      %v461 = vmul.f32 %v297, %v400
      %v462 = vmul.f32 %v297, %v404
      %v463 = vmul.f32 %v297, %v408
      %v464 = vmul.f32 %v297, %v412
      %v465 = vmul.f32 %v297, %v416
      %v466 = vmul.f32 %v297, %v420
      %v467 = vmul.f32 %v297, %v424
      %v468 = vmul.f32 %v297, %v428
      %v469 = vmul.f32 %v297, %v432
      %v470 = vmul.f32 %v297, %v436
      %v471 = vmul.f32 %v297, %v440
      %v472 = vmul.f32 %v297, %v444
      %v473 = vmul.f32 %v297, %v448
      %v474 = vmul.f32 %v297, %v452
      %v475 = vmul.f32 %v297, %v456
      %v476 = vmul.f32 %v297, %v460
      %v477 = vmul.f32 %v302, %v400
      %v478 = vmul.f32 %v302, %v404
      %v479 = vmul.f32 %v302, %v408
      %v480 = vmul.f32 %v302, %v412
      %v481 = vmul.f32 %v302, %v416
      %v482 = vmul.f32 %v302, %v420
      %v483 = vmul.f32 %v302, %v424
      %v484 = vmul.f32 %v302, %v428
      %v485 = vmul.f32 %v302, %v432
      %v486 = vmul.f32 %v302, %v436
      %v487 = vmul.f32 %v302, %v440
      %v488 = vmul.f32 %v302, %v444
      %v489 = vmul.f32 %v302, %v448
      %v490 = vmul.f32 %v302, %v452
      %v491 = vmul.f32 %v302, %v456
      %v492 = vmul.f32 %v302, %v460
      %v493 = vmul.f32 %v307, %v400
      %v494 = vmul.f32 %v307, %v404
      %v495 = vmul.f32 %v307, %v408
      %v496 = vmul.f32 %v307, %v412
      %v497 = vmul.f32 %v307, %v416
      %v498 = vmul.f32 %v307, %v420
      %v499 = vmul.f32 %v307, %v424
      %v500 = vmul.f32 %v307, %v428
      %v501 = vmul.f32 %v307, %v432
      %v502 = vmul.f32 %v307, %v436
      %v503 = vmul.f32 %v307, %v440
      %v504 = vmul.f32 %v307, %v444
      %v505 = vmul.f32 %v307, %v448
      %v506 = vmul.f32 %v307, %v452
      %v507 = vmul.f32 %v307, %v456
      %v508 = vmul.f32 %v307, %v460
      %509 = vset.pattern.permute.xlu0 1
      %510 = vperm.xlu0 %509, %v291
      %v511 = vpop.permute.xlu0 %510
      %513 = vset.pattern.permute.xlu0 1
      %514 = vperm.xlu0 %513, %v292
      %v515 = vpop.permute.xlu0 %514
      %517 = vset.pattern.permute.xlu0 1
      %518 = vperm.xlu0 %517, %v293
      %v519 = vpop.permute.xlu0 %518
      %v521 = vlaneseq
      %v522 = vshrl.u32 %v521, 7
      %v523 = vsub.s32 1, %v522
      %v524 = vrot.slane %v283, %v523
      %v525 = vlaneseq
      %v526 = vshrl.u32 %v525, 7
      %v527 = vsub.s32 5, %v526
      %v528 = vrot.slane %v283, %v527
      %v529 = vlaneseq
      %v530 = vshrl.u32 %v529, 7
      %v531 = vsub.s32 1, %v530
      %v532 = vrot.slane %v284, %v531
      %v533 = vlaneseq
      %v534 = vshrl.u32 %v533, 7
      %v535 = vsub.s32 5, %v534
      %v536 = vrot.slane %v284, %v535
      %v537 = vlaneseq
      %v538 = vshrl.u32 %v537, 7
      %v539 = vsub.s32 1, %v538
      %v540 = vrot.slane %v285, %v539
      %v541 = vlaneseq
      %v542 = vshrl.u32 %v541, 7
      %v543 = vsub.s32 5, %v542
      %v544 = vrot.slane %v285, %v543
      %v545 = vlaneseq
      %v546 = vshrl.u32 %v545, 7
      %v547 = vsub.s32 1, %v546
      %v548 = vrot.slane %v286, %v547
      %v549 = vlaneseq
      %v550 = vshrl.u32 %v549, 7
      %v551 = vsub.s32 5, %v550
      %v552 = vrot.slane %v286, %v551
      %v553 = vlaneseq
      %v554 = vshrl.u32 %v553, 7
      %v555 = vsub.s32 1, %v554
      %v556 = vrot.slane %v287, %v555
      %v557 = vlaneseq
      %v558 = vshrl.u32 %v557, 7
      %v559 = vsub.s32 5, %v558
      %v560 = vrot.slane %v287, %v559
      %v561 = vlaneseq
      %v562 = vshrl.u32 %v561, 7
      %v563 = vsub.s32 1, %v562
      %v564 = vrot.slane %v288, %v563
      %v565 = vlaneseq
      %v566 = vshrl.u32 %v565, 7
      %v567 = vsub.s32 5, %v566
      %v568 = vrot.slane %v288, %v567
      %v569 = vlaneseq
      %v570 = vshrl.u32 %v569, 7
      %v571 = vsub.s32 1, %v570
      %v572 = vrot.slane %v289, %v571
      %v573 = vlaneseq
      %v574 = vshrl.u32 %v573, 7
      %v575 = vsub.s32 5, %v574
      %v576 = vrot.slane %v289, %v575
      %v577 = vlaneseq
      %v578 = vshrl.u32 %v577, 7
      %v579 = vsub.s32 1, %v578
      %v580 = vrot.slane %v290, %v579
      %v581 = vlaneseq
      %v582 = vshrl.u32 %v581, 7
      %v583 = vsub.s32 5, %v582
      %v584 = vrot.slane %v290, %v583
      %v601 = vlaneseq
      %v602 = vshrl.u32 %v601, 7
      %v603 = vsub.s32 1, %v602
      %v604 = vrot.slane %v524, %v603
      %v605 = vlaneseq
      %v606 = vshrl.u32 %v605, 7
      %v607 = vsub.s32 1, %v606
      %v608 = vrot.slane %v528, %v607
      %v609 = vlaneseq
      %v610 = vshrl.u32 %v609, 7
      %v611 = vsub.s32 1, %v610
      %v612 = vrot.slane %v532, %v611
      %v613 = vlaneseq
      %v614 = vshrl.u32 %v613, 7
      %v615 = vsub.s32 1, %v614
      %v616 = vrot.slane %v536, %v615
      %v617 = vlaneseq
      %v618 = vshrl.u32 %v617, 7
      %v619 = vsub.s32 1, %v618
      %v620 = vrot.slane %v540, %v619
      %v621 = vlaneseq
      %v622 = vshrl.u32 %v621, 7
      %v623 = vsub.s32 1, %v622
      %v624 = vrot.slane %v544, %v623
      %v625 = vlaneseq
      %v626 = vshrl.u32 %v625, 7
      %v627 = vsub.s32 1, %v626
      %v628 = vrot.slane %v548, %v627
      %v629 = vlaneseq
      %v630 = vshrl.u32 %v629, 7
      %v631 = vsub.s32 1, %v630
      %v632 = vrot.slane %v552, %v631
      %v633 = vlaneseq
      %v634 = vshrl.u32 %v633, 7
      %v635 = vsub.s32 1, %v634
      %v636 = vrot.slane %v556, %v635
      %v637 = vlaneseq
      %v638 = vshrl.u32 %v637, 7
      %v639 = vsub.s32 1, %v638
      %v640 = vrot.slane %v560, %v639
      %v641 = vlaneseq
      %v642 = vshrl.u32 %v641, 7
      %v643 = vsub.s32 1, %v642
      %v644 = vrot.slane %v564, %v643
      %v645 = vlaneseq
      %v646 = vshrl.u32 %v645, 7
      %v647 = vsub.s32 1, %v646
      %v648 = vrot.slane %v568, %v647
      %v649 = vlaneseq
      %v650 = vshrl.u32 %v649, 7
      %v651 = vsub.s32 1, %v650
      %v652 = vrot.slane %v572, %v651
      %v653 = vlaneseq
      %v654 = vshrl.u32 %v653, 7
      %v655 = vsub.s32 1, %v654
      %v656 = vrot.slane %v576, %v655
      %v657 = vlaneseq
      %v658 = vshrl.u32 %v657, 7
      %v659 = vsub.s32 1, %v658
      %v660 = vrot.slane %v580, %v659
      %v661 = vlaneseq
      %v662 = vshrl.u32 %v661, 7
      %v663 = vsub.s32 1, %v662
      %v664 = vrot.slane %v584, %v663
      %v665 = vmul.f32 %v511, %v604
      %v666 = vmul.f32 %v511, %v608
      %v667 = vmul.f32 %v511, %v612
      %v668 = vmul.f32 %v511, %v616
      %v669 = vmul.f32 %v511, %v620
      %v670 = vmul.f32 %v511, %v624
      %v671 = vmul.f32 %v511, %v628
      %v672 = vmul.f32 %v511, %v632
      %v673 = vmul.f32 %v511, %v636
      %v674 = vmul.f32 %v511, %v640
      %v675 = vmul.f32 %v511, %v644
      %v676 = vmul.f32 %v511, %v648
      %v677 = vmul.f32 %v511, %v652
      %v678 = vmul.f32 %v511, %v656
      %v679 = vmul.f32 %v511, %v660
      %v680 = vmul.f32 %v511, %v664
      %v681 = vmul.f32 %v515, %v604
      %v682 = vmul.f32 %v515, %v608
      %v683 = vmul.f32 %v515, %v612
      %v684 = vmul.f32 %v515, %v616
      %v685 = vmul.f32 %v515, %v620
      %v686 = vmul.f32 %v515, %v624
      %v687 = vmul.f32 %v515, %v628
      %v688 = vmul.f32 %v515, %v632
      %v689 = vmul.f32 %v515, %v636
      %v690 = vmul.f32 %v515, %v640
      %v691 = vmul.f32 %v515, %v644
      %v692 = vmul.f32 %v515, %v648
      %v693 = vmul.f32 %v515, %v652
      %v694 = vmul.f32 %v515, %v656
      %v695 = vmul.f32 %v515, %v660
      %v696 = vmul.f32 %v515, %v664
      %v697 = vmul.f32 %v519, %v604
      %v698 = vmul.f32 %v519, %v608
      %v699 = vmul.f32 %v519, %v612
      %v700 = vmul.f32 %v519, %v616
      %v701 = vmul.f32 %v519, %v620
      %v702 = vmul.f32 %v519, %v624
      %v703 = vmul.f32 %v519, %v628
      %v704 = vmul.f32 %v519, %v632
      %v705 = vmul.f32 %v519, %v636
      %v706 = vmul.f32 %v519, %v640
      %v707 = vmul.f32 %v519, %v644
      %v708 = vmul.f32 %v519, %v648
      %v709 = vmul.f32 %v519, %v652
      %v710 = vmul.f32 %v519, %v656
      %v711 = vmul.f32 %v519, %v660
      %v712 = vmul.f32 %v519, %v664
      %v713 = vadd.f32 %v461, %v665
      %v714 = vadd.f32 %v462, %v666
      %v715 = vadd.f32 %v463, %v667
      %v716 = vadd.f32 %v464, %v668
      %v717 = vadd.f32 %v465, %v669
      %v718 = vadd.f32 %v466, %v670
      %v719 = vadd.f32 %v467, %v671
      %v720 = vadd.f32 %v468, %v672
      %v721 = vadd.f32 %v469, %v673
      %v722 = vadd.f32 %v470, %v674
      %v723 = vadd.f32 %v471, %v675
      %v724 = vadd.f32 %v472, %v676
      %v725 = vadd.f32 %v473, %v677
      %v726 = vadd.f32 %v474, %v678
      %v727 = vadd.f32 %v475, %v679
      %v728 = vadd.f32 %v476, %v680
      %v729 = vadd.f32 %v477, %v681
      %v730 = vadd.f32 %v478, %v682
      %v731 = vadd.f32 %v479, %v683
      %v732 = vadd.f32 %v480, %v684
      %v733 = vadd.f32 %v481, %v685
      %v734 = vadd.f32 %v482, %v686
      %v735 = vadd.f32 %v483, %v687
      %v736 = vadd.f32 %v484, %v688
      %v737 = vadd.f32 %v485, %v689
      %v738 = vadd.f32 %v486, %v690
      %v739 = vadd.f32 %v487, %v691
      %v740 = vadd.f32 %v488, %v692
      %v741 = vadd.f32 %v489, %v693
      %v742 = vadd.f32 %v490, %v694
      %v743 = vadd.f32 %v491, %v695
      %v744 = vadd.f32 %v492, %v696
      %v745 = vadd.f32 %v493, %v697
      %v746 = vadd.f32 %v494, %v698
      %v747 = vadd.f32 %v495, %v699
      %v748 = vadd.f32 %v496, %v700
      %v749 = vadd.f32 %v497, %v701
      %v750 = vadd.f32 %v498, %v702
      %v751 = vadd.f32 %v499, %v703
      %v752 = vadd.f32 %v500, %v704
      %v753 = vadd.f32 %v501, %v705
      %v754 = vadd.f32 %v502, %v706
      %v755 = vadd.f32 %v503, %v707
      %v756 = vadd.f32 %v504, %v708
      %v757 = vadd.f32 %v505, %v709
      %v758 = vadd.f32 %v506, %v710
      %v759 = vadd.f32 %v507, %v711
      %v760 = vadd.f32 %v508, %v712
      %761 = vset.pattern.permute.xlu0 2
      %762 = vperm.xlu0 %761, %v291
      %v763 = vpop.permute.xlu0 %762
      %765 = vset.pattern.permute.xlu0 2
      %766 = vperm.xlu0 %765, %v292
      %v767 = vpop.permute.xlu0 %766
      %769 = vset.pattern.permute.xlu0 2
      %770 = vperm.xlu0 %769, %v293
      %v771 = vpop.permute.xlu0 %770
      %v773 = vlaneseq
      %v774 = vshrl.u32 %v773, 7
      %v775 = vsub.s32 2, %v774
      %v776 = vrot.slane %v283, %v775
      %v777 = vlaneseq
      %v778 = vshrl.u32 %v777, 7
      %v779 = vsub.s32 6, %v778
      %v780 = vrot.slane %v283, %v779
      %v781 = vlaneseq
      %v782 = vshrl.u32 %v781, 7
      %v783 = vsub.s32 2, %v782
      %v784 = vrot.slane %v284, %v783
      %v785 = vlaneseq
      %v786 = vshrl.u32 %v785, 7
      %v787 = vsub.s32 6, %v786
      %v788 = vrot.slane %v284, %v787
      %v789 = vlaneseq
      %v790 = vshrl.u32 %v789, 7
      %v791 = vsub.s32 2, %v790
      %v792 = vrot.slane %v285, %v791
      %v793 = vlaneseq
      %v794 = vshrl.u32 %v793, 7
      %v795 = vsub.s32 6, %v794
      %v796 = vrot.slane %v285, %v795
      %v797 = vlaneseq
      %v798 = vshrl.u32 %v797, 7
      %v799 = vsub.s32 2, %v798
      %v800 = vrot.slane %v286, %v799
      %v801 = vlaneseq
      %v802 = vshrl.u32 %v801, 7
      %v803 = vsub.s32 6, %v802
      %v804 = vrot.slane %v286, %v803
      %v805 = vlaneseq
      %v806 = vshrl.u32 %v805, 7
      %v807 = vsub.s32 2, %v806
      %v808 = vrot.slane %v287, %v807
      %v809 = vlaneseq
      %v810 = vshrl.u32 %v809, 7
      %v811 = vsub.s32 6, %v810
      %v812 = vrot.slane %v287, %v811
      %v813 = vlaneseq
      %v814 = vshrl.u32 %v813, 7
      %v815 = vsub.s32 2, %v814
      %v816 = vrot.slane %v288, %v815
      %v817 = vlaneseq
      %v818 = vshrl.u32 %v817, 7
      %v819 = vsub.s32 6, %v818
      %v820 = vrot.slane %v288, %v819
      %v821 = vlaneseq
      %v822 = vshrl.u32 %v821, 7
      %v823 = vsub.s32 2, %v822
      %v824 = vrot.slane %v289, %v823
      %v825 = vlaneseq
      %v826 = vshrl.u32 %v825, 7
      %v827 = vsub.s32 6, %v826
      %v828 = vrot.slane %v289, %v827
      %v829 = vlaneseq
      %v830 = vshrl.u32 %v829, 7
      %v831 = vsub.s32 2, %v830
      %v832 = vrot.slane %v290, %v831
      %v833 = vlaneseq
      %v834 = vshrl.u32 %v833, 7
      %v835 = vsub.s32 6, %v834
      %v836 = vrot.slane %v290, %v835
      %v853 = vlaneseq
      %v854 = vshrl.u32 %v853, 7
      %v855 = vsub.s32 2, %v854
      %v856 = vrot.slane %v776, %v855
      %v857 = vlaneseq
      %v858 = vshrl.u32 %v857, 7
      %v859 = vsub.s32 2, %v858
      %v860 = vrot.slane %v780, %v859
      %v861 = vlaneseq
      %v862 = vshrl.u32 %v861, 7
      %v863 = vsub.s32 2, %v862
      %v864 = vrot.slane %v784, %v863
      %v865 = vlaneseq
      %v866 = vshrl.u32 %v865, 7
      %v867 = vsub.s32 2, %v866
      %v868 = vrot.slane %v788, %v867
      %v869 = vlaneseq
      %v870 = vshrl.u32 %v869, 7
      %v871 = vsub.s32 2, %v870
      %v872 = vrot.slane %v792, %v871
      %v873 = vlaneseq
      %v874 = vshrl.u32 %v873, 7
      %v875 = vsub.s32 2, %v874
      %v876 = vrot.slane %v796, %v875
      %v877 = vlaneseq
      %v878 = vshrl.u32 %v877, 7
      %v879 = vsub.s32 2, %v878
      %v880 = vrot.slane %v800, %v879
      %v881 = vlaneseq
      %v882 = vshrl.u32 %v881, 7
      %v883 = vsub.s32 2, %v882
      %v884 = vrot.slane %v804, %v883
      %v885 = vlaneseq
      %v886 = vshrl.u32 %v885, 7
      %v887 = vsub.s32 2, %v886
      %v888 = vrot.slane %v808, %v887
      %v889 = vlaneseq
      %v890 = vshrl.u32 %v889, 7
      %v891 = vsub.s32 2, %v890
      %v892 = vrot.slane %v812, %v891
      %v893 = vlaneseq
      %v894 = vshrl.u32 %v893, 7
      %v895 = vsub.s32 2, %v894
      %v896 = vrot.slane %v816, %v895
      %v897 = vlaneseq
      %v898 = vshrl.u32 %v897, 7
      %v899 = vsub.s32 2, %v898
      %v900 = vrot.slane %v820, %v899
      %v901 = vlaneseq
      %v902 = vshrl.u32 %v901, 7
      %v903 = vsub.s32 2, %v902
      %v904 = vrot.slane %v824, %v903
      %v905 = vlaneseq
      %v906 = vshrl.u32 %v905, 7
      %v907 = vsub.s32 2, %v906
      %v908 = vrot.slane %v828, %v907
      %v909 = vlaneseq
      %v910 = vshrl.u32 %v909, 7
      %v911 = vsub.s32 2, %v910
      %v912 = vrot.slane %v832, %v911
      %v913 = vlaneseq
      %v914 = vshrl.u32 %v913, 7
      %v915 = vsub.s32 2, %v914
      %v916 = vrot.slane %v836, %v915
      %v917 = vmul.f32 %v763, %v856
      %v918 = vmul.f32 %v763, %v860
      %v919 = vmul.f32 %v763, %v864
      %v920 = vmul.f32 %v763, %v868
      %v921 = vmul.f32 %v763, %v872
      %v922 = vmul.f32 %v763, %v876
      %v923 = vmul.f32 %v763, %v880
      %v924 = vmul.f32 %v763, %v884
      %v925 = vmul.f32 %v763, %v888
      %v926 = vmul.f32 %v763, %v892
      %v927 = vmul.f32 %v763, %v896
      %v928 = vmul.f32 %v763, %v900
      %v929 = vmul.f32 %v763, %v904
      %v930 = vmul.f32 %v763, %v908
      %v931 = vmul.f32 %v763, %v912
      %v932 = vmul.f32 %v763, %v916
      %v933 = vmul.f32 %v767, %v856
      %v934 = vmul.f32 %v767, %v860
      %v935 = vmul.f32 %v767, %v864
      %v936 = vmul.f32 %v767, %v868
      %v937 = vmul.f32 %v767, %v872
      %v938 = vmul.f32 %v767, %v876
      %v939 = vmul.f32 %v767, %v880
      %v940 = vmul.f32 %v767, %v884
      %v941 = vmul.f32 %v767, %v888
      %v942 = vmul.f32 %v767, %v892
      %v943 = vmul.f32 %v767, %v896
      %v944 = vmul.f32 %v767, %v900
      %v945 = vmul.f32 %v767, %v904
      %v946 = vmul.f32 %v767, %v908
      %v947 = vmul.f32 %v767, %v912
      %v948 = vmul.f32 %v767, %v916
      %v949 = vmul.f32 %v771, %v856
      %v950 = vmul.f32 %v771, %v860
      %v951 = vmul.f32 %v771, %v864
      %v952 = vmul.f32 %v771, %v868
      %v953 = vmul.f32 %v771, %v872
      %v954 = vmul.f32 %v771, %v876
      %v955 = vmul.f32 %v771, %v880
      %v956 = vmul.f32 %v771, %v884
      %v957 = vmul.f32 %v771, %v888
      %v958 = vmul.f32 %v771, %v892
      %v959 = vmul.f32 %v771, %v896
      %v960 = vmul.f32 %v771, %v900
      %v961 = vmul.f32 %v771, %v904
      %v962 = vmul.f32 %v771, %v908
      %v963 = vmul.f32 %v771, %v912
      %v964 = vmul.f32 %v771, %v916
      %v965 = vadd.f32 %v713, %v917
      %v966 = vadd.f32 %v714, %v918
      %v967 = vadd.f32 %v715, %v919
      %v968 = vadd.f32 %v716, %v920
      %v969 = vadd.f32 %v717, %v921
      %v970 = vadd.f32 %v718, %v922
      %v971 = vadd.f32 %v719, %v923
      %v972 = vadd.f32 %v720, %v924
      %v973 = vadd.f32 %v721, %v925
      %v974 = vadd.f32 %v722, %v926
      %v975 = vadd.f32 %v723, %v927
      %v976 = vadd.f32 %v724, %v928
      %v977 = vadd.f32 %v725, %v929
      %v978 = vadd.f32 %v726, %v930
      %v979 = vadd.f32 %v727, %v931
      %v980 = vadd.f32 %v728, %v932
      %v981 = vadd.f32 %v729, %v933
      %v982 = vadd.f32 %v730, %v934
      %v983 = vadd.f32 %v731, %v935
      %v984 = vadd.f32 %v732, %v936
      %v985 = vadd.f32 %v733, %v937
      %v986 = vadd.f32 %v734, %v938
      %v987 = vadd.f32 %v735, %v939
      %v988 = vadd.f32 %v736, %v940
      %v989 = vadd.f32 %v737, %v941
      %v990 = vadd.f32 %v738, %v942
      %v991 = vadd.f32 %v739, %v943
      %v992 = vadd.f32 %v740, %v944
      %v993 = vadd.f32 %v741, %v945
      %v994 = vadd.f32 %v742, %v946
      %v995 = vadd.f32 %v743, %v947
      %v996 = vadd.f32 %v744, %v948
      %v997 = vadd.f32 %v745, %v949
      %v998 = vadd.f32 %v746, %v950
      %v999 = vadd.f32 %v747, %v951
      %v1000 = vadd.f32 %v748, %v952
      %v1001 = vadd.f32 %v749, %v953
      %v1002 = vadd.f32 %v750, %v954
      %v1003 = vadd.f32 %v751, %v955
      %v1004 = vadd.f32 %v752, %v956
      %v1005 = vadd.f32 %v753, %v957
      %v1006 = vadd.f32 %v754, %v958
      %v1007 = vadd.f32 %v755, %v959
      %v1008 = vadd.f32 %v756, %v960
      %v1009 = vadd.f32 %v757, %v961
      %v1010 = vadd.f32 %v758, %v962
      %v1011 = vadd.f32 %v759, %v963
      %v1012 = vadd.f32 %v760, %v964
      %v1013 = vld [vmem:[%s2] sm:$0xff]
      %v1014 = vld [vmem:[%s2 + $0x8] sm:$0xff]
      %v1015 = vld [vmem:[%s2 + $0x10] sm:$0xf]
      %1017 = vset.pattern.permute.xlu0 0
      %1018 = vperm.xlu0 %1017, %v1013
      %v1019 = vpop.permute.xlu0 %1018
      %1022 = vset.pattern.permute.xlu0 0
      %1023 = vperm.xlu0 %1022, %v1014
      %v1024 = vpop.permute.xlu0 %1023
      %1027 = vset.pattern.permute.xlu0 0
      %1028 = vperm.xlu0 %1027, %v1015
      %v1029 = vpop.permute.xlu0 %1028
      %v1031 = vadd.f32 %v965, %v1019
      %v1032 = vadd.f32 %v966, %v1019
      %v1033 = vadd.f32 %v967, %v1019
      %v1034 = vadd.f32 %v968, %v1019
      %v1035 = vadd.f32 %v969, %v1019
      %v1036 = vadd.f32 %v970, %v1019
      %v1037 = vadd.f32 %v971, %v1019
      %v1038 = vadd.f32 %v972, %v1019
      %v1039 = vadd.f32 %v973, %v1019
      %v1040 = vadd.f32 %v974, %v1019
      %v1041 = vadd.f32 %v975, %v1019
      %v1042 = vadd.f32 %v976, %v1019
      %v1043 = vadd.f32 %v977, %v1019
      %v1044 = vadd.f32 %v978, %v1019
      %v1045 = vadd.f32 %v979, %v1019
      %v1046 = vadd.f32 %v980, %v1019
      %v1047 = vadd.f32 %v981, %v1024
      %v1048 = vadd.f32 %v982, %v1024
      %v1049 = vadd.f32 %v983, %v1024
      %v1050 = vadd.f32 %v984, %v1024
      %v1051 = vadd.f32 %v985, %v1024
      %v1052 = vadd.f32 %v986, %v1024
      %v1053 = vadd.f32 %v987, %v1024
      %v1054 = vadd.f32 %v988, %v1024
      %v1055 = vadd.f32 %v989, %v1024
      %v1056 = vadd.f32 %v990, %v1024
      %v1057 = vadd.f32 %v991, %v1024
      %v1058 = vadd.f32 %v992, %v1024
      %v1059 = vadd.f32 %v993, %v1024
      %v1060 = vadd.f32 %v994, %v1024
      %v1061 = vadd.f32 %v995, %v1024
      %v1062 = vadd.f32 %v996, %v1024
      %v1063 = vadd.f32 %v997, %v1029
      %v1064 = vadd.f32 %v998, %v1029
      %v1065 = vadd.f32 %v999, %v1029
      %v1066 = vadd.f32 %v1000, %v1029
      %v1067 = vadd.f32 %v1001, %v1029
      %v1068 = vadd.f32 %v1002, %v1029
      %v1069 = vadd.f32 %v1003, %v1029
      %v1070 = vadd.f32 %v1004, %v1029
      %v1071 = vadd.f32 %v1005, %v1029
      %v1072 = vadd.f32 %v1006, %v1029
      %v1073 = vadd.f32 %v1007, %v1029
      %v1074 = vadd.f32 %v1008, %v1029
      %v1075 = vadd.f32 %v1009, %v1029
      %v1076 = vadd.f32 %v1010, %v1029
      %v1077 = vadd.f32 %v1011, %v1029
      %v1078 = vadd.f32 %v1012, %v1029
      %v1079 = vmul.f32 %v1031, 0.5
      %v1080 = vmul.f32 %v1032, 0.5
      %v1081 = vmul.f32 %v1033, 0.5
      %v1082 = vmul.f32 %v1034, 0.5
      %v1083 = vmul.f32 %v1035, 0.5
      %v1084 = vmul.f32 %v1036, 0.5
      %v1085 = vmul.f32 %v1037, 0.5
      %v1086 = vmul.f32 %v1038, 0.5
      %v1087 = vmul.f32 %v1039, 0.5
      %v1088 = vmul.f32 %v1040, 0.5
      %v1089 = vmul.f32 %v1041, 0.5
      %v1090 = vmul.f32 %v1042, 0.5
      %v1091 = vmul.f32 %v1043, 0.5
      %v1092 = vmul.f32 %v1044, 0.5
      %v1093 = vmul.f32 %v1045, 0.5
      %v1094 = vmul.f32 %v1046, 0.5
      %v1095 = vmul.f32 %v1047, 0.5
      %v1096 = vmul.f32 %v1048, 0.5
      %v1097 = vmul.f32 %v1049, 0.5
      %v1098 = vmul.f32 %v1050, 0.5
      %v1099 = vmul.f32 %v1051, 0.5
      %v1100 = vmul.f32 %v1052, 0.5
      %v1101 = vmul.f32 %v1053, 0.5
      %v1102 = vmul.f32 %v1054, 0.5
      %v1103 = vmul.f32 %v1055, 0.5
      %v1104 = vmul.f32 %v1056, 0.5
      %v1105 = vmul.f32 %v1057, 0.5
      %v1106 = vmul.f32 %v1058, 0.5
      %v1107 = vmul.f32 %v1059, 0.5
      %v1108 = vmul.f32 %v1060, 0.5
      %v1109 = vmul.f32 %v1061, 0.5
      %v1110 = vmul.f32 %v1062, 0.5
      %v1111 = vmul.f32 %v1063, 0.5
      %v1112 = vmul.f32 %v1064, 0.5
      %v1113 = vmul.f32 %v1065, 0.5
      %v1114 = vmul.f32 %v1066, 0.5
      %v1115 = vmul.f32 %v1067, 0.5
      %v1116 = vmul.f32 %v1068, 0.5
      %v1117 = vmul.f32 %v1069, 0.5
      %v1118 = vmul.f32 %v1070, 0.5
      %v1119 = vmul.f32 %v1071, 0.5
      %v1120 = vmul.f32 %v1072, 0.5
      %v1121 = vmul.f32 %v1073, 0.5
      %v1122 = vmul.f32 %v1074, 0.5
      %v1123 = vmul.f32 %v1075, 0.5
      %v1124 = vmul.f32 %v1076, 0.5
      %v1125 = vmul.f32 %v1077, 0.5
      %v1126 = vmul.f32 %v1078, 0.5
      %v1127 = vtanh.pop %v1079
      %v1128 = vtanh.pop %v1080
      %v1129 = vtanh.pop %v1081
      %v1130 = vtanh.pop %v1082
      %v1131 = vtanh.pop %v1083
      %v1132 = vtanh.pop %v1084
      %v1133 = vtanh.pop %v1085
      %v1134 = vtanh.pop %v1086
      %v1135 = vtanh.pop %v1087
      %v1136 = vtanh.pop %v1088
      %v1137 = vtanh.pop %v1089
      %v1138 = vtanh.pop %v1090
      %v1139 = vtanh.pop %v1091
      %v1140 = vtanh.pop %v1092
      %v1141 = vtanh.pop %v1093
      %v1142 = vtanh.pop %v1094
      %v1143 = vtanh.pop %v1095
      %v1144 = vtanh.pop %v1096
      %v1145 = vtanh.pop %v1097
      %v1146 = vtanh.pop %v1098
      %v1147 = vtanh.pop %v1099
      %v1148 = vtanh.pop %v1100
      %v1149 = vtanh.pop %v1101
      %v1150 = vtanh.pop %v1102
      %v1151 = vtanh.pop %v1103
      %v1152 = vtanh.pop %v1104
      %v1153 = vtanh.pop %v1105
      %v1154 = vtanh.pop %v1106
      %v1155 = vtanh.pop %v1107
      %v1156 = vtanh.pop %v1108
      %v1157 = vtanh.pop %v1109
      %v1158 = vtanh.pop %v1110
      %v1159 = vtanh.pop %v1111
      %v1160 = vtanh.pop %v1112
      %v1161 = vtanh.pop %v1113
      %v1162 = vtanh.pop %v1114
      %v1163 = vtanh.pop %v1115
      %v1164 = vtanh.pop %v1116
      %v1165 = vtanh.pop %v1117
      %v1166 = vtanh.pop %v1118
      %v1167 = vtanh.pop %v1119
      %v1168 = vtanh.pop %v1120
      %v1169 = vtanh.pop %v1121
      %v1170 = vtanh.pop %v1122
      %v1171 = vtanh.pop %v1123
      %v1172 = vtanh.pop %v1124
      %v1173 = vtanh.pop %v1125
      %v1174 = vtanh.pop %v1126
      %v1175 = vmul.f32 %v1079, %v1127
      %v1176 = vmul.f32 %v1080, %v1128
      %v1177 = vmul.f32 %v1081, %v1129
      %v1178 = vmul.f32 %v1082, %v1130
      %v1179 = vmul.f32 %v1083, %v1131
      %v1180 = vmul.f32 %v1084, %v1132
      %v1181 = vmul.f32 %v1085, %v1133
      %v1182 = vmul.f32 %v1086, %v1134
      %v1183 = vmul.f32 %v1087, %v1135
      %v1184 = vmul.f32 %v1088, %v1136
      %v1185 = vmul.f32 %v1089, %v1137
      %v1186 = vmul.f32 %v1090, %v1138
      %v1187 = vmul.f32 %v1091, %v1139
      %v1188 = vmul.f32 %v1092, %v1140
      %v1189 = vmul.f32 %v1093, %v1141
      %v1190 = vmul.f32 %v1094, %v1142
      %v1191 = vmul.f32 %v1095, %v1143
      %v1192 = vmul.f32 %v1096, %v1144
      %v1193 = vmul.f32 %v1097, %v1145
      %v1194 = vmul.f32 %v1098, %v1146
      %v1195 = vmul.f32 %v1099, %v1147
      %v1196 = vmul.f32 %v1100, %v1148
      %v1197 = vmul.f32 %v1101, %v1149
      %v1198 = vmul.f32 %v1102, %v1150
      %v1199 = vmul.f32 %v1103, %v1151
      %v1200 = vmul.f32 %v1104, %v1152
      %v1201 = vmul.f32 %v1105, %v1153
      %v1202 = vmul.f32 %v1106, %v1154
      %v1203 = vmul.f32 %v1107, %v1155
      %v1204 = vmul.f32 %v1108, %v1156
      %v1205 = vmul.f32 %v1109, %v1157
      %v1206 = vmul.f32 %v1110, %v1158
      %v1207 = vmul.f32 %v1111, %v1159
      %v1208 = vmul.f32 %v1112, %v1160
      %v1209 = vmul.f32 %v1113, %v1161
      %v1210 = vmul.f32 %v1114, %v1162
      %v1211 = vmul.f32 %v1115, %v1163
      %v1212 = vmul.f32 %v1116, %v1164
      %v1213 = vmul.f32 %v1117, %v1165
      %v1214 = vmul.f32 %v1118, %v1166
      %v1215 = vmul.f32 %v1119, %v1167
      %v1216 = vmul.f32 %v1120, %v1168
      %v1217 = vmul.f32 %v1121, %v1169
      %v1218 = vmul.f32 %v1122, %v1170
      %v1219 = vmul.f32 %v1123, %v1171
      %v1220 = vmul.f32 %v1124, %v1172
      %v1221 = vmul.f32 %v1125, %v1173
      %v1222 = vmul.f32 %v1126, %v1174
      %v1223 = vadd.f32 %v1175, %v1079
      %v1224 = vadd.f32 %v1176, %v1080
      %v1225 = vadd.f32 %v1177, %v1081
      %v1226 = vadd.f32 %v1178, %v1082
      %v1227 = vadd.f32 %v1179, %v1083
      %v1228 = vadd.f32 %v1180, %v1084
      %v1229 = vadd.f32 %v1181, %v1085
      %v1230 = vadd.f32 %v1182, %v1086
      %v1231 = vadd.f32 %v1183, %v1087
      %v1232 = vadd.f32 %v1184, %v1088
      %v1233 = vadd.f32 %v1185, %v1089
      %v1234 = vadd.f32 %v1186, %v1090
      %v1235 = vadd.f32 %v1187, %v1091
      %v1236 = vadd.f32 %v1188, %v1092
      %v1237 = vadd.f32 %v1189, %v1093
      %v1238 = vadd.f32 %v1190, %v1094
      %v1239 = vadd.f32 %v1191, %v1095
      %v1240 = vadd.f32 %v1192, %v1096
      %v1241 = vadd.f32 %v1193, %v1097
      %v1242 = vadd.f32 %v1194, %v1098
      %v1243 = vadd.f32 %v1195, %v1099
      %v1244 = vadd.f32 %v1196, %v1100
      %v1245 = vadd.f32 %v1197, %v1101
      %v1246 = vadd.f32 %v1198, %v1102
      %v1247 = vadd.f32 %v1199, %v1103
      %v1248 = vadd.f32 %v1200, %v1104
      %v1249 = vadd.f32 %v1201, %v1105
      %v1250 = vadd.f32 %v1202, %v1106
      %v1251 = vadd.f32 %v1203, %v1107
      %v1252 = vadd.f32 %v1204, %v1108
      %v1253 = vadd.f32 %v1205, %v1109
      %v1254 = vadd.f32 %v1206, %v1110
      %v1255 = vadd.f32 %v1207, %v1111
      %v1256 = vadd.f32 %v1208, %v1112
      %v1257 = vadd.f32 %v1209, %v1113
      %v1258 = vadd.f32 %v1210, %v1114
      %v1259 = vadd.f32 %v1211, %v1115
      %v1260 = vadd.f32 %v1212, %v1116
      %v1261 = vadd.f32 %v1213, %v1117
      %v1262 = vadd.f32 %v1214, %v1118
      %v1263 = vadd.f32 %v1215, %v1119
      %v1264 = vadd.f32 %v1216, %v1120
      %v1265 = vadd.f32 %v1217, %v1121
      %v1266 = vadd.f32 %v1218, %v1122
      %v1267 = vadd.f32 %v1219, %v1123
      %v1268 = vadd.f32 %v1220, %v1124
      %v1269 = vadd.f32 %v1221, %v1125
      %v1270 = vadd.f32 %v1222, %v1126
      %v1271 = vld [vmem:[%s3] sm:$0xf]
      %v1272 = vld [vmem:[%s3 + $0x4] sm:$0xf]
      %v1273 = vld [vmem:[%s3 + $0x8] sm:$0x3]
      %v1274 = vpack.c.bf16 %v1239, %v1223
      %v1275 = vpack.c.bf16 %v1240, %v1224
      %v1276 = vpack.c.bf16 %v1241, %v1225
      %v1277 = vpack.c.bf16 %v1242, %v1226
      %v1278 = vpack.c.bf16 %v1243, %v1227
      %v1279 = vpack.c.bf16 %v1244, %v1228
      %v1280 = vpack.c.bf16 %v1245, %v1229
      %v1281 = vpack.c.bf16 %v1246, %v1230
      %v1282 = vpack.c.bf16 %v1247, %v1231
      %v1283 = vpack.c.bf16 %v1248, %v1232
      %v1284 = vpack.c.bf16 %v1249, %v1233
      %v1285 = vpack.c.bf16 %v1250, %v1234
      %v1286 = vpack.c.bf16 %v1251, %v1235
      %v1287 = vpack.c.bf16 %v1252, %v1236
      %v1288 = vpack.c.bf16 %v1253, %v1237
      %v1289 = vpack.c.bf16 %v1254, %v1238
      %v1290 = vpack.c.bf16 %v1255, %v1255
      %v1291 = vpack.c.bf16 %v1256, %v1256
      %v1292 = vpack.c.bf16 %v1257, %v1257
      %v1293 = vpack.c.bf16 %v1258, %v1258
      %v1294 = vpack.c.bf16 %v1259, %v1259
      %v1295 = vpack.c.bf16 %v1260, %v1260
      %v1296 = vpack.c.bf16 %v1261, %v1261
      %v1297 = vpack.c.bf16 %v1262, %v1262
      %v1298 = vpack.c.bf16 %v1263, %v1263
      %v1299 = vpack.c.bf16 %v1264, %v1264
      %v1300 = vpack.c.bf16 %v1265, %v1265
      %v1301 = vpack.c.bf16 %v1266, %v1266
      %v1302 = vpack.c.bf16 %v1267, %v1267
      %v1303 = vpack.c.bf16 %v1268, %v1268
      %v1304 = vpack.c.bf16 %v1269, %v1269
      %v1305 = vpack.c.bf16 %v1270, %v1270
      %v1306 = vld [vmem:[%s4] sm:$0xff]
      %v1307 = vld [vmem:[%s4 + $0x8] sm:$0xff]
      %v1308 = vld [vmem:[%s4 + $0x10] sm:$0xf]
      %1310 = vset.pattern.permute.xlu0 0
      %1311 = vperm.xlu0 %1310, %v1306
      %v1312 = vpop.permute.xlu0 %1311
      %1315 = vset.pattern.permute.xlu0 0
      %1316 = vperm.xlu0 %1315, %v1307
      %v1317 = vpop.permute.xlu0 %1316
      %1320 = vset.pattern.permute.xlu0 0
      %1321 = vperm.xlu0 %1320, %v1308
      %v1322 = vpop.permute.xlu0 %1321
      %v1327 = vunpack.c.l.b16 %v1271
      %v1328 = vunpack.c.l.b16 %v1272
      %v1329 = vunpack.c.l.b16 %v1273
      %v1330 = vpack.c.b16 %v1328, %v1327
      %v1331 = vpack.c.b16 %v1329, %v1329
      %vm1332 = vcmask 162816
      %v1334 = vsel %vm1332, %v1330, 0
      %v1337 = vsel %vm1332, %v1331, 0
      %vm1339 = vcmask 1041408
      %v1341 = vsel %vm1339, %v1290, 0
      %v1344 = vsel %vm1339, %v1291, 0
      %v1347 = vsel %vm1339, %v1292, 0
      %v1350 = vsel %vm1339, %v1293, 0
      %v1353 = vsel %vm1339, %v1294, 0
      %v1356 = vsel %vm1339, %v1295, 0
      %v1359 = vsel %vm1339, %v1296, 0
      %v1362 = vsel %vm1339, %v1297, 0
      %v1365 = vsel %vm1339, %v1298, 0
      %v1368 = vsel %vm1339, %v1299, 0
      %v1371 = vsel %vm1339, %v1300, 0
      %v1374 = vsel %vm1339, %v1301, 0
      %v1377 = vsel %vm1339, %v1302, 0
      %v1380 = vsel %vm1339, %v1303, 0
      %v1383 = vsel %vm1339, %v1304, 0
      %v1386 = vsel %vm1339, %v1305, 0
      %1388 = vmatprep.subr.bf16.mxu0 %v1275
      %1389 = vmatpush1.bf16.msra.mxu0 %v1274
      %1390 = vmatprep.subr.bf16.mxu0 %v1344
      %1391 = vmatpush1.bf16.msra.mxu0 %v1341
      %1392 = vmatprep.subr.bf16.mxu0 0
      %1393 = vmatpush1.bf16.msra.mxu0 0
      %1394 = vmatprep.subr.bf16.mxu0 0
      %1395 = vmatpush1.bf16.msra.mxu0 0
      %1396 = vmatprep.subr.bf16.mxu0 0
      %1397 = vmatpush1.bf16.msra.mxu0 0
      %1398 = vmatprep.subr.bf16.mxu0 0
      %1399 = vmatpush1.bf16.msra.mxu0 0
      %1400 = vmatprep.subr.bf16.mxu0 0
      %1401 = vmatpush1.bf16.msra.mxu0 0
      %1402 = vmatprep.subr.bf16.mxu0 0
      %1403 = vmatpush1.bf16.msra.mxu0 0
      %1404 = vmatprep.subr.bf16.mxu0 0
      %1405 = vmatpush1.bf16.msra.mxu0 0
      %1406 = vmatprep.subr.bf16.mxu0 0
      %1407 = vmatpush1.bf16.msra.mxu0 0
      %1408 = vmatprep.subr.bf16.mxu0 0
      %1409 = vmatpush1.bf16.msra.mxu0 0
      %1410 = vmatprep.subr.bf16.mxu0 0
      %1411 = vmatpush1.bf16.msra.mxu0 0
      %1412 = vmatprep.subr.bf16.mxu0 0
      %1413 = vmatpush1.bf16.msra.mxu0 0
      %1414 = vmatprep.subr.bf16.mxu0 0
      %1415 = vmatpush1.bf16.msra.mxu0 0
      %1416 = vmatprep.subr.bf16.mxu0 0
      %1417 = vmatpush1.bf16.msra.mxu0 0
      %1418 = vmatprep.subr.bf16.mxu0 0
      %1419 = vmatpush1.bf16.msra.mxu0 0
      %1420 = vmatprep.mubr.bf16.mxu0 0
      %1421 = vmatmul.mubr.bf16.gmra.mrb[0].mxu0 %v1334
      %v1422 = vpop.f32.mrb[0].mxu0
      %v1423 = vadd.f32 %v1312, %v1422
      %v1424 = vpop.f32.mrb[0].mxu0
      %v1425 = vadd.f32 %v1312, %v1424
      %v1426 = vpop.f32.mrb[0].mxu0
      %v1427 = vadd.f32 %v1317, %v1426
      %v1428 = vpop.f32.mrb[0].mxu0
      %v1429 = vadd.f32 %v1317, %v1428
      %1430 = vmatprep.mubr.bf16.mxu0 0
      %1431 = vmatmul.mubr.bf16.gmra.mrb[0].mxu0 %v1337
      %v1432 = vpop.f32.mrb[0].mxu0
      %v1433 = vadd.f32 %v1322, %v1432
      %v1434 = vpop.f32.mrb[0].mxu0
      %v1435 = vadd.f32 %v1322, %v1434
      %v1436 = vpop.f32.mrb[0].mxu0
      %v1437 = vpop.f32.mrb[0].mxu0
      %1438 = vdwg.mxu0
      %1439 = vmatprep.subr.bf16.mxu0 %v1277
      %1440 = vmatpush1.bf16.msra.mxu0 %v1276
      %1441 = vmatprep.subr.bf16.mxu0 %v1350
      %1442 = vmatpush1.bf16.msra.mxu0 %v1347
      %1443 = vmatprep.subr.bf16.mxu0 0
      %1444 = vmatpush1.bf16.msra.mxu0 0
      %1445 = vmatprep.subr.bf16.mxu0 0
      %1446 = vmatpush1.bf16.msra.mxu0 0
      %1447 = vmatprep.subr.bf16.mxu0 0
      %1448 = vmatpush1.bf16.msra.mxu0 0
      %1449 = vmatprep.subr.bf16.mxu0 0
      %1450 = vmatpush1.bf16.msra.mxu0 0
      %1451 = vmatprep.subr.bf16.mxu0 0
      %1452 = vmatpush1.bf16.msra.mxu0 0
      %1453 = vmatprep.subr.bf16.mxu0 0
      %1454 = vmatpush1.bf16.msra.mxu0 0
      %1455 = vmatprep.subr.bf16.mxu0 0
      %1456 = vmatpush1.bf16.msra.mxu0 0
      %1457 = vmatprep.subr.bf16.mxu0 0
      %1458 = vmatpush1.bf16.msra.mxu0 0
      %1459 = vmatprep.subr.bf16.mxu0 0
      %1460 = vmatpush1.bf16.msra.mxu0 0
      %1461 = vmatprep.subr.bf16.mxu0 0
      %1462 = vmatpush1.bf16.msra.mxu0 0
      %1463 = vmatprep.subr.bf16.mxu0 0
      %1464 = vmatpush1.bf16.msra.mxu0 0
      %1465 = vmatprep.subr.bf16.mxu0 0
      %1466 = vmatpush1.bf16.msra.mxu0 0
      %1467 = vmatprep.subr.bf16.mxu0 0
      %1468 = vmatpush1.bf16.msra.mxu0 0
      %1469 = vmatprep.subr.bf16.mxu0 0
      %1470 = vmatpush1.bf16.msra.mxu0 0
      %1471 = vmatprep.mubr.bf16.mxu0 0
      %1472 = vmatmul.mubr.bf16.gmra.mrb[0].mxu0 %v1334
      %v1473 = vpop.f32.mrb[0].mxu0
      %v1474 = vadd.f32 %v1312, %v1473
      %v1475 = vpop.f32.mrb[0].mxu0
      %v1476 = vadd.f32 %v1312, %v1475
      %v1477 = vpop.f32.mrb[0].mxu0
      %v1478 = vadd.f32 %v1317, %v1477
      %v1479 = vpop.f32.mrb[0].mxu0
      %v1480 = vadd.f32 %v1317, %v1479
      %1481 = vmatprep.mubr.bf16.mxu0 0
      %1482 = vmatmul.mubr.bf16.gmra.mrb[0].mxu0 %v1337
      %v1483 = vpop.f32.mrb[0].mxu0
      %v1484 = vadd.f32 %v1322, %v1483
      %v1485 = vpop.f32.mrb[0].mxu0
      %v1486 = vadd.f32 %v1322, %v1485
      %v1487 = vpop.f32.mrb[0].mxu0
      %v1488 = vpop.f32.mrb[0].mxu0
      %1489 = vdwg.mxu0
      %1490 = vmatprep.subr.bf16.mxu0 %v1279
      %1491 = vmatpush1.bf16.msra.mxu0 %v1278
      %1492 = vmatprep.subr.bf16.mxu0 %v1356
      %1493 = vmatpush1.bf16.msra.mxu0 %v1353
      %1494 = vmatprep.subr.bf16.mxu0 0
      %1495 = vmatpush1.bf16.msra.mxu0 0
      %1496 = vmatprep.subr.bf16.mxu0 0
      %1497 = vmatpush1.bf16.msra.mxu0 0
      %1498 = vmatprep.subr.bf16.mxu0 0
      %1499 = vmatpush1.bf16.msra.mxu0 0
      %1500 = vmatprep.subr.bf16.mxu0 0
      %1501 = vmatpush1.bf16.msra.mxu0 0
      %1502 = vmatprep.subr.bf16.mxu0 0
      %1503 = vmatpush1.bf16.msra.mxu0 0
      %1504 = vmatprep.subr.bf16.mxu0 0
      %1505 = vmatpush1.bf16.msra.mxu0 0
      %1506 = vmatprep.subr.bf16.mxu0 0
      %1507 = vmatpush1.bf16.msra.mxu0 0
      %1508 = vmatprep.subr.bf16.mxu0 0
      %1509 = vmatpush1.bf16.msra.mxu0 0
      %1510 = vmatprep.subr.bf16.mxu0 0
      %1511 = vmatpush1.bf16.msra.mxu0 0
      %1512 = vmatprep.subr.bf16.mxu0 0
      %1513 = vmatpush1.bf16.msra.mxu0 0
      %1514 = vmatprep.subr.bf16.mxu0 0
      %1515 = vmatpush1.bf16.msra.mxu0 0
      %1516 = vmatprep.subr.bf16.mxu0 0
      %1517 = vmatpush1.bf16.msra.mxu0 0
      %1518 = vmatprep.subr.bf16.mxu0 0
      %1519 = vmatpush1.bf16.msra.mxu0 0
      %1520 = vmatprep.subr.bf16.mxu0 0
      %1521 = vmatpush1.bf16.msra.mxu0 0
      %1522 = vmatprep.mubr.bf16.mxu0 0
      %1523 = vmatmul.mubr.bf16.gmra.mrb[0].mxu0 %v1334
      %v1524 = vpop.f32.mrb[0].mxu0
      %v1525 = vadd.f32 %v1312, %v1524
      %v1526 = vpop.f32.mrb[0].mxu0
      %v1527 = vadd.f32 %v1312, %v1526
      %v1528 = vpop.f32.mrb[0].mxu0
      %v1529 = vadd.f32 %v1317, %v1528
      %v1530 = vpop.f32.mrb[0].mxu0
      %v1531 = vadd.f32 %v1317, %v1530
      %1532 = vmatprep.mubr.bf16.mxu0 0
      %1533 = vmatmul.mubr.bf16.gmra.mrb[0].mxu0 %v1337
      %v1534 = vpop.f32.mrb[0].mxu0
      %v1535 = vadd.f32 %v1322, %v1534
      %v1536 = vpop.f32.mrb[0].mxu0
      %v1537 = vadd.f32 %v1322, %v1536
      %v1538 = vpop.f32.mrb[0].mxu0
      %v1539 = vpop.f32.mrb[0].mxu0
      %1540 = vdwg.mxu0
      %1541 = vmatprep.subr.bf16.mxu0 %v1281
      %1542 = vmatpush1.bf16.msra.mxu0 %v1280
      %1543 = vmatprep.subr.bf16.mxu0 %v1362
      %1544 = vmatpush1.bf16.msra.mxu0 %v1359
      %1545 = vmatprep.subr.bf16.mxu0 0
      %1546 = vmatpush1.bf16.msra.mxu0 0
      %1547 = vmatprep.subr.bf16.mxu0 0
      %1548 = vmatpush1.bf16.msra.mxu0 0
      %1549 = vmatprep.subr.bf16.mxu0 0
      %1550 = vmatpush1.bf16.msra.mxu0 0
      %1551 = vmatprep.subr.bf16.mxu0 0
      %1552 = vmatpush1.bf16.msra.mxu0 0
      %1553 = vmatprep.subr.bf16.mxu0 0
      %1554 = vmatpush1.bf16.msra.mxu0 0
      %1555 = vmatprep.subr.bf16.mxu0 0
      %1556 = vmatpush1.bf16.msra.mxu0 0
      %1557 = vmatprep.subr.bf16.mxu0 0
      %1558 = vmatpush1.bf16.msra.mxu0 0
      %1559 = vmatprep.subr.bf16.mxu0 0
      %1560 = vmatpush1.bf16.msra.mxu0 0
      %1561 = vmatprep.subr.bf16.mxu0 0
      %1562 = vmatpush1.bf16.msra.mxu0 0
      %1563 = vmatprep.subr.bf16.mxu0 0
      %1564 = vmatpush1.bf16.msra.mxu0 0
      %1565 = vmatprep.subr.bf16.mxu0 0
      %1566 = vmatpush1.bf16.msra.mxu0 0
      %1567 = vmatprep.subr.bf16.mxu0 0
      %1568 = vmatpush1.bf16.msra.mxu0 0
      %1569 = vmatprep.subr.bf16.mxu0 0
      %1570 = vmatpush1.bf16.msra.mxu0 0
      %1571 = vmatprep.subr.bf16.mxu0 0
      %1572 = vmatpush1.bf16.msra.mxu0 0
      %1573 = vmatprep.mubr.bf16.mxu0 0
      %1574 = vmatmul.mubr.bf16.gmra.mrb[0].mxu0 %v1334
      %v1575 = vpop.f32.mrb[0].mxu0
      %v1576 = vadd.f32 %v1312, %v1575
      %v1577 = vpop.f32.mrb[0].mxu0
      %v1578 = vadd.f32 %v1312, %v1577
      %v1579 = vpop.f32.mrb[0].mxu0
      %v1580 = vadd.f32 %v1317, %v1579
      %v1581 = vpop.f32.mrb[0].mxu0
      %v1582 = vadd.f32 %v1317, %v1581
      %1583 = vmatprep.mubr.bf16.mxu0 0
      %1584 = vmatmul.mubr.bf16.gmra.mrb[0].mxu0 %v1337
      %v1585 = vpop.f32.mrb[0].mxu0
      %v1586 = vadd.f32 %v1322, %v1585
      %v1587 = vpop.f32.mrb[0].mxu0
      %v1588 = vadd.f32 %v1322, %v1587
      %v1589 = vpop.f32.mrb[0].mxu0
      %v1590 = vpop.f32.mrb[0].mxu0
      %1591 = vdwg.mxu0
      %1592 = vmatprep.subr.bf16.mxu0 %v1283
      %1593 = vmatpush1.bf16.msra.mxu0 %v1282
      %1594 = vmatprep.subr.bf16.mxu0 %v1368
      %1595 = vmatpush1.bf16.msra.mxu0 %v1365
      %1596 = vmatprep.subr.bf16.mxu0 0
      %1597 = vmatpush1.bf16.msra.mxu0 0
      %1598 = vmatprep.subr.bf16.mxu0 0
      %1599 = vmatpush1.bf16.msra.mxu0 0
      %1600 = vmatprep.subr.bf16.mxu0 0
      %1601 = vmatpush1.bf16.msra.mxu0 0
      %1602 = vmatprep.subr.bf16.mxu0 0
      %1603 = vmatpush1.bf16.msra.mxu0 0
      %1604 = vmatprep.subr.bf16.mxu0 0
      %1605 = vmatpush1.bf16.msra.mxu0 0
      %1606 = vmatprep.subr.bf16.mxu0 0
      %1607 = vmatpush1.bf16.msra.mxu0 0
      %1608 = vmatprep.subr.bf16.mxu0 0
      %1609 = vmatpush1.bf16.msra.mxu0 0
      %1610 = vmatprep.subr.bf16.mxu0 0
      %1611 = vmatpush1.bf16.msra.mxu0 0
      %1612 = vmatprep.subr.bf16.mxu0 0
      %1613 = vmatpush1.bf16.msra.mxu0 0
      %1614 = vmatprep.subr.bf16.mxu0 0
      %1615 = vmatpush1.bf16.msra.mxu0 0
      %1616 = vmatprep.subr.bf16.mxu0 0
      %1617 = vmatpush1.bf16.msra.mxu0 0
      %1618 = vmatprep.subr.bf16.mxu0 0
      %1619 = vmatpush1.bf16.msra.mxu0 0
      %1620 = vmatprep.subr.bf16.mxu0 0
      %1621 = vmatpush1.bf16.msra.mxu0 0
      %1622 = vmatprep.subr.bf16.mxu0 0
      %1623 = vmatpush1.bf16.msra.mxu0 0
      %1624 = vmatprep.mubr.bf16.mxu0 0
      %1625 = vmatmul.mubr.bf16.gmra.mrb[0].mxu0 %v1334
      %v1626 = vpop.f32.mrb[0].mxu0
      %v1627 = vadd.f32 %v1312, %v1626
      %v1628 = vpop.f32.mrb[0].mxu0
      %v1629 = vadd.f32 %v1312, %v1628
      %v1630 = vpop.f32.mrb[0].mxu0
      %v1631 = vadd.f32 %v1317, %v1630
      %v1632 = vpop.f32.mrb[0].mxu0
      %v1633 = vadd.f32 %v1317, %v1632
      %1634 = vmatprep.mubr.bf16.mxu0 0
      %1635 = vmatmul.mubr.bf16.gmra.mrb[0].mxu0 %v1337
      %v1636 = vpop.f32.mrb[0].mxu0
      %v1637 = vadd.f32 %v1322, %v1636
      %v1638 = vpop.f32.mrb[0].mxu0
      %v1639 = vadd.f32 %v1322, %v1638
      %v1640 = vpop.f32.mrb[0].mxu0
      %v1641 = vpop.f32.mrb[0].mxu0
      %1642 = vdwg.mxu0
      %1643 = vmatprep.subr.bf16.mxu0 %v1285
      %1644 = vmatpush1.bf16.msra.mxu0 %v1284
      %1645 = vmatprep.subr.bf16.mxu0 %v1374
      %1646 = vmatpush1.bf16.msra.mxu0 %v1371
      %1647 = vmatprep.subr.bf16.mxu0 0
      %1648 = vmatpush1.bf16.msra.mxu0 0
      %1649 = vmatprep.subr.bf16.mxu0 0
      %1650 = vmatpush1.bf16.msra.mxu0 0
      %1651 = vmatprep.subr.bf16.mxu0 0
      %1652 = vmatpush1.bf16.msra.mxu0 0
      %1653 = vmatprep.subr.bf16.mxu0 0
      %1654 = vmatpush1.bf16.msra.mxu0 0
      %1655 = vmatprep.subr.bf16.mxu0 0
      %1656 = vmatpush1.bf16.msra.mxu0 0
      %1657 = vmatprep.subr.bf16.mxu0 0
      %1658 = vmatpush1.bf16.msra.mxu0 0
      %1659 = vmatprep.subr.bf16.mxu0 0
      %1660 = vmatpush1.bf16.msra.mxu0 0
      %1661 = vmatprep.subr.bf16.mxu0 0
      %1662 = vmatpush1.bf16.msra.mxu0 0
      %1663 = vmatprep.subr.bf16.mxu0 0
      %1664 = vmatpush1.bf16.msra.mxu0 0
      %1665 = vmatprep.subr.bf16.mxu0 0
      %1666 = vmatpush1.bf16.msra.mxu0 0
      %1667 = vmatprep.subr.bf16.mxu0 0
      %1668 = vmatpush1.bf16.msra.mxu0 0
      %1669 = vmatprep.subr.bf16.mxu0 0
      %1670 = vmatpush1.bf16.msra.mxu0 0
      %1671 = vmatprep.subr.bf16.mxu0 0
      %1672 = vmatpush1.bf16.msra.mxu0 0
      %1673 = vmatprep.subr.bf16.mxu0 0
      %1674 = vmatpush1.bf16.msra.mxu0 0
      %1675 = vmatprep.mubr.bf16.mxu0 0
      %1676 = vmatmul.mubr.bf16.gmra.mrb[0].mxu0 %v1334
      %v1677 = vpop.f32.mrb[0].mxu0
      %v1678 = vadd.f32 %v1312, %v1677
      %v1679 = vpop.f32.mrb[0].mxu0
      %v1680 = vadd.f32 %v1312, %v1679
      %v1681 = vpop.f32.mrb[0].mxu0
      %v1682 = vadd.f32 %v1317, %v1681
      %v1683 = vpop.f32.mrb[0].mxu0
      %v1684 = vadd.f32 %v1317, %v1683
      %1685 = vmatprep.mubr.bf16.mxu0 0
      %1686 = vmatmul.mubr.bf16.gmra.mrb[0].mxu0 %v1337
      %v1687 = vpop.f32.mrb[0].mxu0
      %v1688 = vadd.f32 %v1322, %v1687
      %v1689 = vpop.f32.mrb[0].mxu0
      %v1690 = vadd.f32 %v1322, %v1689
      %v1691 = vpop.f32.mrb[0].mxu0
      %v1692 = vpop.f32.mrb[0].mxu0
      %1693 = vdwg.mxu0
      %1694 = vmatprep.subr.bf16.mxu0 %v1287
      %1695 = vmatpush1.bf16.msra.mxu0 %v1286
      %1696 = vmatprep.subr.bf16.mxu0 %v1380
      %1697 = vmatpush1.bf16.msra.mxu0 %v1377
      %1698 = vmatprep.subr.bf16.mxu0 0
      %1699 = vmatpush1.bf16.msra.mxu0 0
      %1700 = vmatprep.subr.bf16.mxu0 0
      %1701 = vmatpush1.bf16.msra.mxu0 0
      %1702 = vmatprep.subr.bf16.mxu0 0
      %1703 = vmatpush1.bf16.msra.mxu0 0
      %1704 = vmatprep.subr.bf16.mxu0 0
      %1705 = vmatpush1.bf16.msra.mxu0 0
      %1706 = vmatprep.subr.bf16.mxu0 0
      %1707 = vmatpush1.bf16.msra.mxu0 0
      %1708 = vmatprep.subr.bf16.mxu0 0
      %1709 = vmatpush1.bf16.msra.mxu0 0
      %1710 = vmatprep.subr.bf16.mxu0 0
      %1711 = vmatpush1.bf16.msra.mxu0 0
      %1712 = vmatprep.subr.bf16.mxu0 0
      %1713 = vmatpush1.bf16.msra.mxu0 0
      %1714 = vmatprep.subr.bf16.mxu0 0
      %1715 = vmatpush1.bf16.msra.mxu0 0
      %1716 = vmatprep.subr.bf16.mxu0 0
      %1717 = vmatpush1.bf16.msra.mxu0 0
      %1718 = vmatprep.subr.bf16.mxu0 0
      %1719 = vmatpush1.bf16.msra.mxu0 0
      %1720 = vmatprep.subr.bf16.mxu0 0
      %1721 = vmatpush1.bf16.msra.mxu0 0
      %1722 = vmatprep.subr.bf16.mxu0 0
      %1723 = vmatpush1.bf16.msra.mxu0 0
      %1724 = vmatprep.subr.bf16.mxu0 0
      %1725 = vmatpush1.bf16.msra.mxu0 0
      %1726 = vmatprep.mubr.bf16.mxu0 0
      %1727 = vmatmul.mubr.bf16.gmra.mrb[0].mxu0 %v1334
      %v1728 = vpop.f32.mrb[0].mxu0
      %v1729 = vadd.f32 %v1312, %v1728
      %v1730 = vpop.f32.mrb[0].mxu0
      %v1731 = vadd.f32 %v1312, %v1730
      %v1732 = vpop.f32.mrb[0].mxu0
      %v1733 = vadd.f32 %v1317, %v1732
      %v1734 = vpop.f32.mrb[0].mxu0
      %v1735 = vadd.f32 %v1317, %v1734
      %1736 = vmatprep.mubr.bf16.mxu0 0
      %1737 = vmatmul.mubr.bf16.gmra.mrb[0].mxu0 %v1337
      %v1738 = vpop.f32.mrb[0].mxu0
      %v1739 = vadd.f32 %v1322, %v1738
      %v1740 = vpop.f32.mrb[0].mxu0
      %v1741 = vadd.f32 %v1322, %v1740
      %v1742 = vpop.f32.mrb[0].mxu0
      %v1743 = vpop.f32.mrb[0].mxu0
      %1744 = vdwg.mxu0
      %1745 = vmatprep.subr.bf16.mxu0 %v1289
      %1746 = vmatpush1.bf16.msra.mxu0 %v1288
      %1747 = vmatprep.subr.bf16.mxu0 %v1386
      %1748 = vmatpush1.bf16.msra.mxu0 %v1383
      %1749 = vmatprep.subr.bf16.mxu0 0
      %1750 = vmatpush1.bf16.msra.mxu0 0
      %1751 = vmatprep.subr.bf16.mxu0 0
      %1752 = vmatpush1.bf16.msra.mxu0 0
      %1753 = vmatprep.subr.bf16.mxu0 0
      %1754 = vmatpush1.bf16.msra.mxu0 0
      %1755 = vmatprep.subr.bf16.mxu0 0
      %1756 = vmatpush1.bf16.msra.mxu0 0
      %1757 = vmatprep.subr.bf16.mxu0 0
      %1758 = vmatpush1.bf16.msra.mxu0 0
      %1759 = vmatprep.subr.bf16.mxu0 0
      %1760 = vmatpush1.bf16.msra.mxu0 0
      %1761 = vmatprep.subr.bf16.mxu0 0
      %1762 = vmatpush1.bf16.msra.mxu0 0
      %1763 = vmatprep.subr.bf16.mxu0 0
      %1764 = vmatpush1.bf16.msra.mxu0 0
      %1765 = vmatprep.subr.bf16.mxu0 0
      %1766 = vmatpush1.bf16.msra.mxu0 0
      %1767 = vmatprep.subr.bf16.mxu0 0
      %1768 = vmatpush1.bf16.msra.mxu0 0
      %1769 = vmatprep.subr.bf16.mxu0 0
      %1770 = vmatpush1.bf16.msra.mxu0 0
      %1771 = vmatprep.subr.bf16.mxu0 0
      %1772 = vmatpush1.bf16.msra.mxu0 0
      %1773 = vmatprep.subr.bf16.mxu0 0
      %1774 = vmatpush1.bf16.msra.mxu0 0
      %1775 = vmatprep.subr.bf16.mxu0 0
      %1776 = vmatpush1.bf16.msra.mxu0 0
      %1777 = vmatprep.mubr.bf16.mxu0 0
      %1778 = vmatmul.mubr.bf16.gmra.mrb[0].mxu0 %v1334
      %v1779 = vpop.f32.mrb[0].mxu0
      %v1780 = vadd.f32 %v1312, %v1779
      %v1781 = vpop.f32.mrb[0].mxu0
      %v1782 = vadd.f32 %v1312, %v1781
      %v1783 = vpop.f32.mrb[0].mxu0
      %v1784 = vadd.f32 %v1317, %v1783
      %v1785 = vpop.f32.mrb[0].mxu0
      %v1786 = vadd.f32 %v1317, %v1785
      %1787 = vmatprep.mubr.bf16.mxu0 0
      %1788 = vmatmul.mubr.bf16.gmra.mrb[0].mxu0 %v1337
      %v1789 = vpop.f32.mrb[0].mxu0
      %v1790 = vadd.f32 %v1322, %v1789
      %v1791 = vpop.f32.mrb[0].mxu0
      %v1792 = vadd.f32 %v1322, %v1791
      %v1793 = vpop.f32.mrb[0].mxu0
      %v1794 = vpop.f32.mrb[0].mxu0
      %1795 = vdwg.mxu0
      %v1796 = vmul.f32 %v1423, 0.5
      %v1797 = vmul.f32 %v1425, 0.5
      %v1798 = vmul.f32 %v1474, 0.5
      %v1799 = vmul.f32 %v1476, 0.5
      %v1800 = vmul.f32 %v1525, 0.5
      %v1801 = vmul.f32 %v1527, 0.5
      %v1802 = vmul.f32 %v1576, 0.5
      %v1803 = vmul.f32 %v1578, 0.5
      %v1804 = vmul.f32 %v1627, 0.5
      %v1805 = vmul.f32 %v1629, 0.5
      %v1806 = vmul.f32 %v1678, 0.5
      %v1807 = vmul.f32 %v1680, 0.5
      %v1808 = vmul.f32 %v1729, 0.5
      %v1809 = vmul.f32 %v1731, 0.5
      %v1810 = vmul.f32 %v1780, 0.5
      %v1811 = vmul.f32 %v1782, 0.5
      %v1812 = vmul.f32 %v1427, 0.5
      %v1813 = vmul.f32 %v1429, 0.5
      %v1814 = vmul.f32 %v1478, 0.5
      %v1815 = vmul.f32 %v1480, 0.5
      %v1816 = vmul.f32 %v1529, 0.5
      %v1817 = vmul.f32 %v1531, 0.5
      %v1818 = vmul.f32 %v1580, 0.5
      %v1819 = vmul.f32 %v1582, 0.5
      %v1820 = vmul.f32 %v1631, 0.5
      %v1821 = vmul.f32 %v1633, 0.5
      %v1822 = vmul.f32 %v1682, 0.5
      %v1823 = vmul.f32 %v1684, 0.5
      %v1824 = vmul.f32 %v1733, 0.5
      %v1825 = vmul.f32 %v1735, 0.5
      %v1826 = vmul.f32 %v1784, 0.5
      %v1827 = vmul.f32 %v1786, 0.5
      %v1828 = vmul.f32 %v1433, 0.5
      %v1829 = vmul.f32 %v1435, 0.5
      %v1830 = vmul.f32 %v1484, 0.5
      %v1831 = vmul.f32 %v1486, 0.5
      %v1832 = vmul.f32 %v1535, 0.5
      %v1833 = vmul.f32 %v1537, 0.5
      %v1834 = vmul.f32 %v1586, 0.5
      %v1835 = vmul.f32 %v1588, 0.5
      %v1836 = vmul.f32 %v1637, 0.5
      %v1837 = vmul.f32 %v1639, 0.5
      %v1838 = vmul.f32 %v1688, 0.5
      %v1839 = vmul.f32 %v1690, 0.5
      %v1840 = vmul.f32 %v1739, 0.5
      %v1841 = vmul.f32 %v1741, 0.5
      %v1842 = vmul.f32 %v1790, 0.5
      %v1843 = vmul.f32 %v1792, 0.5
      %v1844 = vtanh.pop %v1796
      %v1845 = vtanh.pop %v1797
      %v1846 = vtanh.pop %v1798
      %v1847 = vtanh.pop %v1799
      %v1848 = vtanh.pop %v1800
      %v1849 = vtanh.pop %v1801
      %v1850 = vtanh.pop %v1802
      %v1851 = vtanh.pop %v1803
      %v1852 = vtanh.pop %v1804
      %v1853 = vtanh.pop %v1805
      %v1854 = vtanh.pop %v1806
      %v1855 = vtanh.pop %v1807
      %v1856 = vtanh.pop %v1808
      %v1857 = vtanh.pop %v1809
      %v1858 = vtanh.pop %v1810
      %v1859 = vtanh.pop %v1811
      %v1860 = vtanh.pop %v1812
      %v1861 = vtanh.pop %v1813
      %v1862 = vtanh.pop %v1814
      %v1863 = vtanh.pop %v1815
      %v1864 = vtanh.pop %v1816
      %v1865 = vtanh.pop %v1817
      %v1866 = vtanh.pop %v1818
      %v1867 = vtanh.pop %v1819
      %v1868 = vtanh.pop %v1820
      %v1869 = vtanh.pop %v1821
      %v1870 = vtanh.pop %v1822
      %v1871 = vtanh.pop %v1823
      %v1872 = vtanh.pop %v1824
      %v1873 = vtanh.pop %v1825
      %v1874 = vtanh.pop %v1826
      %v1875 = vtanh.pop %v1827
      %v1876 = vtanh.pop %v1828
      %v1877 = vtanh.pop %v1829
      %v1878 = vtanh.pop %v1830
      %v1879 = vtanh.pop %v1831
      %v1880 = vtanh.pop %v1832
      %v1881 = vtanh.pop %v1833
      %v1882 = vtanh.pop %v1834
      %v1883 = vtanh.pop %v1835
      %v1884 = vtanh.pop %v1836
      %v1885 = vtanh.pop %v1837
      %v1886 = vtanh.pop %v1838
      %v1887 = vtanh.pop %v1839
      %v1888 = vtanh.pop %v1840
      %v1889 = vtanh.pop %v1841
      %v1890 = vtanh.pop %v1842
      %v1891 = vtanh.pop %v1843
      %v1892 = vmul.f32 %v1796, %v1844
      %v1893 = vmul.f32 %v1797, %v1845
      %v1894 = vmul.f32 %v1798, %v1846
      %v1895 = vmul.f32 %v1799, %v1847
      %v1896 = vmul.f32 %v1800, %v1848
      %v1897 = vmul.f32 %v1801, %v1849
      %v1898 = vmul.f32 %v1802, %v1850
      %v1899 = vmul.f32 %v1803, %v1851
      %v1900 = vmul.f32 %v1804, %v1852
      %v1901 = vmul.f32 %v1805, %v1853
      %v1902 = vmul.f32 %v1806, %v1854
      %v1903 = vmul.f32 %v1807, %v1855
      %v1904 = vmul.f32 %v1808, %v1856
      %v1905 = vmul.f32 %v1809, %v1857
      %v1906 = vmul.f32 %v1810, %v1858
      %v1907 = vmul.f32 %v1811, %v1859
      %v1908 = vmul.f32 %v1812, %v1860
      %v1909 = vmul.f32 %v1813, %v1861
      %v1910 = vmul.f32 %v1814, %v1862
      %v1911 = vmul.f32 %v1815, %v1863
      %v1912 = vmul.f32 %v1816, %v1864
      %v1913 = vmul.f32 %v1817, %v1865
      %v1914 = vmul.f32 %v1818, %v1866
      %v1915 = vmul.f32 %v1819, %v1867
      %v1916 = vmul.f32 %v1820, %v1868
      %v1917 = vmul.f32 %v1821, %v1869
      %v1918 = vmul.f32 %v1822, %v1870
      %v1919 = vmul.f32 %v1823, %v1871
      %v1920 = vmul.f32 %v1824, %v1872
      %v1921 = vmul.f32 %v1825, %v1873
      %v1922 = vmul.f32 %v1826, %v1874
      %v1923 = vmul.f32 %v1827, %v1875
      %v1924 = vmul.f32 %v1828, %v1876
      %v1925 = vmul.f32 %v1829, %v1877
      %v1926 = vmul.f32 %v1830, %v1878
      %v1927 = vmul.f32 %v1831, %v1879
      %v1928 = vmul.f32 %v1832, %v1880
      %v1929 = vmul.f32 %v1833, %v1881
      %v1930 = vmul.f32 %v1834, %v1882
      %v1931 = vmul.f32 %v1835, %v1883
      %v1932 = vmul.f32 %v1836, %v1884
      %v1933 = vmul.f32 %v1837, %v1885
      %v1934 = vmul.f32 %v1838, %v1886
      %v1935 = vmul.f32 %v1839, %v1887
      %v1936 = vmul.f32 %v1840, %v1888
      %v1937 = vmul.f32 %v1841, %v1889
      %v1938 = vmul.f32 %v1842, %v1890
      %v1939 = vmul.f32 %v1843, %v1891
      %v1940 = vadd.f32 %v1892, %v1796
      %v1941 = vadd.f32 %v1893, %v1797
      %v1942 = vadd.f32 %v1894, %v1798
      %v1943 = vadd.f32 %v1895, %v1799
      %v1944 = vadd.f32 %v1896, %v1800
      %v1945 = vadd.f32 %v1897, %v1801
      %v1946 = vadd.f32 %v1898, %v1802
      %v1947 = vadd.f32 %v1899, %v1803
      %v1948 = vadd.f32 %v1900, %v1804
      %v1949 = vadd.f32 %v1901, %v1805
      %v1950 = vadd.f32 %v1902, %v1806
      %v1951 = vadd.f32 %v1903, %v1807
      %v1952 = vadd.f32 %v1904, %v1808
      %v1953 = vadd.f32 %v1905, %v1809
      %v1954 = vadd.f32 %v1906, %v1810
      %v1955 = vadd.f32 %v1907, %v1811
      %v1956 = vadd.f32 %v1908, %v1812
      %v1957 = vadd.f32 %v1909, %v1813
      %v1958 = vadd.f32 %v1910, %v1814
      %v1959 = vadd.f32 %v1911, %v1815
      %v1960 = vadd.f32 %v1912, %v1816
      %v1961 = vadd.f32 %v1913, %v1817
      %v1962 = vadd.f32 %v1914, %v1818
      %v1963 = vadd.f32 %v1915, %v1819
      %v1964 = vadd.f32 %v1916, %v1820
      %v1965 = vadd.f32 %v1917, %v1821
      %v1966 = vadd.f32 %v1918, %v1822
      %v1967 = vadd.f32 %v1919, %v1823
      %v1968 = vadd.f32 %v1920, %v1824
      %v1969 = vadd.f32 %v1921, %v1825
      %v1970 = vadd.f32 %v1922, %v1826
      %v1971 = vadd.f32 %v1923, %v1827
      %v1972 = vadd.f32 %v1924, %v1828
      %v1973 = vadd.f32 %v1925, %v1829
      %v1974 = vadd.f32 %v1926, %v1830
      %v1975 = vadd.f32 %v1927, %v1831
      %v1976 = vadd.f32 %v1928, %v1832
      %v1977 = vadd.f32 %v1929, %v1833
      %v1978 = vadd.f32 %v1930, %v1834
      %v1979 = vadd.f32 %v1931, %v1835
      %v1980 = vadd.f32 %v1932, %v1836
      %v1981 = vadd.f32 %v1933, %v1837
      %v1982 = vadd.f32 %v1934, %v1838
      %v1983 = vadd.f32 %v1935, %v1839
      %v1984 = vadd.f32 %v1936, %v1840
      %v1985 = vadd.f32 %v1937, %v1841
      %v1986 = vadd.f32 %v1938, %v1842
      %v1987 = vadd.f32 %v1939, %v1843
      %s1988 = scalar_lea.vmem %s3, 12
      %v1989 = vld [vmem:[%s1988] sm:$0xf]
      %v1990 = vld [vmem:[%s1988 + $0x4] sm:$0xf]
      %v1991 = vld [vmem:[%s1988 + $0x8] sm:$0x3]
      %v1992 = vpack.c.bf16 %v1956, %v1940
      %v1993 = vpack.c.bf16 %v1957, %v1941
      %v1994 = vpack.c.bf16 %v1958, %v1942
      %v1995 = vpack.c.bf16 %v1959, %v1943
      %v1996 = vpack.c.bf16 %v1960, %v1944
      %v1997 = vpack.c.bf16 %v1961, %v1945
      %v1998 = vpack.c.bf16 %v1962, %v1946
      %v1999 = vpack.c.bf16 %v1963, %v1947
      %v2000 = vpack.c.bf16 %v1964, %v1948
      %v2001 = vpack.c.bf16 %v1965, %v1949
      %v2002 = vpack.c.bf16 %v1966, %v1950
      %v2003 = vpack.c.bf16 %v1967, %v1951
      %v2004 = vpack.c.bf16 %v1968, %v1952
      %v2005 = vpack.c.bf16 %v1969, %v1953
      %v2006 = vpack.c.bf16 %v1970, %v1954
      %v2007 = vpack.c.bf16 %v1971, %v1955
      %v2008 = vpack.c.bf16 %v1972, %v1972
      %v2009 = vpack.c.bf16 %v1973, %v1973
      %v2010 = vpack.c.bf16 %v1974, %v1974
      %v2011 = vpack.c.bf16 %v1975, %v1975
      %v2012 = vpack.c.bf16 %v1976, %v1976
      %v2013 = vpack.c.bf16 %v1977, %v1977
      %v2014 = vpack.c.bf16 %v1978, %v1978
      %v2015 = vpack.c.bf16 %v1979, %v1979
      %v2016 = vpack.c.bf16 %v1980, %v1980
      %v2017 = vpack.c.bf16 %v1981, %v1981
      %v2018 = vpack.c.bf16 %v1982, %v1982
      %v2019 = vpack.c.bf16 %v1983, %v1983
      %v2020 = vpack.c.bf16 %v1984, %v1984
      %v2021 = vpack.c.bf16 %v1985, %v1985
      %v2022 = vpack.c.bf16 %v1986, %v1986
      %v2023 = vpack.c.bf16 %v1987, %v1987
      %s2024 = scalar_lea.vmem %s4, 24
      %v2025 = vld [vmem:[%s2024] sm:$0xff]
      %v2026 = vld [vmem:[%s2024 + $0x8] sm:$0xff]
      %v2027 = vld [vmem:[%s2024 + $0x10] sm:$0xf]
      %2029 = vset.pattern.permute.xlu0 0
      %2030 = vperm.xlu0 %2029, %v2025
      %v2031 = vpop.permute.xlu0 %2030
      %2034 = vset.pattern.permute.xlu0 0
      %2035 = vperm.xlu0 %2034, %v2026
      %v2036 = vpop.permute.xlu0 %2035
      %2039 = vset.pattern.permute.xlu0 0
      %2040 = vperm.xlu0 %2039, %v2027
      %v2041 = vpop.permute.xlu0 %2040
      %v2046 = vunpack.c.l.b16 %v1989
      %v2047 = vunpack.c.l.b16 %v1990
      %v2048 = vunpack.c.l.b16 %v1991
      %v2049 = vpack.c.b16 %v2047, %v2046
      %v2050 = vpack.c.b16 %v2048, %v2048
      %v2052 = vsel %vm1332, %v2049, 0
      %v2055 = vsel %vm1332, %v2050, 0
      %v2058 = vsel %vm1339, %v2008, 0
      %v2061 = vsel %vm1339, %v2009, 0
      %v2064 = vsel %vm1339, %v2010, 0
      %v2067 = vsel %vm1339, %v2011, 0
      %v2070 = vsel %vm1339, %v2012, 0
      %v2073 = vsel %vm1339, %v2013, 0
      %v2076 = vsel %vm1339, %v2014, 0
      %v2079 = vsel %vm1339, %v2015, 0
      %v2082 = vsel %vm1339, %v2016, 0
      %v2085 = vsel %vm1339, %v2017, 0
      %v2088 = vsel %vm1339, %v2018, 0
      %v2091 = vsel %vm1339, %v2019, 0
      %v2094 = vsel %vm1339, %v2020, 0
      %v2097 = vsel %vm1339, %v2021, 0
      %v2100 = vsel %vm1339, %v2022, 0
      %v2103 = vsel %vm1339, %v2023, 0
      %2105 = vmatprep.subr.bf16.mxu0 %v1993
      %2106 = vmatpush1.bf16.msra.mxu0 %v1992
      %2107 = vmatprep.subr.bf16.mxu0 %v2061
      %2108 = vmatpush1.bf16.msra.mxu0 %v2058
      %2109 = vmatprep.subr.bf16.mxu0 0
      %2110 = vmatpush1.bf16.msra.mxu0 0
      %2111 = vmatprep.subr.bf16.mxu0 0
      %2112 = vmatpush1.bf16.msra.mxu0 0
      %2113 = vmatprep.subr.bf16.mxu0 0
      %2114 = vmatpush1.bf16.msra.mxu0 0
      %2115 = vmatprep.subr.bf16.mxu0 0
      %2116 = vmatpush1.bf16.msra.mxu0 0
      %2117 = vmatprep.subr.bf16.mxu0 0
      %2118 = vmatpush1.bf16.msra.mxu0 0
      %2119 = vmatprep.subr.bf16.mxu0 0
      %2120 = vmatpush1.bf16.msra.mxu0 0
      %2121 = vmatprep.subr.bf16.mxu0 0
      %2122 = vmatpush1.bf16.msra.mxu0 0
      %2123 = vmatprep.subr.bf16.mxu0 0
      %2124 = vmatpush1.bf16.msra.mxu0 0
      %2125 = vmatprep.subr.bf16.mxu0 0
      %2126 = vmatpush1.bf16.msra.mxu0 0
      %2127 = vmatprep.subr.bf16.mxu0 0
      %2128 = vmatpush1.bf16.msra.mxu0 0
      %2129 = vmatprep.subr.bf16.mxu0 0
      %2130 = vmatpush1.bf16.msra.mxu0 0
      %2131 = vmatprep.subr.bf16.mxu0 0
      %2132 = vmatpush1.bf16.msra.mxu0 0
      %2133 = vmatprep.subr.bf16.mxu0 0
      %2134 = vmatpush1.bf16.msra.mxu0 0
      %2135 = vmatprep.subr.bf16.mxu0 0
      %2136 = vmatpush1.bf16.msra.mxu0 0
      %2137 = vmatprep.mubr.bf16.mxu0 0
      %2138 = vmatmul.mubr.bf16.gmra.mrb[0].mxu0 %v2052
      %v2139 = vpop.f32.mrb[0].mxu0
      %v2140 = vadd.f32 %v2031, %v2139
      %v2141 = vpop.f32.mrb[0].mxu0
      %v2142 = vadd.f32 %v2031, %v2141
      %v2143 = vpop.f32.mrb[0].mxu0
      %v2144 = vadd.f32 %v2036, %v2143
      %v2145 = vpop.f32.mrb[0].mxu0
      %v2146 = vadd.f32 %v2036, %v2145
      %2147 = vmatprep.mubr.bf16.mxu0 0
      %2148 = vmatmul.mubr.bf16.gmra.mrb[0].mxu0 %v2055
      %v2149 = vpop.f32.mrb[0].mxu0
      %v2150 = vadd.f32 %v2041, %v2149
      %v2151 = vpop.f32.mrb[0].mxu0
      %v2152 = vadd.f32 %v2041, %v2151
      %v2153 = vpop.f32.mrb[0].mxu0
      %v2154 = vpop.f32.mrb[0].mxu0
      %2155 = vdwg.mxu0
      %2156 = vmatprep.subr.bf16.mxu0 %v1995
      %2157 = vmatpush1.bf16.msra.mxu0 %v1994
      %2158 = vmatprep.subr.bf16.mxu0 %v2067
      %2159 = vmatpush1.bf16.msra.mxu0 %v2064
      %2160 = vmatprep.subr.bf16.mxu0 0
      %2161 = vmatpush1.bf16.msra.mxu0 0
      %2162 = vmatprep.subr.bf16.mxu0 0
      %2163 = vmatpush1.bf16.msra.mxu0 0
      %2164 = vmatprep.subr.bf16.mxu0 0
      %2165 = vmatpush1.bf16.msra.mxu0 0
      %2166 = vmatprep.subr.bf16.mxu0 0
      %2167 = vmatpush1.bf16.msra.mxu0 0
      %2168 = vmatprep.subr.bf16.mxu0 0
      %2169 = vmatpush1.bf16.msra.mxu0 0
      %2170 = vmatprep.subr.bf16.mxu0 0
      %2171 = vmatpush1.bf16.msra.mxu0 0
      %2172 = vmatprep.subr.bf16.mxu0 0
      %2173 = vmatpush1.bf16.msra.mxu0 0
      %2174 = vmatprep.subr.bf16.mxu0 0
      %2175 = vmatpush1.bf16.msra.mxu0 0
      %2176 = vmatprep.subr.bf16.mxu0 0
      %2177 = vmatpush1.bf16.msra.mxu0 0
      %2178 = vmatprep.subr.bf16.mxu0 0
      %2179 = vmatpush1.bf16.msra.mxu0 0
      %2180 = vmatprep.subr.bf16.mxu0 0
      %2181 = vmatpush1.bf16.msra.mxu0 0
      %2182 = vmatprep.subr.bf16.mxu0 0
      %2183 = vmatpush1.bf16.msra.mxu0 0
      %2184 = vmatprep.subr.bf16.mxu0 0
      %2185 = vmatpush1.bf16.msra.mxu0 0
      %2186 = vmatprep.subr.bf16.mxu0 0
      %2187 = vmatpush1.bf16.msra.mxu0 0
      %2188 = vmatprep.mubr.bf16.mxu0 0
      %2189 = vmatmul.mubr.bf16.gmra.mrb[0].mxu0 %v2052
      %v2190 = vpop.f32.mrb[0].mxu0
      %v2191 = vadd.f32 %v2031, %v2190
      %v2192 = vpop.f32.mrb[0].mxu0
      %v2193 = vadd.f32 %v2031, %v2192
      %v2194 = vpop.f32.mrb[0].mxu0
      %v2195 = vadd.f32 %v2036, %v2194
      %v2196 = vpop.f32.mrb[0].mxu0
      %v2197 = vadd.f32 %v2036, %v2196
      %2198 = vmatprep.mubr.bf16.mxu0 0
      %2199 = vmatmul.mubr.bf16.gmra.mrb[0].mxu0 %v2055
      %v2200 = vpop.f32.mrb[0].mxu0
      %v2201 = vadd.f32 %v2041, %v2200
      %v2202 = vpop.f32.mrb[0].mxu0
      %v2203 = vadd.f32 %v2041, %v2202
      %v2204 = vpop.f32.mrb[0].mxu0
      %v2205 = vpop.f32.mrb[0].mxu0
      %2206 = vdwg.mxu0
      %2207 = vmatprep.subr.bf16.mxu0 %v1997
      %2208 = vmatpush1.bf16.msra.mxu0 %v1996
      %2209 = vmatprep.subr.bf16.mxu0 %v2073
      %2210 = vmatpush1.bf16.msra.mxu0 %v2070
      %2211 = vmatprep.subr.bf16.mxu0 0
      %2212 = vmatpush1.bf16.msra.mxu0 0
      %2213 = vmatprep.subr.bf16.mxu0 0
      %2214 = vmatpush1.bf16.msra.mxu0 0
      %2215 = vmatprep.subr.bf16.mxu0 0
      %2216 = vmatpush1.bf16.msra.mxu0 0
      %2217 = vmatprep.subr.bf16.mxu0 0
      %2218 = vmatpush1.bf16.msra.mxu0 0
      %2219 = vmatprep.subr.bf16.mxu0 0
      %2220 = vmatpush1.bf16.msra.mxu0 0
      %2221 = vmatprep.subr.bf16.mxu0 0
      %2222 = vmatpush1.bf16.msra.mxu0 0
      %2223 = vmatprep.subr.bf16.mxu0 0
      %2224 = vmatpush1.bf16.msra.mxu0 0
      %2225 = vmatprep.subr.bf16.mxu0 0
      %2226 = vmatpush1.bf16.msra.mxu0 0
      %2227 = vmatprep.subr.bf16.mxu0 0
      %2228 = vmatpush1.bf16.msra.mxu0 0
      %2229 = vmatprep.subr.bf16.mxu0 0
      %2230 = vmatpush1.bf16.msra.mxu0 0
      %2231 = vmatprep.subr.bf16.mxu0 0
      %2232 = vmatpush1.bf16.msra.mxu0 0
      %2233 = vmatprep.subr.bf16.mxu0 0
      %2234 = vmatpush1.bf16.msra.mxu0 0
      %2235 = vmatprep.subr.bf16.mxu0 0
      %2236 = vmatpush1.bf16.msra.mxu0 0
      %2237 = vmatprep.subr.bf16.mxu0 0
      %2238 = vmatpush1.bf16.msra.mxu0 0
      %2239 = vmatprep.mubr.bf16.mxu0 0
      %2240 = vmatmul.mubr.bf16.gmra.mrb[0].mxu0 %v2052
      %v2241 = vpop.f32.mrb[0].mxu0
      %v2242 = vadd.f32 %v2031, %v2241
      %v2243 = vpop.f32.mrb[0].mxu0
      %v2244 = vadd.f32 %v2031, %v2243
      %v2245 = vpop.f32.mrb[0].mxu0
      %v2246 = vadd.f32 %v2036, %v2245
      %v2247 = vpop.f32.mrb[0].mxu0
      %v2248 = vadd.f32 %v2036, %v2247
      %2249 = vmatprep.mubr.bf16.mxu0 0
      %2250 = vmatmul.mubr.bf16.gmra.mrb[0].mxu0 %v2055
      %v2251 = vpop.f32.mrb[0].mxu0
      %v2252 = vadd.f32 %v2041, %v2251
      %v2253 = vpop.f32.mrb[0].mxu0
      %v2254 = vadd.f32 %v2041, %v2253
      %v2255 = vpop.f32.mrb[0].mxu0
      %v2256 = vpop.f32.mrb[0].mxu0
      %2257 = vdwg.mxu0
      %2258 = vmatprep.subr.bf16.mxu0 %v1999
      %2259 = vmatpush1.bf16.msra.mxu0 %v1998
      %2260 = vmatprep.subr.bf16.mxu0 %v2079
      %2261 = vmatpush1.bf16.msra.mxu0 %v2076
      %2262 = vmatprep.subr.bf16.mxu0 0
      %2263 = vmatpush1.bf16.msra.mxu0 0
      %2264 = vmatprep.subr.bf16.mxu0 0
      %2265 = vmatpush1.bf16.msra.mxu0 0
      %2266 = vmatprep.subr.bf16.mxu0 0
      %2267 = vmatpush1.bf16.msra.mxu0 0
      %2268 = vmatprep.subr.bf16.mxu0 0
      %2269 = vmatpush1.bf16.msra.mxu0 0
      %2270 = vmatprep.subr.bf16.mxu0 0
      %2271 = vmatpush1.bf16.msra.mxu0 0
      %2272 = vmatprep.subr.bf16.mxu0 0
      %2273 = vmatpush1.bf16.msra.mxu0 0
      %2274 = vmatprep.subr.bf16.mxu0 0
      %2275 = vmatpush1.bf16.msra.mxu0 0
      %2276 = vmatprep.subr.bf16.mxu0 0
      %2277 = vmatpush1.bf16.msra.mxu0 0
      %2278 = vmatprep.subr.bf16.mxu0 0
      %2279 = vmatpush1.bf16.msra.mxu0 0
      %2280 = vmatprep.subr.bf16.mxu0 0
      %2281 = vmatpush1.bf16.msra.mxu0 0
      %2282 = vmatprep.subr.bf16.mxu0 0
      %2283 = vmatpush1.bf16.msra.mxu0 0
      %2284 = vmatprep.subr.bf16.mxu0 0
      %2285 = vmatpush1.bf16.msra.mxu0 0
      %2286 = vmatprep.subr.bf16.mxu0 0
      %2287 = vmatpush1.bf16.msra.mxu0 0
      %2288 = vmatprep.subr.bf16.mxu0 0
      %2289 = vmatpush1.bf16.msra.mxu0 0
      %2290 = vmatprep.mubr.bf16.mxu0 0
      %2291 = vmatmul.mubr.bf16.gmra.mrb[0].mxu0 %v2052
      %v2292 = vpop.f32.mrb[0].mxu0
      %v2293 = vadd.f32 %v2031, %v2292
      %v2294 = vpop.f32.mrb[0].mxu0
      %v2295 = vadd.f32 %v2031, %v2294
      %v2296 = vpop.f32.mrb[0].mxu0
      %v2297 = vadd.f32 %v2036, %v2296
      %v2298 = vpop.f32.mrb[0].mxu0
      %v2299 = vadd.f32 %v2036, %v2298
      %2300 = vmatprep.mubr.bf16.mxu0 0
      %2301 = vmatmul.mubr.bf16.gmra.mrb[0].mxu0 %v2055
      %v2302 = vpop.f32.mrb[0].mxu0
      %v2303 = vadd.f32 %v2041, %v2302
      %v2304 = vpop.f32.mrb[0].mxu0
      %v2305 = vadd.f32 %v2041, %v2304
      %v2306 = vpop.f32.mrb[0].mxu0
      %v2307 = vpop.f32.mrb[0].mxu0
      %2308 = vdwg.mxu0
      %2309 = vmatprep.subr.bf16.mxu0 %v2001
      %2310 = vmatpush1.bf16.msra.mxu0 %v2000
      %2311 = vmatprep.subr.bf16.mxu0 %v2085
      %2312 = vmatpush1.bf16.msra.mxu0 %v2082
      %2313 = vmatprep.subr.bf16.mxu0 0
      %2314 = vmatpush1.bf16.msra.mxu0 0
      %2315 = vmatprep.subr.bf16.mxu0 0
      %2316 = vmatpush1.bf16.msra.mxu0 0
      %2317 = vmatprep.subr.bf16.mxu0 0
      %2318 = vmatpush1.bf16.msra.mxu0 0
      %2319 = vmatprep.subr.bf16.mxu0 0
      %2320 = vmatpush1.bf16.msra.mxu0 0
      %2321 = vmatprep.subr.bf16.mxu0 0
      %2322 = vmatpush1.bf16.msra.mxu0 0
      %2323 = vmatprep.subr.bf16.mxu0 0
      %2324 = vmatpush1.bf16.msra.mxu0 0
      %2325 = vmatprep.subr.bf16.mxu0 0
      %2326 = vmatpush1.bf16.msra.mxu0 0
      %2327 = vmatprep.subr.bf16.mxu0 0
      %2328 = vmatpush1.bf16.msra.mxu0 0
      %2329 = vmatprep.subr.bf16.mxu0 0
      %2330 = vmatpush1.bf16.msra.mxu0 0
      %2331 = vmatprep.subr.bf16.mxu0 0
      %2332 = vmatpush1.bf16.msra.mxu0 0
      %2333 = vmatprep.subr.bf16.mxu0 0
      %2334 = vmatpush1.bf16.msra.mxu0 0
      %2335 = vmatprep.subr.bf16.mxu0 0
      %2336 = vmatpush1.bf16.msra.mxu0 0
      %2337 = vmatprep.subr.bf16.mxu0 0
      %2338 = vmatpush1.bf16.msra.mxu0 0
      %2339 = vmatprep.subr.bf16.mxu0 0
      %2340 = vmatpush1.bf16.msra.mxu0 0
      %2341 = vmatprep.mubr.bf16.mxu0 0
      %2342 = vmatmul.mubr.bf16.gmra.mrb[0].mxu0 %v2052
      %v2343 = vpop.f32.mrb[0].mxu0
      %v2344 = vadd.f32 %v2031, %v2343
      %v2345 = vpop.f32.mrb[0].mxu0
      %v2346 = vadd.f32 %v2031, %v2345
      %v2347 = vpop.f32.mrb[0].mxu0
      %v2348 = vadd.f32 %v2036, %v2347
      %v2349 = vpop.f32.mrb[0].mxu0
      %v2350 = vadd.f32 %v2036, %v2349
      %2351 = vmatprep.mubr.bf16.mxu0 0
      %2352 = vmatmul.mubr.bf16.gmra.mrb[0].mxu0 %v2055
      %v2353 = vpop.f32.mrb[0].mxu0
      %v2354 = vadd.f32 %v2041, %v2353
      %v2355 = vpop.f32.mrb[0].mxu0
      %v2356 = vadd.f32 %v2041, %v2355
      %v2357 = vpop.f32.mrb[0].mxu0
      %v2358 = vpop.f32.mrb[0].mxu0
      %2359 = vdwg.mxu0
      %2360 = vmatprep.subr.bf16.mxu0 %v2003
      %2361 = vmatpush1.bf16.msra.mxu0 %v2002
      %2362 = vmatprep.subr.bf16.mxu0 %v2091
      %2363 = vmatpush1.bf16.msra.mxu0 %v2088
      %2364 = vmatprep.subr.bf16.mxu0 0
      %2365 = vmatpush1.bf16.msra.mxu0 0
      %2366 = vmatprep.subr.bf16.mxu0 0
      %2367 = vmatpush1.bf16.msra.mxu0 0
      %2368 = vmatprep.subr.bf16.mxu0 0
      %2369 = vmatpush1.bf16.msra.mxu0 0
      %2370 = vmatprep.subr.bf16.mxu0 0
      %2371 = vmatpush1.bf16.msra.mxu0 0
      %2372 = vmatprep.subr.bf16.mxu0 0
      %2373 = vmatpush1.bf16.msra.mxu0 0
      %2374 = vmatprep.subr.bf16.mxu0 0
      %2375 = vmatpush1.bf16.msra.mxu0 0
      %2376 = vmatprep.subr.bf16.mxu0 0
      %2377 = vmatpush1.bf16.msra.mxu0 0
      %2378 = vmatprep.subr.bf16.mxu0 0
      %2379 = vmatpush1.bf16.msra.mxu0 0
      %2380 = vmatprep.subr.bf16.mxu0 0
      %2381 = vmatpush1.bf16.msra.mxu0 0
      %2382 = vmatprep.subr.bf16.mxu0 0
      %2383 = vmatpush1.bf16.msra.mxu0 0
      %2384 = vmatprep.subr.bf16.mxu0 0
      %2385 = vmatpush1.bf16.msra.mxu0 0
      %2386 = vmatprep.subr.bf16.mxu0 0
      %2387 = vmatpush1.bf16.msra.mxu0 0
      %2388 = vmatprep.subr.bf16.mxu0 0
      %2389 = vmatpush1.bf16.msra.mxu0 0
      %2390 = vmatprep.subr.bf16.mxu0 0
      %2391 = vmatpush1.bf16.msra.mxu0 0
      %2392 = vmatprep.mubr.bf16.mxu0 0
      %2393 = vmatmul.mubr.bf16.gmra.mrb[0].mxu0 %v2052
      %v2394 = vpop.f32.mrb[0].mxu0
      %v2395 = vadd.f32 %v2031, %v2394
      %v2396 = vpop.f32.mrb[0].mxu0
      %v2397 = vadd.f32 %v2031, %v2396
      %v2398 = vpop.f32.mrb[0].mxu0
      %v2399 = vadd.f32 %v2036, %v2398
      %v2400 = vpop.f32.mrb[0].mxu0
      %v2401 = vadd.f32 %v2036, %v2400
      %2402 = vmatprep.mubr.bf16.mxu0 0
      %2403 = vmatmul.mubr.bf16.gmra.mrb[0].mxu0 %v2055
      %v2404 = vpop.f32.mrb[0].mxu0
      %v2405 = vadd.f32 %v2041, %v2404
      %v2406 = vpop.f32.mrb[0].mxu0
      %v2407 = vadd.f32 %v2041, %v2406
      %v2408 = vpop.f32.mrb[0].mxu0
      %v2409 = vpop.f32.mrb[0].mxu0
      %2410 = vdwg.mxu0
      %2411 = vmatprep.subr.bf16.mxu0 %v2005
      %2412 = vmatpush1.bf16.msra.mxu0 %v2004
      %2413 = vmatprep.subr.bf16.mxu0 %v2097
      %2414 = vmatpush1.bf16.msra.mxu0 %v2094
      %2415 = vmatprep.subr.bf16.mxu0 0
      %2416 = vmatpush1.bf16.msra.mxu0 0
      %2417 = vmatprep.subr.bf16.mxu0 0
      %2418 = vmatpush1.bf16.msra.mxu0 0
      %2419 = vmatprep.subr.bf16.mxu0 0
      %2420 = vmatpush1.bf16.msra.mxu0 0
      %2421 = vmatprep.subr.bf16.mxu0 0
      %2422 = vmatpush1.bf16.msra.mxu0 0
      %2423 = vmatprep.subr.bf16.mxu0 0
      %2424 = vmatpush1.bf16.msra.mxu0 0
      %2425 = vmatprep.subr.bf16.mxu0 0
      %2426 = vmatpush1.bf16.msra.mxu0 0
      %2427 = vmatprep.subr.bf16.mxu0 0
      %2428 = vmatpush1.bf16.msra.mxu0 0
      %2429 = vmatprep.subr.bf16.mxu0 0
      %2430 = vmatpush1.bf16.msra.mxu0 0
      %2431 = vmatprep.subr.bf16.mxu0 0
      %2432 = vmatpush1.bf16.msra.mxu0 0
      %2433 = vmatprep.subr.bf16.mxu0 0
      %2434 = vmatpush1.bf16.msra.mxu0 0
      %2435 = vmatprep.subr.bf16.mxu0 0
      %2436 = vmatpush1.bf16.msra.mxu0 0
      %2437 = vmatprep.subr.bf16.mxu0 0
      %2438 = vmatpush1.bf16.msra.mxu0 0
      %2439 = vmatprep.subr.bf16.mxu0 0
      %2440 = vmatpush1.bf16.msra.mxu0 0
      %2441 = vmatprep.subr.bf16.mxu0 0
      %2442 = vmatpush1.bf16.msra.mxu0 0
      %2443 = vmatprep.mubr.bf16.mxu0 0
      %2444 = vmatmul.mubr.bf16.gmra.mrb[0].mxu0 %v2052
      %v2445 = vpop.f32.mrb[0].mxu0
      %v2446 = vadd.f32 %v2031, %v2445
      %v2447 = vpop.f32.mrb[0].mxu0
      %v2448 = vadd.f32 %v2031, %v2447
      %v2449 = vpop.f32.mrb[0].mxu0
      %v2450 = vadd.f32 %v2036, %v2449
      %v2451 = vpop.f32.mrb[0].mxu0
      %v2452 = vadd.f32 %v2036, %v2451
      %2453 = vmatprep.mubr.bf16.mxu0 0
      %2454 = vmatmul.mubr.bf16.gmra.mrb[0].mxu0 %v2055
      %v2455 = vpop.f32.mrb[0].mxu0
      %v2456 = vadd.f32 %v2041, %v2455
      %v2457 = vpop.f32.mrb[0].mxu0
      %v2458 = vadd.f32 %v2041, %v2457
      %v2459 = vpop.f32.mrb[0].mxu0
      %v2460 = vpop.f32.mrb[0].mxu0
      %2461 = vdwg.mxu0
      %2462 = vmatprep.subr.bf16.mxu0 %v2007
      %2463 = vmatpush1.bf16.msra.mxu0 %v2006
      %2464 = vmatprep.subr.bf16.mxu0 %v2103
      %2465 = vmatpush1.bf16.msra.mxu0 %v2100
      %2466 = vmatprep.subr.bf16.mxu0 0
      %2467 = vmatpush1.bf16.msra.mxu0 0
      %2468 = vmatprep.subr.bf16.mxu0 0
      %2469 = vmatpush1.bf16.msra.mxu0 0
      %2470 = vmatprep.subr.bf16.mxu0 0
      %2471 = vmatpush1.bf16.msra.mxu0 0
      %2472 = vmatprep.subr.bf16.mxu0 0
      %2473 = vmatpush1.bf16.msra.mxu0 0
      %2474 = vmatprep.subr.bf16.mxu0 0
      %2475 = vmatpush1.bf16.msra.mxu0 0
      %2476 = vmatprep.subr.bf16.mxu0 0
      %2477 = vmatpush1.bf16.msra.mxu0 0
      %2478 = vmatprep.subr.bf16.mxu0 0
      %2479 = vmatpush1.bf16.msra.mxu0 0
      %2480 = vmatprep.subr.bf16.mxu0 0
      %2481 = vmatpush1.bf16.msra.mxu0 0
      %2482 = vmatprep.subr.bf16.mxu0 0
      %2483 = vmatpush1.bf16.msra.mxu0 0
      %2484 = vmatprep.subr.bf16.mxu0 0
      %2485 = vmatpush1.bf16.msra.mxu0 0
      %2486 = vmatprep.subr.bf16.mxu0 0
      %2487 = vmatpush1.bf16.msra.mxu0 0
      %2488 = vmatprep.subr.bf16.mxu0 0
      %2489 = vmatpush1.bf16.msra.mxu0 0
      %2490 = vmatprep.subr.bf16.mxu0 0
      %2491 = vmatpush1.bf16.msra.mxu0 0
      %2492 = vmatprep.subr.bf16.mxu0 0
      %2493 = vmatpush1.bf16.msra.mxu0 0
      %2494 = vmatprep.mubr.bf16.mxu0 0
      %2495 = vmatmul.mubr.bf16.gmra.mrb[0].mxu0 %v2052
      %v2496 = vpop.f32.mrb[0].mxu0
      %v2497 = vadd.f32 %v2031, %v2496
      %v2498 = vpop.f32.mrb[0].mxu0
      %v2499 = vadd.f32 %v2031, %v2498
      %v2500 = vpop.f32.mrb[0].mxu0
      %v2501 = vadd.f32 %v2036, %v2500
      %v2502 = vpop.f32.mrb[0].mxu0
      %v2503 = vadd.f32 %v2036, %v2502
      %2504 = vmatprep.mubr.bf16.mxu0 0
      %2505 = vmatmul.mubr.bf16.gmra.mrb[0].mxu0 %v2055
      %v2506 = vpop.f32.mrb[0].mxu0
      %v2507 = vadd.f32 %v2041, %v2506
      %v2508 = vpop.f32.mrb[0].mxu0
      %v2509 = vadd.f32 %v2041, %v2508
      %v2510 = vpop.f32.mrb[0].mxu0
      %v2511 = vpop.f32.mrb[0].mxu0
      %2512 = vdwg.mxu0
      %v2513 = vmul.f32 %v2140, 0.5
      %v2514 = vmul.f32 %v2142, 0.5
      %v2515 = vmul.f32 %v2191, 0.5
      %v2516 = vmul.f32 %v2193, 0.5
      %v2517 = vmul.f32 %v2242, 0.5
      %v2518 = vmul.f32 %v2244, 0.5
      %v2519 = vmul.f32 %v2293, 0.5
      %v2520 = vmul.f32 %v2295, 0.5
      %v2521 = vmul.f32 %v2344, 0.5
      %v2522 = vmul.f32 %v2346, 0.5
      %v2523 = vmul.f32 %v2395, 0.5
      %v2524 = vmul.f32 %v2397, 0.5
      %v2525 = vmul.f32 %v2446, 0.5
      %v2526 = vmul.f32 %v2448, 0.5
      %v2527 = vmul.f32 %v2497, 0.5
      %v2528 = vmul.f32 %v2499, 0.5
      %v2529 = vmul.f32 %v2144, 0.5
      %v2530 = vmul.f32 %v2146, 0.5
      %v2531 = vmul.f32 %v2195, 0.5
      %v2532 = vmul.f32 %v2197, 0.5
      %v2533 = vmul.f32 %v2246, 0.5
      %v2534 = vmul.f32 %v2248, 0.5
      %v2535 = vmul.f32 %v2297, 0.5
      %v2536 = vmul.f32 %v2299, 0.5
      %v2537 = vmul.f32 %v2348, 0.5
      %v2538 = vmul.f32 %v2350, 0.5
      %v2539 = vmul.f32 %v2399, 0.5
      %v2540 = vmul.f32 %v2401, 0.5
      %v2541 = vmul.f32 %v2450, 0.5
      %v2542 = vmul.f32 %v2452, 0.5
      %v2543 = vmul.f32 %v2501, 0.5
      %v2544 = vmul.f32 %v2503, 0.5
      %v2545 = vmul.f32 %v2150, 0.5
      %v2546 = vmul.f32 %v2152, 0.5
      %v2547 = vmul.f32 %v2201, 0.5
      %v2548 = vmul.f32 %v2203, 0.5
      %v2549 = vmul.f32 %v2252, 0.5
      %v2550 = vmul.f32 %v2254, 0.5
      %v2551 = vmul.f32 %v2303, 0.5
      %v2552 = vmul.f32 %v2305, 0.5
      %v2553 = vmul.f32 %v2354, 0.5
      %v2554 = vmul.f32 %v2356, 0.5
      %v2555 = vmul.f32 %v2405, 0.5
      %v2556 = vmul.f32 %v2407, 0.5
      %v2557 = vmul.f32 %v2456, 0.5
      %v2558 = vmul.f32 %v2458, 0.5
      %v2559 = vmul.f32 %v2507, 0.5
      %v2560 = vmul.f32 %v2509, 0.5
      %v2561 = vtanh.pop %v2513
      %v2562 = vtanh.pop %v2514
      %v2563 = vtanh.pop %v2515
      %v2564 = vtanh.pop %v2516
      %v2565 = vtanh.pop %v2517
      %v2566 = vtanh.pop %v2518
      %v2567 = vtanh.pop %v2519
      %v2568 = vtanh.pop %v2520
      %v2569 = vtanh.pop %v2521
      %v2570 = vtanh.pop %v2522
      %v2571 = vtanh.pop %v2523
      %v2572 = vtanh.pop %v2524
      %v2573 = vtanh.pop %v2525
      %v2574 = vtanh.pop %v2526
      %v2575 = vtanh.pop %v2527
      %v2576 = vtanh.pop %v2528
      %v2577 = vtanh.pop %v2529
      %v2578 = vtanh.pop %v2530
      %v2579 = vtanh.pop %v2531
      %v2580 = vtanh.pop %v2532
      %v2581 = vtanh.pop %v2533
      %v2582 = vtanh.pop %v2534
      %v2583 = vtanh.pop %v2535
      %v2584 = vtanh.pop %v2536
      %v2585 = vtanh.pop %v2537
      %v2586 = vtanh.pop %v2538
      %v2587 = vtanh.pop %v2539
      %v2588 = vtanh.pop %v2540
      %v2589 = vtanh.pop %v2541
      %v2590 = vtanh.pop %v2542
      %v2591 = vtanh.pop %v2543
      %v2592 = vtanh.pop %v2544
      %v2593 = vtanh.pop %v2545
      %v2594 = vtanh.pop %v2546
      %v2595 = vtanh.pop %v2547
      %v2596 = vtanh.pop %v2548
      %v2597 = vtanh.pop %v2549
      %v2598 = vtanh.pop %v2550
      %v2599 = vtanh.pop %v2551
      %v2600 = vtanh.pop %v2552
      %v2601 = vtanh.pop %v2553
      %v2602 = vtanh.pop %v2554
      %v2603 = vtanh.pop %v2555
      %v2604 = vtanh.pop %v2556
      %v2605 = vtanh.pop %v2557
      %v2606 = vtanh.pop %v2558
      %v2607 = vtanh.pop %v2559
      %v2608 = vtanh.pop %v2560
      %v2609 = vmul.f32 %v2513, %v2561
      %v2610 = vmul.f32 %v2514, %v2562
      %v2611 = vmul.f32 %v2515, %v2563
      %v2612 = vmul.f32 %v2516, %v2564
      %v2613 = vmul.f32 %v2517, %v2565
      %v2614 = vmul.f32 %v2518, %v2566
      %v2615 = vmul.f32 %v2519, %v2567
      %v2616 = vmul.f32 %v2520, %v2568
      %v2617 = vmul.f32 %v2521, %v2569
      %v2618 = vmul.f32 %v2522, %v2570
      %v2619 = vmul.f32 %v2523, %v2571
      %v2620 = vmul.f32 %v2524, %v2572
      %v2621 = vmul.f32 %v2525, %v2573
      %v2622 = vmul.f32 %v2526, %v2574
      %v2623 = vmul.f32 %v2527, %v2575
      %v2624 = vmul.f32 %v2528, %v2576
      %v2625 = vmul.f32 %v2529, %v2577
      %v2626 = vmul.f32 %v2530, %v2578
      %v2627 = vmul.f32 %v2531, %v2579
      %v2628 = vmul.f32 %v2532, %v2580
      %v2629 = vmul.f32 %v2533, %v2581
      %v2630 = vmul.f32 %v2534, %v2582
      %v2631 = vmul.f32 %v2535, %v2583
      %v2632 = vmul.f32 %v2536, %v2584
      %v2633 = vmul.f32 %v2537, %v2585
      %v2634 = vmul.f32 %v2538, %v2586
      %v2635 = vmul.f32 %v2539, %v2587
      %v2636 = vmul.f32 %v2540, %v2588
      %v2637 = vmul.f32 %v2541, %v2589
      %v2638 = vmul.f32 %v2542, %v2590
      %v2639 = vmul.f32 %v2543, %v2591
      %v2640 = vmul.f32 %v2544, %v2592
      %v2641 = vmul.f32 %v2545, %v2593
      %v2642 = vmul.f32 %v2546, %v2594
      %v2643 = vmul.f32 %v2547, %v2595
      %v2644 = vmul.f32 %v2548, %v2596
      %v2645 = vmul.f32 %v2549, %v2597
      %v2646 = vmul.f32 %v2550, %v2598
      %v2647 = vmul.f32 %v2551, %v2599
      %v2648 = vmul.f32 %v2552, %v2600
      %v2649 = vmul.f32 %v2553, %v2601
      %v2650 = vmul.f32 %v2554, %v2602
      %v2651 = vmul.f32 %v2555, %v2603
      %v2652 = vmul.f32 %v2556, %v2604
      %v2653 = vmul.f32 %v2557, %v2605
      %v2654 = vmul.f32 %v2558, %v2606
      %v2655 = vmul.f32 %v2559, %v2607
      %v2656 = vmul.f32 %v2560, %v2608
      %v2657 = vadd.f32 %v2609, %v2513
      %v2658 = vadd.f32 %v2610, %v2514
      %v2659 = vadd.f32 %v2611, %v2515
      %v2660 = vadd.f32 %v2612, %v2516
      %v2661 = vadd.f32 %v2613, %v2517
      %v2662 = vadd.f32 %v2614, %v2518
      %v2663 = vadd.f32 %v2615, %v2519
      %v2664 = vadd.f32 %v2616, %v2520
      %v2665 = vadd.f32 %v2617, %v2521
      %v2666 = vadd.f32 %v2618, %v2522
      %v2667 = vadd.f32 %v2619, %v2523
      %v2668 = vadd.f32 %v2620, %v2524
      %v2669 = vadd.f32 %v2621, %v2525
      %v2670 = vadd.f32 %v2622, %v2526
      %v2671 = vadd.f32 %v2623, %v2527
      %v2672 = vadd.f32 %v2624, %v2528
      %v2673 = vadd.f32 %v2625, %v2529
      %v2674 = vadd.f32 %v2626, %v2530
      %v2675 = vadd.f32 %v2627, %v2531
      %v2676 = vadd.f32 %v2628, %v2532
      %v2677 = vadd.f32 %v2629, %v2533
      %v2678 = vadd.f32 %v2630, %v2534
      %v2679 = vadd.f32 %v2631, %v2535
      %v2680 = vadd.f32 %v2632, %v2536
      %v2681 = vadd.f32 %v2633, %v2537
      %v2682 = vadd.f32 %v2634, %v2538
      %v2683 = vadd.f32 %v2635, %v2539
      %v2684 = vadd.f32 %v2636, %v2540
      %v2685 = vadd.f32 %v2637, %v2541
      %v2686 = vadd.f32 %v2638, %v2542
      %v2687 = vadd.f32 %v2639, %v2543
      %v2688 = vadd.f32 %v2640, %v2544
      %v2689 = vadd.f32 %v2641, %v2545
      %v2690 = vadd.f32 %v2642, %v2546
      %v2691 = vadd.f32 %v2643, %v2547
      %v2692 = vadd.f32 %v2644, %v2548
      %v2693 = vadd.f32 %v2645, %v2549
      %v2694 = vadd.f32 %v2646, %v2550
      %v2695 = vadd.f32 %v2647, %v2551
      %v2696 = vadd.f32 %v2648, %v2552
      %v2697 = vadd.f32 %v2649, %v2553
      %v2698 = vadd.f32 %v2650, %v2554
      %v2699 = vadd.f32 %v2651, %v2555
      %v2700 = vadd.f32 %v2652, %v2556
      %v2701 = vadd.f32 %v2653, %v2557
      %v2702 = vadd.f32 %v2654, %v2558
      %v2703 = vadd.f32 %v2655, %v2559
      %v2704 = vadd.f32 %v2656, %v2560
      %s2705 = scalar_lea.vmem %s3, 24
      %v2706 = vld [vmem:[%s2705] sm:$0xf]
      %v2707 = vld [vmem:[%s2705 + $0x4] sm:$0xf]
      %v2708 = vld [vmem:[%s2705 + $0x8] sm:$0x3]
      %v2709 = vpack.c.bf16 %v2673, %v2657
      %v2710 = vpack.c.bf16 %v2674, %v2658
      %v2711 = vpack.c.bf16 %v2675, %v2659
      %v2712 = vpack.c.bf16 %v2676, %v2660
      %v2713 = vpack.c.bf16 %v2677, %v2661
      %v2714 = vpack.c.bf16 %v2678, %v2662
      %v2715 = vpack.c.bf16 %v2679, %v2663
      %v2716 = vpack.c.bf16 %v2680, %v2664
      %v2717 = vpack.c.bf16 %v2681, %v2665
      %v2718 = vpack.c.bf16 %v2682, %v2666
      %v2719 = vpack.c.bf16 %v2683, %v2667
      %v2720 = vpack.c.bf16 %v2684, %v2668
      %v2721 = vpack.c.bf16 %v2685, %v2669
      %v2722 = vpack.c.bf16 %v2686, %v2670
      %v2723 = vpack.c.bf16 %v2687, %v2671
      %v2724 = vpack.c.bf16 %v2688, %v2672
      %v2725 = vpack.c.bf16 %v2689, %v2689
      %v2726 = vpack.c.bf16 %v2690, %v2690
      %v2727 = vpack.c.bf16 %v2691, %v2691
      %v2728 = vpack.c.bf16 %v2692, %v2692
      %v2729 = vpack.c.bf16 %v2693, %v2693
      %v2730 = vpack.c.bf16 %v2694, %v2694
      %v2731 = vpack.c.bf16 %v2695, %v2695
      %v2732 = vpack.c.bf16 %v2696, %v2696
      %v2733 = vpack.c.bf16 %v2697, %v2697
      %v2734 = vpack.c.bf16 %v2698, %v2698
      %v2735 = vpack.c.bf16 %v2699, %v2699
      %v2736 = vpack.c.bf16 %v2700, %v2700
      %v2737 = vpack.c.bf16 %v2701, %v2701
      %v2738 = vpack.c.bf16 %v2702, %v2702
      %v2739 = vpack.c.bf16 %v2703, %v2703
      %v2740 = vpack.c.bf16 %v2704, %v2704
      %s2741 = scalar_lea.vmem %s4, 48
      %v2742 = vld [vmem:[%s2741] sm:$0xff]
      %v2743 = vld [vmem:[%s2741 + $0x8] sm:$0xff]
      %v2744 = vld [vmem:[%s2741 + $0x10] sm:$0xf]
      %2746 = vset.pattern.permute.xlu0 0
      %2747 = vperm.xlu0 %2746, %v2742
      %v2748 = vpop.permute.xlu0 %2747
      %2751 = vset.pattern.permute.xlu0 0
      %2752 = vperm.xlu0 %2751, %v2743
      %v2753 = vpop.permute.xlu0 %2752
      %2756 = vset.pattern.permute.xlu0 0
      %2757 = vperm.xlu0 %2756, %v2744
      %v2758 = vpop.permute.xlu0 %2757
      %v2763 = vunpack.c.l.b16 %v2706
      %v2764 = vunpack.c.l.b16 %v2707
      %v2765 = vunpack.c.l.b16 %v2708
      %v2766 = vpack.c.b16 %v2764, %v2763
      %v2767 = vpack.c.b16 %v2765, %v2765
      %v2769 = vsel %vm1332, %v2766, 0
      %v2772 = vsel %vm1332, %v2767, 0
      %v2775 = vsel %vm1339, %v2725, 0
      %v2778 = vsel %vm1339, %v2726, 0
      %v2781 = vsel %vm1339, %v2727, 0
      %v2784 = vsel %vm1339, %v2728, 0
      %v2787 = vsel %vm1339, %v2729, 0
      %v2790 = vsel %vm1339, %v2730, 0
      %v2793 = vsel %vm1339, %v2731, 0
      %v2796 = vsel %vm1339, %v2732, 0
      %v2799 = vsel %vm1339, %v2733, 0
      %v2802 = vsel %vm1339, %v2734, 0
      %v2805 = vsel %vm1339, %v2735, 0
      %v2808 = vsel %vm1339, %v2736, 0
      %v2811 = vsel %vm1339, %v2737, 0
      %v2814 = vsel %vm1339, %v2738, 0
      %v2817 = vsel %vm1339, %v2739, 0
      %v2820 = vsel %vm1339, %v2740, 0
      %2822 = vmatprep.subr.bf16.mxu0 %v2710
      %2823 = vmatpush1.bf16.msra.mxu0 %v2709
      %2824 = vmatprep.subr.bf16.mxu0 %v2778
      %2825 = vmatpush1.bf16.msra.mxu0 %v2775
      %2826 = vmatprep.subr.bf16.mxu0 0
      %2827 = vmatpush1.bf16.msra.mxu0 0
      %2828 = vmatprep.subr.bf16.mxu0 0
      %2829 = vmatpush1.bf16.msra.mxu0 0
      %2830 = vmatprep.subr.bf16.mxu0 0
      %2831 = vmatpush1.bf16.msra.mxu0 0
      %2832 = vmatprep.subr.bf16.mxu0 0
      %2833 = vmatpush1.bf16.msra.mxu0 0
      %2834 = vmatprep.subr.bf16.mxu0 0
      %2835 = vmatpush1.bf16.msra.mxu0 0
      %2836 = vmatprep.subr.bf16.mxu0 0
      %2837 = vmatpush1.bf16.msra.mxu0 0
      %2838 = vmatprep.subr.bf16.mxu0 0
      %2839 = vmatpush1.bf16.msra.mxu0 0
      %2840 = vmatprep.subr.bf16.mxu0 0
      %2841 = vmatpush1.bf16.msra.mxu0 0
      %2842 = vmatprep.subr.bf16.mxu0 0
      %2843 = vmatpush1.bf16.msra.mxu0 0
      %2844 = vmatprep.subr.bf16.mxu0 0
      %2845 = vmatpush1.bf16.msra.mxu0 0
      %2846 = vmatprep.subr.bf16.mxu0 0
      %2847 = vmatpush1.bf16.msra.mxu0 0
      %2848 = vmatprep.subr.bf16.mxu0 0
      %2849 = vmatpush1.bf16.msra.mxu0 0
      %2850 = vmatprep.subr.bf16.mxu0 0
      %2851 = vmatpush1.bf16.msra.mxu0 0
      %2852 = vmatprep.subr.bf16.mxu0 0
      %2853 = vmatpush1.bf16.msra.mxu0 0
      %2854 = vmatprep.mubr.bf16.mxu0 0
      %2855 = vmatmul.mubr.bf16.gmra.mrb[0].mxu0 %v2769
      %v2856 = vpop.f32.mrb[0].mxu0
      %v2857 = vadd.f32 %v2748, %v2856
      %v2858 = vpop.f32.mrb[0].mxu0
      %v2859 = vadd.f32 %v2748, %v2858
      %v2860 = vpop.f32.mrb[0].mxu0
      %v2861 = vadd.f32 %v2753, %v2860
      %v2862 = vpop.f32.mrb[0].mxu0
      %v2863 = vadd.f32 %v2753, %v2862
      %2864 = vmatprep.mubr.bf16.mxu0 0
      %2865 = vmatmul.mubr.bf16.gmra.mrb[0].mxu0 %v2772
      %v2866 = vpop.f32.mrb[0].mxu0
      %v2867 = vadd.f32 %v2758, %v2866
      %v2868 = vpop.f32.mrb[0].mxu0
      %v2869 = vadd.f32 %v2758, %v2868
      %v2870 = vpop.f32.mrb[0].mxu0
      %v2871 = vpop.f32.mrb[0].mxu0
      %2872 = vdwg.mxu0
      %2873 = vmatprep.subr.bf16.mxu0 %v2712
      %2874 = vmatpush1.bf16.msra.mxu0 %v2711
      %2875 = vmatprep.subr.bf16.mxu0 %v2784
      %2876 = vmatpush1.bf16.msra.mxu0 %v2781
      %2877 = vmatprep.subr.bf16.mxu0 0
      %2878 = vmatpush1.bf16.msra.mxu0 0
      %2879 = vmatprep.subr.bf16.mxu0 0
      %2880 = vmatpush1.bf16.msra.mxu0 0
      %2881 = vmatprep.subr.bf16.mxu0 0
      %2882 = vmatpush1.bf16.msra.mxu0 0
      %2883 = vmatprep.subr.bf16.mxu0 0
      %2884 = vmatpush1.bf16.msra.mxu0 0
      %2885 = vmatprep.subr.bf16.mxu0 0
      %2886 = vmatpush1.bf16.msra.mxu0 0
      %2887 = vmatprep.subr.bf16.mxu0 0
      %2888 = vmatpush1.bf16.msra.mxu0 0
      %2889 = vmatprep.subr.bf16.mxu0 0
      %2890 = vmatpush1.bf16.msra.mxu0 0
      %2891 = vmatprep.subr.bf16.mxu0 0
      %2892 = vmatpush1.bf16.msra.mxu0 0
      %2893 = vmatprep.subr.bf16.mxu0 0
      %2894 = vmatpush1.bf16.msra.mxu0 0
      %2895 = vmatprep.subr.bf16.mxu0 0
      %2896 = vmatpush1.bf16.msra.mxu0 0
      %2897 = vmatprep.subr.bf16.mxu0 0
      %2898 = vmatpush1.bf16.msra.mxu0 0
      %2899 = vmatprep.subr.bf16.mxu0 0
      %2900 = vmatpush1.bf16.msra.mxu0 0
      %2901 = vmatprep.subr.bf16.mxu0 0
      %2902 = vmatpush1.bf16.msra.mxu0 0
      %2903 = vmatprep.subr.bf16.mxu0 0
      %2904 = vmatpush1.bf16.msra.mxu0 0
      %2905 = vmatprep.mubr.bf16.mxu0 0
      %2906 = vmatmul.mubr.bf16.gmra.mrb[0].mxu0 %v2769
      %v2907 = vpop.f32.mrb[0].mxu0
      %v2908 = vadd.f32 %v2748, %v2907
      %v2909 = vpop.f32.mrb[0].mxu0
      %v2910 = vadd.f32 %v2748, %v2909
      %v2911 = vpop.f32.mrb[0].mxu0
      %v2912 = vadd.f32 %v2753, %v2911
      %v2913 = vpop.f32.mrb[0].mxu0
      %v2914 = vadd.f32 %v2753, %v2913
      %2915 = vmatprep.mubr.bf16.mxu0 0
      %2916 = vmatmul.mubr.bf16.gmra.mrb[0].mxu0 %v2772
      %v2917 = vpop.f32.mrb[0].mxu0
      %v2918 = vadd.f32 %v2758, %v2917
      %v2919 = vpop.f32.mrb[0].mxu0
      %v2920 = vadd.f32 %v2758, %v2919
      %v2921 = vpop.f32.mrb[0].mxu0
      %v2922 = vpop.f32.mrb[0].mxu0
      %2923 = vdwg.mxu0
      %2924 = vmatprep.subr.bf16.mxu0 %v2714
      %2925 = vmatpush1.bf16.msra.mxu0 %v2713
      %2926 = vmatprep.subr.bf16.mxu0 %v2790
      %2927 = vmatpush1.bf16.msra.mxu0 %v2787
      %2928 = vmatprep.subr.bf16.mxu0 0
      %2929 = vmatpush1.bf16.msra.mxu0 0
      %2930 = vmatprep.subr.bf16.mxu0 0
      %2931 = vmatpush1.bf16.msra.mxu0 0
      %2932 = vmatprep.subr.bf16.mxu0 0
      %2933 = vmatpush1.bf16.msra.mxu0 0
      %2934 = vmatprep.subr.bf16.mxu0 0
      %2935 = vmatpush1.bf16.msra.mxu0 0
      %2936 = vmatprep.subr.bf16.mxu0 0
      %2937 = vmatpush1.bf16.msra.mxu0 0
      %2938 = vmatprep.subr.bf16.mxu0 0
      %2939 = vmatpush1.bf16.msra.mxu0 0
      %2940 = vmatprep.subr.bf16.mxu0 0
      %2941 = vmatpush1.bf16.msra.mxu0 0
      %2942 = vmatprep.subr.bf16.mxu0 0
      %2943 = vmatpush1.bf16.msra.mxu0 0
      %2944 = vmatprep.subr.bf16.mxu0 0
      %2945 = vmatpush1.bf16.msra.mxu0 0
      %2946 = vmatprep.subr.bf16.mxu0 0
      %2947 = vmatpush1.bf16.msra.mxu0 0
      %2948 = vmatprep.subr.bf16.mxu0 0
      %2949 = vmatpush1.bf16.msra.mxu0 0
      %2950 = vmatprep.subr.bf16.mxu0 0
      %2951 = vmatpush1.bf16.msra.mxu0 0
      %2952 = vmatprep.subr.bf16.mxu0 0
      %2953 = vmatpush1.bf16.msra.mxu0 0
      %2954 = vmatprep.subr.bf16.mxu0 0
      %2955 = vmatpush1.bf16.msra.mxu0 0
      %2956 = vmatprep.mubr.bf16.mxu0 0
      %2957 = vmatmul.mubr.bf16.gmra.mrb[0].mxu0 %v2769
      %v2958 = vpop.f32.mrb[0].mxu0
      %v2959 = vadd.f32 %v2748, %v2958
      %v2960 = vpop.f32.mrb[0].mxu0
      %v2961 = vadd.f32 %v2748, %v2960
      %v2962 = vpop.f32.mrb[0].mxu0
      %v2963 = vadd.f32 %v2753, %v2962
      %v2964 = vpop.f32.mrb[0].mxu0
      %v2965 = vadd.f32 %v2753, %v2964
      %2966 = vmatprep.mubr.bf16.mxu0 0
      %2967 = vmatmul.mubr.bf16.gmra.mrb[0].mxu0 %v2772
      %v2968 = vpop.f32.mrb[0].mxu0
      %v2969 = vadd.f32 %v2758, %v2968
      %v2970 = vpop.f32.mrb[0].mxu0
      %v2971 = vadd.f32 %v2758, %v2970
      %v2972 = vpop.f32.mrb[0].mxu0
      %v2973 = vpop.f32.mrb[0].mxu0
      %2974 = vdwg.mxu0
      %2975 = vmatprep.subr.bf16.mxu0 %v2716
      %2976 = vmatpush1.bf16.msra.mxu0 %v2715
      %2977 = vmatprep.subr.bf16.mxu0 %v2796
      %2978 = vmatpush1.bf16.msra.mxu0 %v2793
      %2979 = vmatprep.subr.bf16.mxu0 0
      %2980 = vmatpush1.bf16.msra.mxu0 0
      %2981 = vmatprep.subr.bf16.mxu0 0
      %2982 = vmatpush1.bf16.msra.mxu0 0
      %2983 = vmatprep.subr.bf16.mxu0 0
      %2984 = vmatpush1.bf16.msra.mxu0 0
      %2985 = vmatprep.subr.bf16.mxu0 0
      %2986 = vmatpush1.bf16.msra.mxu0 0
      %2987 = vmatprep.subr.bf16.mxu0 0
      %2988 = vmatpush1.bf16.msra.mxu0 0
      %2989 = vmatprep.subr.bf16.mxu0 0
      %2990 = vmatpush1.bf16.msra.mxu0 0
      %2991 = vmatprep.subr.bf16.mxu0 0
      %2992 = vmatpush1.bf16.msra.mxu0 0
      %2993 = vmatprep.subr.bf16.mxu0 0
      %2994 = vmatpush1.bf16.msra.mxu0 0
      %2995 = vmatprep.subr.bf16.mxu0 0
      %2996 = vmatpush1.bf16.msra.mxu0 0
      %2997 = vmatprep.subr.bf16.mxu0 0
      %2998 = vmatpush1.bf16.msra.mxu0 0
      %2999 = vmatprep.subr.bf16.mxu0 0
      %3000 = vmatpush1.bf16.msra.mxu0 0
      %3001 = vmatprep.subr.bf16.mxu0 0
      %3002 = vmatpush1.bf16.msra.mxu0 0
      %3003 = vmatprep.subr.bf16.mxu0 0
      %3004 = vmatpush1.bf16.msra.mxu0 0
      %3005 = vmatprep.subr.bf16.mxu0 0
      %3006 = vmatpush1.bf16.msra.mxu0 0
      %3007 = vmatprep.mubr.bf16.mxu0 0
      %3008 = vmatmul.mubr.bf16.gmra.mrb[0].mxu0 %v2769
      %v3009 = vpop.f32.mrb[0].mxu0
      %v3010 = vadd.f32 %v2748, %v3009
      %v3011 = vpop.f32.mrb[0].mxu0
      %v3012 = vadd.f32 %v2748, %v3011
      %v3013 = vpop.f32.mrb[0].mxu0
      %v3014 = vadd.f32 %v2753, %v3013
      %v3015 = vpop.f32.mrb[0].mxu0
      %v3016 = vadd.f32 %v2753, %v3015
      %3017 = vmatprep.mubr.bf16.mxu0 0
      %3018 = vmatmul.mubr.bf16.gmra.mrb[0].mxu0 %v2772
      %v3019 = vpop.f32.mrb[0].mxu0
      %v3020 = vadd.f32 %v2758, %v3019
      %v3021 = vpop.f32.mrb[0].mxu0
      %v3022 = vadd.f32 %v2758, %v3021
      %v3023 = vpop.f32.mrb[0].mxu0
      %v3024 = vpop.f32.mrb[0].mxu0
      %3025 = vdwg.mxu0
      %3026 = vmatprep.subr.bf16.mxu0 %v2718
      %3027 = vmatpush1.bf16.msra.mxu0 %v2717
      %3028 = vmatprep.subr.bf16.mxu0 %v2802
      %3029 = vmatpush1.bf16.msra.mxu0 %v2799
      %3030 = vmatprep.subr.bf16.mxu0 0
      %3031 = vmatpush1.bf16.msra.mxu0 0
      %3032 = vmatprep.subr.bf16.mxu0 0
      %3033 = vmatpush1.bf16.msra.mxu0 0
      %3034 = vmatprep.subr.bf16.mxu0 0
      %3035 = vmatpush1.bf16.msra.mxu0 0
      %3036 = vmatprep.subr.bf16.mxu0 0
      %3037 = vmatpush1.bf16.msra.mxu0 0
      %3038 = vmatprep.subr.bf16.mxu0 0
      %3039 = vmatpush1.bf16.msra.mxu0 0
      %3040 = vmatprep.subr.bf16.mxu0 0
      %3041 = vmatpush1.bf16.msra.mxu0 0
      %3042 = vmatprep.subr.bf16.mxu0 0
      %3043 = vmatpush1.bf16.msra.mxu0 0
      %3044 = vmatprep.subr.bf16.mxu0 0
      %3045 = vmatpush1.bf16.msra.mxu0 0
      %3046 = vmatprep.subr.bf16.mxu0 0
      %3047 = vmatpush1.bf16.msra.mxu0 0
      %3048 = vmatprep.subr.bf16.mxu0 0
      %3049 = vmatpush1.bf16.msra.mxu0 0
      %3050 = vmatprep.subr.bf16.mxu0 0
      %3051 = vmatpush1.bf16.msra.mxu0 0
      %3052 = vmatprep.subr.bf16.mxu0 0
      %3053 = vmatpush1.bf16.msra.mxu0 0
      %3054 = vmatprep.subr.bf16.mxu0 0
      %3055 = vmatpush1.bf16.msra.mxu0 0
      %3056 = vmatprep.subr.bf16.mxu0 0
      %3057 = vmatpush1.bf16.msra.mxu0 0
      %3058 = vmatprep.mubr.bf16.mxu0 0
      %3059 = vmatmul.mubr.bf16.gmra.mrb[0].mxu0 %v2769
      %v3060 = vpop.f32.mrb[0].mxu0
      %v3061 = vadd.f32 %v2748, %v3060
      %v3062 = vpop.f32.mrb[0].mxu0
      %v3063 = vadd.f32 %v2748, %v3062
      %v3064 = vpop.f32.mrb[0].mxu0
      %v3065 = vadd.f32 %v2753, %v3064
      %v3066 = vpop.f32.mrb[0].mxu0
      %v3067 = vadd.f32 %v2753, %v3066
      %3068 = vmatprep.mubr.bf16.mxu0 0
      %3069 = vmatmul.mubr.bf16.gmra.mrb[0].mxu0 %v2772
      %v3070 = vpop.f32.mrb[0].mxu0
      %v3071 = vadd.f32 %v2758, %v3070
      %v3072 = vpop.f32.mrb[0].mxu0
      %v3073 = vadd.f32 %v2758, %v3072
      %v3074 = vpop.f32.mrb[0].mxu0
      %v3075 = vpop.f32.mrb[0].mxu0
      %3076 = vdwg.mxu0
      %3077 = vmatprep.subr.bf16.mxu0 %v2720
      %3078 = vmatpush1.bf16.msra.mxu0 %v2719
      %3079 = vmatprep.subr.bf16.mxu0 %v2808
      %3080 = vmatpush1.bf16.msra.mxu0 %v2805
      %3081 = vmatprep.subr.bf16.mxu0 0
      %3082 = vmatpush1.bf16.msra.mxu0 0
      %3083 = vmatprep.subr.bf16.mxu0 0
      %3084 = vmatpush1.bf16.msra.mxu0 0
      %3085 = vmatprep.subr.bf16.mxu0 0
      %3086 = vmatpush1.bf16.msra.mxu0 0
      %3087 = vmatprep.subr.bf16.mxu0 0
      %3088 = vmatpush1.bf16.msra.mxu0 0
      %3089 = vmatprep.subr.bf16.mxu0 0
      %3090 = vmatpush1.bf16.msra.mxu0 0
      %3091 = vmatprep.subr.bf16.mxu0 0
      %3092 = vmatpush1.bf16.msra.mxu0 0
      %3093 = vmatprep.subr.bf16.mxu0 0
      %3094 = vmatpush1.bf16.msra.mxu0 0
      %3095 = vmatprep.subr.bf16.mxu0 0
      %3096 = vmatpush1.bf16.msra.mxu0 0
      %3097 = vmatprep.subr.bf16.mxu0 0
      %3098 = vmatpush1.bf16.msra.mxu0 0
      %3099 = vmatprep.subr.bf16.mxu0 0
      %3100 = vmatpush1.bf16.msra.mxu0 0
      %3101 = vmatprep.subr.bf16.mxu0 0
      %3102 = vmatpush1.bf16.msra.mxu0 0
      %3103 = vmatprep.subr.bf16.mxu0 0
      %3104 = vmatpush1.bf16.msra.mxu0 0
      %3105 = vmatprep.subr.bf16.mxu0 0
      %3106 = vmatpush1.bf16.msra.mxu0 0
      %3107 = vmatprep.subr.bf16.mxu0 0
      %3108 = vmatpush1.bf16.msra.mxu0 0
      %3109 = vmatprep.mubr.bf16.mxu0 0
      %3110 = vmatmul.mubr.bf16.gmra.mrb[0].mxu0 %v2769
      %v3111 = vpop.f32.mrb[0].mxu0
      %v3112 = vadd.f32 %v2748, %v3111
      %v3113 = vpop.f32.mrb[0].mxu0
      %v3114 = vadd.f32 %v2748, %v3113
      %v3115 = vpop.f32.mrb[0].mxu0
      %v3116 = vadd.f32 %v2753, %v3115
      %v3117 = vpop.f32.mrb[0].mxu0
      %v3118 = vadd.f32 %v2753, %v3117
      %3119 = vmatprep.mubr.bf16.mxu0 0
      %3120 = vmatmul.mubr.bf16.gmra.mrb[0].mxu0 %v2772
      %v3121 = vpop.f32.mrb[0].mxu0
      %v3122 = vadd.f32 %v2758, %v3121
      %v3123 = vpop.f32.mrb[0].mxu0
      %v3124 = vadd.f32 %v2758, %v3123
      %v3125 = vpop.f32.mrb[0].mxu0
      %v3126 = vpop.f32.mrb[0].mxu0
      %3127 = vdwg.mxu0
      %3128 = vmatprep.subr.bf16.mxu0 %v2722
      %3129 = vmatpush1.bf16.msra.mxu0 %v2721
      %3130 = vmatprep.subr.bf16.mxu0 %v2814
      %3131 = vmatpush1.bf16.msra.mxu0 %v2811
      %3132 = vmatprep.subr.bf16.mxu0 0
      %3133 = vmatpush1.bf16.msra.mxu0 0
      %3134 = vmatprep.subr.bf16.mxu0 0
      %3135 = vmatpush1.bf16.msra.mxu0 0
      %3136 = vmatprep.subr.bf16.mxu0 0
      %3137 = vmatpush1.bf16.msra.mxu0 0
      %3138 = vmatprep.subr.bf16.mxu0 0
      %3139 = vmatpush1.bf16.msra.mxu0 0
      %3140 = vmatprep.subr.bf16.mxu0 0
      %3141 = vmatpush1.bf16.msra.mxu0 0
      %3142 = vmatprep.subr.bf16.mxu0 0
      %3143 = vmatpush1.bf16.msra.mxu0 0
      %3144 = vmatprep.subr.bf16.mxu0 0
      %3145 = vmatpush1.bf16.msra.mxu0 0
      %3146 = vmatprep.subr.bf16.mxu0 0
      %3147 = vmatpush1.bf16.msra.mxu0 0
      %3148 = vmatprep.subr.bf16.mxu0 0
      %3149 = vmatpush1.bf16.msra.mxu0 0
      %3150 = vmatprep.subr.bf16.mxu0 0
      %3151 = vmatpush1.bf16.msra.mxu0 0
      %3152 = vmatprep.subr.bf16.mxu0 0
      %3153 = vmatpush1.bf16.msra.mxu0 0
      %3154 = vmatprep.subr.bf16.mxu0 0
      %3155 = vmatpush1.bf16.msra.mxu0 0
      %3156 = vmatprep.subr.bf16.mxu0 0
      %3157 = vmatpush1.bf16.msra.mxu0 0
      %3158 = vmatprep.subr.bf16.mxu0 0
      %3159 = vmatpush1.bf16.msra.mxu0 0
      %3160 = vmatprep.mubr.bf16.mxu0 0
      %3161 = vmatmul.mubr.bf16.gmra.mrb[0].mxu0 %v2769
      %v3162 = vpop.f32.mrb[0].mxu0
      %v3163 = vadd.f32 %v2748, %v3162
      %v3164 = vpop.f32.mrb[0].mxu0
      %v3165 = vadd.f32 %v2748, %v3164
      %v3166 = vpop.f32.mrb[0].mxu0
      %v3167 = vadd.f32 %v2753, %v3166
      %v3168 = vpop.f32.mrb[0].mxu0
      %v3169 = vadd.f32 %v2753, %v3168
      %3170 = vmatprep.mubr.bf16.mxu0 0
      %3171 = vmatmul.mubr.bf16.gmra.mrb[0].mxu0 %v2772
      %v3172 = vpop.f32.mrb[0].mxu0
      %v3173 = vadd.f32 %v2758, %v3172
      %v3174 = vpop.f32.mrb[0].mxu0
      %v3175 = vadd.f32 %v2758, %v3174
      %v3176 = vpop.f32.mrb[0].mxu0
      %v3177 = vpop.f32.mrb[0].mxu0
      %3178 = vdwg.mxu0
      %3179 = vmatprep.subr.bf16.mxu0 %v2724
      %3180 = vmatpush1.bf16.msra.mxu0 %v2723
      %3181 = vmatprep.subr.bf16.mxu0 %v2820
      %3182 = vmatpush1.bf16.msra.mxu0 %v2817
      %3183 = vmatprep.subr.bf16.mxu0 0
      %3184 = vmatpush1.bf16.msra.mxu0 0
      %3185 = vmatprep.subr.bf16.mxu0 0
      %3186 = vmatpush1.bf16.msra.mxu0 0
      %3187 = vmatprep.subr.bf16.mxu0 0
      %3188 = vmatpush1.bf16.msra.mxu0 0
      %3189 = vmatprep.subr.bf16.mxu0 0
      %3190 = vmatpush1.bf16.msra.mxu0 0
      %3191 = vmatprep.subr.bf16.mxu0 0
      %3192 = vmatpush1.bf16.msra.mxu0 0
      %3193 = vmatprep.subr.bf16.mxu0 0
      %3194 = vmatpush1.bf16.msra.mxu0 0
      %3195 = vmatprep.subr.bf16.mxu0 0
      %3196 = vmatpush1.bf16.msra.mxu0 0
      %3197 = vmatprep.subr.bf16.mxu0 0
      %3198 = vmatpush1.bf16.msra.mxu0 0
      %3199 = vmatprep.subr.bf16.mxu0 0
      %3200 = vmatpush1.bf16.msra.mxu0 0
      %3201 = vmatprep.subr.bf16.mxu0 0
      %3202 = vmatpush1.bf16.msra.mxu0 0
      %3203 = vmatprep.subr.bf16.mxu0 0
      %3204 = vmatpush1.bf16.msra.mxu0 0
      %3205 = vmatprep.subr.bf16.mxu0 0
      %3206 = vmatpush1.bf16.msra.mxu0 0
      %3207 = vmatprep.subr.bf16.mxu0 0
      %3208 = vmatpush1.bf16.msra.mxu0 0
      %3209 = vmatprep.subr.bf16.mxu0 0
      %3210 = vmatpush1.bf16.msra.mxu0 0
      %3211 = vmatprep.mubr.bf16.mxu0 0
      %3212 = vmatmul.mubr.bf16.gmra.mrb[0].mxu0 %v2769
      %v3213 = vpop.f32.mrb[0].mxu0
      %v3214 = vadd.f32 %v2748, %v3213
      %v3215 = vpop.f32.mrb[0].mxu0
      %v3216 = vadd.f32 %v2748, %v3215
      %v3217 = vpop.f32.mrb[0].mxu0
      %v3218 = vadd.f32 %v2753, %v3217
      %v3219 = vpop.f32.mrb[0].mxu0
      %v3220 = vadd.f32 %v2753, %v3219
      %3221 = vmatprep.mubr.bf16.mxu0 0
      %3222 = vmatmul.mubr.bf16.gmra.mrb[0].mxu0 %v2772
      %v3223 = vpop.f32.mrb[0].mxu0
      %v3224 = vadd.f32 %v2758, %v3223
      %v3225 = vpop.f32.mrb[0].mxu0
      %v3226 = vadd.f32 %v2758, %v3225
      %v3227 = vpop.f32.mrb[0].mxu0
      %v3228 = vpop.f32.mrb[0].mxu0
      %3229 = vdwg.mxu0
      %v3230 = vmul.f32 %v2857, 0.5
      %v3231 = vmul.f32 %v2859, 0.5
      %v3232 = vmul.f32 %v2908, 0.5
      %v3233 = vmul.f32 %v2910, 0.5
      %v3234 = vmul.f32 %v2959, 0.5
      %v3235 = vmul.f32 %v2961, 0.5
      %v3236 = vmul.f32 %v3010, 0.5
      %v3237 = vmul.f32 %v3012, 0.5
      %v3238 = vmul.f32 %v3061, 0.5
      %v3239 = vmul.f32 %v3063, 0.5
      %v3240 = vmul.f32 %v3112, 0.5
      %v3241 = vmul.f32 %v3114, 0.5
      %v3242 = vmul.f32 %v3163, 0.5
      %v3243 = vmul.f32 %v3165, 0.5
      %v3244 = vmul.f32 %v3214, 0.5
      %v3245 = vmul.f32 %v3216, 0.5
      %v3246 = vmul.f32 %v2861, 0.5
      %v3247 = vmul.f32 %v2863, 0.5
      %v3248 = vmul.f32 %v2912, 0.5
      %v3249 = vmul.f32 %v2914, 0.5
      %v3250 = vmul.f32 %v2963, 0.5
      %v3251 = vmul.f32 %v2965, 0.5
      %v3252 = vmul.f32 %v3014, 0.5
      %v3253 = vmul.f32 %v3016, 0.5
      %v3254 = vmul.f32 %v3065, 0.5
      %v3255 = vmul.f32 %v3067, 0.5
      %v3256 = vmul.f32 %v3116, 0.5
      %v3257 = vmul.f32 %v3118, 0.5
      %v3258 = vmul.f32 %v3167, 0.5
      %v3259 = vmul.f32 %v3169, 0.5
      %v3260 = vmul.f32 %v3218, 0.5
      %v3261 = vmul.f32 %v3220, 0.5
      %v3262 = vmul.f32 %v2867, 0.5
      %v3263 = vmul.f32 %v2869, 0.5
      %v3264 = vmul.f32 %v2918, 0.5
      %v3265 = vmul.f32 %v2920, 0.5
      %v3266 = vmul.f32 %v2969, 0.5
      %v3267 = vmul.f32 %v2971, 0.5
      %v3268 = vmul.f32 %v3020, 0.5
      %v3269 = vmul.f32 %v3022, 0.5
      %v3270 = vmul.f32 %v3071, 0.5
      %v3271 = vmul.f32 %v3073, 0.5
      %v3272 = vmul.f32 %v3122, 0.5
      %v3273 = vmul.f32 %v3124, 0.5
      %v3274 = vmul.f32 %v3173, 0.5
      %v3275 = vmul.f32 %v3175, 0.5
      %v3276 = vmul.f32 %v3224, 0.5
      %v3277 = vmul.f32 %v3226, 0.5
      %v3278 = vtanh.pop %v3230
      %v3279 = vtanh.pop %v3231
      %v3280 = vtanh.pop %v3232
      %v3281 = vtanh.pop %v3233
      %v3282 = vtanh.pop %v3234
      %v3283 = vtanh.pop %v3235
      %v3284 = vtanh.pop %v3236
      %v3285 = vtanh.pop %v3237
      %v3286 = vtanh.pop %v3238
      %v3287 = vtanh.pop %v3239
      %v3288 = vtanh.pop %v3240
      %v3289 = vtanh.pop %v3241
      %v3290 = vtanh.pop %v3242
      %v3291 = vtanh.pop %v3243
      %v3292 = vtanh.pop %v3244
      %v3293 = vtanh.pop %v3245
      %v3294 = vtanh.pop %v3246
      %v3295 = vtanh.pop %v3247
      %v3296 = vtanh.pop %v3248
      %v3297 = vtanh.pop %v3249
      %v3298 = vtanh.pop %v3250
      %v3299 = vtanh.pop %v3251
      %v3300 = vtanh.pop %v3252
      %v3301 = vtanh.pop %v3253
      %v3302 = vtanh.pop %v3254
      %v3303 = vtanh.pop %v3255
      %v3304 = vtanh.pop %v3256
      %v3305 = vtanh.pop %v3257
      %v3306 = vtanh.pop %v3258
      %v3307 = vtanh.pop %v3259
      %v3308 = vtanh.pop %v3260
      %v3309 = vtanh.pop %v3261
      %v3310 = vtanh.pop %v3262
      %v3311 = vtanh.pop %v3263
      %v3312 = vtanh.pop %v3264
      %v3313 = vtanh.pop %v3265
      %v3314 = vtanh.pop %v3266
      %v3315 = vtanh.pop %v3267
      %v3316 = vtanh.pop %v3268
      %v3317 = vtanh.pop %v3269
      %v3318 = vtanh.pop %v3270
      %v3319 = vtanh.pop %v3271
      %v3320 = vtanh.pop %v3272
      %v3321 = vtanh.pop %v3273
      %v3322 = vtanh.pop %v3274
      %v3323 = vtanh.pop %v3275
      %v3324 = vtanh.pop %v3276
      %v3325 = vtanh.pop %v3277
      %v3326 = vmul.f32 %v3230, %v3278
      %v3327 = vmul.f32 %v3231, %v3279
      %v3328 = vmul.f32 %v3232, %v3280
      %v3329 = vmul.f32 %v3233, %v3281
      %v3330 = vmul.f32 %v3234, %v3282
      %v3331 = vmul.f32 %v3235, %v3283
      %v3332 = vmul.f32 %v3236, %v3284
      %v3333 = vmul.f32 %v3237, %v3285
      %v3334 = vmul.f32 %v3238, %v3286
      %v3335 = vmul.f32 %v3239, %v3287
      %v3336 = vmul.f32 %v3240, %v3288
      %v3337 = vmul.f32 %v3241, %v3289
      %v3338 = vmul.f32 %v3242, %v3290
      %v3339 = vmul.f32 %v3243, %v3291
      %v3340 = vmul.f32 %v3244, %v3292
      %v3341 = vmul.f32 %v3245, %v3293
      %v3342 = vmul.f32 %v3246, %v3294
      %v3343 = vmul.f32 %v3247, %v3295
      %v3344 = vmul.f32 %v3248, %v3296
      %v3345 = vmul.f32 %v3249, %v3297
      %v3346 = vmul.f32 %v3250, %v3298
      %v3347 = vmul.f32 %v3251, %v3299
      %v3348 = vmul.f32 %v3252, %v3300
      %v3349 = vmul.f32 %v3253, %v3301
      %v3350 = vmul.f32 %v3254, %v3302
      %v3351 = vmul.f32 %v3255, %v3303
      %v3352 = vmul.f32 %v3256, %v3304
      %v3353 = vmul.f32 %v3257, %v3305
      %v3354 = vmul.f32 %v3258, %v3306
      %v3355 = vmul.f32 %v3259, %v3307
      %v3356 = vmul.f32 %v3260, %v3308
      %v3357 = vmul.f32 %v3261, %v3309
      %v3358 = vmul.f32 %v3262, %v3310
      %v3359 = vmul.f32 %v3263, %v3311
      %v3360 = vmul.f32 %v3264, %v3312
      %v3361 = vmul.f32 %v3265, %v3313
      %v3362 = vmul.f32 %v3266, %v3314
      %v3363 = vmul.f32 %v3267, %v3315
      %v3364 = vmul.f32 %v3268, %v3316
      %v3365 = vmul.f32 %v3269, %v3317
      %v3366 = vmul.f32 %v3270, %v3318
      %v3367 = vmul.f32 %v3271, %v3319
      %v3368 = vmul.f32 %v3272, %v3320
      %v3369 = vmul.f32 %v3273, %v3321
      %v3370 = vmul.f32 %v3274, %v3322
      %v3371 = vmul.f32 %v3275, %v3323
      %v3372 = vmul.f32 %v3276, %v3324
      %v3373 = vmul.f32 %v3277, %v3325
      %v3374 = vadd.f32 %v3326, %v3230
      %v3375 = vadd.f32 %v3327, %v3231
      %v3376 = vadd.f32 %v3328, %v3232
      %v3377 = vadd.f32 %v3329, %v3233
      %v3378 = vadd.f32 %v3330, %v3234
      %v3379 = vadd.f32 %v3331, %v3235
      %v3380 = vadd.f32 %v3332, %v3236
      %v3381 = vadd.f32 %v3333, %v3237
      %v3382 = vadd.f32 %v3334, %v3238
      %v3383 = vadd.f32 %v3335, %v3239
      %v3384 = vadd.f32 %v3336, %v3240
      %v3385 = vadd.f32 %v3337, %v3241
      %v3386 = vadd.f32 %v3338, %v3242
      %v3387 = vadd.f32 %v3339, %v3243
      %v3388 = vadd.f32 %v3340, %v3244
      %v3389 = vadd.f32 %v3341, %v3245
      %v3390 = vadd.f32 %v3342, %v3246
      %v3391 = vadd.f32 %v3343, %v3247
      %v3392 = vadd.f32 %v3344, %v3248
      %v3393 = vadd.f32 %v3345, %v3249
      %v3394 = vadd.f32 %v3346, %v3250
      %v3395 = vadd.f32 %v3347, %v3251
      %v3396 = vadd.f32 %v3348, %v3252
      %v3397 = vadd.f32 %v3349, %v3253
      %v3398 = vadd.f32 %v3350, %v3254
      %v3399 = vadd.f32 %v3351, %v3255
      %v3400 = vadd.f32 %v3352, %v3256
      %v3401 = vadd.f32 %v3353, %v3257
      %v3402 = vadd.f32 %v3354, %v3258
      %v3403 = vadd.f32 %v3355, %v3259
      %v3404 = vadd.f32 %v3356, %v3260
      %v3405 = vadd.f32 %v3357, %v3261
      %v3406 = vadd.f32 %v3358, %v3262
      %v3407 = vadd.f32 %v3359, %v3263
      %v3408 = vadd.f32 %v3360, %v3264
      %v3409 = vadd.f32 %v3361, %v3265
      %v3410 = vadd.f32 %v3362, %v3266
      %v3411 = vadd.f32 %v3363, %v3267
      %v3412 = vadd.f32 %v3364, %v3268
      %v3413 = vadd.f32 %v3365, %v3269
      %v3414 = vadd.f32 %v3366, %v3270
      %v3415 = vadd.f32 %v3367, %v3271
      %v3416 = vadd.f32 %v3368, %v3272
      %v3417 = vadd.f32 %v3369, %v3273
      %v3418 = vadd.f32 %v3370, %v3274
      %v3419 = vadd.f32 %v3371, %v3275
      %v3420 = vadd.f32 %v3372, %v3276
      %v3421 = vadd.f32 %v3373, %v3277
      %s3422 = scalar_lea.vmem %s3, 36
      %v3423 = vld [vmem:[%s3422] sm:$0xf]
      %v3424 = vld [vmem:[%s3422 + $0x4] sm:$0xf]
      %v3425 = vld [vmem:[%s3422 + $0x8] sm:$0x3]
      %v3426 = vpack.c.bf16 %v3390, %v3374
      %v3427 = vpack.c.bf16 %v3391, %v3375
      %v3428 = vpack.c.bf16 %v3392, %v3376
      %v3429 = vpack.c.bf16 %v3393, %v3377
      %v3430 = vpack.c.bf16 %v3394, %v3378
      %v3431 = vpack.c.bf16 %v3395, %v3379
      %v3432 = vpack.c.bf16 %v3396, %v3380
      %v3433 = vpack.c.bf16 %v3397, %v3381
      %v3434 = vpack.c.bf16 %v3398, %v3382
      %v3435 = vpack.c.bf16 %v3399, %v3383
      %v3436 = vpack.c.bf16 %v3400, %v3384
      %v3437 = vpack.c.bf16 %v3401, %v3385
      %v3438 = vpack.c.bf16 %v3402, %v3386
      %v3439 = vpack.c.bf16 %v3403, %v3387
      %v3440 = vpack.c.bf16 %v3404, %v3388
      %v3441 = vpack.c.bf16 %v3405, %v3389
      %v3442 = vpack.c.bf16 %v3406, %v3406
      %v3443 = vpack.c.bf16 %v3407, %v3407
      %v3444 = vpack.c.bf16 %v3408, %v3408
      %v3445 = vpack.c.bf16 %v3409, %v3409
      %v3446 = vpack.c.bf16 %v3410, %v3410
      %v3447 = vpack.c.bf16 %v3411, %v3411
      %v3448 = vpack.c.bf16 %v3412, %v3412
      %v3449 = vpack.c.bf16 %v3413, %v3413
      %v3450 = vpack.c.bf16 %v3414, %v3414
      %v3451 = vpack.c.bf16 %v3415, %v3415
      %v3452 = vpack.c.bf16 %v3416, %v3416
      %v3453 = vpack.c.bf16 %v3417, %v3417
      %v3454 = vpack.c.bf16 %v3418, %v3418
      %v3455 = vpack.c.bf16 %v3419, %v3419
      %v3456 = vpack.c.bf16 %v3420, %v3420
      %v3457 = vpack.c.bf16 %v3421, %v3421
      %s3458 = scalar_lea.vmem %s4, 72
      %v3459 = vld [vmem:[%s3458] sm:$0xff]
      %v3460 = vld [vmem:[%s3458 + $0x8] sm:$0xff]
      %v3461 = vld [vmem:[%s3458 + $0x10] sm:$0xf]
      %3463 = vset.pattern.permute.xlu0 0
      %3464 = vperm.xlu0 %3463, %v3459
      %v3465 = vpop.permute.xlu0 %3464
      %3468 = vset.pattern.permute.xlu0 0
      %3469 = vperm.xlu0 %3468, %v3460
      %v3470 = vpop.permute.xlu0 %3469
      %3473 = vset.pattern.permute.xlu0 0
      %3474 = vperm.xlu0 %3473, %v3461
      %v3475 = vpop.permute.xlu0 %3474
      %v3480 = vunpack.c.l.b16 %v3423
      %v3481 = vunpack.c.l.b16 %v3424
      %v3482 = vunpack.c.l.b16 %v3425
      %v3483 = vpack.c.b16 %v3481, %v3480
      %v3484 = vpack.c.b16 %v3482, %v3482
      %v3486 = vsel %vm1332, %v3483, 0
      %v3489 = vsel %vm1332, %v3484, 0
      %v3492 = vsel %vm1339, %v3442, 0
      %v3495 = vsel %vm1339, %v3443, 0
      %v3498 = vsel %vm1339, %v3444, 0
      %v3501 = vsel %vm1339, %v3445, 0
      %v3504 = vsel %vm1339, %v3446, 0
      %v3507 = vsel %vm1339, %v3447, 0
      %v3510 = vsel %vm1339, %v3448, 0
      %v3513 = vsel %vm1339, %v3449, 0
      %v3516 = vsel %vm1339, %v3450, 0
      %v3519 = vsel %vm1339, %v3451, 0
      %v3522 = vsel %vm1339, %v3452, 0
      %v3525 = vsel %vm1339, %v3453, 0
      %v3528 = vsel %vm1339, %v3454, 0
      %v3531 = vsel %vm1339, %v3455, 0
      %v3534 = vsel %vm1339, %v3456, 0
      %v3537 = vsel %vm1339, %v3457, 0
      %3539 = vmatprep.subr.bf16.mxu0 %v3427
      %3540 = vmatpush1.bf16.msra.mxu0 %v3426
      %3541 = vmatprep.subr.bf16.mxu0 %v3495
      %3542 = vmatpush1.bf16.msra.mxu0 %v3492
      %3543 = vmatprep.subr.bf16.mxu0 0
      %3544 = vmatpush1.bf16.msra.mxu0 0
      %3545 = vmatprep.subr.bf16.mxu0 0
      %3546 = vmatpush1.bf16.msra.mxu0 0
      %3547 = vmatprep.subr.bf16.mxu0 0
      %3548 = vmatpush1.bf16.msra.mxu0 0
      %3549 = vmatprep.subr.bf16.mxu0 0
      %3550 = vmatpush1.bf16.msra.mxu0 0
      %3551 = vmatprep.subr.bf16.mxu0 0
      %3552 = vmatpush1.bf16.msra.mxu0 0
      %3553 = vmatprep.subr.bf16.mxu0 0
      %3554 = vmatpush1.bf16.msra.mxu0 0
      %3555 = vmatprep.subr.bf16.mxu0 0
      %3556 = vmatpush1.bf16.msra.mxu0 0
      %3557 = vmatprep.subr.bf16.mxu0 0
      %3558 = vmatpush1.bf16.msra.mxu0 0
      %3559 = vmatprep.subr.bf16.mxu0 0
      %3560 = vmatpush1.bf16.msra.mxu0 0
      %3561 = vmatprep.subr.bf16.mxu0 0
      %3562 = vmatpush1.bf16.msra.mxu0 0
      %3563 = vmatprep.subr.bf16.mxu0 0
      %3564 = vmatpush1.bf16.msra.mxu0 0
      %3565 = vmatprep.subr.bf16.mxu0 0
      %3566 = vmatpush1.bf16.msra.mxu0 0
      %3567 = vmatprep.subr.bf16.mxu0 0
      %3568 = vmatpush1.bf16.msra.mxu0 0
      %3569 = vmatprep.subr.bf16.mxu0 0
      %3570 = vmatpush1.bf16.msra.mxu0 0
      %3571 = vmatprep.mubr.bf16.mxu0 0
      %3572 = vmatmul.mubr.bf16.gmra.mrb[0].mxu0 %v3486
      %v3573 = vpop.f32.mrb[0].mxu0
      %v3574 = vadd.f32 %v3465, %v3573
      %v3575 = vpop.f32.mrb[0].mxu0
      %v3576 = vadd.f32 %v3465, %v3575
      %v3577 = vpop.f32.mrb[0].mxu0
      %v3578 = vadd.f32 %v3470, %v3577
      %v3579 = vpop.f32.mrb[0].mxu0
      %v3580 = vadd.f32 %v3470, %v3579
      %3581 = vmatprep.mubr.bf16.mxu0 0
      %3582 = vmatmul.mubr.bf16.gmra.mrb[0].mxu0 %v3489
      %v3583 = vpop.f32.mrb[0].mxu0
      %v3584 = vadd.f32 %v3475, %v3583
      %v3585 = vpop.f32.mrb[0].mxu0
      %v3586 = vadd.f32 %v3475, %v3585
      %v3587 = vpop.f32.mrb[0].mxu0
      %v3588 = vpop.f32.mrb[0].mxu0
      %3589 = vdwg.mxu0
      %3590 = vmatprep.subr.bf16.mxu0 %v3429
      %3591 = vmatpush1.bf16.msra.mxu0 %v3428
      %3592 = vmatprep.subr.bf16.mxu0 %v3501
      %3593 = vmatpush1.bf16.msra.mxu0 %v3498
      %3594 = vmatprep.subr.bf16.mxu0 0
      %3595 = vmatpush1.bf16.msra.mxu0 0
      %3596 = vmatprep.subr.bf16.mxu0 0
      %3597 = vmatpush1.bf16.msra.mxu0 0
      %3598 = vmatprep.subr.bf16.mxu0 0
      %3599 = vmatpush1.bf16.msra.mxu0 0
      %3600 = vmatprep.subr.bf16.mxu0 0
      %3601 = vmatpush1.bf16.msra.mxu0 0
      %3602 = vmatprep.subr.bf16.mxu0 0
      %3603 = vmatpush1.bf16.msra.mxu0 0
      %3604 = vmatprep.subr.bf16.mxu0 0
      %3605 = vmatpush1.bf16.msra.mxu0 0
      %3606 = vmatprep.subr.bf16.mxu0 0
      %3607 = vmatpush1.bf16.msra.mxu0 0
      %3608 = vmatprep.subr.bf16.mxu0 0
      %3609 = vmatpush1.bf16.msra.mxu0 0
      %3610 = vmatprep.subr.bf16.mxu0 0
      %3611 = vmatpush1.bf16.msra.mxu0 0
      %3612 = vmatprep.subr.bf16.mxu0 0
      %3613 = vmatpush1.bf16.msra.mxu0 0
      %3614 = vmatprep.subr.bf16.mxu0 0
      %3615 = vmatpush1.bf16.msra.mxu0 0
      %3616 = vmatprep.subr.bf16.mxu0 0
      %3617 = vmatpush1.bf16.msra.mxu0 0
      %3618 = vmatprep.subr.bf16.mxu0 0
      %3619 = vmatpush1.bf16.msra.mxu0 0
      %3620 = vmatprep.subr.bf16.mxu0 0
      %3621 = vmatpush1.bf16.msra.mxu0 0
      %3622 = vmatprep.mubr.bf16.mxu0 0
      %3623 = vmatmul.mubr.bf16.gmra.mrb[0].mxu0 %v3486
      %v3624 = vpop.f32.mrb[0].mxu0
      %v3625 = vadd.f32 %v3465, %v3624
      %v3626 = vpop.f32.mrb[0].mxu0
      %v3627 = vadd.f32 %v3465, %v3626
      %v3628 = vpop.f32.mrb[0].mxu0
      %v3629 = vadd.f32 %v3470, %v3628
      %v3630 = vpop.f32.mrb[0].mxu0
      %v3631 = vadd.f32 %v3470, %v3630
      %3632 = vmatprep.mubr.bf16.mxu0 0
      %3633 = vmatmul.mubr.bf16.gmra.mrb[0].mxu0 %v3489
      %v3634 = vpop.f32.mrb[0].mxu0
      %v3635 = vadd.f32 %v3475, %v3634
      %v3636 = vpop.f32.mrb[0].mxu0
      %v3637 = vadd.f32 %v3475, %v3636
      %v3638 = vpop.f32.mrb[0].mxu0
      %v3639 = vpop.f32.mrb[0].mxu0
      %3640 = vdwg.mxu0
      %3641 = vmatprep.subr.bf16.mxu0 %v3431
      %3642 = vmatpush1.bf16.msra.mxu0 %v3430
      %3643 = vmatprep.subr.bf16.mxu0 %v3507
      %3644 = vmatpush1.bf16.msra.mxu0 %v3504
      %3645 = vmatprep.subr.bf16.mxu0 0
      %3646 = vmatpush1.bf16.msra.mxu0 0
      %3647 = vmatprep.subr.bf16.mxu0 0
      %3648 = vmatpush1.bf16.msra.mxu0 0
      %3649 = vmatprep.subr.bf16.mxu0 0
      %3650 = vmatpush1.bf16.msra.mxu0 0
      %3651 = vmatprep.subr.bf16.mxu0 0
      %3652 = vmatpush1.bf16.msra.mxu0 0
      %3653 = vmatprep.subr.bf16.mxu0 0
      %3654 = vmatpush1.bf16.msra.mxu0 0
      %3655 = vmatprep.subr.bf16.mxu0 0
      %3656 = vmatpush1.bf16.msra.mxu0 0
      %3657 = vmatprep.subr.bf16.mxu0 0
      %3658 = vmatpush1.bf16.msra.mxu0 0
      %3659 = vmatprep.subr.bf16.mxu0 0
      %3660 = vmatpush1.bf16.msra.mxu0 0
      %3661 = vmatprep.subr.bf16.mxu0 0
      %3662 = vmatpush1.bf16.msra.mxu0 0
      %3663 = vmatprep.subr.bf16.mxu0 0
      %3664 = vmatpush1.bf16.msra.mxu0 0
      %3665 = vmatprep.subr.bf16.mxu0 0
      %3666 = vmatpush1.bf16.msra.mxu0 0
      %3667 = vmatprep.subr.bf16.mxu0 0
      %3668 = vmatpush1.bf16.msra.mxu0 0
      %3669 = vmatprep.subr.bf16.mxu0 0
      %3670 = vmatpush1.bf16.msra.mxu0 0
      %3671 = vmatprep.subr.bf16.mxu0 0
      %3672 = vmatpush1.bf16.msra.mxu0 0
      %3673 = vmatprep.mubr.bf16.mxu0 0
      %3674 = vmatmul.mubr.bf16.gmra.mrb[0].mxu0 %v3486
      %v3675 = vpop.f32.mrb[0].mxu0
      %v3676 = vadd.f32 %v3465, %v3675
      %v3677 = vpop.f32.mrb[0].mxu0
      %v3678 = vadd.f32 %v3465, %v3677
      %v3679 = vpop.f32.mrb[0].mxu0
      %v3680 = vadd.f32 %v3470, %v3679
      %v3681 = vpop.f32.mrb[0].mxu0
      %v3682 = vadd.f32 %v3470, %v3681
      %3683 = vmatprep.mubr.bf16.mxu0 0
      %3684 = vmatmul.mubr.bf16.gmra.mrb[0].mxu0 %v3489
      %v3685 = vpop.f32.mrb[0].mxu0
      %v3686 = vadd.f32 %v3475, %v3685
      %v3687 = vpop.f32.mrb[0].mxu0
      %v3688 = vadd.f32 %v3475, %v3687
      %v3689 = vpop.f32.mrb[0].mxu0
      %v3690 = vpop.f32.mrb[0].mxu0
      %3691 = vdwg.mxu0
      %3692 = vmatprep.subr.bf16.mxu0 %v3433
      %3693 = vmatpush1.bf16.msra.mxu0 %v3432
      %3694 = vmatprep.subr.bf16.mxu0 %v3513
      %3695 = vmatpush1.bf16.msra.mxu0 %v3510
      %3696 = vmatprep.subr.bf16.mxu0 0
      %3697 = vmatpush1.bf16.msra.mxu0 0
      %3698 = vmatprep.subr.bf16.mxu0 0
      %3699 = vmatpush1.bf16.msra.mxu0 0
      %3700 = vmatprep.subr.bf16.mxu0 0
      %3701 = vmatpush1.bf16.msra.mxu0 0
      %3702 = vmatprep.subr.bf16.mxu0 0
      %3703 = vmatpush1.bf16.msra.mxu0 0
      %3704 = vmatprep.subr.bf16.mxu0 0
      %3705 = vmatpush1.bf16.msra.mxu0 0
      %3706 = vmatprep.subr.bf16.mxu0 0
      %3707 = vmatpush1.bf16.msra.mxu0 0
      %3708 = vmatprep.subr.bf16.mxu0 0
      %3709 = vmatpush1.bf16.msra.mxu0 0
      %3710 = vmatprep.subr.bf16.mxu0 0
      %3711 = vmatpush1.bf16.msra.mxu0 0
      %3712 = vmatprep.subr.bf16.mxu0 0
      %3713 = vmatpush1.bf16.msra.mxu0 0
      %3714 = vmatprep.subr.bf16.mxu0 0
      %3715 = vmatpush1.bf16.msra.mxu0 0
      %3716 = vmatprep.subr.bf16.mxu0 0
      %3717 = vmatpush1.bf16.msra.mxu0 0
      %3718 = vmatprep.subr.bf16.mxu0 0
      %3719 = vmatpush1.bf16.msra.mxu0 0
      %3720 = vmatprep.subr.bf16.mxu0 0
      %3721 = vmatpush1.bf16.msra.mxu0 0
      %3722 = vmatprep.subr.bf16.mxu0 0
      %3723 = vmatpush1.bf16.msra.mxu0 0
      %3724 = vmatprep.mubr.bf16.mxu0 0
      %3725 = vmatmul.mubr.bf16.gmra.mrb[0].mxu0 %v3486
      %v3726 = vpop.f32.mrb[0].mxu0
      %v3727 = vadd.f32 %v3465, %v3726
      %v3728 = vpop.f32.mrb[0].mxu0
      %v3729 = vadd.f32 %v3465, %v3728
      %v3730 = vpop.f32.mrb[0].mxu0
      %v3731 = vadd.f32 %v3470, %v3730
      %v3732 = vpop.f32.mrb[0].mxu0
      %v3733 = vadd.f32 %v3470, %v3732
      %3734 = vmatprep.mubr.bf16.mxu0 0
      %3735 = vmatmul.mubr.bf16.gmra.mrb[0].mxu0 %v3489
      %v3736 = vpop.f32.mrb[0].mxu0
      %v3737 = vadd.f32 %v3475, %v3736
      %v3738 = vpop.f32.mrb[0].mxu0
      %v3739 = vadd.f32 %v3475, %v3738
      %v3740 = vpop.f32.mrb[0].mxu0
      %v3741 = vpop.f32.mrb[0].mxu0
      %3742 = vdwg.mxu0
      %3743 = vmatprep.subr.bf16.mxu0 %v3435
      %3744 = vmatpush1.bf16.msra.mxu0 %v3434
      %3745 = vmatprep.subr.bf16.mxu0 %v3519
      %3746 = vmatpush1.bf16.msra.mxu0 %v3516
      %3747 = vmatprep.subr.bf16.mxu0 0
      %3748 = vmatpush1.bf16.msra.mxu0 0
      %3749 = vmatprep.subr.bf16.mxu0 0
      %3750 = vmatpush1.bf16.msra.mxu0 0
      %3751 = vmatprep.subr.bf16.mxu0 0
      %3752 = vmatpush1.bf16.msra.mxu0 0
      %3753 = vmatprep.subr.bf16.mxu0 0
      %3754 = vmatpush1.bf16.msra.mxu0 0
      %3755 = vmatprep.subr.bf16.mxu0 0
      %3756 = vmatpush1.bf16.msra.mxu0 0
      %3757 = vmatprep.subr.bf16.mxu0 0
      %3758 = vmatpush1.bf16.msra.mxu0 0
      %3759 = vmatprep.subr.bf16.mxu0 0
      %3760 = vmatpush1.bf16.msra.mxu0 0
      %3761 = vmatprep.subr.bf16.mxu0 0
      %3762 = vmatpush1.bf16.msra.mxu0 0
      %3763 = vmatprep.subr.bf16.mxu0 0
      %3764 = vmatpush1.bf16.msra.mxu0 0
      %3765 = vmatprep.subr.bf16.mxu0 0
      %3766 = vmatpush1.bf16.msra.mxu0 0
      %3767 = vmatprep.subr.bf16.mxu0 0
      %3768 = vmatpush1.bf16.msra.mxu0 0
      %3769 = vmatprep.subr.bf16.mxu0 0
      %3770 = vmatpush1.bf16.msra.mxu0 0
      %3771 = vmatprep.subr.bf16.mxu0 0
      %3772 = vmatpush1.bf16.msra.mxu0 0
      %3773 = vmatprep.subr.bf16.mxu0 0
      %3774 = vmatpush1.bf16.msra.mxu0 0
      %3775 = vmatprep.mubr.bf16.mxu0 0
      %3776 = vmatmul.mubr.bf16.gmra.mrb[0].mxu0 %v3486
      %v3777 = vpop.f32.mrb[0].mxu0
      %v3778 = vadd.f32 %v3465, %v3777
      %v3779 = vpop.f32.mrb[0].mxu0
      %v3780 = vadd.f32 %v3465, %v3779
      %v3781 = vpop.f32.mrb[0].mxu0
      %v3782 = vadd.f32 %v3470, %v3781
      %v3783 = vpop.f32.mrb[0].mxu0
      %v3784 = vadd.f32 %v3470, %v3783
      %3785 = vmatprep.mubr.bf16.mxu0 0
      %3786 = vmatmul.mubr.bf16.gmra.mrb[0].mxu0 %v3489
      %v3787 = vpop.f32.mrb[0].mxu0
      %v3788 = vadd.f32 %v3475, %v3787
      %v3789 = vpop.f32.mrb[0].mxu0
      %v3790 = vadd.f32 %v3475, %v3789
      %v3791 = vpop.f32.mrb[0].mxu0
      %v3792 = vpop.f32.mrb[0].mxu0
      %3793 = vdwg.mxu0
      %3794 = vmatprep.subr.bf16.mxu0 %v3437
      %3795 = vmatpush1.bf16.msra.mxu0 %v3436
      %3796 = vmatprep.subr.bf16.mxu0 %v3525
      %3797 = vmatpush1.bf16.msra.mxu0 %v3522
      %3798 = vmatprep.subr.bf16.mxu0 0
      %3799 = vmatpush1.bf16.msra.mxu0 0
      %3800 = vmatprep.subr.bf16.mxu0 0
      %3801 = vmatpush1.bf16.msra.mxu0 0
      %3802 = vmatprep.subr.bf16.mxu0 0
      %3803 = vmatpush1.bf16.msra.mxu0 0
      %3804 = vmatprep.subr.bf16.mxu0 0
      %3805 = vmatpush1.bf16.msra.mxu0 0
      %3806 = vmatprep.subr.bf16.mxu0 0
      %3807 = vmatpush1.bf16.msra.mxu0 0
      %3808 = vmatprep.subr.bf16.mxu0 0
      %3809 = vmatpush1.bf16.msra.mxu0 0
      %3810 = vmatprep.subr.bf16.mxu0 0
      %3811 = vmatpush1.bf16.msra.mxu0 0
      %3812 = vmatprep.subr.bf16.mxu0 0
      %3813 = vmatpush1.bf16.msra.mxu0 0
      %3814 = vmatprep.subr.bf16.mxu0 0
      %3815 = vmatpush1.bf16.msra.mxu0 0
      %3816 = vmatprep.subr.bf16.mxu0 0
      %3817 = vmatpush1.bf16.msra.mxu0 0
      %3818 = vmatprep.subr.bf16.mxu0 0
      %3819 = vmatpush1.bf16.msra.mxu0 0
      %3820 = vmatprep.subr.bf16.mxu0 0
      %3821 = vmatpush1.bf16.msra.mxu0 0
      %3822 = vmatprep.subr.bf16.mxu0 0
      %3823 = vmatpush1.bf16.msra.mxu0 0
      %3824 = vmatprep.subr.bf16.mxu0 0
      %3825 = vmatpush1.bf16.msra.mxu0 0
      %3826 = vmatprep.mubr.bf16.mxu0 0
      %3827 = vmatmul.mubr.bf16.gmra.mrb[0].mxu0 %v3486
      %v3828 = vpop.f32.mrb[0].mxu0
      %v3829 = vadd.f32 %v3465, %v3828
      %v3830 = vpop.f32.mrb[0].mxu0
      %v3831 = vadd.f32 %v3465, %v3830
      %v3832 = vpop.f32.mrb[0].mxu0
      %v3833 = vadd.f32 %v3470, %v3832
      %v3834 = vpop.f32.mrb[0].mxu0
      %v3835 = vadd.f32 %v3470, %v3834
      %3836 = vmatprep.mubr.bf16.mxu0 0
      %3837 = vmatmul.mubr.bf16.gmra.mrb[0].mxu0 %v3489
      %v3838 = vpop.f32.mrb[0].mxu0
      %v3839 = vadd.f32 %v3475, %v3838
      %v3840 = vpop.f32.mrb[0].mxu0
      %v3841 = vadd.f32 %v3475, %v3840
      %v3842 = vpop.f32.mrb[0].mxu0
      %v3843 = vpop.f32.mrb[0].mxu0
      %3844 = vdwg.mxu0
      %3845 = vmatprep.subr.bf16.mxu0 %v3439
      %3846 = vmatpush1.bf16.msra.mxu0 %v3438
      %3847 = vmatprep.subr.bf16.mxu0 %v3531
      %3848 = vmatpush1.bf16.msra.mxu0 %v3528
      %3849 = vmatprep.subr.bf16.mxu0 0
      %3850 = vmatpush1.bf16.msra.mxu0 0
      %3851 = vmatprep.subr.bf16.mxu0 0
      %3852 = vmatpush1.bf16.msra.mxu0 0
      %3853 = vmatprep.subr.bf16.mxu0 0
      %3854 = vmatpush1.bf16.msra.mxu0 0
      %3855 = vmatprep.subr.bf16.mxu0 0
      %3856 = vmatpush1.bf16.msra.mxu0 0
      %3857 = vmatprep.subr.bf16.mxu0 0
      %3858 = vmatpush1.bf16.msra.mxu0 0
      %3859 = vmatprep.subr.bf16.mxu0 0
      %3860 = vmatpush1.bf16.msra.mxu0 0
      %3861 = vmatprep.subr.bf16.mxu0 0
      %3862 = vmatpush1.bf16.msra.mxu0 0
      %3863 = vmatprep.subr.bf16.mxu0 0
      %3864 = vmatpush1.bf16.msra.mxu0 0
      %3865 = vmatprep.subr.bf16.mxu0 0
      %3866 = vmatpush1.bf16.msra.mxu0 0
      %3867 = vmatprep.subr.bf16.mxu0 0
      %3868 = vmatpush1.bf16.msra.mxu0 0
      %3869 = vmatprep.subr.bf16.mxu0 0
      %3870 = vmatpush1.bf16.msra.mxu0 0
      %3871 = vmatprep.subr.bf16.mxu0 0
      %3872 = vmatpush1.bf16.msra.mxu0 0
      %3873 = vmatprep.subr.bf16.mxu0 0
      %3874 = vmatpush1.bf16.msra.mxu0 0
      %3875 = vmatprep.subr.bf16.mxu0 0
      %3876 = vmatpush1.bf16.msra.mxu0 0
      %3877 = vmatprep.mubr.bf16.mxu0 0
      %3878 = vmatmul.mubr.bf16.gmra.mrb[0].mxu0 %v3486
      %v3879 = vpop.f32.mrb[0].mxu0
      %v3880 = vadd.f32 %v3465, %v3879
      %v3881 = vpop.f32.mrb[0].mxu0
      %v3882 = vadd.f32 %v3465, %v3881
      %v3883 = vpop.f32.mrb[0].mxu0
      %v3884 = vadd.f32 %v3470, %v3883
      %v3885 = vpop.f32.mrb[0].mxu0
      %v3886 = vadd.f32 %v3470, %v3885
      %3887 = vmatprep.mubr.bf16.mxu0 0
      %3888 = vmatmul.mubr.bf16.gmra.mrb[0].mxu0 %v3489
      %v3889 = vpop.f32.mrb[0].mxu0
      %v3890 = vadd.f32 %v3475, %v3889
      %v3891 = vpop.f32.mrb[0].mxu0
      %v3892 = vadd.f32 %v3475, %v3891
      %v3893 = vpop.f32.mrb[0].mxu0
      %v3894 = vpop.f32.mrb[0].mxu0
      %3895 = vdwg.mxu0
      %3896 = vmatprep.subr.bf16.mxu0 %v3441
      %3897 = vmatpush1.bf16.msra.mxu0 %v3440
      %3898 = vmatprep.subr.bf16.mxu0 %v3537
      %3899 = vmatpush1.bf16.msra.mxu0 %v3534
      %3900 = vmatprep.subr.bf16.mxu0 0
      %3901 = vmatpush1.bf16.msra.mxu0 0
      %3902 = vmatprep.subr.bf16.mxu0 0
      %3903 = vmatpush1.bf16.msra.mxu0 0
      %3904 = vmatprep.subr.bf16.mxu0 0
      %3905 = vmatpush1.bf16.msra.mxu0 0
      %3906 = vmatprep.subr.bf16.mxu0 0
      %3907 = vmatpush1.bf16.msra.mxu0 0
      %3908 = vmatprep.subr.bf16.mxu0 0
      %3909 = vmatpush1.bf16.msra.mxu0 0
      %3910 = vmatprep.subr.bf16.mxu0 0
      %3911 = vmatpush1.bf16.msra.mxu0 0
      %3912 = vmatprep.subr.bf16.mxu0 0
      %3913 = vmatpush1.bf16.msra.mxu0 0
      %3914 = vmatprep.subr.bf16.mxu0 0
      %3915 = vmatpush1.bf16.msra.mxu0 0
      %3916 = vmatprep.subr.bf16.mxu0 0
      %3917 = vmatpush1.bf16.msra.mxu0 0
      %3918 = vmatprep.subr.bf16.mxu0 0
      %3919 = vmatpush1.bf16.msra.mxu0 0
      %3920 = vmatprep.subr.bf16.mxu0 0
      %3921 = vmatpush1.bf16.msra.mxu0 0
      %3922 = vmatprep.subr.bf16.mxu0 0
      %3923 = vmatpush1.bf16.msra.mxu0 0
      %3924 = vmatprep.subr.bf16.mxu0 0
      %3925 = vmatpush1.bf16.msra.mxu0 0
      %3926 = vmatprep.subr.bf16.mxu0 0
      %3927 = vmatpush1.bf16.msra.mxu0 0
      %3928 = vmatprep.mubr.bf16.mxu0 0
      %3929 = vmatmul.mubr.bf16.gmra.mrb[0].mxu0 %v3486
      %v3930 = vpop.f32.mrb[0].mxu0
      %v3931 = vadd.f32 %v3465, %v3930
      %v3932 = vpop.f32.mrb[0].mxu0
      %v3933 = vadd.f32 %v3465, %v3932
      %v3934 = vpop.f32.mrb[0].mxu0
      %v3935 = vadd.f32 %v3470, %v3934
      %v3936 = vpop.f32.mrb[0].mxu0
      %v3937 = vadd.f32 %v3470, %v3936
      %3938 = vmatprep.mubr.bf16.mxu0 0
      %3939 = vmatmul.mubr.bf16.gmra.mrb[0].mxu0 %v3489
      %v3940 = vpop.f32.mrb[0].mxu0
      %v3941 = vadd.f32 %v3475, %v3940
      %v3942 = vpop.f32.mrb[0].mxu0
      %v3943 = vadd.f32 %v3475, %v3942
      %v3944 = vpop.f32.mrb[0].mxu0
      %v3945 = vpop.f32.mrb[0].mxu0
      %3946 = vdwg.mxu0
      %v3947 = vmul.f32 %v3574, 0.5
      %v3948 = vmul.f32 %v3576, 0.5
      %v3949 = vmul.f32 %v3625, 0.5
      %v3950 = vmul.f32 %v3627, 0.5
      %v3951 = vmul.f32 %v3676, 0.5
      %v3952 = vmul.f32 %v3678, 0.5
      %v3953 = vmul.f32 %v3727, 0.5
      %v3954 = vmul.f32 %v3729, 0.5
      %v3955 = vmul.f32 %v3778, 0.5
      %v3956 = vmul.f32 %v3780, 0.5
      %v3957 = vmul.f32 %v3829, 0.5
      %v3958 = vmul.f32 %v3831, 0.5
      %v3959 = vmul.f32 %v3880, 0.5
      %v3960 = vmul.f32 %v3882, 0.5
      %v3961 = vmul.f32 %v3931, 0.5
      %v3962 = vmul.f32 %v3933, 0.5
      %v3963 = vmul.f32 %v3578, 0.5
      %v3964 = vmul.f32 %v3580, 0.5
      %v3965 = vmul.f32 %v3629, 0.5
      %v3966 = vmul.f32 %v3631, 0.5
      %v3967 = vmul.f32 %v3680, 0.5
      %v3968 = vmul.f32 %v3682, 0.5
      %v3969 = vmul.f32 %v3731, 0.5
      %v3970 = vmul.f32 %v3733, 0.5
      %v3971 = vmul.f32 %v3782, 0.5
      %v3972 = vmul.f32 %v3784, 0.5
      %v3973 = vmul.f32 %v3833, 0.5
      %v3974 = vmul.f32 %v3835, 0.5
      %v3975 = vmul.f32 %v3884, 0.5
      %v3976 = vmul.f32 %v3886, 0.5
      %v3977 = vmul.f32 %v3935, 0.5
      %v3978 = vmul.f32 %v3937, 0.5
      %v3979 = vmul.f32 %v3584, 0.5
      %v3980 = vmul.f32 %v3586, 0.5
      %v3981 = vmul.f32 %v3635, 0.5
      %v3982 = vmul.f32 %v3637, 0.5
      %v3983 = vmul.f32 %v3686, 0.5
      %v3984 = vmul.f32 %v3688, 0.5
      %v3985 = vmul.f32 %v3737, 0.5
      %v3986 = vmul.f32 %v3739, 0.5
      %v3987 = vmul.f32 %v3788, 0.5
      %v3988 = vmul.f32 %v3790, 0.5
      %v3989 = vmul.f32 %v3839, 0.5
      %v3990 = vmul.f32 %v3841, 0.5
      %v3991 = vmul.f32 %v3890, 0.5
      %v3992 = vmul.f32 %v3892, 0.5
      %v3993 = vmul.f32 %v3941, 0.5
      %v3994 = vmul.f32 %v3943, 0.5
      %v3995 = vtanh.pop %v3947
      %v3996 = vtanh.pop %v3948
      %v3997 = vtanh.pop %v3949
      %v3998 = vtanh.pop %v3950
      %v3999 = vtanh.pop %v3951
      %v4000 = vtanh.pop %v3952
      %v4001 = vtanh.pop %v3953
      %v4002 = vtanh.pop %v3954
      %v4003 = vtanh.pop %v3955
      %v4004 = vtanh.pop %v3956
      %v4005 = vtanh.pop %v3957
      %v4006 = vtanh.pop %v3958
      %v4007 = vtanh.pop %v3959
      %v4008 = vtanh.pop %v3960
      %v4009 = vtanh.pop %v3961
      %v4010 = vtanh.pop %v3962
      %v4011 = vtanh.pop %v3963
      %v4012 = vtanh.pop %v3964
      %v4013 = vtanh.pop %v3965
      %v4014 = vtanh.pop %v3966
      %v4015 = vtanh.pop %v3967
      %v4016 = vtanh.pop %v3968
      %v4017 = vtanh.pop %v3969
      %v4018 = vtanh.pop %v3970
      %v4019 = vtanh.pop %v3971
      %v4020 = vtanh.pop %v3972
      %v4021 = vtanh.pop %v3973
      %v4022 = vtanh.pop %v3974
      %v4023 = vtanh.pop %v3975
      %v4024 = vtanh.pop %v3976
      %v4025 = vtanh.pop %v3977
      %v4026 = vtanh.pop %v3978
      %v4027 = vtanh.pop %v3979
      %v4028 = vtanh.pop %v3980
      %v4029 = vtanh.pop %v3981
      %v4030 = vtanh.pop %v3982
      %v4031 = vtanh.pop %v3983
      %v4032 = vtanh.pop %v3984
      %v4033 = vtanh.pop %v3985
      %v4034 = vtanh.pop %v3986
      %v4035 = vtanh.pop %v3987
      %v4036 = vtanh.pop %v3988
      %v4037 = vtanh.pop %v3989
      %v4038 = vtanh.pop %v3990
      %v4039 = vtanh.pop %v3991
      %v4040 = vtanh.pop %v3992
      %v4041 = vtanh.pop %v3993
      %v4042 = vtanh.pop %v3994
      %v4043 = vmul.f32 %v3947, %v3995
      %v4044 = vmul.f32 %v3948, %v3996
      %v4045 = vmul.f32 %v3949, %v3997
      %v4046 = vmul.f32 %v3950, %v3998
      %v4047 = vmul.f32 %v3951, %v3999
      %v4048 = vmul.f32 %v3952, %v4000
      %v4049 = vmul.f32 %v3953, %v4001
      %v4050 = vmul.f32 %v3954, %v4002
      %v4051 = vmul.f32 %v3955, %v4003
      %v4052 = vmul.f32 %v3956, %v4004
      %v4053 = vmul.f32 %v3957, %v4005
      %v4054 = vmul.f32 %v3958, %v4006
      %v4055 = vmul.f32 %v3959, %v4007
      %v4056 = vmul.f32 %v3960, %v4008
      %v4057 = vmul.f32 %v3961, %v4009
      %v4058 = vmul.f32 %v3962, %v4010
      %v4059 = vmul.f32 %v3963, %v4011
      %v4060 = vmul.f32 %v3964, %v4012
      %v4061 = vmul.f32 %v3965, %v4013
      %v4062 = vmul.f32 %v3966, %v4014
      %v4063 = vmul.f32 %v3967, %v4015
      %v4064 = vmul.f32 %v3968, %v4016
      %v4065 = vmul.f32 %v3969, %v4017
      %v4066 = vmul.f32 %v3970, %v4018
      %v4067 = vmul.f32 %v3971, %v4019
      %v4068 = vmul.f32 %v3972, %v4020
      %v4069 = vmul.f32 %v3973, %v4021
      %v4070 = vmul.f32 %v3974, %v4022
      %v4071 = vmul.f32 %v3975, %v4023
      %v4072 = vmul.f32 %v3976, %v4024
      %v4073 = vmul.f32 %v3977, %v4025
      %v4074 = vmul.f32 %v3978, %v4026
      %v4075 = vmul.f32 %v3979, %v4027
      %v4076 = vmul.f32 %v3980, %v4028
      %v4077 = vmul.f32 %v3981, %v4029
      %v4078 = vmul.f32 %v3982, %v4030
      %v4079 = vmul.f32 %v3983, %v4031
      %v4080 = vmul.f32 %v3984, %v4032
      %v4081 = vmul.f32 %v3985, %v4033
      %v4082 = vmul.f32 %v3986, %v4034
      %v4083 = vmul.f32 %v3987, %v4035
      %v4084 = vmul.f32 %v3988, %v4036
      %v4085 = vmul.f32 %v3989, %v4037
      %v4086 = vmul.f32 %v3990, %v4038
      %v4087 = vmul.f32 %v3991, %v4039
      %v4088 = vmul.f32 %v3992, %v4040
      %v4089 = vmul.f32 %v3993, %v4041
      %v4090 = vmul.f32 %v3994, %v4042
      %v4091 = vadd.f32 %v4043, %v3947
      %v4092 = vadd.f32 %v4044, %v3948
      %v4093 = vadd.f32 %v4045, %v3949
      %v4094 = vadd.f32 %v4046, %v3950
      %v4095 = vadd.f32 %v4047, %v3951
      %v4096 = vadd.f32 %v4048, %v3952
      %v4097 = vadd.f32 %v4049, %v3953
      %v4098 = vadd.f32 %v4050, %v3954
      %v4099 = vadd.f32 %v4051, %v3955
      %v4100 = vadd.f32 %v4052, %v3956
      %v4101 = vadd.f32 %v4053, %v3957
      %v4102 = vadd.f32 %v4054, %v3958
      %v4103 = vadd.f32 %v4055, %v3959
      %v4104 = vadd.f32 %v4056, %v3960
      %v4105 = vadd.f32 %v4057, %v3961
      %v4106 = vadd.f32 %v4058, %v3962
      %v4107 = vadd.f32 %v4059, %v3963
      %v4108 = vadd.f32 %v4060, %v3964
      %v4109 = vadd.f32 %v4061, %v3965
      %v4110 = vadd.f32 %v4062, %v3966
      %v4111 = vadd.f32 %v4063, %v3967
      %v4112 = vadd.f32 %v4064, %v3968
      %v4113 = vadd.f32 %v4065, %v3969
      %v4114 = vadd.f32 %v4066, %v3970
      %v4115 = vadd.f32 %v4067, %v3971
      %v4116 = vadd.f32 %v4068, %v3972
      %v4117 = vadd.f32 %v4069, %v3973
      %v4118 = vadd.f32 %v4070, %v3974
      %v4119 = vadd.f32 %v4071, %v3975
      %v4120 = vadd.f32 %v4072, %v3976
      %v4121 = vadd.f32 %v4073, %v3977
      %v4122 = vadd.f32 %v4074, %v3978
      %v4123 = vadd.f32 %v4075, %v3979
      %v4124 = vadd.f32 %v4076, %v3980
      %v4125 = vadd.f32 %v4077, %v3981
      %v4126 = vadd.f32 %v4078, %v3982
      %v4127 = vadd.f32 %v4079, %v3983
      %v4128 = vadd.f32 %v4080, %v3984
      %v4129 = vadd.f32 %v4081, %v3985
      %v4130 = vadd.f32 %v4082, %v3986
      %v4131 = vadd.f32 %v4083, %v3987
      %v4132 = vadd.f32 %v4084, %v3988
      %v4133 = vadd.f32 %v4085, %v3989
      %v4134 = vadd.f32 %v4086, %v3990
      %v4135 = vadd.f32 %v4087, %v3991
      %v4136 = vadd.f32 %v4088, %v3992
      %v4137 = vadd.f32 %v4089, %v3993
      %v4138 = vadd.f32 %v4090, %v3994
      %s4139 = scalar_lea.vmem %s3, 48
      %v4140 = vld [vmem:[%s4139] sm:$0xf]
      %v4141 = vld [vmem:[%s4139 + $0x4] sm:$0xf]
      %v4142 = vld [vmem:[%s4139 + $0x8] sm:$0x3]
      %v4143 = vpack.c.bf16 %v4107, %v4091
      %v4144 = vpack.c.bf16 %v4108, %v4092
      %v4145 = vpack.c.bf16 %v4109, %v4093
      %v4146 = vpack.c.bf16 %v4110, %v4094
      %v4147 = vpack.c.bf16 %v4111, %v4095
      %v4148 = vpack.c.bf16 %v4112, %v4096
      %v4149 = vpack.c.bf16 %v4113, %v4097
      %v4150 = vpack.c.bf16 %v4114, %v4098
      %v4151 = vpack.c.bf16 %v4115, %v4099
      %v4152 = vpack.c.bf16 %v4116, %v4100
      %v4153 = vpack.c.bf16 %v4117, %v4101
      %v4154 = vpack.c.bf16 %v4118, %v4102
      %v4155 = vpack.c.bf16 %v4119, %v4103
      %v4156 = vpack.c.bf16 %v4120, %v4104
      %v4157 = vpack.c.bf16 %v4121, %v4105
      %v4158 = vpack.c.bf16 %v4122, %v4106
      %v4159 = vpack.c.bf16 %v4123, %v4123
      %v4160 = vpack.c.bf16 %v4124, %v4124
      %v4161 = vpack.c.bf16 %v4125, %v4125
      %v4162 = vpack.c.bf16 %v4126, %v4126
      %v4163 = vpack.c.bf16 %v4127, %v4127
      %v4164 = vpack.c.bf16 %v4128, %v4128
      %v4165 = vpack.c.bf16 %v4129, %v4129
      %v4166 = vpack.c.bf16 %v4130, %v4130
      %v4167 = vpack.c.bf16 %v4131, %v4131
      %v4168 = vpack.c.bf16 %v4132, %v4132
      %v4169 = vpack.c.bf16 %v4133, %v4133
      %v4170 = vpack.c.bf16 %v4134, %v4134
      %v4171 = vpack.c.bf16 %v4135, %v4135
      %v4172 = vpack.c.bf16 %v4136, %v4136
      %v4173 = vpack.c.bf16 %v4137, %v4137
      %v4174 = vpack.c.bf16 %v4138, %v4138
      %s4175 = scalar_lea.vmem %s4, 96
      %v4176 = vld [vmem:[%s4175] sm:$0xff]
      %v4177 = vld [vmem:[%s4175 + $0x8] sm:$0xff]
      %v4178 = vld [vmem:[%s4175 + $0x10] sm:$0xf]
      %4180 = vset.pattern.permute.xlu0 0
      %4181 = vperm.xlu0 %4180, %v4176
      %v4182 = vpop.permute.xlu0 %4181
      %4185 = vset.pattern.permute.xlu0 0
      %4186 = vperm.xlu0 %4185, %v4177
      %v4187 = vpop.permute.xlu0 %4186
      %4190 = vset.pattern.permute.xlu0 0
      %4191 = vperm.xlu0 %4190, %v4178
      %v4192 = vpop.permute.xlu0 %4191
      %v4197 = vunpack.c.l.b16 %v4140
      %v4198 = vunpack.c.l.b16 %v4141
      %v4199 = vunpack.c.l.b16 %v4142
      %v4200 = vpack.c.b16 %v4198, %v4197
      %v4201 = vpack.c.b16 %v4199, %v4199
      %v4203 = vsel %vm1332, %v4200, 0
      %v4206 = vsel %vm1332, %v4201, 0
      %v4209 = vsel %vm1339, %v4159, 0
      %v4212 = vsel %vm1339, %v4160, 0
      %v4215 = vsel %vm1339, %v4161, 0
      %v4218 = vsel %vm1339, %v4162, 0
      %v4221 = vsel %vm1339, %v4163, 0
      %v4224 = vsel %vm1339, %v4164, 0
      %v4227 = vsel %vm1339, %v4165, 0
      %v4230 = vsel %vm1339, %v4166, 0
      %v4233 = vsel %vm1339, %v4167, 0
      %v4236 = vsel %vm1339, %v4168, 0
      %v4239 = vsel %vm1339, %v4169, 0
      %v4242 = vsel %vm1339, %v4170, 0
      %v4245 = vsel %vm1339, %v4171, 0
      %v4248 = vsel %vm1339, %v4172, 0
      %v4251 = vsel %vm1339, %v4173, 0
      %v4254 = vsel %vm1339, %v4174, 0
      %4256 = vmatprep.subr.bf16.mxu0 %v4144
      %4257 = vmatpush1.bf16.msra.mxu0 %v4143
      %4258 = vmatprep.subr.bf16.mxu0 %v4212
      %4259 = vmatpush1.bf16.msra.mxu0 %v4209
      %4260 = vmatprep.subr.bf16.mxu0 0
      %4261 = vmatpush1.bf16.msra.mxu0 0
      %4262 = vmatprep.subr.bf16.mxu0 0
      %4263 = vmatpush1.bf16.msra.mxu0 0
      %4264 = vmatprep.subr.bf16.mxu0 0
      %4265 = vmatpush1.bf16.msra.mxu0 0
      %4266 = vmatprep.subr.bf16.mxu0 0
      %4267 = vmatpush1.bf16.msra.mxu0 0
      %4268 = vmatprep.subr.bf16.mxu0 0
      %4269 = vmatpush1.bf16.msra.mxu0 0
      %4270 = vmatprep.subr.bf16.mxu0 0
      %4271 = vmatpush1.bf16.msra.mxu0 0
      %4272 = vmatprep.subr.bf16.mxu0 0
      %4273 = vmatpush1.bf16.msra.mxu0 0
      %4274 = vmatprep.subr.bf16.mxu0 0
      %4275 = vmatpush1.bf16.msra.mxu0 0
      %4276 = vmatprep.subr.bf16.mxu0 0
      %4277 = vmatpush1.bf16.msra.mxu0 0
      %4278 = vmatprep.subr.bf16.mxu0 0
      %4279 = vmatpush1.bf16.msra.mxu0 0
      %4280 = vmatprep.subr.bf16.mxu0 0
      %4281 = vmatpush1.bf16.msra.mxu0 0
      %4282 = vmatprep.subr.bf16.mxu0 0
      %4283 = vmatpush1.bf16.msra.mxu0 0
      %4284 = vmatprep.subr.bf16.mxu0 0
      %4285 = vmatpush1.bf16.msra.mxu0 0
      %4286 = vmatprep.subr.bf16.mxu0 0
      %4287 = vmatpush1.bf16.msra.mxu0 0
      %4288 = vmatprep.mubr.bf16.mxu0 0
      %4289 = vmatmul.mubr.bf16.gmra.mrb[0].mxu0 %v4203
      %v4290 = vpop.f32.mrb[0].mxu0
      %v4291 = vadd.f32 %v4182, %v4290
      %v4292 = vpop.f32.mrb[0].mxu0
      %v4293 = vadd.f32 %v4182, %v4292
      %v4294 = vpop.f32.mrb[0].mxu0
      %v4295 = vadd.f32 %v4187, %v4294
      %v4296 = vpop.f32.mrb[0].mxu0
      %v4297 = vadd.f32 %v4187, %v4296
      %4298 = vmatprep.mubr.bf16.mxu0 0
      %4299 = vmatmul.mubr.bf16.gmra.mrb[0].mxu0 %v4206
      %v4300 = vpop.f32.mrb[0].mxu0
      %v4301 = vadd.f32 %v4192, %v4300
      %v4302 = vpop.f32.mrb[0].mxu0
      %v4303 = vadd.f32 %v4192, %v4302
      %v4304 = vpop.f32.mrb[0].mxu0
      %v4305 = vpop.f32.mrb[0].mxu0
      %4306 = vdwg.mxu0
      %4307 = vmatprep.subr.bf16.mxu0 %v4146
      %4308 = vmatpush1.bf16.msra.mxu0 %v4145
      %4309 = vmatprep.subr.bf16.mxu0 %v4218
      %4310 = vmatpush1.bf16.msra.mxu0 %v4215
      %4311 = vmatprep.subr.bf16.mxu0 0
      %4312 = vmatpush1.bf16.msra.mxu0 0
      %4313 = vmatprep.subr.bf16.mxu0 0
      %4314 = vmatpush1.bf16.msra.mxu0 0
      %4315 = vmatprep.subr.bf16.mxu0 0
      %4316 = vmatpush1.bf16.msra.mxu0 0
      %4317 = vmatprep.subr.bf16.mxu0 0
      %4318 = vmatpush1.bf16.msra.mxu0 0
      %4319 = vmatprep.subr.bf16.mxu0 0
      %4320 = vmatpush1.bf16.msra.mxu0 0
      %4321 = vmatprep.subr.bf16.mxu0 0
      %4322 = vmatpush1.bf16.msra.mxu0 0
      %4323 = vmatprep.subr.bf16.mxu0 0
      %4324 = vmatpush1.bf16.msra.mxu0 0
      %4325 = vmatprep.subr.bf16.mxu0 0
      %4326 = vmatpush1.bf16.msra.mxu0 0
      %4327 = vmatprep.subr.bf16.mxu0 0
      %4328 = vmatpush1.bf16.msra.mxu0 0
      %4329 = vmatprep.subr.bf16.mxu0 0
      %4330 = vmatpush1.bf16.msra.mxu0 0
      %4331 = vmatprep.subr.bf16.mxu0 0
      %4332 = vmatpush1.bf16.msra.mxu0 0
      %4333 = vmatprep.subr.bf16.mxu0 0
      %4334 = vmatpush1.bf16.msra.mxu0 0
      %4335 = vmatprep.subr.bf16.mxu0 0
      %4336 = vmatpush1.bf16.msra.mxu0 0
      %4337 = vmatprep.subr.bf16.mxu0 0
      %4338 = vmatpush1.bf16.msra.mxu0 0
      %4339 = vmatprep.mubr.bf16.mxu0 0
      %4340 = vmatmul.mubr.bf16.gmra.mrb[0].mxu0 %v4203
      %v4341 = vpop.f32.mrb[0].mxu0
      %v4342 = vadd.f32 %v4182, %v4341
      %v4343 = vpop.f32.mrb[0].mxu0
      %v4344 = vadd.f32 %v4182, %v4343
      %v4345 = vpop.f32.mrb[0].mxu0
      %v4346 = vadd.f32 %v4187, %v4345
      %v4347 = vpop.f32.mrb[0].mxu0
      %v4348 = vadd.f32 %v4187, %v4347
      %4349 = vmatprep.mubr.bf16.mxu0 0
      %4350 = vmatmul.mubr.bf16.gmra.mrb[0].mxu0 %v4206
      %v4351 = vpop.f32.mrb[0].mxu0
      %v4352 = vadd.f32 %v4192, %v4351
      %v4353 = vpop.f32.mrb[0].mxu0
      %v4354 = vadd.f32 %v4192, %v4353
      %v4355 = vpop.f32.mrb[0].mxu0
      %v4356 = vpop.f32.mrb[0].mxu0
      %4357 = vdwg.mxu0
      %4358 = vmatprep.subr.bf16.mxu0 %v4148
      %4359 = vmatpush1.bf16.msra.mxu0 %v4147
      %4360 = vmatprep.subr.bf16.mxu0 %v4224
      %4361 = vmatpush1.bf16.msra.mxu0 %v4221
      %4362 = vmatprep.subr.bf16.mxu0 0
      %4363 = vmatpush1.bf16.msra.mxu0 0
      %4364 = vmatprep.subr.bf16.mxu0 0
      %4365 = vmatpush1.bf16.msra.mxu0 0
      %4366 = vmatprep.subr.bf16.mxu0 0
      %4367 = vmatpush1.bf16.msra.mxu0 0
      %4368 = vmatprep.subr.bf16.mxu0 0
      %4369 = vmatpush1.bf16.msra.mxu0 0
      %4370 = vmatprep.subr.bf16.mxu0 0
      %4371 = vmatpush1.bf16.msra.mxu0 0
      %4372 = vmatprep.subr.bf16.mxu0 0
      %4373 = vmatpush1.bf16.msra.mxu0 0
      %4374 = vmatprep.subr.bf16.mxu0 0
      %4375 = vmatpush1.bf16.msra.mxu0 0
      %4376 = vmatprep.subr.bf16.mxu0 0
      %4377 = vmatpush1.bf16.msra.mxu0 0
      %4378 = vmatprep.subr.bf16.mxu0 0
      %4379 = vmatpush1.bf16.msra.mxu0 0
      %4380 = vmatprep.subr.bf16.mxu0 0
      %4381 = vmatpush1.bf16.msra.mxu0 0
      %4382 = vmatprep.subr.bf16.mxu0 0
      %4383 = vmatpush1.bf16.msra.mxu0 0
      %4384 = vmatprep.subr.bf16.mxu0 0
      %4385 = vmatpush1.bf16.msra.mxu0 0
      %4386 = vmatprep.subr.bf16.mxu0 0
      %4387 = vmatpush1.bf16.msra.mxu0 0
      %4388 = vmatprep.subr.bf16.mxu0 0
      %4389 = vmatpush1.bf16.msra.mxu0 0
      %4390 = vmatprep.mubr.bf16.mxu0 0
      %4391 = vmatmul.mubr.bf16.gmra.mrb[0].mxu0 %v4203
      %v4392 = vpop.f32.mrb[0].mxu0
      %v4393 = vadd.f32 %v4182, %v4392
      %v4394 = vpop.f32.mrb[0].mxu0
      %v4395 = vadd.f32 %v4182, %v4394
      %v4396 = vpop.f32.mrb[0].mxu0
      %v4397 = vadd.f32 %v4187, %v4396
      %v4398 = vpop.f32.mrb[0].mxu0
      %v4399 = vadd.f32 %v4187, %v4398
      %4400 = vmatprep.mubr.bf16.mxu0 0
      %4401 = vmatmul.mubr.bf16.gmra.mrb[0].mxu0 %v4206
      %v4402 = vpop.f32.mrb[0].mxu0
      %v4403 = vadd.f32 %v4192, %v4402
      %v4404 = vpop.f32.mrb[0].mxu0
      %v4405 = vadd.f32 %v4192, %v4404
      %v4406 = vpop.f32.mrb[0].mxu0
      %v4407 = vpop.f32.mrb[0].mxu0
      %4408 = vdwg.mxu0
      %4409 = vmatprep.subr.bf16.mxu0 %v4150
      %4410 = vmatpush1.bf16.msra.mxu0 %v4149
      %4411 = vmatprep.subr.bf16.mxu0 %v4230
      %4412 = vmatpush1.bf16.msra.mxu0 %v4227
      %4413 = vmatprep.subr.bf16.mxu0 0
      %4414 = vmatpush1.bf16.msra.mxu0 0
      %4415 = vmatprep.subr.bf16.mxu0 0
      %4416 = vmatpush1.bf16.msra.mxu0 0
      %4417 = vmatprep.subr.bf16.mxu0 0
      %4418 = vmatpush1.bf16.msra.mxu0 0
      %4419 = vmatprep.subr.bf16.mxu0 0
      %4420 = vmatpush1.bf16.msra.mxu0 0
      %4421 = vmatprep.subr.bf16.mxu0 0
      %4422 = vmatpush1.bf16.msra.mxu0 0
      %4423 = vmatprep.subr.bf16.mxu0 0
      %4424 = vmatpush1.bf16.msra.mxu0 0
      %4425 = vmatprep.subr.bf16.mxu0 0
      %4426 = vmatpush1.bf16.msra.mxu0 0
      %4427 = vmatprep.subr.bf16.mxu0 0
      %4428 = vmatpush1.bf16.msra.mxu0 0
      %4429 = vmatprep.subr.bf16.mxu0 0
      %4430 = vmatpush1.bf16.msra.mxu0 0
      %4431 = vmatprep.subr.bf16.mxu0 0
      %4432 = vmatpush1.bf16.msra.mxu0 0
      %4433 = vmatprep.subr.bf16.mxu0 0
      %4434 = vmatpush1.bf16.msra.mxu0 0
      %4435 = vmatprep.subr.bf16.mxu0 0
      %4436 = vmatpush1.bf16.msra.mxu0 0
      %4437 = vmatprep.subr.bf16.mxu0 0
      %4438 = vmatpush1.bf16.msra.mxu0 0
      %4439 = vmatprep.subr.bf16.mxu0 0
      %4440 = vmatpush1.bf16.msra.mxu0 0
      %4441 = vmatprep.mubr.bf16.mxu0 0
      %4442 = vmatmul.mubr.bf16.gmra.mrb[0].mxu0 %v4203
      %v4443 = vpop.f32.mrb[0].mxu0
      %v4444 = vadd.f32 %v4182, %v4443
      %v4445 = vpop.f32.mrb[0].mxu0
      %v4446 = vadd.f32 %v4182, %v4445
      %v4447 = vpop.f32.mrb[0].mxu0
      %v4448 = vadd.f32 %v4187, %v4447
      %v4449 = vpop.f32.mrb[0].mxu0
      %v4450 = vadd.f32 %v4187, %v4449
      %4451 = vmatprep.mubr.bf16.mxu0 0
      %4452 = vmatmul.mubr.bf16.gmra.mrb[0].mxu0 %v4206
      %v4453 = vpop.f32.mrb[0].mxu0
      %v4454 = vadd.f32 %v4192, %v4453
      %v4455 = vpop.f32.mrb[0].mxu0
      %v4456 = vadd.f32 %v4192, %v4455
      %v4457 = vpop.f32.mrb[0].mxu0
      %v4458 = vpop.f32.mrb[0].mxu0
      %4459 = vdwg.mxu0
      %4460 = vmatprep.subr.bf16.mxu0 %v4152
      %4461 = vmatpush1.bf16.msra.mxu0 %v4151
      %4462 = vmatprep.subr.bf16.mxu0 %v4236
      %4463 = vmatpush1.bf16.msra.mxu0 %v4233
      %4464 = vmatprep.subr.bf16.mxu0 0
      %4465 = vmatpush1.bf16.msra.mxu0 0
      %4466 = vmatprep.subr.bf16.mxu0 0
      %4467 = vmatpush1.bf16.msra.mxu0 0
      %4468 = vmatprep.subr.bf16.mxu0 0
      %4469 = vmatpush1.bf16.msra.mxu0 0
      %4470 = vmatprep.subr.bf16.mxu0 0
      %4471 = vmatpush1.bf16.msra.mxu0 0
      %4472 = vmatprep.subr.bf16.mxu0 0
      %4473 = vmatpush1.bf16.msra.mxu0 0
      %4474 = vmatprep.subr.bf16.mxu0 0
      %4475 = vmatpush1.bf16.msra.mxu0 0
      %4476 = vmatprep.subr.bf16.mxu0 0
      %4477 = vmatpush1.bf16.msra.mxu0 0
      %4478 = vmatprep.subr.bf16.mxu0 0
      %4479 = vmatpush1.bf16.msra.mxu0 0
      %4480 = vmatprep.subr.bf16.mxu0 0
      %4481 = vmatpush1.bf16.msra.mxu0 0
      %4482 = vmatprep.subr.bf16.mxu0 0
      %4483 = vmatpush1.bf16.msra.mxu0 0
      %4484 = vmatprep.subr.bf16.mxu0 0
      %4485 = vmatpush1.bf16.msra.mxu0 0
      %4486 = vmatprep.subr.bf16.mxu0 0
      %4487 = vmatpush1.bf16.msra.mxu0 0
      %4488 = vmatprep.subr.bf16.mxu0 0
      %4489 = vmatpush1.bf16.msra.mxu0 0
      %4490 = vmatprep.subr.bf16.mxu0 0
      %4491 = vmatpush1.bf16.msra.mxu0 0
      %4492 = vmatprep.mubr.bf16.mxu0 0
      %4493 = vmatmul.mubr.bf16.gmra.mrb[0].mxu0 %v4203
      %v4494 = vpop.f32.mrb[0].mxu0
      %v4495 = vadd.f32 %v4182, %v4494
      %v4496 = vpop.f32.mrb[0].mxu0
      %v4497 = vadd.f32 %v4182, %v4496
      %v4498 = vpop.f32.mrb[0].mxu0
      %v4499 = vadd.f32 %v4187, %v4498
      %v4500 = vpop.f32.mrb[0].mxu0
      %v4501 = vadd.f32 %v4187, %v4500
      %4502 = vmatprep.mubr.bf16.mxu0 0
      %4503 = vmatmul.mubr.bf16.gmra.mrb[0].mxu0 %v4206
      %v4504 = vpop.f32.mrb[0].mxu0
      %v4505 = vadd.f32 %v4192, %v4504
      %v4506 = vpop.f32.mrb[0].mxu0
      %v4507 = vadd.f32 %v4192, %v4506
      %v4508 = vpop.f32.mrb[0].mxu0
      %v4509 = vpop.f32.mrb[0].mxu0
      %4510 = vdwg.mxu0
      %4511 = vmatprep.subr.bf16.mxu0 %v4154
      %4512 = vmatpush1.bf16.msra.mxu0 %v4153
      %4513 = vmatprep.subr.bf16.mxu0 %v4242
      %4514 = vmatpush1.bf16.msra.mxu0 %v4239
      %4515 = vmatprep.subr.bf16.mxu0 0
      %4516 = vmatpush1.bf16.msra.mxu0 0
      %4517 = vmatprep.subr.bf16.mxu0 0
      %4518 = vmatpush1.bf16.msra.mxu0 0
      %4519 = vmatprep.subr.bf16.mxu0 0
      %4520 = vmatpush1.bf16.msra.mxu0 0
      %4521 = vmatprep.subr.bf16.mxu0 0
      %4522 = vmatpush1.bf16.msra.mxu0 0
      %4523 = vmatprep.subr.bf16.mxu0 0
      %4524 = vmatpush1.bf16.msra.mxu0 0
      %4525 = vmatprep.subr.bf16.mxu0 0
      %4526 = vmatpush1.bf16.msra.mxu0 0
      %4527 = vmatprep.subr.bf16.mxu0 0
      %4528 = vmatpush1.bf16.msra.mxu0 0
      %4529 = vmatprep.subr.bf16.mxu0 0
      %4530 = vmatpush1.bf16.msra.mxu0 0
      %4531 = vmatprep.subr.bf16.mxu0 0
      %4532 = vmatpush1.bf16.msra.mxu0 0
      %4533 = vmatprep.subr.bf16.mxu0 0
      %4534 = vmatpush1.bf16.msra.mxu0 0
      %4535 = vmatprep.subr.bf16.mxu0 0
      %4536 = vmatpush1.bf16.msra.mxu0 0
      %4537 = vmatprep.subr.bf16.mxu0 0
      %4538 = vmatpush1.bf16.msra.mxu0 0
      %4539 = vmatprep.subr.bf16.mxu0 0
      %4540 = vmatpush1.bf16.msra.mxu0 0
      %4541 = vmatprep.subr.bf16.mxu0 0
      %4542 = vmatpush1.bf16.msra.mxu0 0
      %4543 = vmatprep.mubr.bf16.mxu0 0
      %4544 = vmatmul.mubr.bf16.gmra.mrb[0].mxu0 %v4203
      %v4545 = vpop.f32.mrb[0].mxu0
      %v4546 = vadd.f32 %v4182, %v4545
      %v4547 = vpop.f32.mrb[0].mxu0
      %v4548 = vadd.f32 %v4182, %v4547
      %v4549 = vpop.f32.mrb[0].mxu0
      %v4550 = vadd.f32 %v4187, %v4549
      %v4551 = vpop.f32.mrb[0].mxu0
      %v4552 = vadd.f32 %v4187, %v4551
      %4553 = vmatprep.mubr.bf16.mxu0 0
      %4554 = vmatmul.mubr.bf16.gmra.mrb[0].mxu0 %v4206
      %v4555 = vpop.f32.mrb[0].mxu0
      %v4556 = vadd.f32 %v4192, %v4555
      %v4557 = vpop.f32.mrb[0].mxu0
      %v4558 = vadd.f32 %v4192, %v4557
      %v4559 = vpop.f32.mrb[0].mxu0
      %v4560 = vpop.f32.mrb[0].mxu0
      %4561 = vdwg.mxu0
      %4562 = vmatprep.subr.bf16.mxu0 %v4156
      %4563 = vmatpush1.bf16.msra.mxu0 %v4155
      %4564 = vmatprep.subr.bf16.mxu0 %v4248
      %4565 = vmatpush1.bf16.msra.mxu0 %v4245
      %4566 = vmatprep.subr.bf16.mxu0 0
      %4567 = vmatpush1.bf16.msra.mxu0 0
      %4568 = vmatprep.subr.bf16.mxu0 0
      %4569 = vmatpush1.bf16.msra.mxu0 0
      %4570 = vmatprep.subr.bf16.mxu0 0
      %4571 = vmatpush1.bf16.msra.mxu0 0
      %4572 = vmatprep.subr.bf16.mxu0 0
      %4573 = vmatpush1.bf16.msra.mxu0 0
      %4574 = vmatprep.subr.bf16.mxu0 0
      %4575 = vmatpush1.bf16.msra.mxu0 0
      %4576 = vmatprep.subr.bf16.mxu0 0
      %4577 = vmatpush1.bf16.msra.mxu0 0
      %4578 = vmatprep.subr.bf16.mxu0 0
      %4579 = vmatpush1.bf16.msra.mxu0 0
      %4580 = vmatprep.subr.bf16.mxu0 0
      %4581 = vmatpush1.bf16.msra.mxu0 0
      %4582 = vmatprep.subr.bf16.mxu0 0
      %4583 = vmatpush1.bf16.msra.mxu0 0
      %4584 = vmatprep.subr.bf16.mxu0 0
      %4585 = vmatpush1.bf16.msra.mxu0 0
      %4586 = vmatprep.subr.bf16.mxu0 0
      %4587 = vmatpush1.bf16.msra.mxu0 0
      %4588 = vmatprep.subr.bf16.mxu0 0
      %4589 = vmatpush1.bf16.msra.mxu0 0
      %4590 = vmatprep.subr.bf16.mxu0 0
      %4591 = vmatpush1.bf16.msra.mxu0 0
      %4592 = vmatprep.subr.bf16.mxu0 0
      %4593 = vmatpush1.bf16.msra.mxu0 0
      %4594 = vmatprep.mubr.bf16.mxu0 0
      %4595 = vmatmul.mubr.bf16.gmra.mrb[0].mxu0 %v4203
      %v4596 = vpop.f32.mrb[0].mxu0
      %v4597 = vadd.f32 %v4182, %v4596
      %v4598 = vpop.f32.mrb[0].mxu0
      %v4599 = vadd.f32 %v4182, %v4598
      %v4600 = vpop.f32.mrb[0].mxu0
      %v4601 = vadd.f32 %v4187, %v4600
      %v4602 = vpop.f32.mrb[0].mxu0
      %v4603 = vadd.f32 %v4187, %v4602
      %4604 = vmatprep.mubr.bf16.mxu0 0
      %4605 = vmatmul.mubr.bf16.gmra.mrb[0].mxu0 %v4206
      %v4606 = vpop.f32.mrb[0].mxu0
      %v4607 = vadd.f32 %v4192, %v4606
      %v4608 = vpop.f32.mrb[0].mxu0
      %v4609 = vadd.f32 %v4192, %v4608
      %v4610 = vpop.f32.mrb[0].mxu0
      %v4611 = vpop.f32.mrb[0].mxu0
      %4612 = vdwg.mxu0
      %4613 = vmatprep.subr.bf16.mxu0 %v4158
      %4614 = vmatpush1.bf16.msra.mxu0 %v4157
      %4615 = vmatprep.subr.bf16.mxu0 %v4254
      %4616 = vmatpush1.bf16.msra.mxu0 %v4251
      %4617 = vmatprep.subr.bf16.mxu0 0
      %4618 = vmatpush1.bf16.msra.mxu0 0
      %4619 = vmatprep.subr.bf16.mxu0 0
      %4620 = vmatpush1.bf16.msra.mxu0 0
      %4621 = vmatprep.subr.bf16.mxu0 0
      %4622 = vmatpush1.bf16.msra.mxu0 0
      %4623 = vmatprep.subr.bf16.mxu0 0
      %4624 = vmatpush1.bf16.msra.mxu0 0
      %4625 = vmatprep.subr.bf16.mxu0 0
      %4626 = vmatpush1.bf16.msra.mxu0 0
      %4627 = vmatprep.subr.bf16.mxu0 0
      %4628 = vmatpush1.bf16.msra.mxu0 0
      %4629 = vmatprep.subr.bf16.mxu0 0
      %4630 = vmatpush1.bf16.msra.mxu0 0
      %4631 = vmatprep.subr.bf16.mxu0 0
      %4632 = vmatpush1.bf16.msra.mxu0 0
      %4633 = vmatprep.subr.bf16.mxu0 0
      %4634 = vmatpush1.bf16.msra.mxu0 0
      %4635 = vmatprep.subr.bf16.mxu0 0
      %4636 = vmatpush1.bf16.msra.mxu0 0
      %4637 = vmatprep.subr.bf16.mxu0 0
      %4638 = vmatpush1.bf16.msra.mxu0 0
      %4639 = vmatprep.subr.bf16.mxu0 0
      %4640 = vmatpush1.bf16.msra.mxu0 0
      %4641 = vmatprep.subr.bf16.mxu0 0
      %4642 = vmatpush1.bf16.msra.mxu0 0
      %4643 = vmatprep.subr.bf16.mxu0 0
      %4644 = vmatpush1.bf16.msra.mxu0 0
      %4645 = vmatprep.mubr.bf16.mxu0 0
      %4646 = vmatmul.mubr.bf16.gmra.mrb[0].mxu0 %v4203
      %v4647 = vpop.f32.mrb[0].mxu0
      %v4648 = vadd.f32 %v4182, %v4647
      %v4649 = vpop.f32.mrb[0].mxu0
      %v4650 = vadd.f32 %v4182, %v4649
      %v4651 = vpop.f32.mrb[0].mxu0
      %v4652 = vadd.f32 %v4187, %v4651
      %v4653 = vpop.f32.mrb[0].mxu0
      %v4654 = vadd.f32 %v4187, %v4653
      %4655 = vmatprep.mubr.bf16.mxu0 0
      %4656 = vmatmul.mubr.bf16.gmra.mrb[0].mxu0 %v4206
      %v4657 = vpop.f32.mrb[0].mxu0
      %v4658 = vadd.f32 %v4192, %v4657
      %v4659 = vpop.f32.mrb[0].mxu0
      %v4660 = vadd.f32 %v4192, %v4659
      %v4661 = vpop.f32.mrb[0].mxu0
      %v4662 = vpop.f32.mrb[0].mxu0
      %4663 = vdwg.mxu0
      %v4664 = vmul.f32 %v4291, 0.5
      %v4665 = vmul.f32 %v4293, 0.5
      %v4666 = vmul.f32 %v4342, 0.5
      %v4667 = vmul.f32 %v4344, 0.5
      %v4668 = vmul.f32 %v4393, 0.5
      %v4669 = vmul.f32 %v4395, 0.5
      %v4670 = vmul.f32 %v4444, 0.5
      %v4671 = vmul.f32 %v4446, 0.5
      %v4672 = vmul.f32 %v4495, 0.5
      %v4673 = vmul.f32 %v4497, 0.5
      %v4674 = vmul.f32 %v4546, 0.5
      %v4675 = vmul.f32 %v4548, 0.5
      %v4676 = vmul.f32 %v4597, 0.5
      %v4677 = vmul.f32 %v4599, 0.5
      %v4678 = vmul.f32 %v4648, 0.5
      %v4679 = vmul.f32 %v4650, 0.5
      %v4680 = vmul.f32 %v4295, 0.5
      %v4681 = vmul.f32 %v4297, 0.5
      %v4682 = vmul.f32 %v4346, 0.5
      %v4683 = vmul.f32 %v4348, 0.5
      %v4684 = vmul.f32 %v4397, 0.5
      %v4685 = vmul.f32 %v4399, 0.5
      %v4686 = vmul.f32 %v4448, 0.5
      %v4687 = vmul.f32 %v4450, 0.5
      %v4688 = vmul.f32 %v4499, 0.5
      %v4689 = vmul.f32 %v4501, 0.5
      %v4690 = vmul.f32 %v4550, 0.5
      %v4691 = vmul.f32 %v4552, 0.5
      %v4692 = vmul.f32 %v4601, 0.5
      %v4693 = vmul.f32 %v4603, 0.5
      %v4694 = vmul.f32 %v4652, 0.5
      %v4695 = vmul.f32 %v4654, 0.5
      %v4696 = vmul.f32 %v4301, 0.5
      %v4697 = vmul.f32 %v4303, 0.5
      %v4698 = vmul.f32 %v4352, 0.5
      %v4699 = vmul.f32 %v4354, 0.5
      %v4700 = vmul.f32 %v4403, 0.5
      %v4701 = vmul.f32 %v4405, 0.5
      %v4702 = vmul.f32 %v4454, 0.5
      %v4703 = vmul.f32 %v4456, 0.5
      %v4704 = vmul.f32 %v4505, 0.5
      %v4705 = vmul.f32 %v4507, 0.5
      %v4706 = vmul.f32 %v4556, 0.5
      %v4707 = vmul.f32 %v4558, 0.5
      %v4708 = vmul.f32 %v4607, 0.5
      %v4709 = vmul.f32 %v4609, 0.5
      %v4710 = vmul.f32 %v4658, 0.5
      %v4711 = vmul.f32 %v4660, 0.5
      %v4712 = vtanh.pop %v4664
      %v4713 = vtanh.pop %v4665
      %v4714 = vtanh.pop %v4666
      %v4715 = vtanh.pop %v4667
      %v4716 = vtanh.pop %v4668
      %v4717 = vtanh.pop %v4669
      %v4718 = vtanh.pop %v4670
      %v4719 = vtanh.pop %v4671
      %v4720 = vtanh.pop %v4672
      %v4721 = vtanh.pop %v4673
      %v4722 = vtanh.pop %v4674
      %v4723 = vtanh.pop %v4675
      %v4724 = vtanh.pop %v4676
      %v4725 = vtanh.pop %v4677
      %v4726 = vtanh.pop %v4678
      %v4727 = vtanh.pop %v4679
      %v4728 = vtanh.pop %v4680
      %v4729 = vtanh.pop %v4681
      %v4730 = vtanh.pop %v4682
      %v4731 = vtanh.pop %v4683
      %v4732 = vtanh.pop %v4684
      %v4733 = vtanh.pop %v4685
      %v4734 = vtanh.pop %v4686
      %v4735 = vtanh.pop %v4687
      %v4736 = vtanh.pop %v4688
      %v4737 = vtanh.pop %v4689
      %v4738 = vtanh.pop %v4690
      %v4739 = vtanh.pop %v4691
      %v4740 = vtanh.pop %v4692
      %v4741 = vtanh.pop %v4693
      %v4742 = vtanh.pop %v4694
      %v4743 = vtanh.pop %v4695
      %v4744 = vtanh.pop %v4696
      %v4745 = vtanh.pop %v4697
      %v4746 = vtanh.pop %v4698
      %v4747 = vtanh.pop %v4699
      %v4748 = vtanh.pop %v4700
      %v4749 = vtanh.pop %v4701
      %v4750 = vtanh.pop %v4702
      %v4751 = vtanh.pop %v4703
      %v4752 = vtanh.pop %v4704
      %v4753 = vtanh.pop %v4705
      %v4754 = vtanh.pop %v4706
      %v4755 = vtanh.pop %v4707
      %v4756 = vtanh.pop %v4708
      %v4757 = vtanh.pop %v4709
      %v4758 = vtanh.pop %v4710
      %v4759 = vtanh.pop %v4711
      %v4760 = vmul.f32 %v4664, %v4712
      %v4761 = vmul.f32 %v4665, %v4713
      %v4762 = vmul.f32 %v4666, %v4714
      %v4763 = vmul.f32 %v4667, %v4715
      %v4764 = vmul.f32 %v4668, %v4716
      %v4765 = vmul.f32 %v4669, %v4717
      %v4766 = vmul.f32 %v4670, %v4718
      %v4767 = vmul.f32 %v4671, %v4719
      %v4768 = vmul.f32 %v4672, %v4720
      %v4769 = vmul.f32 %v4673, %v4721
      %v4770 = vmul.f32 %v4674, %v4722
      %v4771 = vmul.f32 %v4675, %v4723
      %v4772 = vmul.f32 %v4676, %v4724
      %v4773 = vmul.f32 %v4677, %v4725
      %v4774 = vmul.f32 %v4678, %v4726
      %v4775 = vmul.f32 %v4679, %v4727
      %v4776 = vmul.f32 %v4680, %v4728
      %v4777 = vmul.f32 %v4681, %v4729
      %v4778 = vmul.f32 %v4682, %v4730
      %v4779 = vmul.f32 %v4683, %v4731
      %v4780 = vmul.f32 %v4684, %v4732
      %v4781 = vmul.f32 %v4685, %v4733
      %v4782 = vmul.f32 %v4686, %v4734
      %v4783 = vmul.f32 %v4687, %v4735
      %v4784 = vmul.f32 %v4688, %v4736
      %v4785 = vmul.f32 %v4689, %v4737
      %v4786 = vmul.f32 %v4690, %v4738
      %v4787 = vmul.f32 %v4691, %v4739
      %v4788 = vmul.f32 %v4692, %v4740
      %v4789 = vmul.f32 %v4693, %v4741
      %v4790 = vmul.f32 %v4694, %v4742
      %v4791 = vmul.f32 %v4695, %v4743
      %v4792 = vmul.f32 %v4696, %v4744
      %v4793 = vmul.f32 %v4697, %v4745
      %v4794 = vmul.f32 %v4698, %v4746
      %v4795 = vmul.f32 %v4699, %v4747
      %v4796 = vmul.f32 %v4700, %v4748
      %v4797 = vmul.f32 %v4701, %v4749
      %v4798 = vmul.f32 %v4702, %v4750
      %v4799 = vmul.f32 %v4703, %v4751
      %v4800 = vmul.f32 %v4704, %v4752
      %v4801 = vmul.f32 %v4705, %v4753
      %v4802 = vmul.f32 %v4706, %v4754
      %v4803 = vmul.f32 %v4707, %v4755
      %v4804 = vmul.f32 %v4708, %v4756
      %v4805 = vmul.f32 %v4709, %v4757
      %v4806 = vmul.f32 %v4710, %v4758
      %v4807 = vmul.f32 %v4711, %v4759
      %v4808 = vadd.f32 %v4760, %v4664
      %v4809 = vadd.f32 %v4761, %v4665
      %v4810 = vadd.f32 %v4762, %v4666
      %v4811 = vadd.f32 %v4763, %v4667
      %v4812 = vadd.f32 %v4764, %v4668
      %v4813 = vadd.f32 %v4765, %v4669
      %v4814 = vadd.f32 %v4766, %v4670
      %v4815 = vadd.f32 %v4767, %v4671
      %v4816 = vadd.f32 %v4768, %v4672
      %v4817 = vadd.f32 %v4769, %v4673
      %v4818 = vadd.f32 %v4770, %v4674
      %v4819 = vadd.f32 %v4771, %v4675
      %v4820 = vadd.f32 %v4772, %v4676
      %v4821 = vadd.f32 %v4773, %v4677
      %v4822 = vadd.f32 %v4774, %v4678
      %v4823 = vadd.f32 %v4775, %v4679
      %v4824 = vadd.f32 %v4776, %v4680
      %v4825 = vadd.f32 %v4777, %v4681
      %v4826 = vadd.f32 %v4778, %v4682
      %v4827 = vadd.f32 %v4779, %v4683
      %v4828 = vadd.f32 %v4780, %v4684
      %v4829 = vadd.f32 %v4781, %v4685
      %v4830 = vadd.f32 %v4782, %v4686
      %v4831 = vadd.f32 %v4783, %v4687
      %v4832 = vadd.f32 %v4784, %v4688
      %v4833 = vadd.f32 %v4785, %v4689
      %v4834 = vadd.f32 %v4786, %v4690
      %v4835 = vadd.f32 %v4787, %v4691
      %v4836 = vadd.f32 %v4788, %v4692
      %v4837 = vadd.f32 %v4789, %v4693
      %v4838 = vadd.f32 %v4790, %v4694
      %v4839 = vadd.f32 %v4791, %v4695
      %v4840 = vadd.f32 %v4792, %v4696
      %v4841 = vadd.f32 %v4793, %v4697
      %v4842 = vadd.f32 %v4794, %v4698
      %v4843 = vadd.f32 %v4795, %v4699
      %v4844 = vadd.f32 %v4796, %v4700
      %v4845 = vadd.f32 %v4797, %v4701
      %v4846 = vadd.f32 %v4798, %v4702
      %v4847 = vadd.f32 %v4799, %v4703
      %v4848 = vadd.f32 %v4800, %v4704
      %v4849 = vadd.f32 %v4801, %v4705
      %v4850 = vadd.f32 %v4802, %v4706
      %v4851 = vadd.f32 %v4803, %v4707
      %v4852 = vadd.f32 %v4804, %v4708
      %v4853 = vadd.f32 %v4805, %v4709
      %v4854 = vadd.f32 %v4806, %v4710
      %v4855 = vadd.f32 %v4807, %v4711
      %s4856 = scalar_lea.vmem %s3, 60
      %v4857 = vld [vmem:[%s4856] sm:$0xf]
      %v4858 = vld [vmem:[%s4856 + $0x4] sm:$0xf]
      %v4859 = vld [vmem:[%s4856 + $0x8] sm:$0x3]
      %v4860 = vpack.c.bf16 %v4824, %v4808
      %v4861 = vpack.c.bf16 %v4825, %v4809
      %v4862 = vpack.c.bf16 %v4826, %v4810
      %v4863 = vpack.c.bf16 %v4827, %v4811
      %v4864 = vpack.c.bf16 %v4828, %v4812
      %v4865 = vpack.c.bf16 %v4829, %v4813
      %v4866 = vpack.c.bf16 %v4830, %v4814
      %v4867 = vpack.c.bf16 %v4831, %v4815
      %v4868 = vpack.c.bf16 %v4832, %v4816
      %v4869 = vpack.c.bf16 %v4833, %v4817
      %v4870 = vpack.c.bf16 %v4834, %v4818
      %v4871 = vpack.c.bf16 %v4835, %v4819
      %v4872 = vpack.c.bf16 %v4836, %v4820
      %v4873 = vpack.c.bf16 %v4837, %v4821
      %v4874 = vpack.c.bf16 %v4838, %v4822
      %v4875 = vpack.c.bf16 %v4839, %v4823
      %v4876 = vpack.c.bf16 %v4840, %v4840
      %v4877 = vpack.c.bf16 %v4841, %v4841
      %v4878 = vpack.c.bf16 %v4842, %v4842
      %v4879 = vpack.c.bf16 %v4843, %v4843
      %v4880 = vpack.c.bf16 %v4844, %v4844
      %v4881 = vpack.c.bf16 %v4845, %v4845
      %v4882 = vpack.c.bf16 %v4846, %v4846
      %v4883 = vpack.c.bf16 %v4847, %v4847
      %v4884 = vpack.c.bf16 %v4848, %v4848
      %v4885 = vpack.c.bf16 %v4849, %v4849
      %v4886 = vpack.c.bf16 %v4850, %v4850
      %v4887 = vpack.c.bf16 %v4851, %v4851
      %v4888 = vpack.c.bf16 %v4852, %v4852
      %v4889 = vpack.c.bf16 %v4853, %v4853
      %v4890 = vpack.c.bf16 %v4854, %v4854
      %v4891 = vpack.c.bf16 %v4855, %v4855
      %s4892 = scalar_lea.vmem %s4, 120
      %v4893 = vld [vmem:[%s4892] sm:$0xff]
      %v4894 = vld [vmem:[%s4892 + $0x8] sm:$0xff]
      %v4895 = vld [vmem:[%s4892 + $0x10] sm:$0xf]
      %4897 = vset.pattern.permute.xlu0 0
      %4898 = vperm.xlu0 %4897, %v4893
      %v4899 = vpop.permute.xlu0 %4898
      %4902 = vset.pattern.permute.xlu0 0
      %4903 = vperm.xlu0 %4902, %v4894
      %v4904 = vpop.permute.xlu0 %4903
      %4907 = vset.pattern.permute.xlu0 0
      %4908 = vperm.xlu0 %4907, %v4895
      %v4909 = vpop.permute.xlu0 %4908
      %v4914 = vunpack.c.l.b16 %v4857
      %v4915 = vunpack.c.l.b16 %v4858
      %v4916 = vunpack.c.l.b16 %v4859
      %v4917 = vpack.c.b16 %v4915, %v4914
      %v4918 = vpack.c.b16 %v4916, %v4916
      %v4920 = vsel %vm1332, %v4917, 0
      %v4923 = vsel %vm1332, %v4918, 0
      %v4926 = vsel %vm1339, %v4876, 0
      %v4929 = vsel %vm1339, %v4877, 0
      %v4932 = vsel %vm1339, %v4878, 0
      %v4935 = vsel %vm1339, %v4879, 0
      %v4938 = vsel %vm1339, %v4880, 0
      %v4941 = vsel %vm1339, %v4881, 0
      %v4944 = vsel %vm1339, %v4882, 0
      %v4947 = vsel %vm1339, %v4883, 0
      %v4950 = vsel %vm1339, %v4884, 0
      %v4953 = vsel %vm1339, %v4885, 0
      %v4956 = vsel %vm1339, %v4886, 0
      %v4959 = vsel %vm1339, %v4887, 0
      %v4962 = vsel %vm1339, %v4888, 0
      %v4965 = vsel %vm1339, %v4889, 0
      %v4968 = vsel %vm1339, %v4890, 0
      %v4971 = vsel %vm1339, %v4891, 0
      %4973 = vmatprep.subr.bf16.mxu0 %v4861
      %4974 = vmatpush1.bf16.msra.mxu0 %v4860
      %4975 = vmatprep.subr.bf16.mxu0 %v4929
      %4976 = vmatpush1.bf16.msra.mxu0 %v4926
      %4977 = vmatprep.subr.bf16.mxu0 0
      %4978 = vmatpush1.bf16.msra.mxu0 0
      %4979 = vmatprep.subr.bf16.mxu0 0
      %4980 = vmatpush1.bf16.msra.mxu0 0
      %4981 = vmatprep.subr.bf16.mxu0 0
      %4982 = vmatpush1.bf16.msra.mxu0 0
      %4983 = vmatprep.subr.bf16.mxu0 0
      %4984 = vmatpush1.bf16.msra.mxu0 0
      %4985 = vmatprep.subr.bf16.mxu0 0
      %4986 = vmatpush1.bf16.msra.mxu0 0
      %4987 = vmatprep.subr.bf16.mxu0 0
      %4988 = vmatpush1.bf16.msra.mxu0 0
      %4989 = vmatprep.subr.bf16.mxu0 0
      %4990 = vmatpush1.bf16.msra.mxu0 0
      %4991 = vmatprep.subr.bf16.mxu0 0
      %4992 = vmatpush1.bf16.msra.mxu0 0
      %4993 = vmatprep.subr.bf16.mxu0 0
      %4994 = vmatpush1.bf16.msra.mxu0 0
      %4995 = vmatprep.subr.bf16.mxu0 0
      %4996 = vmatpush1.bf16.msra.mxu0 0
      %4997 = vmatprep.subr.bf16.mxu0 0
      %4998 = vmatpush1.bf16.msra.mxu0 0
      %4999 = vmatprep.subr.bf16.mxu0 0
      %5000 = vmatpush1.bf16.msra.mxu0 0
      %5001 = vmatprep.subr.bf16.mxu0 0
      %5002 = vmatpush1.bf16.msra.mxu0 0
      %5003 = vmatprep.subr.bf16.mxu0 0
      %5004 = vmatpush1.bf16.msra.mxu0 0
      %5005 = vmatprep.mubr.bf16.mxu0 0
      %5006 = vmatmul.mubr.bf16.gmra.mrb[0].mxu0 %v4920
      %v5007 = vpop.f32.mrb[0].mxu0
      %v5008 = vadd.f32 %v4899, %v5007
      %v5009 = vpop.f32.mrb[0].mxu0
      %v5010 = vadd.f32 %v4899, %v5009
      %v5011 = vpop.f32.mrb[0].mxu0
      %v5012 = vadd.f32 %v4904, %v5011
      %v5013 = vpop.f32.mrb[0].mxu0
      %v5014 = vadd.f32 %v4904, %v5013
      %5015 = vmatprep.mubr.bf16.mxu0 0
      %5016 = vmatmul.mubr.bf16.gmra.mrb[0].mxu0 %v4923
      %v5017 = vpop.f32.mrb[0].mxu0
      %v5018 = vadd.f32 %v4909, %v5017
      %v5019 = vpop.f32.mrb[0].mxu0
      %v5020 = vadd.f32 %v4909, %v5019
      %v5021 = vpop.f32.mrb[0].mxu0
      %v5022 = vpop.f32.mrb[0].mxu0
      %5023 = vdwg.mxu0
      %5024 = vmatprep.subr.bf16.mxu0 %v4863
      %5025 = vmatpush1.bf16.msra.mxu0 %v4862
      %5026 = vmatprep.subr.bf16.mxu0 %v4935
      %5027 = vmatpush1.bf16.msra.mxu0 %v4932
      %5028 = vmatprep.subr.bf16.mxu0 0
      %5029 = vmatpush1.bf16.msra.mxu0 0
      %5030 = vmatprep.subr.bf16.mxu0 0
      %5031 = vmatpush1.bf16.msra.mxu0 0
      %5032 = vmatprep.subr.bf16.mxu0 0
      %5033 = vmatpush1.bf16.msra.mxu0 0
      %5034 = vmatprep.subr.bf16.mxu0 0
      %5035 = vmatpush1.bf16.msra.mxu0 0
      %5036 = vmatprep.subr.bf16.mxu0 0
      %5037 = vmatpush1.bf16.msra.mxu0 0
      %5038 = vmatprep.subr.bf16.mxu0 0
      %5039 = vmatpush1.bf16.msra.mxu0 0
      %5040 = vmatprep.subr.bf16.mxu0 0
      %5041 = vmatpush1.bf16.msra.mxu0 0
      %5042 = vmatprep.subr.bf16.mxu0 0
      %5043 = vmatpush1.bf16.msra.mxu0 0
      %5044 = vmatprep.subr.bf16.mxu0 0
      %5045 = vmatpush1.bf16.msra.mxu0 0
      %5046 = vmatprep.subr.bf16.mxu0 0
      %5047 = vmatpush1.bf16.msra.mxu0 0
      %5048 = vmatprep.subr.bf16.mxu0 0
      %5049 = vmatpush1.bf16.msra.mxu0 0
      %5050 = vmatprep.subr.bf16.mxu0 0
      %5051 = vmatpush1.bf16.msra.mxu0 0
      %5052 = vmatprep.subr.bf16.mxu0 0
      %5053 = vmatpush1.bf16.msra.mxu0 0
      %5054 = vmatprep.subr.bf16.mxu0 0
      %5055 = vmatpush1.bf16.msra.mxu0 0
      %5056 = vmatprep.mubr.bf16.mxu0 0
      %5057 = vmatmul.mubr.bf16.gmra.mrb[0].mxu0 %v4920
      %v5058 = vpop.f32.mrb[0].mxu0
      %v5059 = vadd.f32 %v4899, %v5058
      %v5060 = vpop.f32.mrb[0].mxu0
      %v5061 = vadd.f32 %v4899, %v5060
      %v5062 = vpop.f32.mrb[0].mxu0
      %v5063 = vadd.f32 %v4904, %v5062
      %v5064 = vpop.f32.mrb[0].mxu0
      %v5065 = vadd.f32 %v4904, %v5064
      %5066 = vmatprep.mubr.bf16.mxu0 0
      %5067 = vmatmul.mubr.bf16.gmra.mrb[0].mxu0 %v4923
      %v5068 = vpop.f32.mrb[0].mxu0
      %v5069 = vadd.f32 %v4909, %v5068
      %v5070 = vpop.f32.mrb[0].mxu0
      %v5071 = vadd.f32 %v4909, %v5070
      %v5072 = vpop.f32.mrb[0].mxu0
      %v5073 = vpop.f32.mrb[0].mxu0
      %5074 = vdwg.mxu0
      %5075 = vmatprep.subr.bf16.mxu0 %v4865
      %5076 = vmatpush1.bf16.msra.mxu0 %v4864
      %5077 = vmatprep.subr.bf16.mxu0 %v4941
      %5078 = vmatpush1.bf16.msra.mxu0 %v4938
      %5079 = vmatprep.subr.bf16.mxu0 0
      %5080 = vmatpush1.bf16.msra.mxu0 0
      %5081 = vmatprep.subr.bf16.mxu0 0
      %5082 = vmatpush1.bf16.msra.mxu0 0
      %5083 = vmatprep.subr.bf16.mxu0 0
      %5084 = vmatpush1.bf16.msra.mxu0 0
      %5085 = vmatprep.subr.bf16.mxu0 0
      %5086 = vmatpush1.bf16.msra.mxu0 0
      %5087 = vmatprep.subr.bf16.mxu0 0
      %5088 = vmatpush1.bf16.msra.mxu0 0
      %5089 = vmatprep.subr.bf16.mxu0 0
      %5090 = vmatpush1.bf16.msra.mxu0 0
      %5091 = vmatprep.subr.bf16.mxu0 0
      %5092 = vmatpush1.bf16.msra.mxu0 0
      %5093 = vmatprep.subr.bf16.mxu0 0
      %5094 = vmatpush1.bf16.msra.mxu0 0
      %5095 = vmatprep.subr.bf16.mxu0 0
      %5096 = vmatpush1.bf16.msra.mxu0 0
      %5097 = vmatprep.subr.bf16.mxu0 0
      %5098 = vmatpush1.bf16.msra.mxu0 0
      %5099 = vmatprep.subr.bf16.mxu0 0
      %5100 = vmatpush1.bf16.msra.mxu0 0
      %5101 = vmatprep.subr.bf16.mxu0 0
      %5102 = vmatpush1.bf16.msra.mxu0 0
      %5103 = vmatprep.subr.bf16.mxu0 0
      %5104 = vmatpush1.bf16.msra.mxu0 0
      %5105 = vmatprep.subr.bf16.mxu0 0
      %5106 = vmatpush1.bf16.msra.mxu0 0
      %5107 = vmatprep.mubr.bf16.mxu0 0
      %5108 = vmatmul.mubr.bf16.gmra.mrb[0].mxu0 %v4920
      %v5109 = vpop.f32.mrb[0].mxu0
      %v5110 = vadd.f32 %v4899, %v5109
      %v5111 = vpop.f32.mrb[0].mxu0
      %v5112 = vadd.f32 %v4899, %v5111
      %v5113 = vpop.f32.mrb[0].mxu0
      %v5114 = vadd.f32 %v4904, %v5113
      %v5115 = vpop.f32.mrb[0].mxu0
      %v5116 = vadd.f32 %v4904, %v5115
      %5117 = vmatprep.mubr.bf16.mxu0 0
      %5118 = vmatmul.mubr.bf16.gmra.mrb[0].mxu0 %v4923
      %v5119 = vpop.f32.mrb[0].mxu0
      %v5120 = vadd.f32 %v4909, %v5119
      %v5121 = vpop.f32.mrb[0].mxu0
      %v5122 = vadd.f32 %v4909, %v5121
      %v5123 = vpop.f32.mrb[0].mxu0
      %v5124 = vpop.f32.mrb[0].mxu0
      %5125 = vdwg.mxu0
      %5126 = vmatprep.subr.bf16.mxu0 %v4867
      %5127 = vmatpush1.bf16.msra.mxu0 %v4866
      %5128 = vmatprep.subr.bf16.mxu0 %v4947
      %5129 = vmatpush1.bf16.msra.mxu0 %v4944
      %5130 = vmatprep.subr.bf16.mxu0 0
      %5131 = vmatpush1.bf16.msra.mxu0 0
      %5132 = vmatprep.subr.bf16.mxu0 0
      %5133 = vmatpush1.bf16.msra.mxu0 0
      %5134 = vmatprep.subr.bf16.mxu0 0
      %5135 = vmatpush1.bf16.msra.mxu0 0
      %5136 = vmatprep.subr.bf16.mxu0 0
      %5137 = vmatpush1.bf16.msra.mxu0 0
      %5138 = vmatprep.subr.bf16.mxu0 0
      %5139 = vmatpush1.bf16.msra.mxu0 0
      %5140 = vmatprep.subr.bf16.mxu0 0
      %5141 = vmatpush1.bf16.msra.mxu0 0
      %5142 = vmatprep.subr.bf16.mxu0 0
      %5143 = vmatpush1.bf16.msra.mxu0 0
      %5144 = vmatprep.subr.bf16.mxu0 0
      %5145 = vmatpush1.bf16.msra.mxu0 0
      %5146 = vmatprep.subr.bf16.mxu0 0
      %5147 = vmatpush1.bf16.msra.mxu0 0
      %5148 = vmatprep.subr.bf16.mxu0 0
      %5149 = vmatpush1.bf16.msra.mxu0 0
      %5150 = vmatprep.subr.bf16.mxu0 0
      %5151 = vmatpush1.bf16.msra.mxu0 0
      %5152 = vmatprep.subr.bf16.mxu0 0
      %5153 = vmatpush1.bf16.msra.mxu0 0
      %5154 = vmatprep.subr.bf16.mxu0 0
      %5155 = vmatpush1.bf16.msra.mxu0 0
      %5156 = vmatprep.subr.bf16.mxu0 0
      %5157 = vmatpush1.bf16.msra.mxu0 0
      %5158 = vmatprep.mubr.bf16.mxu0 0
      %5159 = vmatmul.mubr.bf16.gmra.mrb[0].mxu0 %v4920
      %v5160 = vpop.f32.mrb[0].mxu0
      %v5161 = vadd.f32 %v4899, %v5160
      %v5162 = vpop.f32.mrb[0].mxu0
      %v5163 = vadd.f32 %v4899, %v5162
      %v5164 = vpop.f32.mrb[0].mxu0
      %v5165 = vadd.f32 %v4904, %v5164
      %v5166 = vpop.f32.mrb[0].mxu0
      %v5167 = vadd.f32 %v4904, %v5166
      %5168 = vmatprep.mubr.bf16.mxu0 0
      %5169 = vmatmul.mubr.bf16.gmra.mrb[0].mxu0 %v4923
      %v5170 = vpop.f32.mrb[0].mxu0
      %v5171 = vadd.f32 %v4909, %v5170
      %v5172 = vpop.f32.mrb[0].mxu0
      %v5173 = vadd.f32 %v4909, %v5172
      %v5174 = vpop.f32.mrb[0].mxu0
      %v5175 = vpop.f32.mrb[0].mxu0
      %5176 = vdwg.mxu0
      %5177 = vmatprep.subr.bf16.mxu0 %v4869
      %5178 = vmatpush1.bf16.msra.mxu0 %v4868
      %5179 = vmatprep.subr.bf16.mxu0 %v4953
      %5180 = vmatpush1.bf16.msra.mxu0 %v4950
      %5181 = vmatprep.subr.bf16.mxu0 0
      %5182 = vmatpush1.bf16.msra.mxu0 0
      %5183 = vmatprep.subr.bf16.mxu0 0
      %5184 = vmatpush1.bf16.msra.mxu0 0
      %5185 = vmatprep.subr.bf16.mxu0 0
      %5186 = vmatpush1.bf16.msra.mxu0 0
      %5187 = vmatprep.subr.bf16.mxu0 0
      %5188 = vmatpush1.bf16.msra.mxu0 0
      %5189 = vmatprep.subr.bf16.mxu0 0
      %5190 = vmatpush1.bf16.msra.mxu0 0
      %5191 = vmatprep.subr.bf16.mxu0 0
      %5192 = vmatpush1.bf16.msra.mxu0 0
      %5193 = vmatprep.subr.bf16.mxu0 0
      %5194 = vmatpush1.bf16.msra.mxu0 0
      %5195 = vmatprep.subr.bf16.mxu0 0
      %5196 = vmatpush1.bf16.msra.mxu0 0
      %5197 = vmatprep.subr.bf16.mxu0 0
      %5198 = vmatpush1.bf16.msra.mxu0 0
      %5199 = vmatprep.subr.bf16.mxu0 0
      %5200 = vmatpush1.bf16.msra.mxu0 0
      %5201 = vmatprep.subr.bf16.mxu0 0
      %5202 = vmatpush1.bf16.msra.mxu0 0
      %5203 = vmatprep.subr.bf16.mxu0 0
      %5204 = vmatpush1.bf16.msra.mxu0 0
      %5205 = vmatprep.subr.bf16.mxu0 0
      %5206 = vmatpush1.bf16.msra.mxu0 0
      %5207 = vmatprep.subr.bf16.mxu0 0
      %5208 = vmatpush1.bf16.msra.mxu0 0
      %5209 = vmatprep.mubr.bf16.mxu0 0
      %5210 = vmatmul.mubr.bf16.gmra.mrb[0].mxu0 %v4920
      %v5211 = vpop.f32.mrb[0].mxu0
      %v5212 = vadd.f32 %v4899, %v5211
      %v5213 = vpop.f32.mrb[0].mxu0
      %v5214 = vadd.f32 %v4899, %v5213
      %v5215 = vpop.f32.mrb[0].mxu0
      %v5216 = vadd.f32 %v4904, %v5215
      %v5217 = vpop.f32.mrb[0].mxu0
      %v5218 = vadd.f32 %v4904, %v5217
      %5219 = vmatprep.mubr.bf16.mxu0 0
      %5220 = vmatmul.mubr.bf16.gmra.mrb[0].mxu0 %v4923
      %v5221 = vpop.f32.mrb[0].mxu0
      %v5222 = vadd.f32 %v4909, %v5221
      %v5223 = vpop.f32.mrb[0].mxu0
      %v5224 = vadd.f32 %v4909, %v5223
      %v5225 = vpop.f32.mrb[0].mxu0
      %v5226 = vpop.f32.mrb[0].mxu0
      %5227 = vdwg.mxu0
      %5228 = vmatprep.subr.bf16.mxu0 %v4871
      %5229 = vmatpush1.bf16.msra.mxu0 %v4870
      %5230 = vmatprep.subr.bf16.mxu0 %v4959
      %5231 = vmatpush1.bf16.msra.mxu0 %v4956
      %5232 = vmatprep.subr.bf16.mxu0 0
      %5233 = vmatpush1.bf16.msra.mxu0 0
      %5234 = vmatprep.subr.bf16.mxu0 0
      %5235 = vmatpush1.bf16.msra.mxu0 0
      %5236 = vmatprep.subr.bf16.mxu0 0
      %5237 = vmatpush1.bf16.msra.mxu0 0
      %5238 = vmatprep.subr.bf16.mxu0 0
      %5239 = vmatpush1.bf16.msra.mxu0 0
      %5240 = vmatprep.subr.bf16.mxu0 0
      %5241 = vmatpush1.bf16.msra.mxu0 0
      %5242 = vmatprep.subr.bf16.mxu0 0
      %5243 = vmatpush1.bf16.msra.mxu0 0
      %5244 = vmatprep.subr.bf16.mxu0 0
      %5245 = vmatpush1.bf16.msra.mxu0 0
      %5246 = vmatprep.subr.bf16.mxu0 0
      %5247 = vmatpush1.bf16.msra.mxu0 0
      %5248 = vmatprep.subr.bf16.mxu0 0
      %5249 = vmatpush1.bf16.msra.mxu0 0
      %5250 = vmatprep.subr.bf16.mxu0 0
      %5251 = vmatpush1.bf16.msra.mxu0 0
      %5252 = vmatprep.subr.bf16.mxu0 0
      %5253 = vmatpush1.bf16.msra.mxu0 0
      %5254 = vmatprep.subr.bf16.mxu0 0
      %5255 = vmatpush1.bf16.msra.mxu0 0
      %5256 = vmatprep.subr.bf16.mxu0 0
      %5257 = vmatpush1.bf16.msra.mxu0 0
      %5258 = vmatprep.subr.bf16.mxu0 0
      %5259 = vmatpush1.bf16.msra.mxu0 0
      %5260 = vmatprep.mubr.bf16.mxu0 0
      %5261 = vmatmul.mubr.bf16.gmra.mrb[0].mxu0 %v4920
      %v5262 = vpop.f32.mrb[0].mxu0
      %v5263 = vadd.f32 %v4899, %v5262
      %v5264 = vpop.f32.mrb[0].mxu0
      %v5265 = vadd.f32 %v4899, %v5264
      %v5266 = vpop.f32.mrb[0].mxu0
      %v5267 = vadd.f32 %v4904, %v5266
      %v5268 = vpop.f32.mrb[0].mxu0
      %v5269 = vadd.f32 %v4904, %v5268
      %5270 = vmatprep.mubr.bf16.mxu0 0
      %5271 = vmatmul.mubr.bf16.gmra.mrb[0].mxu0 %v4923
      %v5272 = vpop.f32.mrb[0].mxu0
      %v5273 = vadd.f32 %v4909, %v5272
      %v5274 = vpop.f32.mrb[0].mxu0
      %v5275 = vadd.f32 %v4909, %v5274
      %v5276 = vpop.f32.mrb[0].mxu0
      %v5277 = vpop.f32.mrb[0].mxu0
      %5278 = vdwg.mxu0
      %5279 = vmatprep.subr.bf16.mxu0 %v4873
      %5280 = vmatpush1.bf16.msra.mxu0 %v4872
      %5281 = vmatprep.subr.bf16.mxu0 %v4965
      %5282 = vmatpush1.bf16.msra.mxu0 %v4962
      %5283 = vmatprep.subr.bf16.mxu0 0
      %5284 = vmatpush1.bf16.msra.mxu0 0
      %5285 = vmatprep.subr.bf16.mxu0 0
      %5286 = vmatpush1.bf16.msra.mxu0 0
      %5287 = vmatprep.subr.bf16.mxu0 0
      %5288 = vmatpush1.bf16.msra.mxu0 0
      %5289 = vmatprep.subr.bf16.mxu0 0
      %5290 = vmatpush1.bf16.msra.mxu0 0
      %5291 = vmatprep.subr.bf16.mxu0 0
      %5292 = vmatpush1.bf16.msra.mxu0 0
      %5293 = vmatprep.subr.bf16.mxu0 0
      %5294 = vmatpush1.bf16.msra.mxu0 0
      %5295 = vmatprep.subr.bf16.mxu0 0
      %5296 = vmatpush1.bf16.msra.mxu0 0
      %5297 = vmatprep.subr.bf16.mxu0 0
      %5298 = vmatpush1.bf16.msra.mxu0 0
      %5299 = vmatprep.subr.bf16.mxu0 0
      %5300 = vmatpush1.bf16.msra.mxu0 0
      %5301 = vmatprep.subr.bf16.mxu0 0
      %5302 = vmatpush1.bf16.msra.mxu0 0
      %5303 = vmatprep.subr.bf16.mxu0 0
      %5304 = vmatpush1.bf16.msra.mxu0 0
      %5305 = vmatprep.subr.bf16.mxu0 0
      %5306 = vmatpush1.bf16.msra.mxu0 0
      %5307 = vmatprep.subr.bf16.mxu0 0
      %5308 = vmatpush1.bf16.msra.mxu0 0
      %5309 = vmatprep.subr.bf16.mxu0 0
      %5310 = vmatpush1.bf16.msra.mxu0 0
      %5311 = vmatprep.mubr.bf16.mxu0 0
      %5312 = vmatmul.mubr.bf16.gmra.mrb[0].mxu0 %v4920
      %v5313 = vpop.f32.mrb[0].mxu0
      %v5314 = vadd.f32 %v4899, %v5313
      %v5315 = vpop.f32.mrb[0].mxu0
      %v5316 = vadd.f32 %v4899, %v5315
      %v5317 = vpop.f32.mrb[0].mxu0
      %v5318 = vadd.f32 %v4904, %v5317
      %v5319 = vpop.f32.mrb[0].mxu0
      %v5320 = vadd.f32 %v4904, %v5319
      %5321 = vmatprep.mubr.bf16.mxu0 0
      %5322 = vmatmul.mubr.bf16.gmra.mrb[0].mxu0 %v4923
      %v5323 = vpop.f32.mrb[0].mxu0
      %v5324 = vadd.f32 %v4909, %v5323
      %v5325 = vpop.f32.mrb[0].mxu0
      %v5326 = vadd.f32 %v4909, %v5325
      %v5327 = vpop.f32.mrb[0].mxu0
      %v5328 = vpop.f32.mrb[0].mxu0
      %5329 = vdwg.mxu0
      %5330 = vmatprep.subr.bf16.mxu0 %v4875
      %5331 = vmatpush1.bf16.msra.mxu0 %v4874
      %5332 = vmatprep.subr.bf16.mxu0 %v4971
      %5333 = vmatpush1.bf16.msra.mxu0 %v4968
      %5334 = vmatprep.subr.bf16.mxu0 0
      %5335 = vmatpush1.bf16.msra.mxu0 0
      %5336 = vmatprep.subr.bf16.mxu0 0
      %5337 = vmatpush1.bf16.msra.mxu0 0
      %5338 = vmatprep.subr.bf16.mxu0 0
      %5339 = vmatpush1.bf16.msra.mxu0 0
      %5340 = vmatprep.subr.bf16.mxu0 0
      %5341 = vmatpush1.bf16.msra.mxu0 0
      %5342 = vmatprep.subr.bf16.mxu0 0
      %5343 = vmatpush1.bf16.msra.mxu0 0
      %5344 = vmatprep.subr.bf16.mxu0 0
      %5345 = vmatpush1.bf16.msra.mxu0 0
      %5346 = vmatprep.subr.bf16.mxu0 0
      %5347 = vmatpush1.bf16.msra.mxu0 0
      %5348 = vmatprep.subr.bf16.mxu0 0
      %5349 = vmatpush1.bf16.msra.mxu0 0
      %5350 = vmatprep.subr.bf16.mxu0 0
      %5351 = vmatpush1.bf16.msra.mxu0 0
      %5352 = vmatprep.subr.bf16.mxu0 0
      %5353 = vmatpush1.bf16.msra.mxu0 0
      %5354 = vmatprep.subr.bf16.mxu0 0
      %5355 = vmatpush1.bf16.msra.mxu0 0
      %5356 = vmatprep.subr.bf16.mxu0 0
      %5357 = vmatpush1.bf16.msra.mxu0 0
      %5358 = vmatprep.subr.bf16.mxu0 0
      %5359 = vmatpush1.bf16.msra.mxu0 0
      %5360 = vmatprep.subr.bf16.mxu0 0
      %5361 = vmatpush1.bf16.msra.mxu0 0
      %5362 = vmatprep.mubr.bf16.mxu0 0
      %5363 = vmatmul.mubr.bf16.gmra.mrb[0].mxu0 %v4920
      %v5364 = vpop.f32.mrb[0].mxu0
      %v5365 = vadd.f32 %v4899, %v5364
      %v5366 = vpop.f32.mrb[0].mxu0
      %v5367 = vadd.f32 %v4899, %v5366
      %v5368 = vpop.f32.mrb[0].mxu0
      %v5369 = vadd.f32 %v4904, %v5368
      %v5370 = vpop.f32.mrb[0].mxu0
      %v5371 = vadd.f32 %v4904, %v5370
      %5372 = vmatprep.mubr.bf16.mxu0 0
      %5373 = vmatmul.mubr.bf16.gmra.mrb[0].mxu0 %v4923
      %v5374 = vpop.f32.mrb[0].mxu0
      %v5375 = vadd.f32 %v4909, %v5374
      %v5376 = vpop.f32.mrb[0].mxu0
      %v5377 = vadd.f32 %v4909, %v5376
      %v5378 = vpop.f32.mrb[0].mxu0
      %v5379 = vpop.f32.mrb[0].mxu0
      %5380 = vdwg.mxu0
      %v5381 = vmul.f32 %v5008, 0.5
      %v5382 = vmul.f32 %v5010, 0.5
      %v5383 = vmul.f32 %v5059, 0.5
      %v5384 = vmul.f32 %v5061, 0.5
      %v5385 = vmul.f32 %v5110, 0.5
      %v5386 = vmul.f32 %v5112, 0.5
      %v5387 = vmul.f32 %v5161, 0.5
      %v5388 = vmul.f32 %v5163, 0.5
      %v5389 = vmul.f32 %v5212, 0.5
      %v5390 = vmul.f32 %v5214, 0.5
      %v5391 = vmul.f32 %v5263, 0.5
      %v5392 = vmul.f32 %v5265, 0.5
      %v5393 = vmul.f32 %v5314, 0.5
      %v5394 = vmul.f32 %v5316, 0.5
      %v5395 = vmul.f32 %v5365, 0.5
      %v5396 = vmul.f32 %v5367, 0.5
      %v5397 = vmul.f32 %v5012, 0.5
      %v5398 = vmul.f32 %v5014, 0.5
      %v5399 = vmul.f32 %v5063, 0.5
      %v5400 = vmul.f32 %v5065, 0.5
      %v5401 = vmul.f32 %v5114, 0.5
      %v5402 = vmul.f32 %v5116, 0.5
      %v5403 = vmul.f32 %v5165, 0.5
      %v5404 = vmul.f32 %v5167, 0.5
      %v5405 = vmul.f32 %v5216, 0.5
      %v5406 = vmul.f32 %v5218, 0.5
      %v5407 = vmul.f32 %v5267, 0.5
      %v5408 = vmul.f32 %v5269, 0.5
      %v5409 = vmul.f32 %v5318, 0.5
      %v5410 = vmul.f32 %v5320, 0.5
      %v5411 = vmul.f32 %v5369, 0.5
      %v5412 = vmul.f32 %v5371, 0.5
      %v5413 = vmul.f32 %v5018, 0.5
      %v5414 = vmul.f32 %v5020, 0.5
      %v5415 = vmul.f32 %v5069, 0.5
      %v5416 = vmul.f32 %v5071, 0.5
      %v5417 = vmul.f32 %v5120, 0.5
      %v5418 = vmul.f32 %v5122, 0.5
      %v5419 = vmul.f32 %v5171, 0.5
      %v5420 = vmul.f32 %v5173, 0.5
      %v5421 = vmul.f32 %v5222, 0.5
      %v5422 = vmul.f32 %v5224, 0.5
      %v5423 = vmul.f32 %v5273, 0.5
      %v5424 = vmul.f32 %v5275, 0.5
      %v5425 = vmul.f32 %v5324, 0.5
      %v5426 = vmul.f32 %v5326, 0.5
      %v5427 = vmul.f32 %v5375, 0.5
      %v5428 = vmul.f32 %v5377, 0.5
      %v5429 = vtanh.pop %v5381
      %v5430 = vtanh.pop %v5382
      %v5431 = vtanh.pop %v5383
      %v5432 = vtanh.pop %v5384
      %v5433 = vtanh.pop %v5385
      %v5434 = vtanh.pop %v5386
      %v5435 = vtanh.pop %v5387
      %v5436 = vtanh.pop %v5388
      %v5437 = vtanh.pop %v5389
      %v5438 = vtanh.pop %v5390
      %v5439 = vtanh.pop %v5391
      %v5440 = vtanh.pop %v5392
      %v5441 = vtanh.pop %v5393
      %v5442 = vtanh.pop %v5394
      %v5443 = vtanh.pop %v5395
      %v5444 = vtanh.pop %v5396
      %v5445 = vtanh.pop %v5397
      %v5446 = vtanh.pop %v5398
      %v5447 = vtanh.pop %v5399
      %v5448 = vtanh.pop %v5400
      %v5449 = vtanh.pop %v5401
      %v5450 = vtanh.pop %v5402
      %v5451 = vtanh.pop %v5403
      %v5452 = vtanh.pop %v5404
      %v5453 = vtanh.pop %v5405
      %v5454 = vtanh.pop %v5406
      %v5455 = vtanh.pop %v5407
      %v5456 = vtanh.pop %v5408
      %v5457 = vtanh.pop %v5409
      %v5458 = vtanh.pop %v5410
      %v5459 = vtanh.pop %v5411
      %v5460 = vtanh.pop %v5412
      %v5461 = vtanh.pop %v5413
      %v5462 = vtanh.pop %v5414
      %v5463 = vtanh.pop %v5415
      %v5464 = vtanh.pop %v5416
      %v5465 = vtanh.pop %v5417
      %v5466 = vtanh.pop %v5418
      %v5467 = vtanh.pop %v5419
      %v5468 = vtanh.pop %v5420
      %v5469 = vtanh.pop %v5421
      %v5470 = vtanh.pop %v5422
      %v5471 = vtanh.pop %v5423
      %v5472 = vtanh.pop %v5424
      %v5473 = vtanh.pop %v5425
      %v5474 = vtanh.pop %v5426
      %v5475 = vtanh.pop %v5427
      %v5476 = vtanh.pop %v5428
      %v5477 = vmul.f32 %v5381, %v5429
      %v5478 = vmul.f32 %v5382, %v5430
      %v5479 = vmul.f32 %v5383, %v5431
      %v5480 = vmul.f32 %v5384, %v5432
      %v5481 = vmul.f32 %v5385, %v5433
      %v5482 = vmul.f32 %v5386, %v5434
      %v5483 = vmul.f32 %v5387, %v5435
      %v5484 = vmul.f32 %v5388, %v5436
      %v5485 = vmul.f32 %v5389, %v5437
      %v5486 = vmul.f32 %v5390, %v5438
      %v5487 = vmul.f32 %v5391, %v5439
      %v5488 = vmul.f32 %v5392, %v5440
      %v5489 = vmul.f32 %v5393, %v5441
      %v5490 = vmul.f32 %v5394, %v5442
      %v5491 = vmul.f32 %v5395, %v5443
      %v5492 = vmul.f32 %v5396, %v5444
      %v5493 = vmul.f32 %v5397, %v5445
      %v5494 = vmul.f32 %v5398, %v5446
      %v5495 = vmul.f32 %v5399, %v5447
      %v5496 = vmul.f32 %v5400, %v5448
      %v5497 = vmul.f32 %v5401, %v5449
      %v5498 = vmul.f32 %v5402, %v5450
      %v5499 = vmul.f32 %v5403, %v5451
      %v5500 = vmul.f32 %v5404, %v5452
      %v5501 = vmul.f32 %v5405, %v5453
      %v5502 = vmul.f32 %v5406, %v5454
      %v5503 = vmul.f32 %v5407, %v5455
      %v5504 = vmul.f32 %v5408, %v5456
      %v5505 = vmul.f32 %v5409, %v5457
      %v5506 = vmul.f32 %v5410, %v5458
      %v5507 = vmul.f32 %v5411, %v5459
      %v5508 = vmul.f32 %v5412, %v5460
      %v5509 = vmul.f32 %v5413, %v5461
      %v5510 = vmul.f32 %v5414, %v5462
      %v5511 = vmul.f32 %v5415, %v5463
      %v5512 = vmul.f32 %v5416, %v5464
      %v5513 = vmul.f32 %v5417, %v5465
      %v5514 = vmul.f32 %v5418, %v5466
      %v5515 = vmul.f32 %v5419, %v5467
      %v5516 = vmul.f32 %v5420, %v5468
      %v5517 = vmul.f32 %v5421, %v5469
      %v5518 = vmul.f32 %v5422, %v5470
      %v5519 = vmul.f32 %v5423, %v5471
      %v5520 = vmul.f32 %v5424, %v5472
      %v5521 = vmul.f32 %v5425, %v5473
      %v5522 = vmul.f32 %v5426, %v5474
      %v5523 = vmul.f32 %v5427, %v5475
      %v5524 = vmul.f32 %v5428, %v5476
      %v5525 = vadd.f32 %v5477, %v5381
      %v5526 = vadd.f32 %v5478, %v5382
      %v5527 = vadd.f32 %v5479, %v5383
      %v5528 = vadd.f32 %v5480, %v5384
      %v5529 = vadd.f32 %v5481, %v5385
      %v5530 = vadd.f32 %v5482, %v5386
      %v5531 = vadd.f32 %v5483, %v5387
      %v5532 = vadd.f32 %v5484, %v5388
      %v5533 = vadd.f32 %v5485, %v5389
      %v5534 = vadd.f32 %v5486, %v5390
      %v5535 = vadd.f32 %v5487, %v5391
      %v5536 = vadd.f32 %v5488, %v5392
      %v5537 = vadd.f32 %v5489, %v5393
      %v5538 = vadd.f32 %v5490, %v5394
      %v5539 = vadd.f32 %v5491, %v5395
      %v5540 = vadd.f32 %v5492, %v5396
      %v5541 = vadd.f32 %v5493, %v5397
      %v5542 = vadd.f32 %v5494, %v5398
      %v5543 = vadd.f32 %v5495, %v5399
      %v5544 = vadd.f32 %v5496, %v5400
      %v5545 = vadd.f32 %v5497, %v5401
      %v5546 = vadd.f32 %v5498, %v5402
      %v5547 = vadd.f32 %v5499, %v5403
      %v5548 = vadd.f32 %v5500, %v5404
      %v5549 = vadd.f32 %v5501, %v5405
      %v5550 = vadd.f32 %v5502, %v5406
      %v5551 = vadd.f32 %v5503, %v5407
      %v5552 = vadd.f32 %v5504, %v5408
      %v5553 = vadd.f32 %v5505, %v5409
      %v5554 = vadd.f32 %v5506, %v5410
      %v5555 = vadd.f32 %v5507, %v5411
      %v5556 = vadd.f32 %v5508, %v5412
      %v5557 = vadd.f32 %v5509, %v5413
      %v5558 = vadd.f32 %v5510, %v5414
      %v5559 = vadd.f32 %v5511, %v5415
      %v5560 = vadd.f32 %v5512, %v5416
      %v5561 = vadd.f32 %v5513, %v5417
      %v5562 = vadd.f32 %v5514, %v5418
      %v5563 = vadd.f32 %v5515, %v5419
      %v5564 = vadd.f32 %v5516, %v5420
      %v5565 = vadd.f32 %v5517, %v5421
      %v5566 = vadd.f32 %v5518, %v5422
      %v5567 = vadd.f32 %v5519, %v5423
      %v5568 = vadd.f32 %v5520, %v5424
      %v5569 = vadd.f32 %v5521, %v5425
      %v5570 = vadd.f32 %v5522, %v5426
      %v5571 = vadd.f32 %v5523, %v5427
      %v5572 = vadd.f32 %v5524, %v5428
      %s5573 = scalar_lea.vmem %s3, 72
      %v5574 = vld [vmem:[%s5573] sm:$0xf]
      %v5575 = vld [vmem:[%s5573 + $0x4] sm:$0xf]
      %v5576 = vld [vmem:[%s5573 + $0x8] sm:$0x3]
      %v5577 = vpack.c.bf16 %v5541, %v5525
      %v5578 = vpack.c.bf16 %v5542, %v5526
      %v5579 = vpack.c.bf16 %v5543, %v5527
      %v5580 = vpack.c.bf16 %v5544, %v5528
      %v5581 = vpack.c.bf16 %v5545, %v5529
      %v5582 = vpack.c.bf16 %v5546, %v5530
      %v5583 = vpack.c.bf16 %v5547, %v5531
      %v5584 = vpack.c.bf16 %v5548, %v5532
      %v5585 = vpack.c.bf16 %v5549, %v5533
      %v5586 = vpack.c.bf16 %v5550, %v5534
      %v5587 = vpack.c.bf16 %v5551, %v5535
      %v5588 = vpack.c.bf16 %v5552, %v5536
      %v5589 = vpack.c.bf16 %v5553, %v5537
      %v5590 = vpack.c.bf16 %v5554, %v5538
      %v5591 = vpack.c.bf16 %v5555, %v5539
      %v5592 = vpack.c.bf16 %v5556, %v5540
      %v5593 = vpack.c.bf16 %v5557, %v5557
      %v5594 = vpack.c.bf16 %v5558, %v5558
      %v5595 = vpack.c.bf16 %v5559, %v5559
      %v5596 = vpack.c.bf16 %v5560, %v5560
      %v5597 = vpack.c.bf16 %v5561, %v5561
      %v5598 = vpack.c.bf16 %v5562, %v5562
      %v5599 = vpack.c.bf16 %v5563, %v5563
      %v5600 = vpack.c.bf16 %v5564, %v5564
      %v5601 = vpack.c.bf16 %v5565, %v5565
      %v5602 = vpack.c.bf16 %v5566, %v5566
      %v5603 = vpack.c.bf16 %v5567, %v5567
      %v5604 = vpack.c.bf16 %v5568, %v5568
      %v5605 = vpack.c.bf16 %v5569, %v5569
      %v5606 = vpack.c.bf16 %v5570, %v5570
      %v5607 = vpack.c.bf16 %v5571, %v5571
      %v5608 = vpack.c.bf16 %v5572, %v5572
      %s5609 = scalar_lea.vmem %s4, 144
      %v5610 = vld [vmem:[%s5609] sm:$0xff]
      %v5611 = vld [vmem:[%s5609 + $0x8] sm:$0xff]
      %v5612 = vld [vmem:[%s5609 + $0x10] sm:$0xf]
      %5614 = vset.pattern.permute.xlu0 0
      %5615 = vperm.xlu0 %5614, %v5610
      %v5616 = vpop.permute.xlu0 %5615
      %5619 = vset.pattern.permute.xlu0 0
      %5620 = vperm.xlu0 %5619, %v5611
      %v5621 = vpop.permute.xlu0 %5620
      %5624 = vset.pattern.permute.xlu0 0
      %5625 = vperm.xlu0 %5624, %v5612
      %v5626 = vpop.permute.xlu0 %5625
      %v5631 = vunpack.c.l.b16 %v5574
      %v5632 = vunpack.c.l.b16 %v5575
      %v5633 = vunpack.c.l.b16 %v5576
      %v5634 = vpack.c.b16 %v5632, %v5631
      %v5635 = vpack.c.b16 %v5633, %v5633
      %v5637 = vsel %vm1332, %v5634, 0
      %v5640 = vsel %vm1332, %v5635, 0
      %v5643 = vsel %vm1339, %v5593, 0
      %v5646 = vsel %vm1339, %v5594, 0
      %v5649 = vsel %vm1339, %v5595, 0
      %v5652 = vsel %vm1339, %v5596, 0
      %v5655 = vsel %vm1339, %v5597, 0
      %v5658 = vsel %vm1339, %v5598, 0
      %v5661 = vsel %vm1339, %v5599, 0
      %v5664 = vsel %vm1339, %v5600, 0
      %v5667 = vsel %vm1339, %v5601, 0
      %v5670 = vsel %vm1339, %v5602, 0
      %v5673 = vsel %vm1339, %v5603, 0
      %v5676 = vsel %vm1339, %v5604, 0
      %v5679 = vsel %vm1339, %v5605, 0
      %v5682 = vsel %vm1339, %v5606, 0
      %v5685 = vsel %vm1339, %v5607, 0
      %v5688 = vsel %vm1339, %v5608, 0
      %5690 = vmatprep.subr.bf16.mxu0 %v5578
      %5691 = vmatpush1.bf16.msra.mxu0 %v5577
      %5692 = vmatprep.subr.bf16.mxu0 %v5646
      %5693 = vmatpush1.bf16.msra.mxu0 %v5643
      %5694 = vmatprep.subr.bf16.mxu0 0
      %5695 = vmatpush1.bf16.msra.mxu0 0
      %5696 = vmatprep.subr.bf16.mxu0 0
      %5697 = vmatpush1.bf16.msra.mxu0 0
      %5698 = vmatprep.subr.bf16.mxu0 0
      %5699 = vmatpush1.bf16.msra.mxu0 0
      %5700 = vmatprep.subr.bf16.mxu0 0
      %5701 = vmatpush1.bf16.msra.mxu0 0
      %5702 = vmatprep.subr.bf16.mxu0 0
      %5703 = vmatpush1.bf16.msra.mxu0 0
      %5704 = vmatprep.subr.bf16.mxu0 0
      %5705 = vmatpush1.bf16.msra.mxu0 0
      %5706 = vmatprep.subr.bf16.mxu0 0
      %5707 = vmatpush1.bf16.msra.mxu0 0
      %5708 = vmatprep.subr.bf16.mxu0 0
      %5709 = vmatpush1.bf16.msra.mxu0 0
      %5710 = vmatprep.subr.bf16.mxu0 0
      %5711 = vmatpush1.bf16.msra.mxu0 0
      %5712 = vmatprep.subr.bf16.mxu0 0
      %5713 = vmatpush1.bf16.msra.mxu0 0
      %5714 = vmatprep.subr.bf16.mxu0 0
      %5715 = vmatpush1.bf16.msra.mxu0 0
      %5716 = vmatprep.subr.bf16.mxu0 0
      %5717 = vmatpush1.bf16.msra.mxu0 0
      %5718 = vmatprep.subr.bf16.mxu0 0
      %5719 = vmatpush1.bf16.msra.mxu0 0
      %5720 = vmatprep.subr.bf16.mxu0 0
      %5721 = vmatpush1.bf16.msra.mxu0 0
      %5722 = vmatprep.mubr.bf16.mxu0 0
      %5723 = vmatmul.mubr.bf16.gmra.mrb[0].mxu0 %v5637
      %v5724 = vpop.f32.mrb[0].mxu0
      %v5725 = vadd.f32 %v5616, %v5724
      %v5726 = vpop.f32.mrb[0].mxu0
      %v5727 = vadd.f32 %v5616, %v5726
      %v5728 = vpop.f32.mrb[0].mxu0
      %v5729 = vadd.f32 %v5621, %v5728
      %v5730 = vpop.f32.mrb[0].mxu0
      %v5731 = vadd.f32 %v5621, %v5730
      %5732 = vmatprep.mubr.bf16.mxu0 0
      %5733 = vmatmul.mubr.bf16.gmra.mrb[0].mxu0 %v5640
      %v5734 = vpop.f32.mrb[0].mxu0
      %v5735 = vadd.f32 %v5626, %v5734
      %v5736 = vpop.f32.mrb[0].mxu0
      %v5737 = vadd.f32 %v5626, %v5736
      %v5738 = vpop.f32.mrb[0].mxu0
      %v5739 = vpop.f32.mrb[0].mxu0
      %5740 = vdwg.mxu0
      %5741 = vmatprep.subr.bf16.mxu0 %v5580
      %5742 = vmatpush1.bf16.msra.mxu0 %v5579
      %5743 = vmatprep.subr.bf16.mxu0 %v5652
      %5744 = vmatpush1.bf16.msra.mxu0 %v5649
      %5745 = vmatprep.subr.bf16.mxu0 0
      %5746 = vmatpush1.bf16.msra.mxu0 0
      %5747 = vmatprep.subr.bf16.mxu0 0
      %5748 = vmatpush1.bf16.msra.mxu0 0
      %5749 = vmatprep.subr.bf16.mxu0 0
      %5750 = vmatpush1.bf16.msra.mxu0 0
      %5751 = vmatprep.subr.bf16.mxu0 0
      %5752 = vmatpush1.bf16.msra.mxu0 0
      %5753 = vmatprep.subr.bf16.mxu0 0
      %5754 = vmatpush1.bf16.msra.mxu0 0
      %5755 = vmatprep.subr.bf16.mxu0 0
      %5756 = vmatpush1.bf16.msra.mxu0 0
      %5757 = vmatprep.subr.bf16.mxu0 0
      %5758 = vmatpush1.bf16.msra.mxu0 0
      %5759 = vmatprep.subr.bf16.mxu0 0
      %5760 = vmatpush1.bf16.msra.mxu0 0
      %5761 = vmatprep.subr.bf16.mxu0 0
      %5762 = vmatpush1.bf16.msra.mxu0 0
      %5763 = vmatprep.subr.bf16.mxu0 0
      %5764 = vmatpush1.bf16.msra.mxu0 0
      %5765 = vmatprep.subr.bf16.mxu0 0
      %5766 = vmatpush1.bf16.msra.mxu0 0
      %5767 = vmatprep.subr.bf16.mxu0 0
      %5768 = vmatpush1.bf16.msra.mxu0 0
      %5769 = vmatprep.subr.bf16.mxu0 0
      %5770 = vmatpush1.bf16.msra.mxu0 0
      %5771 = vmatprep.subr.bf16.mxu0 0
      %5772 = vmatpush1.bf16.msra.mxu0 0
      %5773 = vmatprep.mubr.bf16.mxu0 0
      %5774 = vmatmul.mubr.bf16.gmra.mrb[0].mxu0 %v5637
      %v5775 = vpop.f32.mrb[0].mxu0
      %v5776 = vadd.f32 %v5616, %v5775
      %v5777 = vpop.f32.mrb[0].mxu0
      %v5778 = vadd.f32 %v5616, %v5777
      %v5779 = vpop.f32.mrb[0].mxu0
      %v5780 = vadd.f32 %v5621, %v5779
      %v5781 = vpop.f32.mrb[0].mxu0
      %v5782 = vadd.f32 %v5621, %v5781
      %5783 = vmatprep.mubr.bf16.mxu0 0
      %5784 = vmatmul.mubr.bf16.gmra.mrb[0].mxu0 %v5640
      %v5785 = vpop.f32.mrb[0].mxu0
      %v5786 = vadd.f32 %v5626, %v5785
      %v5787 = vpop.f32.mrb[0].mxu0
      %v5788 = vadd.f32 %v5626, %v5787
      %v5789 = vpop.f32.mrb[0].mxu0
      %v5790 = vpop.f32.mrb[0].mxu0
      %5791 = vdwg.mxu0
      %5792 = vmatprep.subr.bf16.mxu0 %v5582
      %5793 = vmatpush1.bf16.msra.mxu0 %v5581
      %5794 = vmatprep.subr.bf16.mxu0 %v5658
      %5795 = vmatpush1.bf16.msra.mxu0 %v5655
      %5796 = vmatprep.subr.bf16.mxu0 0
      %5797 = vmatpush1.bf16.msra.mxu0 0
      %5798 = vmatprep.subr.bf16.mxu0 0
      %5799 = vmatpush1.bf16.msra.mxu0 0
      %5800 = vmatprep.subr.bf16.mxu0 0
      %5801 = vmatpush1.bf16.msra.mxu0 0
      %5802 = vmatprep.subr.bf16.mxu0 0
      %5803 = vmatpush1.bf16.msra.mxu0 0
      %5804 = vmatprep.subr.bf16.mxu0 0
      %5805 = vmatpush1.bf16.msra.mxu0 0
      %5806 = vmatprep.subr.bf16.mxu0 0
      %5807 = vmatpush1.bf16.msra.mxu0 0
      %5808 = vmatprep.subr.bf16.mxu0 0
      %5809 = vmatpush1.bf16.msra.mxu0 0
      %5810 = vmatprep.subr.bf16.mxu0 0
      %5811 = vmatpush1.bf16.msra.mxu0 0
      %5812 = vmatprep.subr.bf16.mxu0 0
      %5813 = vmatpush1.bf16.msra.mxu0 0
      %5814 = vmatprep.subr.bf16.mxu0 0
      %5815 = vmatpush1.bf16.msra.mxu0 0
      %5816 = vmatprep.subr.bf16.mxu0 0
      %5817 = vmatpush1.bf16.msra.mxu0 0
      %5818 = vmatprep.subr.bf16.mxu0 0
      %5819 = vmatpush1.bf16.msra.mxu0 0
      %5820 = vmatprep.subr.bf16.mxu0 0
      %5821 = vmatpush1.bf16.msra.mxu0 0
      %5822 = vmatprep.subr.bf16.mxu0 0
      %5823 = vmatpush1.bf16.msra.mxu0 0
      %5824 = vmatprep.mubr.bf16.mxu0 0
      %5825 = vmatmul.mubr.bf16.gmra.mrb[0].mxu0 %v5637
      %v5826 = vpop.f32.mrb[0].mxu0
      %v5827 = vadd.f32 %v5616, %v5826
      %v5828 = vpop.f32.mrb[0].mxu0
      %v5829 = vadd.f32 %v5616, %v5828
      %v5830 = vpop.f32.mrb[0].mxu0
      %v5831 = vadd.f32 %v5621, %v5830
      %v5832 = vpop.f32.mrb[0].mxu0
      %v5833 = vadd.f32 %v5621, %v5832
      %5834 = vmatprep.mubr.bf16.mxu0 0
      %5835 = vmatmul.mubr.bf16.gmra.mrb[0].mxu0 %v5640
      %v5836 = vpop.f32.mrb[0].mxu0
      %v5837 = vadd.f32 %v5626, %v5836
      %v5838 = vpop.f32.mrb[0].mxu0
      %v5839 = vadd.f32 %v5626, %v5838
      %v5840 = vpop.f32.mrb[0].mxu0
      %v5841 = vpop.f32.mrb[0].mxu0
      %5842 = vdwg.mxu0
      %5843 = vmatprep.subr.bf16.mxu0 %v5584
      %5844 = vmatpush1.bf16.msra.mxu0 %v5583
      %5845 = vmatprep.subr.bf16.mxu0 %v5664
      %5846 = vmatpush1.bf16.msra.mxu0 %v5661
      %5847 = vmatprep.subr.bf16.mxu0 0
      %5848 = vmatpush1.bf16.msra.mxu0 0
      %5849 = vmatprep.subr.bf16.mxu0 0
      %5850 = vmatpush1.bf16.msra.mxu0 0
      %5851 = vmatprep.subr.bf16.mxu0 0
      %5852 = vmatpush1.bf16.msra.mxu0 0
      %5853 = vmatprep.subr.bf16.mxu0 0
      %5854 = vmatpush1.bf16.msra.mxu0 0
      %5855 = vmatprep.subr.bf16.mxu0 0
      %5856 = vmatpush1.bf16.msra.mxu0 0
      %5857 = vmatprep.subr.bf16.mxu0 0
      %5858 = vmatpush1.bf16.msra.mxu0 0
      %5859 = vmatprep.subr.bf16.mxu0 0
      %5860 = vmatpush1.bf16.msra.mxu0 0
      %5861 = vmatprep.subr.bf16.mxu0 0
      %5862 = vmatpush1.bf16.msra.mxu0 0
      %5863 = vmatprep.subr.bf16.mxu0 0
      %5864 = vmatpush1.bf16.msra.mxu0 0
      %5865 = vmatprep.subr.bf16.mxu0 0
      %5866 = vmatpush1.bf16.msra.mxu0 0
      %5867 = vmatprep.subr.bf16.mxu0 0
      %5868 = vmatpush1.bf16.msra.mxu0 0
      %5869 = vmatprep.subr.bf16.mxu0 0
      %5870 = vmatpush1.bf16.msra.mxu0 0
      %5871 = vmatprep.subr.bf16.mxu0 0
      %5872 = vmatpush1.bf16.msra.mxu0 0
      %5873 = vmatprep.subr.bf16.mxu0 0
      %5874 = vmatpush1.bf16.msra.mxu0 0
      %5875 = vmatprep.mubr.bf16.mxu0 0
      %5876 = vmatmul.mubr.bf16.gmra.mrb[0].mxu0 %v5637
      %v5877 = vpop.f32.mrb[0].mxu0
      %v5878 = vadd.f32 %v5616, %v5877
      %v5879 = vpop.f32.mrb[0].mxu0
      %v5880 = vadd.f32 %v5616, %v5879
      %v5881 = vpop.f32.mrb[0].mxu0
      %v5882 = vadd.f32 %v5621, %v5881
      %v5883 = vpop.f32.mrb[0].mxu0
      %v5884 = vadd.f32 %v5621, %v5883
      %5885 = vmatprep.mubr.bf16.mxu0 0
      %5886 = vmatmul.mubr.bf16.gmra.mrb[0].mxu0 %v5640
      %v5887 = vpop.f32.mrb[0].mxu0
      %v5888 = vadd.f32 %v5626, %v5887
      %v5889 = vpop.f32.mrb[0].mxu0
      %v5890 = vadd.f32 %v5626, %v5889
      %v5891 = vpop.f32.mrb[0].mxu0
      %v5892 = vpop.f32.mrb[0].mxu0
      %5893 = vdwg.mxu0
      %5894 = vmatprep.subr.bf16.mxu0 %v5586
      %5895 = vmatpush1.bf16.msra.mxu0 %v5585
      %5896 = vmatprep.subr.bf16.mxu0 %v5670
      %5897 = vmatpush1.bf16.msra.mxu0 %v5667
      %5898 = vmatprep.subr.bf16.mxu0 0
      %5899 = vmatpush1.bf16.msra.mxu0 0
      %5900 = vmatprep.subr.bf16.mxu0 0
      %5901 = vmatpush1.bf16.msra.mxu0 0
      %5902 = vmatprep.subr.bf16.mxu0 0
      %5903 = vmatpush1.bf16.msra.mxu0 0
      %5904 = vmatprep.subr.bf16.mxu0 0
      %5905 = vmatpush1.bf16.msra.mxu0 0
      %5906 = vmatprep.subr.bf16.mxu0 0
      %5907 = vmatpush1.bf16.msra.mxu0 0
      %5908 = vmatprep.subr.bf16.mxu0 0
      %5909 = vmatpush1.bf16.msra.mxu0 0
      %5910 = vmatprep.subr.bf16.mxu0 0
      %5911 = vmatpush1.bf16.msra.mxu0 0
      %5912 = vmatprep.subr.bf16.mxu0 0
      %5913 = vmatpush1.bf16.msra.mxu0 0
      %5914 = vmatprep.subr.bf16.mxu0 0
      %5915 = vmatpush1.bf16.msra.mxu0 0
      %5916 = vmatprep.subr.bf16.mxu0 0
      %5917 = vmatpush1.bf16.msra.mxu0 0
      %5918 = vmatprep.subr.bf16.mxu0 0
      %5919 = vmatpush1.bf16.msra.mxu0 0
      %5920 = vmatprep.subr.bf16.mxu0 0
      %5921 = vmatpush1.bf16.msra.mxu0 0
      %5922 = vmatprep.subr.bf16.mxu0 0
      %5923 = vmatpush1.bf16.msra.mxu0 0
      %5924 = vmatprep.subr.bf16.mxu0 0
      %5925 = vmatpush1.bf16.msra.mxu0 0
      %5926 = vmatprep.mubr.bf16.mxu0 0
      %5927 = vmatmul.mubr.bf16.gmra.mrb[0].mxu0 %v5637
      %v5928 = vpop.f32.mrb[0].mxu0
      %v5929 = vadd.f32 %v5616, %v5928
      %v5930 = vpop.f32.mrb[0].mxu0
      %v5931 = vadd.f32 %v5616, %v5930
      %v5932 = vpop.f32.mrb[0].mxu0
      %v5933 = vadd.f32 %v5621, %v5932
      %v5934 = vpop.f32.mrb[0].mxu0
      %v5935 = vadd.f32 %v5621, %v5934
      %5936 = vmatprep.mubr.bf16.mxu0 0
      %5937 = vmatmul.mubr.bf16.gmra.mrb[0].mxu0 %v5640
      %v5938 = vpop.f32.mrb[0].mxu0
      %v5939 = vadd.f32 %v5626, %v5938
      %v5940 = vpop.f32.mrb[0].mxu0
      %v5941 = vadd.f32 %v5626, %v5940
      %v5942 = vpop.f32.mrb[0].mxu0
      %v5943 = vpop.f32.mrb[0].mxu0
      %5944 = vdwg.mxu0
      %5945 = vmatprep.subr.bf16.mxu0 %v5588
      %5946 = vmatpush1.bf16.msra.mxu0 %v5587
      %5947 = vmatprep.subr.bf16.mxu0 %v5676
      %5948 = vmatpush1.bf16.msra.mxu0 %v5673
      %5949 = vmatprep.subr.bf16.mxu0 0
      %5950 = vmatpush1.bf16.msra.mxu0 0
      %5951 = vmatprep.subr.bf16.mxu0 0
      %5952 = vmatpush1.bf16.msra.mxu0 0
      %5953 = vmatprep.subr.bf16.mxu0 0
      %5954 = vmatpush1.bf16.msra.mxu0 0
      %5955 = vmatprep.subr.bf16.mxu0 0
      %5956 = vmatpush1.bf16.msra.mxu0 0
      %5957 = vmatprep.subr.bf16.mxu0 0
      %5958 = vmatpush1.bf16.msra.mxu0 0
      %5959 = vmatprep.subr.bf16.mxu0 0
      %5960 = vmatpush1.bf16.msra.mxu0 0
      %5961 = vmatprep.subr.bf16.mxu0 0
      %5962 = vmatpush1.bf16.msra.mxu0 0
      %5963 = vmatprep.subr.bf16.mxu0 0
      %5964 = vmatpush1.bf16.msra.mxu0 0
      %5965 = vmatprep.subr.bf16.mxu0 0
      %5966 = vmatpush1.bf16.msra.mxu0 0
      %5967 = vmatprep.subr.bf16.mxu0 0
      %5968 = vmatpush1.bf16.msra.mxu0 0
      %5969 = vmatprep.subr.bf16.mxu0 0
      %5970 = vmatpush1.bf16.msra.mxu0 0
      %5971 = vmatprep.subr.bf16.mxu0 0
      %5972 = vmatpush1.bf16.msra.mxu0 0
      %5973 = vmatprep.subr.bf16.mxu0 0
      %5974 = vmatpush1.bf16.msra.mxu0 0
      %5975 = vmatprep.subr.bf16.mxu0 0
      %5976 = vmatpush1.bf16.msra.mxu0 0
      %5977 = vmatprep.mubr.bf16.mxu0 0
      %5978 = vmatmul.mubr.bf16.gmra.mrb[0].mxu0 %v5637
      %v5979 = vpop.f32.mrb[0].mxu0
      %v5980 = vadd.f32 %v5616, %v5979
      %v5981 = vpop.f32.mrb[0].mxu0
      %v5982 = vadd.f32 %v5616, %v5981
      %v5983 = vpop.f32.mrb[0].mxu0
      %v5984 = vadd.f32 %v5621, %v5983
      %v5985 = vpop.f32.mrb[0].mxu0
      %v5986 = vadd.f32 %v5621, %v5985
      %5987 = vmatprep.mubr.bf16.mxu0 0
      %5988 = vmatmul.mubr.bf16.gmra.mrb[0].mxu0 %v5640
      %v5989 = vpop.f32.mrb[0].mxu0
      %v5990 = vadd.f32 %v5626, %v5989
      %v5991 = vpop.f32.mrb[0].mxu0
      %v5992 = vadd.f32 %v5626, %v5991
      %v5993 = vpop.f32.mrb[0].mxu0
      %v5994 = vpop.f32.mrb[0].mxu0
      %5995 = vdwg.mxu0
      %5996 = vmatprep.subr.bf16.mxu0 %v5590
      %5997 = vmatpush1.bf16.msra.mxu0 %v5589
      %5998 = vmatprep.subr.bf16.mxu0 %v5682
      %5999 = vmatpush1.bf16.msra.mxu0 %v5679
      %6000 = vmatprep.subr.bf16.mxu0 0
      %6001 = vmatpush1.bf16.msra.mxu0 0
      %6002 = vmatprep.subr.bf16.mxu0 0
      %6003 = vmatpush1.bf16.msra.mxu0 0
      %6004 = vmatprep.subr.bf16.mxu0 0
      %6005 = vmatpush1.bf16.msra.mxu0 0
      %6006 = vmatprep.subr.bf16.mxu0 0
      %6007 = vmatpush1.bf16.msra.mxu0 0
      %6008 = vmatprep.subr.bf16.mxu0 0
      %6009 = vmatpush1.bf16.msra.mxu0 0
      %6010 = vmatprep.subr.bf16.mxu0 0
      %6011 = vmatpush1.bf16.msra.mxu0 0
      %6012 = vmatprep.subr.bf16.mxu0 0
      %6013 = vmatpush1.bf16.msra.mxu0 0
      %6014 = vmatprep.subr.bf16.mxu0 0
      %6015 = vmatpush1.bf16.msra.mxu0 0
      %6016 = vmatprep.subr.bf16.mxu0 0
      %6017 = vmatpush1.bf16.msra.mxu0 0
      %6018 = vmatprep.subr.bf16.mxu0 0
      %6019 = vmatpush1.bf16.msra.mxu0 0
      %6020 = vmatprep.subr.bf16.mxu0 0
      %6021 = vmatpush1.bf16.msra.mxu0 0
      %6022 = vmatprep.subr.bf16.mxu0 0
      %6023 = vmatpush1.bf16.msra.mxu0 0
      %6024 = vmatprep.subr.bf16.mxu0 0
      %6025 = vmatpush1.bf16.msra.mxu0 0
      %6026 = vmatprep.subr.bf16.mxu0 0
      %6027 = vmatpush1.bf16.msra.mxu0 0
      %6028 = vmatprep.mubr.bf16.mxu0 0
      %6029 = vmatmul.mubr.bf16.gmra.mrb[0].mxu0 %v5637
      %v6030 = vpop.f32.mrb[0].mxu0
      %v6031 = vadd.f32 %v5616, %v6030
      %v6032 = vpop.f32.mrb[0].mxu0
      %v6033 = vadd.f32 %v5616, %v6032
      %v6034 = vpop.f32.mrb[0].mxu0
      %v6035 = vadd.f32 %v5621, %v6034
      %v6036 = vpop.f32.mrb[0].mxu0
      %v6037 = vadd.f32 %v5621, %v6036
      %6038 = vmatprep.mubr.bf16.mxu0 0
      %6039 = vmatmul.mubr.bf16.gmra.mrb[0].mxu0 %v5640
      %v6040 = vpop.f32.mrb[0].mxu0
      %v6041 = vadd.f32 %v5626, %v6040
      %v6042 = vpop.f32.mrb[0].mxu0
      %v6043 = vadd.f32 %v5626, %v6042
      %v6044 = vpop.f32.mrb[0].mxu0
      %v6045 = vpop.f32.mrb[0].mxu0
      %6046 = vdwg.mxu0
      %6047 = vmatprep.subr.bf16.mxu0 %v5592
      %6048 = vmatpush1.bf16.msra.mxu0 %v5591
      %6049 = vmatprep.subr.bf16.mxu0 %v5688
      %6050 = vmatpush1.bf16.msra.mxu0 %v5685
      %6051 = vmatprep.subr.bf16.mxu0 0
      %6052 = vmatpush1.bf16.msra.mxu0 0
      %6053 = vmatprep.subr.bf16.mxu0 0
      %6054 = vmatpush1.bf16.msra.mxu0 0
      %6055 = vmatprep.subr.bf16.mxu0 0
      %6056 = vmatpush1.bf16.msra.mxu0 0
      %6057 = vmatprep.subr.bf16.mxu0 0
      %6058 = vmatpush1.bf16.msra.mxu0 0
      %6059 = vmatprep.subr.bf16.mxu0 0
      %6060 = vmatpush1.bf16.msra.mxu0 0
      %6061 = vmatprep.subr.bf16.mxu0 0
      %6062 = vmatpush1.bf16.msra.mxu0 0
      %6063 = vmatprep.subr.bf16.mxu0 0
      %6064 = vmatpush1.bf16.msra.mxu0 0
      %6065 = vmatprep.subr.bf16.mxu0 0
      %6066 = vmatpush1.bf16.msra.mxu0 0
      %6067 = vmatprep.subr.bf16.mxu0 0
      %6068 = vmatpush1.bf16.msra.mxu0 0
      %6069 = vmatprep.subr.bf16.mxu0 0
      %6070 = vmatpush1.bf16.msra.mxu0 0
      %6071 = vmatprep.subr.bf16.mxu0 0
      %6072 = vmatpush1.bf16.msra.mxu0 0
      %6073 = vmatprep.subr.bf16.mxu0 0
      %6074 = vmatpush1.bf16.msra.mxu0 0
      %6075 = vmatprep.subr.bf16.mxu0 0
      %6076 = vmatpush1.bf16.msra.mxu0 0
      %6077 = vmatprep.subr.bf16.mxu0 0
      %6078 = vmatpush1.bf16.msra.mxu0 0
      %6079 = vmatprep.mubr.bf16.mxu0 0
      %6080 = vmatmul.mubr.bf16.gmra.mrb[0].mxu0 %v5637
      %v6081 = vpop.f32.mrb[0].mxu0
      %v6082 = vadd.f32 %v5616, %v6081
      %v6083 = vpop.f32.mrb[0].mxu0
      %v6084 = vadd.f32 %v5616, %v6083
      %v6085 = vpop.f32.mrb[0].mxu0
      %v6086 = vadd.f32 %v5621, %v6085
      %v6087 = vpop.f32.mrb[0].mxu0
      %v6088 = vadd.f32 %v5621, %v6087
      %6089 = vmatprep.mubr.bf16.mxu0 0
      %6090 = vmatmul.mubr.bf16.gmra.mrb[0].mxu0 %v5640
      %v6091 = vpop.f32.mrb[0].mxu0
      %v6092 = vadd.f32 %v5626, %v6091
      %v6093 = vpop.f32.mrb[0].mxu0
      %v6094 = vadd.f32 %v5626, %v6093
      %v6095 = vpop.f32.mrb[0].mxu0
      %v6096 = vpop.f32.mrb[0].mxu0
      %6097 = vdwg.mxu0
      %v6098 = vmul.f32 %v5725, 0.5
      %v6099 = vmul.f32 %v5727, 0.5
      %v6100 = vmul.f32 %v5776, 0.5
      %v6101 = vmul.f32 %v5778, 0.5
      %v6102 = vmul.f32 %v5827, 0.5
      %v6103 = vmul.f32 %v5829, 0.5
      %v6104 = vmul.f32 %v5878, 0.5
      %v6105 = vmul.f32 %v5880, 0.5
      %v6106 = vmul.f32 %v5929, 0.5
      %v6107 = vmul.f32 %v5931, 0.5
      %v6108 = vmul.f32 %v5980, 0.5
      %v6109 = vmul.f32 %v5982, 0.5
      %v6110 = vmul.f32 %v6031, 0.5
      %v6111 = vmul.f32 %v6033, 0.5
      %v6112 = vmul.f32 %v6082, 0.5
      %v6113 = vmul.f32 %v6084, 0.5
      %v6114 = vmul.f32 %v5729, 0.5
      %v6115 = vmul.f32 %v5731, 0.5
      %v6116 = vmul.f32 %v5780, 0.5
      %v6117 = vmul.f32 %v5782, 0.5
      %v6118 = vmul.f32 %v5831, 0.5
      %v6119 = vmul.f32 %v5833, 0.5
      %v6120 = vmul.f32 %v5882, 0.5
      %v6121 = vmul.f32 %v5884, 0.5
      %v6122 = vmul.f32 %v5933, 0.5
      %v6123 = vmul.f32 %v5935, 0.5
      %v6124 = vmul.f32 %v5984, 0.5
      %v6125 = vmul.f32 %v5986, 0.5
      %v6126 = vmul.f32 %v6035, 0.5
      %v6127 = vmul.f32 %v6037, 0.5
      %v6128 = vmul.f32 %v6086, 0.5
      %v6129 = vmul.f32 %v6088, 0.5
      %v6130 = vmul.f32 %v5735, 0.5
      %v6131 = vmul.f32 %v5737, 0.5
      %v6132 = vmul.f32 %v5786, 0.5
      %v6133 = vmul.f32 %v5788, 0.5
      %v6134 = vmul.f32 %v5837, 0.5
      %v6135 = vmul.f32 %v5839, 0.5
      %v6136 = vmul.f32 %v5888, 0.5
      %v6137 = vmul.f32 %v5890, 0.5
      %v6138 = vmul.f32 %v5939, 0.5
      %v6139 = vmul.f32 %v5941, 0.5
      %v6140 = vmul.f32 %v5990, 0.5
      %v6141 = vmul.f32 %v5992, 0.5
      %v6142 = vmul.f32 %v6041, 0.5
      %v6143 = vmul.f32 %v6043, 0.5
      %v6144 = vmul.f32 %v6092, 0.5
      %v6145 = vmul.f32 %v6094, 0.5
      %v6146 = vtanh.pop %v6098
      %v6147 = vtanh.pop %v6099
      %v6148 = vtanh.pop %v6100
      %v6149 = vtanh.pop %v6101
      %v6150 = vtanh.pop %v6102
      %v6151 = vtanh.pop %v6103
      %v6152 = vtanh.pop %v6104
      %v6153 = vtanh.pop %v6105
      %v6154 = vtanh.pop %v6106
      %v6155 = vtanh.pop %v6107
      %v6156 = vtanh.pop %v6108
      %v6157 = vtanh.pop %v6109
      %v6158 = vtanh.pop %v6110
      %v6159 = vtanh.pop %v6111
      %v6160 = vtanh.pop %v6112
      %v6161 = vtanh.pop %v6113
      %v6162 = vtanh.pop %v6114
      %v6163 = vtanh.pop %v6115
      %v6164 = vtanh.pop %v6116
      %v6165 = vtanh.pop %v6117
      %v6166 = vtanh.pop %v6118
      %v6167 = vtanh.pop %v6119
      %v6168 = vtanh.pop %v6120
      %v6169 = vtanh.pop %v6121
      %v6170 = vtanh.pop %v6122
      %v6171 = vtanh.pop %v6123
      %v6172 = vtanh.pop %v6124
      %v6173 = vtanh.pop %v6125
      %v6174 = vtanh.pop %v6126
      %v6175 = vtanh.pop %v6127
      %v6176 = vtanh.pop %v6128
      %v6177 = vtanh.pop %v6129
      %v6178 = vtanh.pop %v6130
      %v6179 = vtanh.pop %v6131
      %v6180 = vtanh.pop %v6132
      %v6181 = vtanh.pop %v6133
      %v6182 = vtanh.pop %v6134
      %v6183 = vtanh.pop %v6135
      %v6184 = vtanh.pop %v6136
      %v6185 = vtanh.pop %v6137
      %v6186 = vtanh.pop %v6138
      %v6187 = vtanh.pop %v6139
      %v6188 = vtanh.pop %v6140
      %v6189 = vtanh.pop %v6141
      %v6190 = vtanh.pop %v6142
      %v6191 = vtanh.pop %v6143
      %v6192 = vtanh.pop %v6144
      %v6193 = vtanh.pop %v6145
      %v6194 = vmul.f32 %v6098, %v6146
      %v6195 = vmul.f32 %v6099, %v6147
      %v6196 = vmul.f32 %v6100, %v6148
      %v6197 = vmul.f32 %v6101, %v6149
      %v6198 = vmul.f32 %v6102, %v6150
      %v6199 = vmul.f32 %v6103, %v6151
      %v6200 = vmul.f32 %v6104, %v6152
      %v6201 = vmul.f32 %v6105, %v6153
      %v6202 = vmul.f32 %v6106, %v6154
      %v6203 = vmul.f32 %v6107, %v6155
      %v6204 = vmul.f32 %v6108, %v6156
      %v6205 = vmul.f32 %v6109, %v6157
      %v6206 = vmul.f32 %v6110, %v6158
      %v6207 = vmul.f32 %v6111, %v6159
      %v6208 = vmul.f32 %v6112, %v6160
      %v6209 = vmul.f32 %v6113, %v6161
      %v6210 = vmul.f32 %v6114, %v6162
      %v6211 = vmul.f32 %v6115, %v6163
      %v6212 = vmul.f32 %v6116, %v6164
      %v6213 = vmul.f32 %v6117, %v6165
      %v6214 = vmul.f32 %v6118, %v6166
      %v6215 = vmul.f32 %v6119, %v6167
      %v6216 = vmul.f32 %v6120, %v6168
      %v6217 = vmul.f32 %v6121, %v6169
      %v6218 = vmul.f32 %v6122, %v6170
      %v6219 = vmul.f32 %v6123, %v6171
      %v6220 = vmul.f32 %v6124, %v6172
      %v6221 = vmul.f32 %v6125, %v6173
      %v6222 = vmul.f32 %v6126, %v6174
      %v6223 = vmul.f32 %v6127, %v6175
      %v6224 = vmul.f32 %v6128, %v6176
      %v6225 = vmul.f32 %v6129, %v6177
      %v6226 = vmul.f32 %v6130, %v6178
      %v6227 = vmul.f32 %v6131, %v6179
      %v6228 = vmul.f32 %v6132, %v6180
      %v6229 = vmul.f32 %v6133, %v6181
      %v6230 = vmul.f32 %v6134, %v6182
      %v6231 = vmul.f32 %v6135, %v6183
      %v6232 = vmul.f32 %v6136, %v6184
      %v6233 = vmul.f32 %v6137, %v6185
      %v6234 = vmul.f32 %v6138, %v6186
      %v6235 = vmul.f32 %v6139, %v6187
      %v6236 = vmul.f32 %v6140, %v6188
      %v6237 = vmul.f32 %v6141, %v6189
      %v6238 = vmul.f32 %v6142, %v6190
      %v6239 = vmul.f32 %v6143, %v6191
      %v6240 = vmul.f32 %v6144, %v6192
      %v6241 = vmul.f32 %v6145, %v6193
      %v6242 = vadd.f32 %v6194, %v6098
      %v6243 = vadd.f32 %v6195, %v6099
      %v6244 = vadd.f32 %v6196, %v6100
      %v6245 = vadd.f32 %v6197, %v6101
      %v6246 = vadd.f32 %v6198, %v6102
      %v6247 = vadd.f32 %v6199, %v6103
      %v6248 = vadd.f32 %v6200, %v6104
      %v6249 = vadd.f32 %v6201, %v6105
      %v6250 = vadd.f32 %v6202, %v6106
      %v6251 = vadd.f32 %v6203, %v6107
      %v6252 = vadd.f32 %v6204, %v6108
      %v6253 = vadd.f32 %v6205, %v6109
      %v6254 = vadd.f32 %v6206, %v6110
      %v6255 = vadd.f32 %v6207, %v6111
      %v6256 = vadd.f32 %v6208, %v6112
      %v6257 = vadd.f32 %v6209, %v6113
      %v6258 = vadd.f32 %v6210, %v6114
      %v6259 = vadd.f32 %v6211, %v6115
      %v6260 = vadd.f32 %v6212, %v6116
      %v6261 = vadd.f32 %v6213, %v6117
      %v6262 = vadd.f32 %v6214, %v6118
      %v6263 = vadd.f32 %v6215, %v6119
      %v6264 = vadd.f32 %v6216, %v6120
      %v6265 = vadd.f32 %v6217, %v6121
      %v6266 = vadd.f32 %v6218, %v6122
      %v6267 = vadd.f32 %v6219, %v6123
      %v6268 = vadd.f32 %v6220, %v6124
      %v6269 = vadd.f32 %v6221, %v6125
      %v6270 = vadd.f32 %v6222, %v6126
      %v6271 = vadd.f32 %v6223, %v6127
      %v6272 = vadd.f32 %v6224, %v6128
      %v6273 = vadd.f32 %v6225, %v6129
      %v6274 = vadd.f32 %v6226, %v6130
      %v6275 = vadd.f32 %v6227, %v6131
      %v6276 = vadd.f32 %v6228, %v6132
      %v6277 = vadd.f32 %v6229, %v6133
      %v6278 = vadd.f32 %v6230, %v6134
      %v6279 = vadd.f32 %v6231, %v6135
      %v6280 = vadd.f32 %v6232, %v6136
      %v6281 = vadd.f32 %v6233, %v6137
      %v6282 = vadd.f32 %v6234, %v6138
      %v6283 = vadd.f32 %v6235, %v6139
      %v6284 = vadd.f32 %v6236, %v6140
      %v6285 = vadd.f32 %v6237, %v6141
      %v6286 = vadd.f32 %v6238, %v6142
      %v6287 = vadd.f32 %v6239, %v6143
      %v6288 = vadd.f32 %v6240, %v6144
      %v6289 = vadd.f32 %v6241, %v6145
      %s6290 = scalar_lea.vmem %s3, 84
      %v6291 = vld [vmem:[%s6290] sm:$0xf]
      %v6292 = vld [vmem:[%s6290 + $0x4] sm:$0xf]
      %v6293 = vld [vmem:[%s6290 + $0x8] sm:$0x3]
      %v6294 = vpack.c.bf16 %v6258, %v6242
      %v6295 = vpack.c.bf16 %v6259, %v6243
      %v6296 = vpack.c.bf16 %v6260, %v6244
      %v6297 = vpack.c.bf16 %v6261, %v6245
      %v6298 = vpack.c.bf16 %v6262, %v6246
      %v6299 = vpack.c.bf16 %v6263, %v6247
      %v6300 = vpack.c.bf16 %v6264, %v6248
      %v6301 = vpack.c.bf16 %v6265, %v6249
      %v6302 = vpack.c.bf16 %v6266, %v6250
      %v6303 = vpack.c.bf16 %v6267, %v6251
      %v6304 = vpack.c.bf16 %v6268, %v6252
      %v6305 = vpack.c.bf16 %v6269, %v6253
      %v6306 = vpack.c.bf16 %v6270, %v6254
      %v6307 = vpack.c.bf16 %v6271, %v6255
      %v6308 = vpack.c.bf16 %v6272, %v6256
      %v6309 = vpack.c.bf16 %v6273, %v6257
      %v6310 = vpack.c.bf16 %v6274, %v6274
      %v6311 = vpack.c.bf16 %v6275, %v6275
      %v6312 = vpack.c.bf16 %v6276, %v6276
      %v6313 = vpack.c.bf16 %v6277, %v6277
      %v6314 = vpack.c.bf16 %v6278, %v6278
      %v6315 = vpack.c.bf16 %v6279, %v6279
      %v6316 = vpack.c.bf16 %v6280, %v6280
      %v6317 = vpack.c.bf16 %v6281, %v6281
      %v6318 = vpack.c.bf16 %v6282, %v6282
      %v6319 = vpack.c.bf16 %v6283, %v6283
      %v6320 = vpack.c.bf16 %v6284, %v6284
      %v6321 = vpack.c.bf16 %v6285, %v6285
      %v6322 = vpack.c.bf16 %v6286, %v6286
      %v6323 = vpack.c.bf16 %v6287, %v6287
      %v6324 = vpack.c.bf16 %v6288, %v6288
      %v6325 = vpack.c.bf16 %v6289, %v6289
      %s6326 = scalar_lea.vmem %s4, 168
      %v6327 = vld [vmem:[%s6326] sm:$0xff]
      %v6328 = vld [vmem:[%s6326 + $0x8] sm:$0xff]
      %v6329 = vld [vmem:[%s6326 + $0x10] sm:$0xf]
      %6331 = vset.pattern.permute.xlu0 0
      %6332 = vperm.xlu0 %6331, %v6327
      %v6333 = vpop.permute.xlu0 %6332
      %6336 = vset.pattern.permute.xlu0 0
      %6337 = vperm.xlu0 %6336, %v6328
      %v6338 = vpop.permute.xlu0 %6337
      %6341 = vset.pattern.permute.xlu0 0
      %6342 = vperm.xlu0 %6341, %v6329
      %v6343 = vpop.permute.xlu0 %6342
      %v6348 = vunpack.c.l.b16 %v6291
      %v6349 = vunpack.c.l.b16 %v6292
      %v6350 = vunpack.c.l.b16 %v6293
      %v6351 = vpack.c.b16 %v6349, %v6348
      %v6352 = vpack.c.b16 %v6350, %v6350
      %v6354 = vsel %vm1332, %v6351, 0
      %v6357 = vsel %vm1332, %v6352, 0
      %v6360 = vsel %vm1339, %v6310, 0
      %v6363 = vsel %vm1339, %v6311, 0
      %v6366 = vsel %vm1339, %v6312, 0
      %v6369 = vsel %vm1339, %v6313, 0
      %v6372 = vsel %vm1339, %v6314, 0
      %v6375 = vsel %vm1339, %v6315, 0
      %v6378 = vsel %vm1339, %v6316, 0
      %v6381 = vsel %vm1339, %v6317, 0
      %v6384 = vsel %vm1339, %v6318, 0
      %v6387 = vsel %vm1339, %v6319, 0
      %v6390 = vsel %vm1339, %v6320, 0
      %v6393 = vsel %vm1339, %v6321, 0
      %v6396 = vsel %vm1339, %v6322, 0
      %v6399 = vsel %vm1339, %v6323, 0
      %v6402 = vsel %vm1339, %v6324, 0
      %v6405 = vsel %vm1339, %v6325, 0
      %6407 = vmatprep.subr.bf16.mxu0 %v6295
      %6408 = vmatpush1.bf16.msra.mxu0 %v6294
      %6409 = vmatprep.subr.bf16.mxu0 %v6363
      %6410 = vmatpush1.bf16.msra.mxu0 %v6360
      %6411 = vmatprep.subr.bf16.mxu0 0
      %6412 = vmatpush1.bf16.msra.mxu0 0
      %6413 = vmatprep.subr.bf16.mxu0 0
      %6414 = vmatpush1.bf16.msra.mxu0 0
      %6415 = vmatprep.subr.bf16.mxu0 0
      %6416 = vmatpush1.bf16.msra.mxu0 0
      %6417 = vmatprep.subr.bf16.mxu0 0
      %6418 = vmatpush1.bf16.msra.mxu0 0
      %6419 = vmatprep.subr.bf16.mxu0 0
      %6420 = vmatpush1.bf16.msra.mxu0 0
      %6421 = vmatprep.subr.bf16.mxu0 0
      %6422 = vmatpush1.bf16.msra.mxu0 0
      %6423 = vmatprep.subr.bf16.mxu0 0
      %6424 = vmatpush1.bf16.msra.mxu0 0
      %6425 = vmatprep.subr.bf16.mxu0 0
      %6426 = vmatpush1.bf16.msra.mxu0 0
      %6427 = vmatprep.subr.bf16.mxu0 0
      %6428 = vmatpush1.bf16.msra.mxu0 0
      %6429 = vmatprep.subr.bf16.mxu0 0
      %6430 = vmatpush1.bf16.msra.mxu0 0
      %6431 = vmatprep.subr.bf16.mxu0 0
      %6432 = vmatpush1.bf16.msra.mxu0 0
      %6433 = vmatprep.subr.bf16.mxu0 0
      %6434 = vmatpush1.bf16.msra.mxu0 0
      %6435 = vmatprep.subr.bf16.mxu0 0
      %6436 = vmatpush1.bf16.msra.mxu0 0
      %6437 = vmatprep.subr.bf16.mxu0 0
      %6438 = vmatpush1.bf16.msra.mxu0 0
      %6439 = vmatprep.mubr.bf16.mxu0 0
      %6440 = vmatmul.mubr.bf16.gmra.mrb[0].mxu0 %v6354
      %v6441 = vpop.f32.mrb[0].mxu0
      %v6442 = vadd.f32 %v6333, %v6441
      %v6443 = vpop.f32.mrb[0].mxu0
      %v6444 = vadd.f32 %v6333, %v6443
      %v6445 = vpop.f32.mrb[0].mxu0
      %v6446 = vadd.f32 %v6338, %v6445
      %v6447 = vpop.f32.mrb[0].mxu0
      %v6448 = vadd.f32 %v6338, %v6447
      %6449 = vmatprep.mubr.bf16.mxu0 0
      %6450 = vmatmul.mubr.bf16.gmra.mrb[0].mxu0 %v6357
      %v6451 = vpop.f32.mrb[0].mxu0
      %v6452 = vadd.f32 %v6343, %v6451
      %v6453 = vpop.f32.mrb[0].mxu0
      %v6454 = vadd.f32 %v6343, %v6453
      %v6455 = vpop.f32.mrb[0].mxu0
      %v6456 = vpop.f32.mrb[0].mxu0
      %6457 = vdwg.mxu0
      %6458 = vmatprep.subr.bf16.mxu0 %v6297
      %6459 = vmatpush1.bf16.msra.mxu0 %v6296
      %6460 = vmatprep.subr.bf16.mxu0 %v6369
      %6461 = vmatpush1.bf16.msra.mxu0 %v6366
      %6462 = vmatprep.subr.bf16.mxu0 0
      %6463 = vmatpush1.bf16.msra.mxu0 0
      %6464 = vmatprep.subr.bf16.mxu0 0
      %6465 = vmatpush1.bf16.msra.mxu0 0
      %6466 = vmatprep.subr.bf16.mxu0 0
      %6467 = vmatpush1.bf16.msra.mxu0 0
      %6468 = vmatprep.subr.bf16.mxu0 0
      %6469 = vmatpush1.bf16.msra.mxu0 0
      %6470 = vmatprep.subr.bf16.mxu0 0
      %6471 = vmatpush1.bf16.msra.mxu0 0
      %6472 = vmatprep.subr.bf16.mxu0 0
      %6473 = vmatpush1.bf16.msra.mxu0 0
      %6474 = vmatprep.subr.bf16.mxu0 0
      %6475 = vmatpush1.bf16.msra.mxu0 0
      %6476 = vmatprep.subr.bf16.mxu0 0
      %6477 = vmatpush1.bf16.msra.mxu0 0
      %6478 = vmatprep.subr.bf16.mxu0 0
      %6479 = vmatpush1.bf16.msra.mxu0 0
      %6480 = vmatprep.subr.bf16.mxu0 0
      %6481 = vmatpush1.bf16.msra.mxu0 0
      %6482 = vmatprep.subr.bf16.mxu0 0
      %6483 = vmatpush1.bf16.msra.mxu0 0
      %6484 = vmatprep.subr.bf16.mxu0 0
      %6485 = vmatpush1.bf16.msra.mxu0 0
      %6486 = vmatprep.subr.bf16.mxu0 0
      %6487 = vmatpush1.bf16.msra.mxu0 0
      %6488 = vmatprep.subr.bf16.mxu0 0
      %6489 = vmatpush1.bf16.msra.mxu0 0
      %6490 = vmatprep.mubr.bf16.mxu0 0
      %6491 = vmatmul.mubr.bf16.gmra.mrb[0].mxu0 %v6354
      %v6492 = vpop.f32.mrb[0].mxu0
      %v6493 = vadd.f32 %v6333, %v6492
      %v6494 = vpop.f32.mrb[0].mxu0
      %v6495 = vadd.f32 %v6333, %v6494
      %v6496 = vpop.f32.mrb[0].mxu0
      %v6497 = vadd.f32 %v6338, %v6496
      %v6498 = vpop.f32.mrb[0].mxu0
      %v6499 = vadd.f32 %v6338, %v6498
      %6500 = vmatprep.mubr.bf16.mxu0 0
      %6501 = vmatmul.mubr.bf16.gmra.mrb[0].mxu0 %v6357
      %v6502 = vpop.f32.mrb[0].mxu0
      %v6503 = vadd.f32 %v6343, %v6502
      %v6504 = vpop.f32.mrb[0].mxu0
      %v6505 = vadd.f32 %v6343, %v6504
      %v6506 = vpop.f32.mrb[0].mxu0
      %v6507 = vpop.f32.mrb[0].mxu0
      %6508 = vdwg.mxu0
      %6509 = vmatprep.subr.bf16.mxu0 %v6299
      %6510 = vmatpush1.bf16.msra.mxu0 %v6298
      %6511 = vmatprep.subr.bf16.mxu0 %v6375
      %6512 = vmatpush1.bf16.msra.mxu0 %v6372
      %6513 = vmatprep.subr.bf16.mxu0 0
      %6514 = vmatpush1.bf16.msra.mxu0 0
      %6515 = vmatprep.subr.bf16.mxu0 0
      %6516 = vmatpush1.bf16.msra.mxu0 0
      %6517 = vmatprep.subr.bf16.mxu0 0
      %6518 = vmatpush1.bf16.msra.mxu0 0
      %6519 = vmatprep.subr.bf16.mxu0 0
      %6520 = vmatpush1.bf16.msra.mxu0 0
      %6521 = vmatprep.subr.bf16.mxu0 0
      %6522 = vmatpush1.bf16.msra.mxu0 0
      %6523 = vmatprep.subr.bf16.mxu0 0
      %6524 = vmatpush1.bf16.msra.mxu0 0
      %6525 = vmatprep.subr.bf16.mxu0 0
      %6526 = vmatpush1.bf16.msra.mxu0 0
      %6527 = vmatprep.subr.bf16.mxu0 0
      %6528 = vmatpush1.bf16.msra.mxu0 0
      %6529 = vmatprep.subr.bf16.mxu0 0
      %6530 = vmatpush1.bf16.msra.mxu0 0
      %6531 = vmatprep.subr.bf16.mxu0 0
      %6532 = vmatpush1.bf16.msra.mxu0 0
      %6533 = vmatprep.subr.bf16.mxu0 0
      %6534 = vmatpush1.bf16.msra.mxu0 0
      %6535 = vmatprep.subr.bf16.mxu0 0
      %6536 = vmatpush1.bf16.msra.mxu0 0
      %6537 = vmatprep.subr.bf16.mxu0 0
      %6538 = vmatpush1.bf16.msra.mxu0 0
      %6539 = vmatprep.subr.bf16.mxu0 0
      %6540 = vmatpush1.bf16.msra.mxu0 0
      %6541 = vmatprep.mubr.bf16.mxu0 0
      %6542 = vmatmul.mubr.bf16.gmra.mrb[0].mxu0 %v6354
      %v6543 = vpop.f32.mrb[0].mxu0
      %v6544 = vadd.f32 %v6333, %v6543
      %v6545 = vpop.f32.mrb[0].mxu0
      %v6546 = vadd.f32 %v6333, %v6545
      %v6547 = vpop.f32.mrb[0].mxu0
      %v6548 = vadd.f32 %v6338, %v6547
      %v6549 = vpop.f32.mrb[0].mxu0
      %v6550 = vadd.f32 %v6338, %v6549
      %6551 = vmatprep.mubr.bf16.mxu0 0
      %6552 = vmatmul.mubr.bf16.gmra.mrb[0].mxu0 %v6357
      %v6553 = vpop.f32.mrb[0].mxu0
      %v6554 = vadd.f32 %v6343, %v6553
      %v6555 = vpop.f32.mrb[0].mxu0
      %v6556 = vadd.f32 %v6343, %v6555
      %v6557 = vpop.f32.mrb[0].mxu0
      %v6558 = vpop.f32.mrb[0].mxu0
      %6559 = vdwg.mxu0
      %6560 = vmatprep.subr.bf16.mxu0 %v6301
      %6561 = vmatpush1.bf16.msra.mxu0 %v6300
      %6562 = vmatprep.subr.bf16.mxu0 %v6381
      %6563 = vmatpush1.bf16.msra.mxu0 %v6378
      %6564 = vmatprep.subr.bf16.mxu0 0
      %6565 = vmatpush1.bf16.msra.mxu0 0
      %6566 = vmatprep.subr.bf16.mxu0 0
      %6567 = vmatpush1.bf16.msra.mxu0 0
      %6568 = vmatprep.subr.bf16.mxu0 0
      %6569 = vmatpush1.bf16.msra.mxu0 0
      %6570 = vmatprep.subr.bf16.mxu0 0
      %6571 = vmatpush1.bf16.msra.mxu0 0
      %6572 = vmatprep.subr.bf16.mxu0 0
      %6573 = vmatpush1.bf16.msra.mxu0 0
      %6574 = vmatprep.subr.bf16.mxu0 0
      %6575 = vmatpush1.bf16.msra.mxu0 0
      %6576 = vmatprep.subr.bf16.mxu0 0
      %6577 = vmatpush1.bf16.msra.mxu0 0
      %6578 = vmatprep.subr.bf16.mxu0 0
      %6579 = vmatpush1.bf16.msra.mxu0 0
      %6580 = vmatprep.subr.bf16.mxu0 0
      %6581 = vmatpush1.bf16.msra.mxu0 0
      %6582 = vmatprep.subr.bf16.mxu0 0
      %6583 = vmatpush1.bf16.msra.mxu0 0
      %6584 = vmatprep.subr.bf16.mxu0 0
      %6585 = vmatpush1.bf16.msra.mxu0 0
      %6586 = vmatprep.subr.bf16.mxu0 0
      %6587 = vmatpush1.bf16.msra.mxu0 0
      %6588 = vmatprep.subr.bf16.mxu0 0
      %6589 = vmatpush1.bf16.msra.mxu0 0
      %6590 = vmatprep.subr.bf16.mxu0 0
      %6591 = vmatpush1.bf16.msra.mxu0 0
      %6592 = vmatprep.mubr.bf16.mxu0 0
      %6593 = vmatmul.mubr.bf16.gmra.mrb[0].mxu0 %v6354
      %v6594 = vpop.f32.mrb[0].mxu0
      %v6595 = vadd.f32 %v6333, %v6594
      %v6596 = vpop.f32.mrb[0].mxu0
      %v6597 = vadd.f32 %v6333, %v6596
      %v6598 = vpop.f32.mrb[0].mxu0
      %v6599 = vadd.f32 %v6338, %v6598
      %v6600 = vpop.f32.mrb[0].mxu0
      %v6601 = vadd.f32 %v6338, %v6600
      %6602 = vmatprep.mubr.bf16.mxu0 0
      %6603 = vmatmul.mubr.bf16.gmra.mrb[0].mxu0 %v6357
      %v6604 = vpop.f32.mrb[0].mxu0
      %v6605 = vadd.f32 %v6343, %v6604
      %v6606 = vpop.f32.mrb[0].mxu0
      %v6607 = vadd.f32 %v6343, %v6606
      %v6608 = vpop.f32.mrb[0].mxu0
      %v6609 = vpop.f32.mrb[0].mxu0
      %6610 = vdwg.mxu0
      %6611 = vmatprep.subr.bf16.mxu0 %v6303
      %6612 = vmatpush1.bf16.msra.mxu0 %v6302
      %6613 = vmatprep.subr.bf16.mxu0 %v6387
      %6614 = vmatpush1.bf16.msra.mxu0 %v6384
      %6615 = vmatprep.subr.bf16.mxu0 0
      %6616 = vmatpush1.bf16.msra.mxu0 0
      %6617 = vmatprep.subr.bf16.mxu0 0
      %6618 = vmatpush1.bf16.msra.mxu0 0
      %6619 = vmatprep.subr.bf16.mxu0 0
      %6620 = vmatpush1.bf16.msra.mxu0 0
      %6621 = vmatprep.subr.bf16.mxu0 0
      %6622 = vmatpush1.bf16.msra.mxu0 0
      %6623 = vmatprep.subr.bf16.mxu0 0
      %6624 = vmatpush1.bf16.msra.mxu0 0
      %6625 = vmatprep.subr.bf16.mxu0 0
      %6626 = vmatpush1.bf16.msra.mxu0 0
      %6627 = vmatprep.subr.bf16.mxu0 0
      %6628 = vmatpush1.bf16.msra.mxu0 0
      %6629 = vmatprep.subr.bf16.mxu0 0
      %6630 = vmatpush1.bf16.msra.mxu0 0
      %6631 = vmatprep.subr.bf16.mxu0 0
      %6632 = vmatpush1.bf16.msra.mxu0 0
      %6633 = vmatprep.subr.bf16.mxu0 0
      %6634 = vmatpush1.bf16.msra.mxu0 0
      %6635 = vmatprep.subr.bf16.mxu0 0
      %6636 = vmatpush1.bf16.msra.mxu0 0
      %6637 = vmatprep.subr.bf16.mxu0 0
      %6638 = vmatpush1.bf16.msra.mxu0 0
      %6639 = vmatprep.subr.bf16.mxu0 0
      %6640 = vmatpush1.bf16.msra.mxu0 0
      %6641 = vmatprep.subr.bf16.mxu0 0
      %6642 = vmatpush1.bf16.msra.mxu0 0
      %6643 = vmatprep.mubr.bf16.mxu0 0
      %6644 = vmatmul.mubr.bf16.gmra.mrb[0].mxu0 %v6354
      %v6645 = vpop.f32.mrb[0].mxu0
      %v6646 = vadd.f32 %v6333, %v6645
      %v6647 = vpop.f32.mrb[0].mxu0
      %v6648 = vadd.f32 %v6333, %v6647
      %v6649 = vpop.f32.mrb[0].mxu0
      %v6650 = vadd.f32 %v6338, %v6649
      %v6651 = vpop.f32.mrb[0].mxu0
      %v6652 = vadd.f32 %v6338, %v6651
      %6653 = vmatprep.mubr.bf16.mxu0 0
      %6654 = vmatmul.mubr.bf16.gmra.mrb[0].mxu0 %v6357
      %v6655 = vpop.f32.mrb[0].mxu0
      %v6656 = vadd.f32 %v6343, %v6655
      %v6657 = vpop.f32.mrb[0].mxu0
      %v6658 = vadd.f32 %v6343, %v6657
      %v6659 = vpop.f32.mrb[0].mxu0
      %v6660 = vpop.f32.mrb[0].mxu0
      %6661 = vdwg.mxu0
      %6662 = vmatprep.subr.bf16.mxu0 %v6305
      %6663 = vmatpush1.bf16.msra.mxu0 %v6304
      %6664 = vmatprep.subr.bf16.mxu0 %v6393
      %6665 = vmatpush1.bf16.msra.mxu0 %v6390
      %6666 = vmatprep.subr.bf16.mxu0 0
      %6667 = vmatpush1.bf16.msra.mxu0 0
      %6668 = vmatprep.subr.bf16.mxu0 0
      %6669 = vmatpush1.bf16.msra.mxu0 0
      %6670 = vmatprep.subr.bf16.mxu0 0
      %6671 = vmatpush1.bf16.msra.mxu0 0
      %6672 = vmatprep.subr.bf16.mxu0 0
      %6673 = vmatpush1.bf16.msra.mxu0 0
      %6674 = vmatprep.subr.bf16.mxu0 0
      %6675 = vmatpush1.bf16.msra.mxu0 0
      %6676 = vmatprep.subr.bf16.mxu0 0
      %6677 = vmatpush1.bf16.msra.mxu0 0
      %6678 = vmatprep.subr.bf16.mxu0 0
      %6679 = vmatpush1.bf16.msra.mxu0 0
      %6680 = vmatprep.subr.bf16.mxu0 0
      %6681 = vmatpush1.bf16.msra.mxu0 0
      %6682 = vmatprep.subr.bf16.mxu0 0
      %6683 = vmatpush1.bf16.msra.mxu0 0
      %6684 = vmatprep.subr.bf16.mxu0 0
      %6685 = vmatpush1.bf16.msra.mxu0 0
      %6686 = vmatprep.subr.bf16.mxu0 0
      %6687 = vmatpush1.bf16.msra.mxu0 0
      %6688 = vmatprep.subr.bf16.mxu0 0
      %6689 = vmatpush1.bf16.msra.mxu0 0
      %6690 = vmatprep.subr.bf16.mxu0 0
      %6691 = vmatpush1.bf16.msra.mxu0 0
      %6692 = vmatprep.subr.bf16.mxu0 0
      %6693 = vmatpush1.bf16.msra.mxu0 0
      %6694 = vmatprep.mubr.bf16.mxu0 0
      %6695 = vmatmul.mubr.bf16.gmra.mrb[0].mxu0 %v6354
      %v6696 = vpop.f32.mrb[0].mxu0
      %v6697 = vadd.f32 %v6333, %v6696
      %v6698 = vpop.f32.mrb[0].mxu0
      %v6699 = vadd.f32 %v6333, %v6698
      %v6700 = vpop.f32.mrb[0].mxu0
      %v6701 = vadd.f32 %v6338, %v6700
      %v6702 = vpop.f32.mrb[0].mxu0
      %v6703 = vadd.f32 %v6338, %v6702
      %6704 = vmatprep.mubr.bf16.mxu0 0
      %6705 = vmatmul.mubr.bf16.gmra.mrb[0].mxu0 %v6357
      %v6706 = vpop.f32.mrb[0].mxu0
      %v6707 = vadd.f32 %v6343, %v6706
      %v6708 = vpop.f32.mrb[0].mxu0
      %v6709 = vadd.f32 %v6343, %v6708
      %v6710 = vpop.f32.mrb[0].mxu0
      %v6711 = vpop.f32.mrb[0].mxu0
      %6712 = vdwg.mxu0
      %6713 = vmatprep.subr.bf16.mxu0 %v6307
      %6714 = vmatpush1.bf16.msra.mxu0 %v6306
      %6715 = vmatprep.subr.bf16.mxu0 %v6399
      %6716 = vmatpush1.bf16.msra.mxu0 %v6396
      %6717 = vmatprep.subr.bf16.mxu0 0
      %6718 = vmatpush1.bf16.msra.mxu0 0
      %6719 = vmatprep.subr.bf16.mxu0 0
      %6720 = vmatpush1.bf16.msra.mxu0 0
      %6721 = vmatprep.subr.bf16.mxu0 0
      %6722 = vmatpush1.bf16.msra.mxu0 0
      %6723 = vmatprep.subr.bf16.mxu0 0
      %6724 = vmatpush1.bf16.msra.mxu0 0
      %6725 = vmatprep.subr.bf16.mxu0 0
      %6726 = vmatpush1.bf16.msra.mxu0 0
      %6727 = vmatprep.subr.bf16.mxu0 0
      %6728 = vmatpush1.bf16.msra.mxu0 0
      %6729 = vmatprep.subr.bf16.mxu0 0
      %6730 = vmatpush1.bf16.msra.mxu0 0
      %6731 = vmatprep.subr.bf16.mxu0 0
      %6732 = vmatpush1.bf16.msra.mxu0 0
      %6733 = vmatprep.subr.bf16.mxu0 0
      %6734 = vmatpush1.bf16.msra.mxu0 0
      %6735 = vmatprep.subr.bf16.mxu0 0
      %6736 = vmatpush1.bf16.msra.mxu0 0
      %6737 = vmatprep.subr.bf16.mxu0 0
      %6738 = vmatpush1.bf16.msra.mxu0 0
      %6739 = vmatprep.subr.bf16.mxu0 0
      %6740 = vmatpush1.bf16.msra.mxu0 0
      %6741 = vmatprep.subr.bf16.mxu0 0
      %6742 = vmatpush1.bf16.msra.mxu0 0
      %6743 = vmatprep.subr.bf16.mxu0 0
      %6744 = vmatpush1.bf16.msra.mxu0 0
      %6745 = vmatprep.mubr.bf16.mxu0 0
      %6746 = vmatmul.mubr.bf16.gmra.mrb[0].mxu0 %v6354
      %v6747 = vpop.f32.mrb[0].mxu0
      %v6748 = vadd.f32 %v6333, %v6747
      %v6749 = vpop.f32.mrb[0].mxu0
      %v6750 = vadd.f32 %v6333, %v6749
      %v6751 = vpop.f32.mrb[0].mxu0
      %v6752 = vadd.f32 %v6338, %v6751
      %v6753 = vpop.f32.mrb[0].mxu0
      %v6754 = vadd.f32 %v6338, %v6753
      %6755 = vmatprep.mubr.bf16.mxu0 0
      %6756 = vmatmul.mubr.bf16.gmra.mrb[0].mxu0 %v6357
      %v6757 = vpop.f32.mrb[0].mxu0
      %v6758 = vadd.f32 %v6343, %v6757
      %v6759 = vpop.f32.mrb[0].mxu0
      %v6760 = vadd.f32 %v6343, %v6759
      %v6761 = vpop.f32.mrb[0].mxu0
      %v6762 = vpop.f32.mrb[0].mxu0
      %6763 = vdwg.mxu0
      %6764 = vmatprep.subr.bf16.mxu0 %v6309
      %6765 = vmatpush1.bf16.msra.mxu0 %v6308
      %6766 = vmatprep.subr.bf16.mxu0 %v6405
      %6767 = vmatpush1.bf16.msra.mxu0 %v6402
      %6768 = vmatprep.subr.bf16.mxu0 0
      %6769 = vmatpush1.bf16.msra.mxu0 0
      %6770 = vmatprep.subr.bf16.mxu0 0
      %6771 = vmatpush1.bf16.msra.mxu0 0
      %6772 = vmatprep.subr.bf16.mxu0 0
      %6773 = vmatpush1.bf16.msra.mxu0 0
      %6774 = vmatprep.subr.bf16.mxu0 0
      %6775 = vmatpush1.bf16.msra.mxu0 0
      %6776 = vmatprep.subr.bf16.mxu0 0
      %6777 = vmatpush1.bf16.msra.mxu0 0
      %6778 = vmatprep.subr.bf16.mxu0 0
      %6779 = vmatpush1.bf16.msra.mxu0 0
      %6780 = vmatprep.subr.bf16.mxu0 0
      %6781 = vmatpush1.bf16.msra.mxu0 0
      %6782 = vmatprep.subr.bf16.mxu0 0
      %6783 = vmatpush1.bf16.msra.mxu0 0
      %6784 = vmatprep.subr.bf16.mxu0 0
      %6785 = vmatpush1.bf16.msra.mxu0 0
      %6786 = vmatprep.subr.bf16.mxu0 0
      %6787 = vmatpush1.bf16.msra.mxu0 0
      %6788 = vmatprep.subr.bf16.mxu0 0
      %6789 = vmatpush1.bf16.msra.mxu0 0
      %6790 = vmatprep.subr.bf16.mxu0 0
      %6791 = vmatpush1.bf16.msra.mxu0 0
      %6792 = vmatprep.subr.bf16.mxu0 0
      %6793 = vmatpush1.bf16.msra.mxu0 0
      %6794 = vmatprep.subr.bf16.mxu0 0
      %6795 = vmatpush1.bf16.msra.mxu0 0
      %6796 = vmatprep.mubr.bf16.mxu0 0
      %6797 = vmatmul.mubr.bf16.gmra.mrb[0].mxu0 %v6354
      %v6798 = vpop.f32.mrb[0].mxu0
      %v6799 = vadd.f32 %v6333, %v6798
      %v6800 = vpop.f32.mrb[0].mxu0
      %v6801 = vadd.f32 %v6333, %v6800
      %v6802 = vpop.f32.mrb[0].mxu0
      %v6803 = vadd.f32 %v6338, %v6802
      %v6804 = vpop.f32.mrb[0].mxu0
      %v6805 = vadd.f32 %v6338, %v6804
      %6806 = vmatprep.mubr.bf16.mxu0 0
      %6807 = vmatmul.mubr.bf16.gmra.mrb[0].mxu0 %v6357
      %v6808 = vpop.f32.mrb[0].mxu0
      %v6809 = vadd.f32 %v6343, %v6808
      %v6810 = vpop.f32.mrb[0].mxu0
      %v6811 = vadd.f32 %v6343, %v6810
      %v6812 = vpop.f32.mrb[0].mxu0
      %v6813 = vpop.f32.mrb[0].mxu0
      %6814 = vdwg.mxu0
      %v6815 = vmul.f32 %v6442, 0.5
      %v6816 = vmul.f32 %v6444, 0.5
      %v6817 = vmul.f32 %v6493, 0.5
      %v6818 = vmul.f32 %v6495, 0.5
      %v6819 = vmul.f32 %v6544, 0.5
      %v6820 = vmul.f32 %v6546, 0.5
      %v6821 = vmul.f32 %v6595, 0.5
      %v6822 = vmul.f32 %v6597, 0.5
      %v6823 = vmul.f32 %v6646, 0.5
      %v6824 = vmul.f32 %v6648, 0.5
      %v6825 = vmul.f32 %v6697, 0.5
      %v6826 = vmul.f32 %v6699, 0.5
      %v6827 = vmul.f32 %v6748, 0.5
      %v6828 = vmul.f32 %v6750, 0.5
      %v6829 = vmul.f32 %v6799, 0.5
      %v6830 = vmul.f32 %v6801, 0.5
      %v6831 = vmul.f32 %v6446, 0.5
      %v6832 = vmul.f32 %v6448, 0.5
      %v6833 = vmul.f32 %v6497, 0.5
      %v6834 = vmul.f32 %v6499, 0.5
      %v6835 = vmul.f32 %v6548, 0.5
      %v6836 = vmul.f32 %v6550, 0.5
      %v6837 = vmul.f32 %v6599, 0.5
      %v6838 = vmul.f32 %v6601, 0.5
      %v6839 = vmul.f32 %v6650, 0.5
      %v6840 = vmul.f32 %v6652, 0.5
      %v6841 = vmul.f32 %v6701, 0.5
      %v6842 = vmul.f32 %v6703, 0.5
      %v6843 = vmul.f32 %v6752, 0.5
      %v6844 = vmul.f32 %v6754, 0.5
      %v6845 = vmul.f32 %v6803, 0.5
      %v6846 = vmul.f32 %v6805, 0.5
      %v6847 = vmul.f32 %v6452, 0.5
      %v6848 = vmul.f32 %v6454, 0.5
      %v6849 = vmul.f32 %v6503, 0.5
      %v6850 = vmul.f32 %v6505, 0.5
      %v6851 = vmul.f32 %v6554, 0.5
      %v6852 = vmul.f32 %v6556, 0.5
      %v6853 = vmul.f32 %v6605, 0.5
      %v6854 = vmul.f32 %v6607, 0.5
      %v6855 = vmul.f32 %v6656, 0.5
      %v6856 = vmul.f32 %v6658, 0.5
      %v6857 = vmul.f32 %v6707, 0.5
      %v6858 = vmul.f32 %v6709, 0.5
      %v6859 = vmul.f32 %v6758, 0.5
      %v6860 = vmul.f32 %v6760, 0.5
      %v6861 = vmul.f32 %v6809, 0.5
      %v6862 = vmul.f32 %v6811, 0.5
      %v6863 = vtanh.pop %v6815
      %v6864 = vtanh.pop %v6816
      %v6865 = vtanh.pop %v6817
      %v6866 = vtanh.pop %v6818
      %v6867 = vtanh.pop %v6819
      %v6868 = vtanh.pop %v6820
      %v6869 = vtanh.pop %v6821
      %v6870 = vtanh.pop %v6822
      %v6871 = vtanh.pop %v6823
      %v6872 = vtanh.pop %v6824
      %v6873 = vtanh.pop %v6825
      %v6874 = vtanh.pop %v6826
      %v6875 = vtanh.pop %v6827
      %v6876 = vtanh.pop %v6828
      %v6877 = vtanh.pop %v6829
      %v6878 = vtanh.pop %v6830
      %v6879 = vtanh.pop %v6831
      %v6880 = vtanh.pop %v6832
      %v6881 = vtanh.pop %v6833
      %v6882 = vtanh.pop %v6834
      %v6883 = vtanh.pop %v6835
      %v6884 = vtanh.pop %v6836
      %v6885 = vtanh.pop %v6837
      %v6886 = vtanh.pop %v6838
      %v6887 = vtanh.pop %v6839
      %v6888 = vtanh.pop %v6840
      %v6889 = vtanh.pop %v6841
      %v6890 = vtanh.pop %v6842
      %v6891 = vtanh.pop %v6843
      %v6892 = vtanh.pop %v6844
      %v6893 = vtanh.pop %v6845
      %v6894 = vtanh.pop %v6846
      %v6895 = vtanh.pop %v6847
      %v6896 = vtanh.pop %v6848
      %v6897 = vtanh.pop %v6849
      %v6898 = vtanh.pop %v6850
      %v6899 = vtanh.pop %v6851
      %v6900 = vtanh.pop %v6852
      %v6901 = vtanh.pop %v6853
      %v6902 = vtanh.pop %v6854
      %v6903 = vtanh.pop %v6855
      %v6904 = vtanh.pop %v6856
      %v6905 = vtanh.pop %v6857
      %v6906 = vtanh.pop %v6858
      %v6907 = vtanh.pop %v6859
      %v6908 = vtanh.pop %v6860
      %v6909 = vtanh.pop %v6861
      %v6910 = vtanh.pop %v6862
      %v6911 = vmul.f32 %v6815, %v6863
      %v6912 = vmul.f32 %v6816, %v6864
      %v6913 = vmul.f32 %v6817, %v6865
      %v6914 = vmul.f32 %v6818, %v6866
      %v6915 = vmul.f32 %v6819, %v6867
      %v6916 = vmul.f32 %v6820, %v6868
      %v6917 = vmul.f32 %v6821, %v6869
      %v6918 = vmul.f32 %v6822, %v6870
      %v6919 = vmul.f32 %v6823, %v6871
      %v6920 = vmul.f32 %v6824, %v6872
      %v6921 = vmul.f32 %v6825, %v6873
      %v6922 = vmul.f32 %v6826, %v6874
      %v6923 = vmul.f32 %v6827, %v6875
      %v6924 = vmul.f32 %v6828, %v6876
      %v6925 = vmul.f32 %v6829, %v6877
      %v6926 = vmul.f32 %v6830, %v6878
      %v6927 = vmul.f32 %v6831, %v6879
      %v6928 = vmul.f32 %v6832, %v6880
      %v6929 = vmul.f32 %v6833, %v6881
      %v6930 = vmul.f32 %v6834, %v6882
      %v6931 = vmul.f32 %v6835, %v6883
      %v6932 = vmul.f32 %v6836, %v6884
      %v6933 = vmul.f32 %v6837, %v6885
      %v6934 = vmul.f32 %v6838, %v6886
      %v6935 = vmul.f32 %v6839, %v6887
      %v6936 = vmul.f32 %v6840, %v6888
      %v6937 = vmul.f32 %v6841, %v6889
      %v6938 = vmul.f32 %v6842, %v6890
      %v6939 = vmul.f32 %v6843, %v6891
      %v6940 = vmul.f32 %v6844, %v6892
      %v6941 = vmul.f32 %v6845, %v6893
      %v6942 = vmul.f32 %v6846, %v6894
      %v6943 = vmul.f32 %v6847, %v6895
      %v6944 = vmul.f32 %v6848, %v6896
      %v6945 = vmul.f32 %v6849, %v6897
      %v6946 = vmul.f32 %v6850, %v6898
      %v6947 = vmul.f32 %v6851, %v6899
      %v6948 = vmul.f32 %v6852, %v6900
      %v6949 = vmul.f32 %v6853, %v6901
      %v6950 = vmul.f32 %v6854, %v6902
      %v6951 = vmul.f32 %v6855, %v6903
      %v6952 = vmul.f32 %v6856, %v6904
      %v6953 = vmul.f32 %v6857, %v6905
      %v6954 = vmul.f32 %v6858, %v6906
      %v6955 = vmul.f32 %v6859, %v6907
      %v6956 = vmul.f32 %v6860, %v6908
      %v6957 = vmul.f32 %v6861, %v6909
      %v6958 = vmul.f32 %v6862, %v6910
      %v6959 = vadd.f32 %v6911, %v6815
      %v6960 = vadd.f32 %v6912, %v6816
      %v6961 = vadd.f32 %v6913, %v6817
      %v6962 = vadd.f32 %v6914, %v6818
      %v6963 = vadd.f32 %v6915, %v6819
      %v6964 = vadd.f32 %v6916, %v6820
      %v6965 = vadd.f32 %v6917, %v6821
      %v6966 = vadd.f32 %v6918, %v6822
      %v6967 = vadd.f32 %v6919, %v6823
      %v6968 = vadd.f32 %v6920, %v6824
      %v6969 = vadd.f32 %v6921, %v6825
      %v6970 = vadd.f32 %v6922, %v6826
      %v6971 = vadd.f32 %v6923, %v6827
      %v6972 = vadd.f32 %v6924, %v6828
      %v6973 = vadd.f32 %v6925, %v6829
      %v6974 = vadd.f32 %v6926, %v6830
      %v6975 = vadd.f32 %v6927, %v6831
      %v6976 = vadd.f32 %v6928, %v6832
      %v6977 = vadd.f32 %v6929, %v6833
      %v6978 = vadd.f32 %v6930, %v6834
      %v6979 = vadd.f32 %v6931, %v6835
      %v6980 = vadd.f32 %v6932, %v6836
      %v6981 = vadd.f32 %v6933, %v6837
      %v6982 = vadd.f32 %v6934, %v6838
      %v6983 = vadd.f32 %v6935, %v6839
      %v6984 = vadd.f32 %v6936, %v6840
      %v6985 = vadd.f32 %v6937, %v6841
      %v6986 = vadd.f32 %v6938, %v6842
      %v6987 = vadd.f32 %v6939, %v6843
      %v6988 = vadd.f32 %v6940, %v6844
      %v6989 = vadd.f32 %v6941, %v6845
      %v6990 = vadd.f32 %v6942, %v6846
      %v6991 = vadd.f32 %v6943, %v6847
      %v6992 = vadd.f32 %v6944, %v6848
      %v6993 = vadd.f32 %v6945, %v6849
      %v6994 = vadd.f32 %v6946, %v6850
      %v6995 = vadd.f32 %v6947, %v6851
      %v6996 = vadd.f32 %v6948, %v6852
      %v6997 = vadd.f32 %v6949, %v6853
      %v6998 = vadd.f32 %v6950, %v6854
      %v6999 = vadd.f32 %v6951, %v6855
      %v7000 = vadd.f32 %v6952, %v6856
      %v7001 = vadd.f32 %v6953, %v6857
      %v7002 = vadd.f32 %v6954, %v6858
      %v7003 = vadd.f32 %v6955, %v6859
      %v7004 = vadd.f32 %v6956, %v6860
      %v7005 = vadd.f32 %v6957, %v6861
      %v7006 = vadd.f32 %v6958, %v6862
      %v7007 = vld [vmem:[%s5] sm:$0xff]
      %v7008 = vld [vmem:[%s5 + $0x8] sm:$0xff]
      %v7009 = vld [vmem:[%s5 + $0x10] sm:$0xf]
      %7011 = vset.pattern.permute.xlu0 0
      %7012 = vperm.xlu0 %7011, %v7007
      %v7013 = vpop.permute.xlu0 %7012
      %7016 = vset.pattern.permute.xlu0 0
      %7017 = vperm.xlu0 %7016, %v7008
      %v7018 = vpop.permute.xlu0 %7017
      %7021 = vset.pattern.permute.xlu0 0
      %7022 = vperm.xlu0 %7021, %v7009
      %v7023 = vpop.permute.xlu0 %7022
      %v7025 = vmul.f32 %v7013, %v6959
      %v7026 = vmul.f32 %v7013, %v6960
      %v7027 = vmul.f32 %v7013, %v6961
      %v7028 = vmul.f32 %v7013, %v6962
      %v7029 = vmul.f32 %v7013, %v6963
      %v7030 = vmul.f32 %v7013, %v6964
      %v7031 = vmul.f32 %v7013, %v6965
      %v7032 = vmul.f32 %v7013, %v6966
      %v7033 = vmul.f32 %v7013, %v6967
      %v7034 = vmul.f32 %v7013, %v6968
      %v7035 = vmul.f32 %v7013, %v6969
      %v7036 = vmul.f32 %v7013, %v6970
      %v7037 = vmul.f32 %v7013, %v6971
      %v7038 = vmul.f32 %v7013, %v6972
      %v7039 = vmul.f32 %v7013, %v6973
      %v7040 = vmul.f32 %v7013, %v6974
      %v7041 = vmul.f32 %v7018, %v6975
      %v7042 = vmul.f32 %v7018, %v6976
      %v7043 = vmul.f32 %v7018, %v6977
      %v7044 = vmul.f32 %v7018, %v6978
      %v7045 = vmul.f32 %v7018, %v6979
      %v7046 = vmul.f32 %v7018, %v6980
      %v7047 = vmul.f32 %v7018, %v6981
      %v7048 = vmul.f32 %v7018, %v6982
      %v7049 = vmul.f32 %v7018, %v6983
      %v7050 = vmul.f32 %v7018, %v6984
      %v7051 = vmul.f32 %v7018, %v6985
      %v7052 = vmul.f32 %v7018, %v6986
      %v7053 = vmul.f32 %v7018, %v6987
      %v7054 = vmul.f32 %v7018, %v6988
      %v7055 = vmul.f32 %v7018, %v6989
      %v7056 = vmul.f32 %v7018, %v6990
      %v7057 = vmul.f32 %v7023, %v6991
      %v7058 = vmul.f32 %v7023, %v6992
      %v7059 = vmul.f32 %v7023, %v6993
      %v7060 = vmul.f32 %v7023, %v6994
      %v7061 = vmul.f32 %v7023, %v6995
      %v7062 = vmul.f32 %v7023, %v6996
      %v7063 = vmul.f32 %v7023, %v6997
      %v7064 = vmul.f32 %v7023, %v6998
      %v7065 = vmul.f32 %v7023, %v6999
      %v7066 = vmul.f32 %v7023, %v7000
      %v7067 = vmul.f32 %v7023, %v7001
      %v7068 = vmul.f32 %v7023, %v7002
      %v7069 = vmul.f32 %v7023, %v7003
      %v7070 = vmul.f32 %v7023, %v7004
      %v7071 = vmul.f32 %v7023, %v7005
      %v7072 = vmul.f32 %v7023, %v7006
      %v7073 = vadd.f32 %v7025, %v7041
      %vm7074 = vcmask 1043456
      %v7075 = vsel %vm7074, %v7057, 0.0
      %v7076 = vadd.f32 %v7073, %v7075
      %v7077 = vrot.slane %v7076, 4
      %v7078 = vadd.f32 %v7076, %v7077
      %v7079 = vrot.slane %v7078, 2
      %v7080 = vadd.f32 %v7078, %v7079
      %v7081 = vrot.slane %v7080, 1
      %v7082 = vadd.f32 %v7080, %v7081
      %v7083 = vadd.f32 %v7026, %v7042
      %v7084 = vsel %vm7074, %v7058, 0.0
      %v7085 = vadd.f32 %v7083, %v7084
      %v7086 = vrot.slane %v7085, 4
      %v7087 = vadd.f32 %v7085, %v7086
      %v7088 = vrot.slane %v7087, 2
      %v7089 = vadd.f32 %v7087, %v7088
      %v7090 = vrot.slane %v7089, 1
      %v7091 = vadd.f32 %v7089, %v7090
      %v7092 = vadd.f32 %v7027, %v7043
      %v7093 = vsel %vm7074, %v7059, 0.0
      %v7094 = vadd.f32 %v7092, %v7093
      %v7095 = vrot.slane %v7094, 4
      %v7096 = vadd.f32 %v7094, %v7095
      %v7097 = vrot.slane %v7096, 2
      %v7098 = vadd.f32 %v7096, %v7097
      %v7099 = vrot.slane %v7098, 1
      %v7100 = vadd.f32 %v7098, %v7099
      %v7101 = vadd.f32 %v7028, %v7044
      %v7102 = vsel %vm7074, %v7060, 0.0
      %v7103 = vadd.f32 %v7101, %v7102
      %v7104 = vrot.slane %v7103, 4
      %v7105 = vadd.f32 %v7103, %v7104
      %v7106 = vrot.slane %v7105, 2
      %v7107 = vadd.f32 %v7105, %v7106
      %v7108 = vrot.slane %v7107, 1
      %v7109 = vadd.f32 %v7107, %v7108
      %v7110 = vadd.f32 %v7029, %v7045
      %v7111 = vsel %vm7074, %v7061, 0.0
      %v7112 = vadd.f32 %v7110, %v7111
      %v7113 = vrot.slane %v7112, 4
      %v7114 = vadd.f32 %v7112, %v7113
      %v7115 = vrot.slane %v7114, 2
      %v7116 = vadd.f32 %v7114, %v7115
      %v7117 = vrot.slane %v7116, 1
      %v7118 = vadd.f32 %v7116, %v7117
      %v7119 = vadd.f32 %v7030, %v7046
      %v7120 = vsel %vm7074, %v7062, 0.0
      %v7121 = vadd.f32 %v7119, %v7120
      %v7122 = vrot.slane %v7121, 4
      %v7123 = vadd.f32 %v7121, %v7122
      %v7124 = vrot.slane %v7123, 2
      %v7125 = vadd.f32 %v7123, %v7124
      %v7126 = vrot.slane %v7125, 1
      %v7127 = vadd.f32 %v7125, %v7126
      %v7128 = vadd.f32 %v7031, %v7047
      %v7129 = vsel %vm7074, %v7063, 0.0
      %v7130 = vadd.f32 %v7128, %v7129
      %v7131 = vrot.slane %v7130, 4
      %v7132 = vadd.f32 %v7130, %v7131
      %v7133 = vrot.slane %v7132, 2
      %v7134 = vadd.f32 %v7132, %v7133
      %v7135 = vrot.slane %v7134, 1
      %v7136 = vadd.f32 %v7134, %v7135
      %v7137 = vadd.f32 %v7032, %v7048
      %v7138 = vsel %vm7074, %v7064, 0.0
      %v7139 = vadd.f32 %v7137, %v7138
      %v7140 = vrot.slane %v7139, 4
      %v7141 = vadd.f32 %v7139, %v7140
      %v7142 = vrot.slane %v7141, 2
      %v7143 = vadd.f32 %v7141, %v7142
      %v7144 = vrot.slane %v7143, 1
      %v7145 = vadd.f32 %v7143, %v7144
      %v7146 = vadd.f32 %v7033, %v7049
      %v7147 = vsel %vm7074, %v7065, 0.0
      %v7148 = vadd.f32 %v7146, %v7147
      %v7149 = vrot.slane %v7148, 4
      %v7150 = vadd.f32 %v7148, %v7149
      %v7151 = vrot.slane %v7150, 2
      %v7152 = vadd.f32 %v7150, %v7151
      %v7153 = vrot.slane %v7152, 1
      %v7154 = vadd.f32 %v7152, %v7153
      %v7155 = vadd.f32 %v7034, %v7050
      %v7156 = vsel %vm7074, %v7066, 0.0
      %v7157 = vadd.f32 %v7155, %v7156
      %v7158 = vrot.slane %v7157, 4
      %v7159 = vadd.f32 %v7157, %v7158
      %v7160 = vrot.slane %v7159, 2
      %v7161 = vadd.f32 %v7159, %v7160
      %v7162 = vrot.slane %v7161, 1
      %v7163 = vadd.f32 %v7161, %v7162
      %v7164 = vadd.f32 %v7035, %v7051
      %v7165 = vsel %vm7074, %v7067, 0.0
      %v7166 = vadd.f32 %v7164, %v7165
      %v7167 = vrot.slane %v7166, 4
      %v7168 = vadd.f32 %v7166, %v7167
      %v7169 = vrot.slane %v7168, 2
      %v7170 = vadd.f32 %v7168, %v7169
      %v7171 = vrot.slane %v7170, 1
      %v7172 = vadd.f32 %v7170, %v7171
      %v7173 = vadd.f32 %v7036, %v7052
      %v7174 = vsel %vm7074, %v7068, 0.0
      %v7175 = vadd.f32 %v7173, %v7174
      %v7176 = vrot.slane %v7175, 4
      %v7177 = vadd.f32 %v7175, %v7176
      %v7178 = vrot.slane %v7177, 2
      %v7179 = vadd.f32 %v7177, %v7178
      %v7180 = vrot.slane %v7179, 1
      %v7181 = vadd.f32 %v7179, %v7180
      %v7182 = vadd.f32 %v7037, %v7053
      %v7183 = vsel %vm7074, %v7069, 0.0
      %v7184 = vadd.f32 %v7182, %v7183
      %v7185 = vrot.slane %v7184, 4
      %v7186 = vadd.f32 %v7184, %v7185
      %v7187 = vrot.slane %v7186, 2
      %v7188 = vadd.f32 %v7186, %v7187
      %v7189 = vrot.slane %v7188, 1
      %v7190 = vadd.f32 %v7188, %v7189
      %v7191 = vadd.f32 %v7038, %v7054
      %v7192 = vsel %vm7074, %v7070, 0.0
      %v7193 = vadd.f32 %v7191, %v7192
      %v7194 = vrot.slane %v7193, 4
      %v7195 = vadd.f32 %v7193, %v7194
      %v7196 = vrot.slane %v7195, 2
      %v7197 = vadd.f32 %v7195, %v7196
      %v7198 = vrot.slane %v7197, 1
      %v7199 = vadd.f32 %v7197, %v7198
      %v7200 = vadd.f32 %v7039, %v7055
      %v7201 = vsel %vm7074, %v7071, 0.0
      %v7202 = vadd.f32 %v7200, %v7201
      %v7203 = vrot.slane %v7202, 4
      %v7204 = vadd.f32 %v7202, %v7203
      %v7205 = vrot.slane %v7204, 2
      %v7206 = vadd.f32 %v7204, %v7205
      %v7207 = vrot.slane %v7206, 1
      %v7208 = vadd.f32 %v7206, %v7207
      %v7209 = vadd.f32 %v7040, %v7056
      %v7210 = vsel %vm7074, %v7072, 0.0
      %v7211 = vadd.f32 %v7209, %v7210
      %v7212 = vrot.slane %v7211, 4
      %v7213 = vadd.f32 %v7211, %v7212
      %v7214 = vrot.slane %v7213, 2
      %v7215 = vadd.f32 %v7213, %v7214
      %v7216 = vrot.slane %v7215, 1
      %v7217 = vadd.f32 %v7215, %v7216
      %v7218 = vld [vmem:[#allocation2] sm:$0x1]
      %7220 = vset.pattern.permute.xlu0 0
      %7221 = vperm.xlu0 %7220, %v7218
      %v7222 = vpop.permute.xlu0 %7221
      %v7224 = vlaneseq
      %v7225 = vshrl.u32 %v7224, 7
      %v7226 = vsub.s32 0, %v7225
      %v7227 = vrot.slane %v7222, %v7226
      %v7228 = vadd.f32 %v7082, %v7227
      %v7229 = vadd.f32 %v7091, %v7227
      %v7230 = vadd.f32 %v7100, %v7227
      %v7231 = vadd.f32 %v7109, %v7227
      %v7232 = vadd.f32 %v7118, %v7227
      %v7233 = vadd.f32 %v7127, %v7227
      %v7234 = vadd.f32 %v7136, %v7227
      %v7235 = vadd.f32 %v7145, %v7227
      %v7236 = vadd.f32 %v7154, %v7227
      %v7237 = vadd.f32 %v7163, %v7227
      %v7238 = vadd.f32 %v7172, %v7227
      %v7239 = vadd.f32 %v7181, %v7227
      %v7240 = vadd.f32 %v7190, %v7227
      %v7241 = vadd.f32 %v7199, %v7227
      %v7242 = vadd.f32 %v7208, %v7227
      %v7243 = vadd.f32 %v7217, %v7227
      %v7260 = vcombine.low %v7228, %v7229
      %v7261 = vcombine.low %v7230, %v7231
      %v7262 = vcombine.low %v7232, %v7233
      %v7263 = vcombine.low %v7234, %v7235
      %v7265 = vunpack.c.l.s4 1966171168
      %v7266 = vunpack.c.0.s8 %v7265
      %v7267 = vlaneseq
      %v7268 = vshrl.u32 %v7267, 7
      %v7269 = vsub.s32 %v7266, %v7268
      %v7270 = vrot.slane %v7260, %v7269
      %v7272 = vunpack.c.l.s4 1966171168
      %v7273 = vunpack.c.0.s8 %v7272
      %v7274 = vlaneseq
      %v7275 = vshrl.u32 %v7274, 7
      %v7276 = vsub.s32 %v7273, %v7275
      %v7277 = vrot.slane %v7261, %v7276
      %v7279 = vunpack.c.l.s4 1966171168
      %v7280 = vunpack.c.0.s8 %v7279
      %v7281 = vlaneseq
      %v7282 = vshrl.u32 %v7281, 7
      %v7283 = vsub.s32 %v7280, %v7282
      %v7284 = vrot.slane %v7262, %v7283
      %v7286 = vunpack.c.l.s4 1966171168
      %v7287 = vunpack.c.0.s8 %v7286
      %v7288 = vlaneseq
      %v7289 = vshrl.u32 %v7288, 7
      %v7290 = vsub.s32 %v7287, %v7289
      %v7291 = vrot.slane %v7263, %v7290
      %v7292 = vcombine.low %v7270, %v7277
      %v7293 = vcombine.low %v7284, %v7291
      %v7295 = vunpack.c.l.s4 1966171168
      %v7296 = vunpack.c.0.s8 %v7295
      %v7297 = vlaneseq
      %v7298 = vshrl.u32 %v7297, 7
      %v7299 = vsub.s32 %v7296, %v7298
      %v7300 = vrot.slane %v7292, %v7299
      %v7302 = vunpack.c.l.s4 1966171168
      %v7303 = vunpack.c.0.s8 %v7302
      %v7304 = vlaneseq
      %v7305 = vshrl.u32 %v7304, 7
      %v7306 = vsub.s32 %v7303, %v7305
      %v7307 = vrot.slane %v7293, %v7306
      %v7308 = vcombine.low %v7300, %v7307
      %v7309 = vcombine.low %v7236, %v7237
      %v7310 = vcombine.low %v7238, %v7239
      %v7311 = vcombine.low %v7240, %v7241
      %v7312 = vcombine.low %v7242, %v7243
      %v7314 = vunpack.c.l.s4 1966171168
      %v7315 = vunpack.c.0.s8 %v7314
      %v7316 = vlaneseq
      %v7317 = vshrl.u32 %v7316, 7
      %v7318 = vsub.s32 %v7315, %v7317
      %v7319 = vrot.slane %v7309, %v7318
      %v7321 = vunpack.c.l.s4 1966171168
      %v7322 = vunpack.c.0.s8 %v7321
      %v7323 = vlaneseq
      %v7324 = vshrl.u32 %v7323, 7
      %v7325 = vsub.s32 %v7322, %v7324
      %v7326 = vrot.slane %v7310, %v7325
      %v7328 = vunpack.c.l.s4 1966171168
      %v7329 = vunpack.c.0.s8 %v7328
      %v7330 = vlaneseq
      %v7331 = vshrl.u32 %v7330, 7
      %v7332 = vsub.s32 %v7329, %v7331
      %v7333 = vrot.slane %v7311, %v7332
      %v7335 = vunpack.c.l.s4 1966171168
      %v7336 = vunpack.c.0.s8 %v7335
      %v7337 = vlaneseq
      %v7338 = vshrl.u32 %v7337, 7
      %v7339 = vsub.s32 %v7336, %v7338
      %v7340 = vrot.slane %v7312, %v7339
      %v7341 = vcombine.low %v7319, %v7326
      %v7342 = vcombine.low %v7333, %v7340
      %v7344 = vunpack.c.l.s4 1966171168
      %v7345 = vunpack.c.0.s8 %v7344
      %v7346 = vlaneseq
      %v7347 = vshrl.u32 %v7346, 7
      %v7348 = vsub.s32 %v7345, %v7347
      %v7349 = vrot.slane %v7341, %v7348
      %v7351 = vunpack.c.l.s4 1966171168
      %v7352 = vunpack.c.0.s8 %v7351
      %v7353 = vlaneseq
      %v7354 = vshrl.u32 %v7353, 7
      %v7355 = vsub.s32 %v7352, %v7354
      %v7356 = vrot.slane %v7342, %v7355
      %v7357 = vcombine.low %v7349, %v7356
      %7360 = vst [vmem:[%s280] sm:$0xff] %v7308
      %7361 = vst [vmem:[%s280 + $0x8] sm:$0xff] %v7357
      %s7362 = smul.u32 16, %s20
      %p7363 = scmp.lt.s32.totalorder %s7362, 31
      %s7364 = scalar_select %p7363, %s7362, 31
      %s7365 = scalar_lea.vmem %s7, %s7364
      // Predicated region
      $region49: #{_pinn_w_forward.1} parent=47 // pred_check
        %p7366 = pneg %p190
      $region50: #{_pinn_w_forward.1} parent=47 // pred_check_branch
        %7368 = sbr.rel (%p7366) target = $region52
      $region51: #{_pinn_w_forward.1} parent=47 // pred_region
        %s7369 = smul.u32 16, %s20
      $region52: #{_pinn_w_forward.1} parent=47 // pred_fallthru
        _
    $region48: #{_pinn_w_forward.1} parent=5 // pred_fallthru
      _
    %p7370 = scmp.le.s32.totalorder 2, %s15
    // Predicated region
    $region53: #{_pinn_w_forward.1} parent=5 // pred_check
      %p7371 = pneg %p7370
    $region54: #{_pinn_w_forward.1} parent=5 // pred_check_branch
      %7373 = sbr.rel (%p7371) target = $region56
    $region55: #{_pinn_w_forward.1} parent=5 // pred_region
      %s7374 = ssub.s32 %s15, 2
      // Predicated region
      $region57: #{_pinn_w_forward.1} parent=55 // pred_check
        %p7375 = pneg %p196
      $region58: #{_pinn_w_forward.1} parent=55 // pred_check_branch
        %7377 = sbr.rel (%p7375) target = $region60
      $region59: #{_pinn_w_forward.1} parent=55 // pred_region
        %s7378 = smul.u32 16, %s21
        %p7379 = scmp.lt.s32.totalorder %s7378, 31
        %s7380 = scalar_select %p7379, %s7378, 31
        %s7381 = scalar_lea.vmem %s7, %s7380
      $region60: #{_pinn_w_forward.1} parent=55 // pred_fallthru
        _
    $region56: #{_pinn_w_forward.1} parent=5 // pred_fallthru
      _
  $region6: #{_pinn_w_forward.1} parent=0 // loop_footer
    %s19 = sadd.s32 1, %s15
  $region7: #{_pinn_w_forward.1} parent=0 // loop_footer_branch
    %14 = sbr.rel target = $region3
  $region8: #{_pinn_w_forward.1} parent=0 // loop_exit
    _

</llo_original>
